<compile_context>
chip_gen: v7x
topology: tpu7x:2x2x1
jax: 0.10.0
libtpu: 0.0.40
codegen_flags: <defaults>
</compile_context>

<pallas_src>
import functools

import jax
import jax.numpy as jnp
import numpy as np
from jax import lax
from jax.experimental import pallas as pl
from jax.experimental.pallas import tpu as pltpu

EPS = 1e-5


# ----------------------------- Pallas kernels ------------------------------
def l1_fused_kernel(z_ref, w_ref, sel_ref, selt_ref, g_ref, b_ref, o_ref, *, count):
    # ConvTranspose2d(nz, C1, 7, 1, 0) on a 1x1 input (== matmul, bf16 operands)
    # fused with training-mode BatchNorm2d + ReLU.  Output columns are
    # (oy, ox, channel); per-channel pooling over the 49 spatial positions uses
    # tiny 0/1 selection matmuls so no in-kernel reshape is needed.
    y = jnp.dot(z_ref[...], w_ref[...], preferred_element_type=jnp.float32)
    colsum = jnp.sum(y, axis=0, keepdims=True)                    # (1, 49*C1)
    colsq = jnp.sum(y * y, axis=0, keepdims=True)
    ch_sum = jnp.dot(colsum, sel_ref[...], preferred_element_type=jnp.float32)
    ch_sq = jnp.dot(colsq, sel_ref[...], preferred_element_type=jnp.float32)
    inv_n = 1.0 / count
    mean = ch_sum * inv_n                                         # (1, C1)
    # NOTE: single-pass E[y^2]-E[y]^2 in f32 (matches previous validated version).
    var = ch_sq * inv_n - mean * mean
    scale = lax.rsqrt(var + EPS)
    mean_t = jnp.dot(mean, selt_ref[...], preferred_element_type=jnp.float32)
    scale_t = jnp.dot(scale, selt_ref[...], preferred_element_type=jnp.float32)
    yn = (y - mean_t) * scale_t * g_ref[...] + b_ref[...]
    o_ref[...] = jnp.maximum(yn, 0.0).astype(o_ref.dtype)


def conv_bn_relu_kernel(x_ref, w_ref, m_ref, g_ref, b_ref, sel_ref, selt_ref,
                        o_ref, y_ref, st_ref, *,
                        offsets, tr, win, inv_count, num_blocks):
    # Fused sub-pixel ConvTranspose2d(k=4,s=2,p=1) + training-mode BN + ReLU.
    # x_ref: (R_pad + 2G, Cin) bf16, fully resident (flattened padded feature map)
    # w_ref: (9, Cin, 4*Cout) bf16 per-tap weights
    # m_ref: (tr, 1) f32 validity mask block (zeros garbage / padded rows)
    # o_ref: (R_pad, 4*Cout) bf16, whole-output resident, written in final step
    # y_ref: (num_blocks, tr, 4*Cout) f32 scratch (pre-BN activations)
    # st_ref: (2, 4*Cout) f32 scratch (per-column sum / sum-of-squares)
    i = pl.program_id(0)

    @pl.when(i == 0)
    def _init():
        st_ref[...] = jnp.zeros_like(st_ref)

    ncol = w_ref.shape[2]
    r0 = pl.multiple_of(i * tr, tr)
    xb = x_ref[pl.ds(r0, win), :]                      # aligned dynamic window load
    acc = jnp.zeros((tr, ncol), jnp.float32)
    for t, off in enumerate(offsets):                  # 9 taps, unrolled
        xt = xb[off:off + tr, :]                       # static in-VMEM tap slice
        acc = acc + jnp.dot(xt, w_ref[t], preferred_element_type=jnp.float32)
    acc = acc * m_ref[...]                             # zero invalid rows -> clean stats
    y_ref[i] = acc
    st_ref[...] = st_ref[...] + jnp.concatenate(
        [jnp.sum(acc, axis=0, keepdims=True),
         jnp.sum(acc * acc, axis=0, keepdims=True)], axis=0)

    @pl.when(i == pl.num_programs(0) - 1)
    def _finalize():
        # Pool the 4 sub-pixel phase column-groups per channel with 0/1 matmuls.
        mean = jnp.dot(st_ref[0:1, :], sel_ref[...],
                       preferred_element_type=jnp.float32) * inv_count   # (1, Cout)
        ex2 = jnp.dot(st_ref[1:2, :], sel_ref[...],
                      preferred_element_type=jnp.float32) * inv_count
        var = ex2 - mean * mean
        scale = g_ref[...] * lax.rsqrt(var + EPS)
        bias = b_ref[...] - mean * scale
        scale_row = jnp.dot(scale, selt_ref[...], preferred_element_type=jnp.float32)
        bias_row = jnp.dot(bias, selt_ref[...], preferred_element_type=jnp.float32)
        for k in range(num_blocks):                    # normalize the resident y
            yk = y_ref[k]
            o_ref[k * tr:(k + 1) * tr, :] = jnp.maximum(
                yk * scale_row + bias_row, 0.0).astype(o_ref.dtype)


def conv_tanh_kernel(x_ref, w_ref, o_ref, *, offsets, tr, win):
    # Final sub-pixel ConvTranspose2d + Tanh.  Output is transposed
    # (ncol=4, tr) so stores are lane-dense (tr >= 128 lanes).
    ncol = w_ref.shape[1]
    r0 = pl.multiple_of(pl.program_id(0) * tr, tr)
    xb = x_ref[pl.ds(r0, win), :]
    acc = jnp.zeros((ncol, tr), jnp.float32)
    for t, off in enumerate(offsets):
        xt = xb[off:off + tr, :]                       # (tr, Cin) bf16
        acc = acc + lax.dot_general(                   # (ncol, Cin) x (tr, Cin)^T
            w_ref[t], xt, (((1,), (1,)), ((), ())),
            preferred_element_type=jnp.float32)
    o_ref[...] = jnp.tanh(acc).astype(o_ref.dtype)


# ------------------------------ helpers --------------------------------------
def _round_up(x, m):
    return (x + m - 1) // m * m


def _row_tiling(rows, max_tile=1024):
    # Row tiles are multiples of 128 (lane-dense layer-3 blocks) and divide the
    # padded row count exactly; >= 2 grid steps whenever the size allows it.
    r128 = _round_up(rows, 128)
    if r128 > max_tile:
        rows_p = _round_up(rows, max_tile)
        return max_tile, rows_p, rows_p // max_tile
    if r128 % 256 == 0:
        return r128 // 2, r128, 2
    return r128, r128, 1


# 3x3 tap offset -> transposed-conv kernel index, per output phase (0=even, 1=odd).
_PHASE_TAPS = {0: {0: 3, 1: 1}, 1: {1: 2, 2: 0}}


def _subpixel_weight(w):
    # PyTorch ConvTranspose2d weight (Cin, Cout, 4, 4), stride=2, padding=1
    # -> effective matmul weight (9*Cin, 4*Cout) for the 3x3 sub-pixel patches.
    cin, cout = w.shape[0], w.shape[1]
    weff = jnp.zeros((3, 3, cin, 2, 2, cout), w.dtype)
    for py in (0, 1):
        for px in (0, 1):
            for dy, ky in _PHASE_TAPS[py].items():
                for dx, kx in _PHASE_TAPS[px].items():
                    weff = weff.at[dy, dx, :, py, px, :].set(w[:, :, ky, kx])
    return weff.reshape(9 * cin, 4 * cout)


def _prep_rows(x, tr, rows_pad, guard):
    # Spatial 1-pad + flatten + guard/row padding, fused by XLA into one copy.
    B, H, W, Cin = x.shape
    Hp, Wp = H + 2, W + 2
    R = B * Hp * Wp
    x2 = jnp.pad(x.astype(jnp.bfloat16),
                 ((0, 0), (1, 1), (1, 1), (0, 0))).reshape(R, Cin)
    return jnp.pad(x2, ((guard, rows_pad - R + guard), (0, 0)))


# ------------------------------ layer wrappers -------------------------------
def _layer1_fused(z, w1, gamma, beta):
    # z: (B, nz); w1: (nz, C1, 7, 7) f32  -> (B, 7, 7, C1) bf16.
    B, nz = z.shape
    C1 = w1.shape[1]
    w1m = jnp.transpose(w1, (0, 2, 3, 1)).reshape(nz, 49 * C1)   # cols = (oy, ox, c)
    sel = jnp.tile(jnp.eye(C1, dtype=jnp.float32), (49, 1))      # (49*C1, C1)
    selt = sel.T                                                 # (C1, 49*C1)
    g_row = jnp.tile(gamma.astype(jnp.float32), 49)[None, :]
    b_row = jnp.tile(beta.astype(jnp.float32), 49)[None, :]

    kern = functools.partial(l1_fused_kernel, count=float(B * 49))
    y = pl.pallas_call(
        kern,
        out_shape=jax.ShapeDtypeStruct((B, 49 * C1), jnp.bfloat16),
        in_specs=[pl.BlockSpec(memory_space=pltpu.MemorySpace.VMEM)] * 6,
        out_specs=pl.BlockSpec(memory_space=pltpu.MemorySpace.VMEM),
    )(z.astype(jnp.bfloat16), w1m.astype(jnp.bfloat16), sel, selt, g_row, b_row)
    return y.reshape(B, 7, 7, C1)


def _conv_subpixel_bn_relu(x, w, gamma, beta):
    # x: (B, H, W, Cin) bf16; w: (Cin, Cout, 4, 4) f32 -> (B, 2H, 2W, Cout) bf16.
    B, H, W, Cin = x.shape
    Cout = w.shape[1]
    Hp, Wp, ncol = H + 2, W + 2, 4 * Cout
    R = B * Hp * Wp
    tr, rows_pad, gsteps = _row_tiling(R)
    guard = _round_up(Wp + 1, 8)
    win = tr + 2 * guard
    rows_g = rows_pad + 2 * guard

    x2g = _prep_rows(x, tr, rows_pad, guard)
    w9 = _subpixel_weight(w).reshape(9, Cin, ncol).astype(jnp.bfloat16)

    # Validity mask: rows of the padded output grid that map to real pixels.
    idx = jnp.arange(rows_pad, dtype=jnp.int32)
    ii = (idx % (Hp * Wp)) // Wp
    jj = idx % Wp
    valid = (idx < R) & (ii >= 1) & (ii <= H) & (jj >= 1) & (jj <= W)
    mask = valid.astype(jnp.float32)[:, None]

    sel = jnp.tile(jnp.eye(Cout, dtype=jnp.float32), (4, 1))     # (4*Cout, Cout)
    selt = sel.T
    g_row = gamma.astype(jnp.float32)[None, :]
    b_row = beta.astype(jnp.float32)[None, :]

    offsets = tuple(guard + (dy - 1) * Wp + (dx - 1)
                    for dy in range(3) for dx in range(3))
    kern = functools.partial(conv_bn_relu_kernel, offsets=offsets, tr=tr, win=win,
                             inv_count=1.0 / float(4 * B * H * W),
                             num_blocks=gsteps)

    y = pl.pallas_call(
        kern,
        out_shape=jax.ShapeDtypeStruct((rows_pad, ncol), jnp.bfloat16),
        grid=(gsteps,),
        in_specs=[
            pl.BlockSpec((rows_g, Cin), lambda i: (0, 0)),       # resident input
            pl.BlockSpec((9, Cin, ncol), lambda i: (0, 0, 0)),   # resident weights
            pl.BlockSpec((tr, 1), lambda i: (i, 0)),             # mask blocks
            pl.BlockSpec((1, Cout), lambda i: (0, 0)),
            pl.BlockSpec((1, Cout), lambda i: (0, 0)),
            pl.BlockSpec((ncol, Cout), lambda i: (0, 0)),
            pl.BlockSpec((Cout, ncol), lambda i: (0, 0)),
        ],
        out_specs=pl.BlockSpec((rows_pad, ncol), lambda i: (0, 0)),  # resident out
        scratch_shapes=[pltpu.VMEM((gsteps, tr, ncol), jnp.float32),
                        pltpu.VMEM((2, ncol), jnp.float32)],
        compiler_params=pltpu.CompilerParams(
            dimension_semantics=("arbitrary",),
            vmem_limit_bytes=64 * 1024 * 1024),
    )(x2g, w9, mask, g_row, b_row, sel, selt)

    # Drop padded-grid borders, pixel-shuffle phases (single fused XLA copy).
    y = y[:R].reshape(B, Hp, Wp, 2, 2, Cout)[:, 1:H + 1, 1:W + 1]
    return y.transpose(0, 1, 3, 2, 4, 5).reshape(B, 2 * H, 2 * W, Cout)


def _conv_subpixel_tanh(x, w):
    # x: (B, H, W, Cin) bf16; w: (Cin, 1, 4, 4) f32 -> (B, 1, 2H, 2W) f32.
    B, H, W, Cin = x.shape
    Cout = w.shape[1]                     # == 1
    Hp, Wp, ncol = H + 2, W + 2, 4 * Cout
    R = B * Hp * Wp
    tr, rows_pad, gsteps = _row_tiling(R)
    guard = _round_up(Wp + 1, 8)
    win = tr + 2 * guard
    rows_g = rows_pad + 2 * guard

    x2g = _prep_rows(x, tr, rows_pad, guard)
    # Pre-transposed per-tap weights -> lane-dense (ncol, tr) output blocks.
    w9t = _subpixel_weight(w).reshape(9, Cin, ncol).transpose(0, 2, 1)
    w9t = w9t.astype(jnp.bfloat16)

    offsets = tuple(guard + (dy - 1) * Wp + (dx - 1)
                    for dy in range(3) for dx in range(3))
    kern = functools.partial(conv_tanh_kernel, offsets=offsets, tr=tr, win=win)

    y = pl.pallas_call(
        kern,
        out_shape=jax.ShapeDtypeStruct((ncol, rows_pad), jnp.float32),
        grid=(gsteps,),
        in_specs=[pl.BlockSpec((rows_g, Cin), lambda i: (0, 0)),
                  pl.BlockSpec((9, ncol, Cin), lambda i: (0, 0, 0))],
        out_specs=pl.BlockSpec((ncol, tr), lambda i: (0, i)),
        compiler_params=pltpu.CompilerParams(
            dimension_semantics=("parallel",),
            vmem_limit_bytes=64 * 1024 * 1024),
    )(x2g, w9t)

    # Rows of y are (py, px) phases (Cout == 1); assemble the image and the
    # NCHW output in one XLA epilogue (the channel dim is a pure reshape).
    img = y[:, :R].reshape(2, 2, B, Hp, Wp)[:, :, :, 1:H + 1, 1:W + 1]
    img = img.transpose(2, 3, 0, 4, 1).reshape(B, 2 * H, 2 * W)
    return img[:, None, :, :]


# ------------------------------ NetG forward --------------------------------
def netg_forward(x_nchw, params):
    B, nz = x_nchw.shape[0], x_nchw.shape[1]
    z = x_nchw.reshape(B, nz).astype(jnp.float32)

    # Layer 1: ConvTranspose2d(nz, 2*ngf, 7, 1, 0) + BN + ReLU -> (B, 7, 7, 2*ngf)
    y = _layer1_fused(z, params["w1"], params["g1"], params["b1"])
    # Layer 2: ConvTranspose2d(2*ngf, ngf, 4, 2, 1) + BN + ReLU -> (B, 14, 14, ngf)
    y = _conv_subpixel_bn_relu(y, params["w2"], params["g2"], params["b2"])
    # Layer 3: ConvTranspose2d(ngf, 1, 4, 2, 1) + Tanh -> (B, 1, 28, 28)
    return _conv_subpixel_tanh(y, params["w3"])


# --------------------- independent pure-JAX reference -----------------------
def _ref_convtranspose2d(x, w, stride, padding):
    B, Cin, H, W = x.shape
    Cout, K = w.shape[1], w.shape[2]
    OH = (H - 1) * stride - 2 * padding + K
    OW = (W - 1) * stride - 2 * padding + K
    full = jnp.zeros((B, Cout, OH + 2 * padding, OW + 2 * padding), jnp.float32)
    for iy in range(H):
        for ix in range(W):
            contrib = jnp.einsum("bc,cokl->bokl", x[:, :, iy, ix], w,
                                 precision=lax.Precision.HIGHEST)
            full = full.at[:, :, iy * stride:iy * stride + K,
                           ix * stride:ix * stride + K].add(contrib)
    return full[:, :, padding:padding + OH, padding:padding + OW]


def _ref_bn_relu(x, g, b):
    mean = x.mean(axis=(0, 2, 3), keepdims=True)
    var = jnp.square(x - mean).mean(axis=(0, 2, 3), keepdims=True)
    xn = (x - mean) * lax.rsqrt(var + EPS)
    return jnp.maximum(xn * g.reshape(1, -1, 1, 1) + b.reshape(1, -1, 1, 1), 0.0)


def ref_netg(x, params):
    y = _ref_convtranspose2d(x, params["w1"], 1, 0)
    y = _ref_bn_relu(y, params["g1"], params["b1"])
    y = _ref_convtranspose2d(y, params["w2"], 2, 1)
    y = _ref_bn_relu(y, params["g2"], params["b2"])
    y = _ref_convtranspose2d(y, params["w3"], 2, 1)
    return jnp.tanh(y)


# --------------------------------- main --------------------------------------
if __name__ == "__main__":
    B, NZ, NGF = 2, 16, 8          # small stand-ins for opt.nz=100 / opt.ngf=64
    C1, C2 = NGF * 2, NGF
    key = jax.random.PRNGKey(0)
    k1, k2, k3, kg1, kb1, kg2, kb2, kz = jax.random.split(key, 8)
    params = {
        # ConvTranspose2d weights: (in_channels, out_channels, kH, kW), bias=False
        "w1": 0.02 * jax.random.normal(k1, (NZ, C1, 7, 7), jnp.float32),
        "w2": 0.02 * jax.random.normal(k2, (C1, C2, 4, 4), jnp.float32),
        "w3": 0.02 * jax.random.normal(k3, (C2, 1, 4, 4), jnp.float32),
        # BatchNorm2d affine params (perturbed to exercise the affine path)
        "g1": 1.0 + 0.1 * jax.random.normal(kg1, (C1,), jnp.float32),
        "b1": 0.1 * jax.random.normal(kb1, (C1,), jnp.float32),
        "g2": 1.0 + 0.1 * jax.random.normal(kg2, (C2,), jnp.float32),
        "b2": 0.1 * jax.random.normal(kb2, (C2,), jnp.float32),
    }
    x = jax.random.normal(kz, (B, NZ, 1, 1), jnp.float32)   # NCHW, like PyTorch

    out = jax.block_until_ready(jax.jit(netg_forward)(x, params))
    assert out.shape == (B, 1, 28, 28), out.shape

    ref = jax.block_until_ready(ref_netg(x, params))
    max_err = float(np.max(np.abs(np.asarray(out) - np.asarray(ref))))
    # bf16 MXU operands on all three layers -> ~1e-2-level absolute error budget.
    assert max_err < 3e-2, max_err

    print("KERNEL_OK")
</pallas_src>

<mosaic_0001>
module attributes {stable_mosaic.version = 11 : i64} {
  func.func @l1_fused_kernel(%arg0: memref<2x16xbf16, #tpu.memory_space<vmem>>, %arg1: memref<16x784xbf16, #tpu.memory_space<vmem>>, %arg2: memref<784x16xf32, #tpu.memory_space<vmem>>, %arg3: memref<16x784xf32, #tpu.memory_space<vmem>>, %arg4: memref<1x784xf32, #tpu.memory_space<vmem>>, %arg5: memref<1x784xf32, #tpu.memory_space<vmem>>, %arg6: memref<2x784xbf16, #tpu.memory_space<vmem>>) attributes {dimension_semantics = [], scalar_prefetch = 0 : i64, scratch_operands = 0 : i64, tpu.core_type = #tpu.core_type<tc>} {
    %c0 = arith.constant 0 : index
    %c0_0 = arith.constant 0 : index
    %0 = vector.load %arg0[%c0, %c0_0] : memref<2x16xbf16, #tpu.memory_space<vmem>>, vector<2x16xbf16>
    %c0_1 = arith.constant 0 : index
    %c0_2 = arith.constant 0 : index
    %1 = vector.load %arg1[%c0_1, %c0_2] : memref<16x784xbf16, #tpu.memory_space<vmem>>, vector<16x784xbf16>
    %cst = arith.constant dense<0.000000e+00> : vector<2x784xf32>
    %2 = tpu.matmul %0, %1, %cst {dimension_numbers = #tpu.dot_dimension_numbers<[1], [0], [0], [1], [0, 0, 1, 1], [], []>} : vector<2x16xbf16>, vector<16x784xbf16>, vector<2x784xf32> -> vector<2x784xf32>
    %cst_3 = arith.constant dense<0.000000e+00> : vector<784xf32>
    %3 = vector.multi_reduction <add>, %2, %cst_3 [0] : vector<2x784xf32> to vector<784xf32>
    %4 = vector.shape_cast %3 : vector<784xf32> to vector<1x784xf32>
    %5 = arith.mulf %2, %2 : vector<2x784xf32>
    %cst_4 = arith.constant dense<0.000000e+00> : vector<784xf32>
    %6 = vector.multi_reduction <add>, %5, %cst_4 [0] : vector<2x784xf32> to vector<784xf32>
    %7 = vector.shape_cast %6 : vector<784xf32> to vector<1x784xf32>
    %c0_5 = arith.constant 0 : index
    %c0_6 = arith.constant 0 : index
    %8 = vector.load %arg2[%c0_5, %c0_6] : memref<784x16xf32, #tpu.memory_space<vmem>>, vector<784x16xf32>
    %cst_7 = arith.constant dense<0.000000e+00> : vector<1x16xf32>
    %9 = tpu.matmul %4, %8, %cst_7 {dimension_numbers = #tpu.dot_dimension_numbers<[1], [0], [0], [1], [0, 0, 1, 1], [], []>} : vector<1x784xf32>, vector<784x16xf32>, vector<1x16xf32> -> vector<1x16xf32>
    %c0_8 = arith.constant 0 : index
    %c0_9 = arith.constant 0 : index
    %10 = vector.load %arg2[%c0_8, %c0_9] : memref<784x16xf32, #tpu.memory_space<vmem>>, vector<784x16xf32>
    %cst_10 = arith.constant dense<0.000000e+00> : vector<1x16xf32>
    %11 = tpu.matmul %7, %10, %cst_10 {dimension_numbers = #tpu.dot_dimension_numbers<[1], [0], [0], [1], [0, 0, 1, 1], [], []>} : vector<1x784xf32>, vector<784x16xf32>, vector<1x16xf32> -> vector<1x16xf32>
    %cst_11 = arith.constant 0.0102040814 : f32
    %12 = vector.broadcast %cst_11 : f32 to vector<1x16xf32>
    %13 = arith.mulf %9, %12 : vector<1x16xf32>
    %cst_12 = arith.constant 0.0102040814 : f32
    %14 = vector.broadcast %cst_12 : f32 to vector<1x16xf32>
    %15 = arith.mulf %11, %14 : vector<1x16xf32>
    %16 = arith.mulf %13, %13 : vector<1x16xf32>
    %17 = arith.subf %15, %16 : vector<1x16xf32>
    %cst_13 = arith.constant 9.99999974E-6 : f32
    %18 = vector.broadcast %cst_13 : f32 to vector<1x16xf32>
    %19 = arith.addf %17, %18 : vector<1x16xf32>
    %20 = math.rsqrt %19 : vector<1x16xf32>
    %c0_14 = arith.constant 0 : index
    %c0_15 = arith.constant 0 : index
    %21 = vector.load %arg3[%c0_14, %c0_15] : memref<16x784xf32, #tpu.memory_space<vmem>>, vector<16x784xf32>
    %cst_16 = arith.constant dense<0.000000e+00> : vector<1x784xf32>
    %22 = tpu.matmul %13, %21, %cst_16 {dimension_numbers = #tpu.dot_dimension_numbers<[1], [0], [0], [1], [0, 0, 1, 1], [], []>} : vector<1x16xf32>, vector<16x784xf32>, vector<1x784xf32> -> vector<1x784xf32>
    %c0_17 = arith.constant 0 : index
    %c0_18 = arith.constant 0 : index
    %23 = vector.load %arg3[%c0_17, %c0_18] : memref<16x784xf32, #tpu.memory_space<vmem>>, vector<16x784xf32>
    %cst_19 = arith.constant dense<0.000000e+00> : vector<1x784xf32>
    %24 = tpu.matmul %20, %23, %cst_19 {dimension_numbers = #tpu.dot_dimension_numbers<[1], [0], [0], [1], [0, 0, 1, 1], [], []>} : vector<1x16xf32>, vector<16x784xf32>, vector<1x784xf32> -> vector<1x784xf32>
    %25 = vector.broadcast %22 : vector<1x784xf32> to vector<2x784xf32>
    %26 = arith.subf %2, %25 : vector<2x784xf32>
    %27 = vector.broadcast %24 : vector<1x784xf32> to vector<2x784xf32>
    %28 = arith.mulf %26, %27 : vector<2x784xf32>
    %c0_20 = arith.constant 0 : index
    %c0_21 = arith.constant 0 : index
    %29 = vector.load %arg4[%c0_20, %c0_21] : memref<1x784xf32, #tpu.memory_space<vmem>>, vector<1x784xf32>
    %30 = vector.broadcast %29 : vector<1x784xf32> to vector<2x784xf32>
    %31 = arith.mulf %28, %30 : vector<2x784xf32>
    %c0_22 = arith.constant 0 : index
    %c0_23 = arith.constant 0 : index
    %32 = vector.load %arg5[%c0_22, %c0_23] : memref<1x784xf32, #tpu.memory_space<vmem>>, vector<1x784xf32>
    %33 = vector.broadcast %32 : vector<1x784xf32> to vector<2x784xf32>
    %34 = arith.addf %31, %33 : vector<2x784xf32>
    %cst_24 = arith.constant 0.000000e+00 : f32
    %35 = vector.broadcast %cst_24 : f32 to vector<2x784xf32>
    %36 = arith.maximumf %34, %35 : vector<2x784xf32>
    %37 = arith.truncf %36 : vector<2x784xf32> to vector<2x784xbf16>
    %c0_25 = arith.constant 0 : index
    %c0_26 = arith.constant 0 : index
    %38 = vector.load %arg6[%c0_25, %c0_26] : memref<2x784xbf16, #tpu.memory_space<vmem>>, vector<2x784xbf16>
    tpu.vector_store %arg6[%c0_25, %c0_26], %37 {strides = array<i32>} : memref<2x784xbf16, #tpu.memory_space<vmem>>, vector<2x784xbf16>,
    return
  }
}

module attributes {stable_mosaic.version = 11 : i64} {
  func.func @conv_bn_relu_kernel(%arg0: i32, %arg1: memref<288x16xbf16, #tpu.memory_space<vmem>>, %arg2: memref<9x16x32xbf16, #tpu.memory_space<vmem>>, %arg3: memref<128x1xf32, #tpu.memory_space<vmem>>, %arg4: memref<1x8xf32, #tpu.memory_space<vmem>>, %arg5: memref<1x8xf32, #tpu.memory_space<vmem>>, %arg6: memref<32x8xf32, #tpu.memory_space<vmem>>, %arg7: memref<8x32xf32, #tpu.memory_space<vmem>>, %arg8: memref<256x32xbf16, #tpu.memory_space<vmem>>, %arg9: memref<2x128x32xf32, #tpu.memory_space<vmem>>, %arg10: memref<2x32xf32, #tpu.memory_space<vmem>>) attributes {dimension_semantics = [#tpu.dimension_semantics<arbitrary>], iteration_bounds = array<i64: 2>, scalar_prefetch = 0 : i64, scratch_operands = 2 : i64, tpu.core_type = #tpu.core_type<tc>, window_params = [{pipeline_mode = #tpu.pipeline_mode<synchronous>, transform_indices = @transform_0, window_bounds = array<i64: 288, 16>}, {pipeline_mode = #tpu.pipeline_mode<synchronous>, transform_indices = @transform_1, window_bounds = array<i64: 9, 16, 32>}, {transform_indices = @transform_2, window_bounds = array<i64: 128, 1>}, {pipeline_mode = #tpu.pipeline_mode<synchronous>, transform_indices = @transform_3, window_bounds = array<i64: 1, 8>}, {pipeline_mode = #tpu.pipeline_mode<synchronous>, transform_indices = @transform_4, window_bounds = array<i64: 1, 8>}, {pipeline_mode = #tpu.pipeline_mode<synchronous>, transform_indices = @transform_5, window_bounds = array<i64: 32, 8>}, {pipeline_mode = #tpu.pipeline_mode<synchronous>, transform_indices = @transform_6, window_bounds = array<i64: 8, 32>}, {pipeline_mode = #tpu.pipeline_mode<synchronous>, transform_indices = @transform_7, window_bounds = array<i64: 256, 32>}]} {
    %c0_i32 = arith.constant 0 : i32
    %0 = arith.cmpi eq, %arg0, %c0_i32 : i32
    %1 = arith.extui %0 : i1 to i32
    %c0_i32_0 = arith.constant 0 : i32
    %2 = arith.cmpi ne, %1, %c0_i32_0 : i32
    scf.if %2 {
      %cst_40 = arith.constant 0.000000e+00 : f32
      %72 = vector.broadcast %cst_40 : f32 to vector<2x32xf32>
      %c0_41 = arith.constant 0 : index
      %c0_42 = arith.constant 0 : index
      %73 = vector.load %arg10[%c0_41, %c0_42] : memref<2x32xf32, #tpu.memory_space<vmem>>, vector<2x32xf32>
      tpu.vector_store %arg10[%c0_41, %c0_42], %72 {strides = array<i32>} : memref<2x32xf32, #tpu.memory_space<vmem>>, vector<2x32xf32>,
    } else {
    }
    %c128_i32 = arith.constant 128 : i32
    %3 = arith.muli %arg0, %c128_i32 : i32
    %4 = tpu.assume_multiple %3, 128 : i32
    %5 = arith.index_cast %4 : i32 to index
    %c0 = arith.constant 0 : index
    %6 = vector.load %arg1[%5, %c0] : memref<288x16xbf16, #tpu.memory_space<vmem>>, vector<160x16xbf16>
    %cst = arith.constant 0.000000e+00 : f32
    %7 = vector.broadcast %cst : f32 to vector<128x32xf32>
    %8 = vector.extract_strided_slice %6 {offsets = [6, 0], sizes = [128, 16], strides = [1, 1]} : vector<160x16xbf16> to vector<128x16xbf16>
    %c0_1 = arith.constant 0 : index
    %c0_2 = arith.constant 0 : index
    %c0_3 = arith.constant 0 : index
    %9 = vector.load %arg2[%c0_1, %c0_2, %c0_3] : memref<9x16x32xbf16, #tpu.memory_space<vmem>>, vector<1x16x32xbf16>
    %10 = vector.shape_cast %9 : vector<1x16x32xbf16> to vector<16x32xbf16>
    %cst_4 = arith.constant dense<0.000000e+00> : vector<128x32xf32>
    %11 = tpu.matmul %8, %10, %cst_4 {dimension_numbers = #tpu.dot_dimension_numbers<[1], [0], [0], [1], [0, 0, 1, 1], [], []>} : vector<128x16xbf16>, vector<16x32xbf16>, vector<128x32xf32> -> vector<128x32xf32>
    %12 = arith.addf %7, %11 : vector<128x32xf32>
    %13 = vector.extract_strided_slice %6 {offsets = [7, 0], sizes = [128, 16], strides = [1, 1]} : vector<160x16xbf16> to vector<128x16xbf16>
    %c1 = arith.constant 1 : index
    %c0_5 = arith.constant 0 : index
    %c0_6 = arith.constant 0 : index
    %14 = vector.load %arg2[%c1, %c0_5, %c0_6] : memref<9x16x32xbf16, #tpu.memory_space<vmem>>, vector<1x16x32xbf16>
    %15 = vector.shape_cast %14 : vector<1x16x32xbf16> to vector<16x32xbf16>
    %cst_7 = arith.constant dense<0.000000e+00> : vector<128x32xf32>
    %16 = tpu.matmul %13, %15, %cst_7 {dimension_numbers = #tpu.dot_dimension_numbers<[1], [0], [0], [1], [0, 0, 1, 1], [], []>} : vector<128x16xbf16>, vector<16x32xbf16>, vector<128x32xf32> -> vector<128x32xf32>
    %17 = arith.addf %12, %16 : vector<128x32xf32>
    %18 = vector.extract_strided_slice %6 {offsets = [8, 0], sizes = [128, 16], strides = [1, 1]} : vector<160x16xbf16> to vector<128x16xbf16>
    %c2 = arith.constant 2 : index
    %c0_8 = arith.constant 0 : index
    %c0_9 = arith.constant 0 : index
    %19 = vector.load %arg2[%c2, %c0_8, %c0_9] : memref<9x16x32xbf16, #tpu.memory_space<vmem>>, vector<1x16x32xbf16>
    %20 = vector.shape_cast %19 : vector<1x16x32xbf16> to vector<16x32xbf16>
    %cst_10 = arith.constant dense<0.000000e+00> : vector<128x32xf32>
    %21 = tpu.matmul %18, %20, %cst_10 {dimension_numbers = #tpu.dot_dimension_numbers<[1], [0], [0], [1], [0, 0, 1, 1], [], []>} : vector<128x16xbf16>, vector<16x32xbf16>, vector<128x32xf32> -> vector<128x32xf32>
    %22 = arith.addf %17, %21 : vector<128x32xf32>
    %23 = vector.extract_strided_slice %6 {offsets = [15, 0], sizes = [128, 16], strides = [1, 1]} : vector<160x16xbf16> to vector<128x16xbf16>
    %c3 = arith.constant 3 : index
    %c0_11 = arith.constant 0 : index
    %c0_12 = arith.constant 0 : index
    %24 = vector.load %arg2[%c3, %c0_11, %c0_12] : memref<9x16x32xbf16, #tpu.memory_space<vmem>>, vector<1x16x32xbf16>
    %25 = vector.shape_cast %24 : vector<1x16x32xbf16> to vector<16x32xbf16>
    %cst_13 = arith.constant dense<0.000000e+00> : vector<128x32xf32>
    %26 = tpu.matmul %23, %25, %cst_13 {dimension_numbers = #tpu.dot_dimension_numbers<[1], [0], [0], [1], [0, 0, 1, 1], [], []>} : vector<128x16xbf16>, vector<16x32xbf16>, vector<128x32xf32> -> vector<128x32xf32>
    %27 = arith.addf %22, %26 : vector<128x32xf32>
    %28 = vector.extract_strided_slice %6 {offsets = [16, 0], sizes = [128, 16], strides = [1, 1]} : vector<160x16xbf16> to vector<128x16xbf16>
    %c4 = arith.constant 4 : index
    %c0_14 = arith.constant 0 : index
    %c0_15 = arith.constant 0 : index
    %29 = vector.load %arg2[%c4, %c0_14, %c0_15] : memref<9x16x32xbf16, #tpu.memory_space<vmem>>, vector<1x16x32xbf16>
    %30 = vector.shape_cast %29 : vector<1x16x32xbf16> to vector<16x32xbf16>
    %cst_16 = arith.constant dense<0.000000e+00> : vector<128x32xf32>
    %31 = tpu.matmul %28, %30, %cst_16 {dimension_numbers = #tpu.dot_dimension_numbers<[1], [0], [0], [1], [0, 0, 1, 1], [], []>} : vector<128x16xbf16>, vector<16x32xbf16>, vector<128x32xf32> -> vector<128x32xf32>
    %32 = arith.addf %27, %31 : vector<128x32xf32>
    %33 = vector.extract_strided_slice %6 {offsets = [17, 0], sizes = [128, 16], strides = [1, 1]} : vector<160x16xbf16> to vector<128x16xbf16>
    %c5 = arith.constant 5 : index
    %c0_17 = arith.constant 0 : index
    %c0_18 = arith.constant 0 : index
    %34 = vector.load %arg2[%c5, %c0_17, %c0_18] : memref<9x16x32xbf16, #tpu.memory_space<vmem>>, vector<1x16x32xbf16>
    %35 = vector.shape_cast %34 : vector<1x16x32xbf16> to vector<16x32xbf16>
    %cst_19 = arith.constant dense<0.000000e+00> : vector<128x32xf32>
    %36 = tpu.matmul %33, %35, %cst_19 {dimension_numbers = #tpu.dot_dimension_numbers<[1], [0], [0], [1], [0, 0, 1, 1], [], []>} : vector<128x16xbf16>, vector<16x32xbf16>, vector<128x32xf32> -> vector<128x32xf32>
    %37 = arith.addf %32, %36 : vector<128x32xf32>
    %38 = vector.extract_strided_slice %6 {offsets = [24, 0], sizes = [128, 16], strides = [1, 1]} : vector<160x16xbf16> to vector<128x16xbf16>
    %c6 = arith.constant 6 : index
    %c0_20 = arith.constant 0 : index
    %c0_21 = arith.constant 0 : index
    %39 = vector.load %arg2[%c6, %c0_20, %c0_21] : memref<9x16x32xbf16, #tpu.memory_space<vmem>>, vector<1x16x32xbf16>
    %40 = vector.shape_cast %39 : vector<1x16x32xbf16> to vector<16x32xbf16>
    %cst_22 = arith.constant dense<0.000000e+00> : vector<128x32xf32>
    %41 = tpu.matmul %38, %40, %cst_22 {dimension_numbers = #tpu.dot_dimension_numbers<[1], [0], [0], [1], [0, 0, 1, 1], [], []>} : vector<128x16xbf16>, vector<16x32xbf16>, vector<128x32xf32> -> vector<128x32xf32>
    %42 = arith.addf %37, %41 : vector<128x32xf32>
    %43 = vector.extract_strided_slice %6 {offsets = [25, 0], sizes = [128, 16], strides = [1, 1]} : vector<160x16xbf16> to vector<128x16xbf16>
    %c7 = arith.constant 7 : index
    %c0_23 = arith.constant 0 : index
    %c0_24 = arith.constant 0 : index
    %44 = vector.load %arg2[%c7, %c0_23, %c0_24] : memref<9x16x32xbf16, #tpu.memory_space<vmem>>, vector<1x16x32xbf16>
    %45 = vector.shape_cast %44 : vector<1x16x32xbf16> to vector<16x32xbf16>
    %cst_25 = arith.constant dense<0.000000e+00> : vector<128x32xf32>
    %46 = tpu.matmul %43, %45, %cst_25 {dimension_numbers = #tpu.dot_dimension_numbers<[1], [0], [0], [1], [0, 0, 1, 1], [], []>} : vector<128x16xbf16>, vector<16x32xbf16>, vector<128x32xf32> -> vector<128x32xf32>
    %47 = arith.addf %42, %46 : vector<128x32xf32>
    %48 = vector.extract_strided_slice %6 {offsets = [26, 0], sizes = [128, 16], strides = [1, 1]} : vector<160x16xbf16> to vector<128x16xbf16>
    %c8 = arith.constant 8 : index
    %c0_26 = arith.constant 0 : index
    %c0_27 = arith.constant 0 : index
    %49 = vector.load %arg2[%c8, %c0_26, %c0_27] : memref<9x16x32xbf16, #tpu.memory_space<vmem>>, vector<1x16x32xbf16>
    %50 = vector.shape_cast %49 : vector<1x16x32xbf16> to vector<16x32xbf16>
    %cst_28 = arith.constant dense<0.000000e+00> : vector<128x32xf32>
    %51 = tpu.matmul %48, %50, %cst_28 {dimension_numbers = #tpu.dot_dimension_numbers<[1], [0], [0], [1], [0, 0, 1, 1], [], []>} : vector<128x16xbf16>, vector<16x32xbf16>, vector<128x32xf32> -> vector<128x32xf32>
    %52 = arith.addf %47, %51 : vector<128x32xf32>
    %c0_29 = arith.constant 0 : index
    %c0_30 = arith.constant 0 : index
    %53 = vector.load %arg3[%c0_29, %c0_30] : memref<128x1xf32, #tpu.memory_space<vmem>>, vector<128x1xf32>
    %54 = vector.broadcast %53 : vector<128x1xf32> to vector<128x32xf32>
    %55 = arith.mulf %52, %54 : vector<128x32xf32>
    %56 = arith.index_cast %arg0 : i32 to index
    %c0_31 = arith.constant 0 : index
    %c0_32 = arith.constant 0 : index
    %57 = vector.load %arg9[%56, %c0_31, %c0_32] : memref<2x128x32xf32, #tpu.memory_space<vmem>>, vector<1x128x32xf32>
    %58 = vector.shape_cast %57 : vector<1x128x32xf32> to vector<128x32xf32>
    %59 = vector.shape_cast %55 : vector<128x32xf32> to vector<1x128x32xf32>
    tpu.vector_store %arg9[%56, %c0_31, %c0_32], %59 {strides = array<i32>} : memref<2x128x32xf32, #tpu.memory_space<vmem>>, vector<1x128x32xf32>,
    %c0_33 = arith.constant 0 : index
    %c0_34 = arith.constant 0 : index
    %60 = vector.load %arg10[%c0_33, %c0_34] : memref<2x32xf32, #tpu.memory_space<vmem>>, vector<2x32xf32>
    %cst_35 = arith.constant dense<0.000000e+00> : vector<32xf32>
    %61 = vector.multi_reduction <add>, %55, %cst_35 [0] : vector<128x32xf32> to vector<32xf32>
    %62 = vector.shape_cast %61 : vector<32xf32> to vector<1x32xf32>
    %63 = arith.mulf %55, %55 : vector<128x32xf32>
    %cst_36 = arith.constant dense<0.000000e+00> : vector<32xf32>
    %64 = vector.multi_reduction <add>, %63, %cst_36 [0] : vector<128x32xf32> to vector<32xf32>
    %65 = vector.shape_cast %64 : vector<32xf32> to vector<1x32xf32>
    %66 = tpu.concatenate %62, %65 in 0 : vector<1x32xf32>, vector<1x32xf32> -> vector<2x32xf32>
    %67 = arith.addf %60, %66 : vector<2x32xf32>
    %c0_37 = arith.constant 0 : index
    %c0_38 = arith.constant 0 : index
    %68 = vector.load %arg10[%c0_37, %c0_38] : memref<2x32xf32, #tpu.memory_space<vmem>>, vector<2x32xf32>
    tpu.vector_store %arg10[%c0_37, %c0_38], %67 {strides = array<i32>} : memref<2x32xf32, #tpu.memory_space<vmem>>, vector<2x32xf32>,
    %c1_i32 = arith.constant 1 : i32
    %69 = arith.cmpi eq, %arg0, %c1_i32 : i32
    %70 = arith.extui %69 : i1 to i32
    %c0_i32_39 = arith.constant 0 : i32
    %71 = arith.cmpi ne, %70, %c0_i32_39 : i32
    scf.if %71 {
      %c0_40 = arith.constant 0 : index
      %c0_41 = arith.constant 0 : index
      %72 = vector.load %arg10[%c0_40, %c0_41] : memref<2x32xf32, #tpu.memory_space<vmem>>, vector<1x32xf32>
      %c0_42 = arith.constant 0 : index
      %c0_43 = arith.constant 0 : index
      %73 = vector.load %arg6[%c0_42, %c0_43] : memref<32x8xf32, #tpu.memory_space<vmem>>, vector<32x8xf32>
      %cst_44 = arith.constant dense<0.000000e+00> : vector<1x8xf32>
      %74 = tpu.matmul %72, %73, %cst_44 {dimension_numbers = #tpu.dot_dimension_numbers<[1], [0], [0], [1], [0, 0, 1, 1], [], []>} : vector<1x32xf32>, vector<32x8xf32>, vector<1x8xf32> -> vector<1x8xf32>
      %cst_45 = arith.constant 0.00255102036 : f32
      %75 = vector.broadcast %cst_45 : f32 to vector<1x8xf32>
      %76 = arith.mulf %74, %75 : vector<1x8xf32>
      %c1_46 = arith.constant 1 : index
      %c0_47 = arith.constant 0 : index
      %77 = vector.load %arg10[%c1_46, %c0_47] : memref<2x32xf32, #tpu.memory_space<vmem>>, vector<1x32xf32>
      %c0_48 = arith.constant 0 : index
      %c0_49 = arith.constant 0 : index
      %78 = vector.load %arg6[%c0_48, %c0_49] : memref<32x8xf32, #tpu.memory_space<vmem>>, vector<32x8xf32>
      %cst_50 = arith.constant dense<0.000000e+00> : vector<1x8xf32>
      %79 = tpu.matmul %77, %78, %cst_50 {dimension_numbers = #tpu.dot_dimension_numbers<[1], [0], [0], [1], [0, 0, 1, 1], [], []>} : vector<1x32xf32>, vector<32x8xf32>, vector<1x8xf32> -> vector<1x8xf32>
      %cst_51 = arith.constant 0.00255102036 : f32
      %80 = vector.broadcast %cst_51 : f32 to vector<1x8xf32>
      %81 = arith.mulf %79, %80 : vector<1x8xf32>
      %82 = arith.mulf %76, %76 : vector<1x8xf32>
      %83 = arith.subf %81, %82 : vector<1x8xf32>
      %c0_52 = arith.constant 0 : index
      %c0_53 = arith.constant 0 : index
      %84 = vector.load %arg4[%c0_52, %c0_53] : memref<1x8xf32, #tpu.memory_space<vmem>>, vector<1x8xf32>
      %cst_54 = arith.constant 9.99999974E-6 : f32
      %85 = vector.broadcast %cst_54 : f32 to vector<1x8xf32>
      %86 = arith.addf %83, %85 : vector<1x8xf32>
      %87 = math.rsqrt %86 : vector<1x8xf32>
      %88 = arith.mulf %84, %87 : vector<1x8xf32>
      %c0_55 = arith.constant 0 : index
      %c0_56 = arith.constant 0 : index
      %89 = vector.load %arg5[%c0_55, %c0_56] : memref<1x8xf32, #tpu.memory_space<vmem>>, vector<1x8xf32>
      %90 = arith.mulf %76, %88 : vector<1x8xf32>
      %91 = arith.subf %89, %90 : vector<1x8xf32>
      %c0_57 = arith.constant 0 : index
      %c0_58 = arith.constant 0 : index
      %92 = vector.load %arg7[%c0_57, %c0_58] : memref<8x32xf32, #tpu.memory_space<vmem>>, vector<8x32xf32>
      %cst_59 = arith.constant dense<0.000000e+00> : vector<1x32xf32>
      %93 = tpu.matmul %88, %92, %cst_59 {dimension_numbers = #tpu.dot_dimension_numbers<[1], [0], [0], [1], [0, 0, 1, 1], [], []>} : vector<1x8xf32>, vector<8x32xf32>, vector<1x32xf32> -> vector<1x32xf32>
      %c0_60 = arith.constant 0 : index
      %c0_61 = arith.constant 0 : index
      %94 = vector.load %arg7[%c0_60, %c0_61] : memref<8x32xf32, #tpu.memory_space<vmem>>, vector<8x32xf32>
      %cst_62 = arith.constant dense<0.000000e+00> : vector<1x32xf32>
      %95 = tpu.matmul %91, %94, %cst_62 {dimension_numbers = #tpu.dot_dimension_numbers<[1], [0], [0], [1], [0, 0, 1, 1], [], []>} : vector<1x8xf32>, vector<8x32xf32>, vector<1x32xf32> -> vector<1x32xf32>
      %c0_63 = arith.constant 0 : index
      %c0_64 = arith.constant 0 : index
      %c0_65 = arith.constant 0 : index
      %96 = vector.load %arg9[%c0_63, %c0_64, %c0_65] : memref<2x128x32xf32, #tpu.memory_space<vmem>>, vector<1x128x32xf32>
      %97 = vector.shape_cast %96 : vector<1x128x32xf32> to vector<128x32xf32>
      %98 = vector.broadcast %93 : vector<1x32xf32> to vector<128x32xf32>
      %99 = arith.mulf %97, %98 : vector<128x32xf32>
      %100 = vector.broadcast %95 : vector<1x32xf32> to vector<128x32xf32>
      %101 = arith.addf %99, %100 : vector<128x32xf32>
      %cst_66 = arith.constant 0.000000e+00 : f32
      %102 = vector.broadcast %cst_66 : f32 to vector<128x32xf32>
      %103 = arith.maximumf %101, %102 : vector<128x32xf32>
      %104 = arith.truncf %103 : vector<128x32xf32> to vector<128x32xbf16>
      %c0_67 = arith.constant 0 : index
      %c0_68 = arith.constant 0 : index
      %105 = vector.load %arg8[%c0_67, %c0_68] : memref<256x32xbf16, #tpu.memory_space<vmem>>, vector<128x32xbf16>
      tpu.vector_store %arg8[%c0_67, %c0_68], %104 {strides = array<i32>} : memref<256x32xbf16, #tpu.memory_space<vmem>>, vector<128x32xbf16>,
      %c1_69 = arith.constant 1 : index
      %c0_70 = arith.constant 0 : index
      %c0_71 = arith.constant 0 : index
      %106 = vector.load %arg9[%c1_69, %c0_70, %c0_71] : memref<2x128x32xf32, #tpu.memory_space<vmem>>, vector<1x128x32xf32>
      %107 = vector.shape_cast %106 : vector<1x128x32xf32> to vector<128x32xf32>
      %108 = vector.broadcast %93 : vector<1x32xf32> to vector<128x32xf32>
      %109 = arith.mulf %107, %108 : vector<128x32xf32>
      %110 = vector.broadcast %95 : vector<1x32xf32> to vector<128x32xf32>
      %111 = arith.addf %109, %110 : vector<128x32xf32>
      %cst_72 = arith.constant 0.000000e+00 : f32
      %112 = vector.broadcast %cst_72 : f32 to vector<128x32xf32>
      %113 = arith.maximumf %111, %112 : vector<128x32xf32>
      %114 = arith.truncf %113 : vector<128x32xf32> to vector<128x32xbf16>
      %c128 = arith.constant 128 : index
      %c0_73 = arith.constant 0 : index
      %115 = vector.load %arg8[%c128, %c0_73] : memref<256x32xbf16, #tpu.memory_space<vmem>>, vector<128x32xbf16>
      tpu.vector_store %arg8[%c128, %c0_73], %114 {strides = array<i32>} : memref<256x32xbf16, #tpu.memory_space<vmem>>, vector<128x32xbf16>,
    } else {
    }
    return
  }
  func.func @transform_0(%arg0: i32) -> (i32, i32) {
    %c0_i32 = arith.constant 0 : i32
    %c0_i32_0 = arith.constant 0 : i32
    %c0_i32_1 = arith.constant 0 : i32
    return %c0_i32, %c0_i32_0 : i32, i32
  }
  func.func @transform_1(%arg0: i32) -> (i32, i32, i32) {
    %c0_i32 = arith.constant 0 : i32
    %c0_i32_0 = arith.constant 0 : i32
    %c0_i32_1 = arith.constant 0 : i32
    %c0_i32_2 = arith.constant 0 : i32
    return %c0_i32, %c0_i32_0, %c0_i32_1 : i32, i32, i32
  }
  func.func @transform_2(%arg0: i32) -> (i32, i32) {
    %c0_i32 = arith.constant 0 : i32
    %c0_i32_0 = arith.constant 0 : i32
    return %arg0, %c0_i32 : i32, i32
  }
  func.func @transform_3(%arg0: i32) -> (i32, i32) {
    %c0_i32 = arith.constant 0 : i32
    %c0_i32_0 = arith.constant 0 : i32
    %c0_i32_1 = arith.constant 0 : i32
    return %c0_i32, %c0_i32_0 : i32, i32
  }
  func.func @transform_4(%arg0: i32) -> (i32, i32) {
    %c0_i32 = arith.constant 0 : i32
    %c0_i32_0 = arith.constant 0 : i32
    %c0_i32_1 = arith.constant 0 : i32
    return %c0_i32, %c0_i32_0 : i32, i32
  }
  func.func @transform_5(%arg0: i32) -> (i32, i32) {
    %c0_i32 = arith.constant 0 : i32
    %c0_i32_0 = arith.constant 0 : i32
    %c0_i32_1 = arith.constant 0 : i32
    return %c0_i32, %c0_i32_0 : i32, i32
  }
  func.func @transform_6(%arg0: i32) -> (i32, i32) {
    %c0_i32 = arith.constant 0 : i32
    %c0_i32_0 = arith.constant 0 : i32
    %c0_i32_1 = arith.constant 0 : i32
    return %c0_i32, %c0_i32_0 : i32, i32
  }
  func.func @transform_7(%arg0: i32) -> (i32, i32) {
    %c0_i32 = arith.constant 0 : i32
    %c0_i32_0 = arith.constant 0 : i32
    %c0_i32_1 = arith.constant 0 : i32
    return %c0_i32, %c0_i32_0 : i32, i32
  }
}

module attributes {stable_mosaic.version = 11 : i64} {
  func.func @conv_tanh_kernel(%arg0: i32, %arg1: memref<560x8xbf16, #tpu.memory_space<vmem>>, %arg2: memref<9x4x8xbf16, #tpu.memory_space<vmem>>, %arg3: memref<4x256xf32, #tpu.memory_space<vmem>>) attributes {dimension_semantics = [#tpu.dimension_semantics<parallel>], iteration_bounds = array<i64: 2>, scalar_prefetch = 0 : i64, scratch_operands = 0 : i64, tpu.core_type = #tpu.core_type<tc>, window_params = [{pipeline_mode = #tpu.pipeline_mode<synchronous>, transform_indices = @transform_0, window_bounds = array<i64: 560, 8>}, {pipeline_mode = #tpu.pipeline_mode<synchronous>, transform_indices = @transform_1, window_bounds = array<i64: 9, 4, 8>}, {transform_indices = @transform_2, window_bounds = array<i64: 4, 256>}]} {
    %c256_i32 = arith.constant 256 : i32
    %0 = arith.muli %arg0, %c256_i32 : i32
    %1 = tpu.assume_multiple %0, 256 : i32
    %2 = arith.index_cast %1 : i32 to index
    %c0 = arith.constant 0 : index
    %3 = vector.load %arg1[%2, %c0] : memref<560x8xbf16, #tpu.memory_space<vmem>>, vector<304x8xbf16>
    %cst = arith.constant 0.000000e+00 : f32
    %4 = vector.broadcast %cst : f32 to vector<4x256xf32>
    %5 = vector.extract_strided_slice %3 {offsets = [7, 0], sizes = [256, 8], strides = [1, 1]} : vector<304x8xbf16> to vector<256x8xbf16>
    %c0_0 = arith.constant 0 : index
    %c0_1 = arith.constant 0 : index
    %c0_2 = arith.constant 0 : index
    %6 = vector.load %arg2[%c0_0, %c0_1, %c0_2] : memref<9x4x8xbf16, #tpu.memory_space<vmem>>, vector<1x4x8xbf16>
    %7 = vector.shape_cast %6 : vector<1x4x8xbf16> to vector<4x8xbf16>
    %cst_3 = arith.constant dense<0.000000e+00> : vector<4x256xf32>
    %8 = tpu.matmul %7, %5, %cst_3 {dimension_numbers = #tpu.dot_dimension_numbers<[1], [1], [0], [0], [0, 0, 1, 0], [], []>} : vector<4x8xbf16>, vector<256x8xbf16>, vector<4x256xf32> -> vector<4x256xf32>
    %9 = arith.addf %4, %8 : vector<4x256xf32>
    %10 = vector.extract_strided_slice %3 {offsets = [8, 0], sizes = [256, 8], strides = [1, 1]} : vector<304x8xbf16> to vector<256x8xbf16>
    %c1 = arith.constant 1 : index
    %c0_4 = arith.constant 0 : index
    %c0_5 = arith.constant 0 : index
    %11 = vector.load %arg2[%c1, %c0_4, %c0_5] : memref<9x4x8xbf16, #tpu.memory_space<vmem>>, vector<1x4x8xbf16>
    %12 = vector.shape_cast %11 : vector<1x4x8xbf16> to vector<4x8xbf16>
    %cst_6 = arith.constant dense<0.000000e+00> : vector<4x256xf32>
    %13 = tpu.matmul %12, %10, %cst_6 {dimension_numbers = #tpu.dot_dimension_numbers<[1], [1], [0], [0], [0, 0, 1, 0], [], []>} : vector<4x8xbf16>, vector<256x8xbf16>, vector<4x256xf32> -> vector<4x256xf32>
    %14 = arith.addf %9, %13 : vector<4x256xf32>
    %15 = vector.extract_strided_slice %3 {offsets = [9, 0], sizes = [256, 8], strides = [1, 1]} : vector<304x8xbf16> to vector<256x8xbf16>
    %c2 = arith.constant 2 : index
    %c0_7 = arith.constant 0 : index
    %c0_8 = arith.constant 0 : index
    %16 = vector.load %arg2[%c2, %c0_7, %c0_8] : memref<9x4x8xbf16, #tpu.memory_space<vmem>>, vector<1x4x8xbf16>
    %17 = vector.shape_cast %16 : vector<1x4x8xbf16> to vector<4x8xbf16>
    %cst_9 = arith.constant dense<0.000000e+00> : vector<4x256xf32>
    %18 = tpu.matmul %17, %15, %cst_9 {dimension_numbers = #tpu.dot_dimension_numbers<[1], [1], [0], [0], [0, 0, 1, 0], [], []>} : vector<4x8xbf16>, vector<256x8xbf16>, vector<4x256xf32> -> vector<4x256xf32>
    %19 = arith.addf %14, %18 : vector<4x256xf32>
    %20 = vector.extract_strided_slice %3 {offsets = [23, 0], sizes = [256, 8], strides = [1, 1]} : vector<304x8xbf16> to vector<256x8xbf16>
    %c3 = arith.constant 3 : index
    %c0_10 = arith.constant 0 : index
    %c0_11 = arith.constant 0 : index
    %21 = vector.load %arg2[%c3, %c0_10, %c0_11] : memref<9x4x8xbf16, #tpu.memory_space<vmem>>, vector<1x4x8xbf16>
    %22 = vector.shape_cast %21 : vector<1x4x8xbf16> to vector<4x8xbf16>
    %cst_12 = arith.constant dense<0.000000e+00> : vector<4x256xf32>
    %23 = tpu.matmul %22, %20, %cst_12 {dimension_numbers = #tpu.dot_dimension_numbers<[1], [1], [0], [0], [0, 0, 1, 0], [], []>} : vector<4x8xbf16>, vector<256x8xbf16>, vector<4x256xf32> -> vector<4x256xf32>
    %24 = arith.addf %19, %23 : vector<4x256xf32>
    %25 = vector.extract_strided_slice %3 {offsets = [24, 0], sizes = [256, 8], strides = [1, 1]} : vector<304x8xbf16> to vector<256x8xbf16>
    %c4 = arith.constant 4 : index
    %c0_13 = arith.constant 0 : index
    %c0_14 = arith.constant 0 : index
    %26 = vector.load %arg2[%c4, %c0_13, %c0_14] : memref<9x4x8xbf16, #tpu.memory_space<vmem>>, vector<1x4x8xbf16>
    %27 = vector.shape_cast %26 : vector<1x4x8xbf16> to vector<4x8xbf16>
    %cst_15 = arith.constant dense<0.000000e+00> : vector<4x256xf32>
    %28 = tpu.matmul %27, %25, %cst_15 {dimension_numbers = #tpu.dot_dimension_numbers<[1], [1], [0], [0], [0, 0, 1, 0], [], []>} : vector<4x8xbf16>, vector<256x8xbf16>, vector<4x256xf32> -> vector<4x256xf32>
    %29 = arith.addf %24, %28 : vector<4x256xf32>
    %30 = vector.extract_strided_slice %3 {offsets = [25, 0], sizes = [256, 8], strides = [1, 1]} : vector<304x8xbf16> to vector<256x8xbf16>
    %c5 = arith.constant 5 : index
    %c0_16 = arith.constant 0 : index
    %c0_17 = arith.constant 0 : index
    %31 = vector.load %arg2[%c5, %c0_16, %c0_17] : memref<9x4x8xbf16, #tpu.memory_space<vmem>>, vector<1x4x8xbf16>
    %32 = vector.shape_cast %31 : vector<1x4x8xbf16> to vector<4x8xbf16>
    %cst_18 = arith.constant dense<0.000000e+00> : vector<4x256xf32>
    %33 = tpu.matmul %32, %30, %cst_18 {dimension_numbers = #tpu.dot_dimension_numbers<[1], [1], [0], [0], [0, 0, 1, 0], [], []>} : vector<4x8xbf16>, vector<256x8xbf16>, vector<4x256xf32> -> vector<4x256xf32>
    %34 = arith.addf %29, %33 : vector<4x256xf32>
    %35 = vector.extract_strided_slice %3 {offsets = [39, 0], sizes = [256, 8], strides = [1, 1]} : vector<304x8xbf16> to vector<256x8xbf16>
    %c6 = arith.constant 6 : index
    %c0_19 = arith.constant 0 : index
    %c0_20 = arith.constant 0 : index
    %36 = vector.load %arg2[%c6, %c0_19, %c0_20] : memref<9x4x8xbf16, #tpu.memory_space<vmem>>, vector<1x4x8xbf16>
    %37 = vector.shape_cast %36 : vector<1x4x8xbf16> to vector<4x8xbf16>
    %cst_21 = arith.constant dense<0.000000e+00> : vector<4x256xf32>
    %38 = tpu.matmul %37, %35, %cst_21 {dimension_numbers = #tpu.dot_dimension_numbers<[1], [1], [0], [0], [0, 0, 1, 0], [], []>} : vector<4x8xbf16>, vector<256x8xbf16>, vector<4x256xf32> -> vector<4x256xf32>
    %39 = arith.addf %34, %38 : vector<4x256xf32>
    %40 = vector.extract_strided_slice %3 {offsets = [40, 0], sizes = [256, 8], strides = [1, 1]} : vector<304x8xbf16> to vector<256x8xbf16>
    %c7 = arith.constant 7 : index
    %c0_22 = arith.constant 0 : index
    %c0_23 = arith.constant 0 : index
    %41 = vector.load %arg2[%c7, %c0_22, %c0_23] : memref<9x4x8xbf16, #tpu.memory_space<vmem>>, vector<1x4x8xbf16>
    %42 = vector.shape_cast %41 : vector<1x4x8xbf16> to vector<4x8xbf16>
    %cst_24 = arith.constant dense<0.000000e+00> : vector<4x256xf32>
    %43 = tpu.matmul %42, %40, %cst_24 {dimension_numbers = #tpu.dot_dimension_numbers<[1], [1], [0], [0], [0, 0, 1, 0], [], []>} : vector<4x8xbf16>, vector<256x8xbf16>, vector<4x256xf32> -> vector<4x256xf32>
    %44 = arith.addf %39, %43 : vector<4x256xf32>
    %45 = vector.extract_strided_slice %3 {offsets = [41, 0], sizes = [256, 8], strides = [1, 1]} : vector<304x8xbf16> to vector<256x8xbf16>
    %c8 = arith.constant 8 : index
    %c0_25 = arith.constant 0 : index
    %c0_26 = arith.constant 0 : index
    %46 = vector.load %arg2[%c8, %c0_25, %c0_26] : memref<9x4x8xbf16, #tpu.memory_space<vmem>>, vector<1x4x8xbf16>
    %47 = vector.shape_cast %46 : vector<1x4x8xbf16> to vector<4x8xbf16>
    %cst_27 = arith.constant dense<0.000000e+00> : vector<4x256xf32>
    %48 = tpu.matmul %47, %45, %cst_27 {dimension_numbers = #tpu.dot_dimension_numbers<[1], [1], [0], [0], [0, 0, 1, 0], [], []>} : vector<4x8xbf16>, vector<256x8xbf16>, vector<4x256xf32> -> vector<4x256xf32>
    %49 = arith.addf %44, %48 : vector<4x256xf32>
    %50 = math.tanh %49 : vector<4x256xf32>
    %c0_28 = arith.constant 0 : index
    %c0_29 = arith.constant 0 : index
    %51 = vector.load %arg3[%c0_28, %c0_29] : memref<4x256xf32, #tpu.memory_space<vmem>>, vector<4x256xf32>
    tpu.vector_store %arg3[%c0_28, %c0_29], %50 {strides = array<i32>} : memref<4x256xf32, #tpu.memory_space<vmem>>, vector<4x256xf32>,
    return
  }
  func.func @transform_0(%arg0: i32) -> (i32, i32) {
    %c0_i32 = arith.constant 0 : i32
    %c0_i32_0 = arith.constant 0 : i32
    %c0_i32_1 = arith.constant 0 : i32
    return %c0_i32, %c0_i32_0 : i32, i32
  }
  func.func @transform_1(%arg0: i32) -> (i32, i32, i32) {
    %c0_i32 = arith.constant 0 : i32
    %c0_i32_0 = arith.constant 0 : i32
    %c0_i32_1 = arith.constant 0 : i32
    %c0_i32_2 = arith.constant 0 : i32
    return %c0_i32, %c0_i32_0, %c0_i32_1 : i32, i32, i32
  }
  func.func @transform_2(%arg0: i32) -> (i32, i32) {
    %c0_i32 = arith.constant 0 : i32
    %c0_i32_0 = arith.constant 0 : i32
    return %c0_i32, %arg0 : i32, i32
  }
}

</mosaic_0001>

<llo_original>
// kernel: tile.28
$region0: #{tile.28}
  #allocation0 [shape = 's32[1]{0}', space=sflag, size = 0x4, scoped, tag = 'scoped memory for tile.28']
  %s0 = inlined_call_operand.vmem [shape: f32[16], index: 0, kind: input, shape index: {}]
  %s1 = inlined_call_operand.vmem [shape: f32[49,16], index: 1, kind: output, shape index: {}]
  // Predicated region
  $region2: #{tile.28} parent=0 // pred_check
    _
  $region3: #{tile.28} parent=0 // pred_check_branch
    %3 = sbr.rel (0) target = $region5
  $region4: #{tile.28} parent=0 // pred_region
    _
  $region5: #{tile.28} parent=0 // pred_fallthru
    _
  %v4 = vld [vmem:[%s0] ss:$0 sm:$0xff]
  %5 = vst [vmem:[%s1] sm:$0xff] %v4
  %s6 = scalar_lea.vmem %s1, 8
  %7 = vst [vmem:[%s6] sm:$0xff] %v4
  %s8 = scalar_lea.vmem %s1, 16
  %9 = vst [vmem:[%s8] sm:$0xff] %v4
  %s10 = scalar_lea.vmem %s1, 24
  %11 = vst [vmem:[%s10] sm:$0xff] %v4
  %s12 = scalar_lea.vmem %s1, 32
  %13 = vst [vmem:[%s12] sm:$0xff] %v4
  %s14 = scalar_lea.vmem %s1, 40
  %15 = vst [vmem:[%s14] sm:$0xff] %v4
  %s16 = scalar_lea.vmem %s1, 48
  %17 = vst [vmem:[%s16] sm:$0xff] %v4

// kernel: tile.24
$region0: #{tile.24}
  %s0 = inlined_call_operand.vmem [shape: f32[49,16,16], index: 0, kind: input, shape index: {}]
  %s1 = inlined_call_operand.vmem [shape: f32[784,16], index: 1, kind: output, shape index: {}]
  %v2 = vld [vmem:[%s0] ss:$8 sm:$0xf]
  %v3 = vld [vmem:[%s0] ss:$8 sm:$0xf0]
  %vm4 = vcmask 1047556
  %v5 = vsel %vm4, %v3, %v2
  %vm6 = vcmask 130048
  %7 = vst.msk [vmem:[%s1] ss:$8 sm:$0xf] %vm6, %v5
  %8 = vst.msk [vmem:[%s1] ss:$8 sm:$0x70] %vm6, %v5
  %s9 = scalar_lea.vmem %s1, 4294967290
  %10 = vst.msk [vmem:[%s9] sm:$0x80] %vm6, %v5
  %s11 = scalar_lea.vmem %s0, 64
  %v12 = vld [vmem:[%s11] ss:$8 sm:$0xf]
  %s13 = scalar_lea.vmem %s0, 64
  %v14 = vld [vmem:[%s13] ss:$8 sm:$0xf0]
  %vm15 = vcmask 1047556
  %v16 = vsel %vm15, %v14, %v12
  %vm17 = vcmask 130048
  %s18 = scalar_lea.vmem %s1, 9
  %19 = vst.msk [vmem:[%s18] ss:$8 sm:$0xf] %vm17, %v16
  %s20 = scalar_lea.vmem %s1, 9
  %21 = vst.msk [vmem:[%s20] ss:$8 sm:$0x30] %vm17, %v16
  %s22 = scalar_lea.vmem %s1, 4294967250
  %23 = vst.msk [vmem:[%s22] ss:$8 sm:$0xc0] %vm17, %v16
  %s24 = scalar_lea.vmem %s0, 128
  %v25 = vld [vmem:[%s24] ss:$8 sm:$0xf]
  %s26 = scalar_lea.vmem %s0, 128
  %v27 = vld [vmem:[%s26] ss:$8 sm:$0xf0]
  %vm28 = vcmask 1047556
  %v29 = vsel %vm28, %v27, %v25
  %vm30 = vcmask 130048
  %s31 = scalar_lea.vmem %s1, 18
  %32 = vst.msk [vmem:[%s31] ss:$8 sm:$0xf] %vm30, %v29
  %s33 = scalar_lea.vmem %s1, 238
  %34 = vst.msk [vmem:[%s33] ss:$-47 sm:$0x30] %vm30, %v29
  %s35 = scalar_lea.vmem %s1, 4294967259
  %36 = vst.msk [vmem:[%s35] ss:$8 sm:$0xc0] %vm30, %v29
  %s37 = scalar_lea.vmem %s0, 192
  %v38 = vld [vmem:[%s37] ss:$8 sm:$0xf]
  %s39 = scalar_lea.vmem %s0, 192
  %v40 = vld [vmem:[%s39] ss:$8 sm:$0xf0]
  %vm41 = vcmask 1047556
  %v42 = vsel %vm41, %v40, %v38
  %vm43 = vcmask 130048
  %s44 = scalar_lea.vmem %s1, 27
  %45 = vst.msk [vmem:[%s44] ss:$8 sm:$0xf] %vm43, %v42
  %s46 = scalar_lea.vmem %s1, 4294967268
  %47 = vst.msk [vmem:[%s46] ss:$8 sm:$0xf0] %vm43, %v42
  %s48 = scalar_lea.vmem %s0, 256
  %v49 = vld [vmem:[%s48] ss:$8 sm:$0xf]
  %s50 = scalar_lea.vmem %s0, 256
  %v51 = vld [vmem:[%s50] ss:$8 sm:$0xf0]
  %vm52 = vcmask 1047556
  %v53 = vsel %vm52, %v51, %v49
  %vm54 = vcmask 130048
  %s55 = scalar_lea.vmem %s1, 36
  %56 = vst.msk [vmem:[%s55] ss:$8 sm:$0x7] %vm54, %v53
  %s57 = scalar_lea.vmem %s1, 4294967277
  %58 = vst.msk [vmem:[%s57] ss:$8 sm:$0x78] %vm54, %v53
  %s59 = scalar_lea.vmem %s1, 30
  %60 = vst.msk [vmem:[%s59] sm:$0x80] %vm54, %v53
  %s61 = scalar_lea.vmem %s0, 320
  %v62 = vld [vmem:[%s61] ss:$8 sm:$0xf]
  %s63 = scalar_lea.vmem %s0, 320
  %v64 = vld [vmem:[%s63] ss:$8 sm:$0xf0]
  %vm65 = vcmask 1047556
  %v66 = vsel %vm65, %v64, %v62
  %vm67 = vcmask 130048
  %s68 = scalar_lea.vmem %s1, 45
  %69 = vst.msk [vmem:[%s68] ss:$8 sm:$0x3] %vm67, %v66
  %s70 = scalar_lea.vmem %s1, 4294967286
  %71 = vst.msk [vmem:[%s70] ss:$8 sm:$0x3c] %vm67, %v66
  %s72 = scalar_lea.vmem %s1, 4294967286
  %73 = vst.msk [vmem:[%s72] ss:$8 sm:$0xc0] %vm67, %v66
  %s74 = scalar_lea.vmem %s0, 384
  %v75 = vld [vmem:[%s74] ss:$8 sm:$0xf]
  %s76 = scalar_lea.vmem %s0, 384
  %v77 = vld [vmem:[%s76] ss:$8 sm:$0xf0]
  %vm78 = vcmask 1047556
  %v79 = vsel %vm78, %v77, %v75
  %vm80 = vcmask 130048
  %s81 = scalar_lea.vmem %s1, 54
  %82 = vst.msk [vmem:[%s81] ss:$-47 sm:$0x3] %vm80, %v79
  %s83 = scalar_lea.vmem %s1, 4294967295
  %84 = vst.msk [vmem:[%s83] ss:$8 sm:$0x3c] %vm80, %v79
  %s85 = scalar_lea.vmem %s1, 4294967295
  %86 = vst.msk [vmem:[%s85] ss:$8 sm:$0xc0] %vm80, %v79
  %s87 = scalar_lea.vmem %s0, 448
  %v88 = vld [vmem:[%s87] ss:$8 sm:$0xf]
  %s89 = scalar_lea.vmem %s0, 448
  %v90 = vld [vmem:[%s89] ss:$8 sm:$0xf0]
  %vm91 = vcmask 1047556
  %v92 = vsel %vm91, %v90, %v88
  %vm93 = vcmask 130048
  %s94 = scalar_lea.vmem %s1, 56
  %95 = vst.msk [vmem:[%s94] ss:$8 sm:$0xf] %vm93, %v92
  %s96 = scalar_lea.vmem %s1, 56
  %97 = vst.msk [vmem:[%s96] ss:$8 sm:$0x70] %vm93, %v92
  %s98 = scalar_lea.vmem %s1, 50
  %99 = vst.msk [vmem:[%s98] sm:$0x80] %vm93, %v92
  %s100 = scalar_lea.vmem %s0, 512
  %v101 = vld [vmem:[%s100] ss:$8 sm:$0xf]
  %s102 = scalar_lea.vmem %s0, 512
  %v103 = vld [vmem:[%s102] ss:$8 sm:$0xf0]
  %vm104 = vcmask 1047556
  %v105 = vsel %vm104, %v103, %v101
  %vm106 = vcmask 130048
  %s107 = scalar_lea.vmem %s1, 65
  %108 = vst.msk [vmem:[%s107] ss:$8 sm:$0xf] %vm106, %v105
  %s109 = scalar_lea.vmem %s1, 65
  %110 = vst.msk [vmem:[%s109] ss:$8 sm:$0x30] %vm106, %v105
  %s111 = scalar_lea.vmem %s1, 10
  %112 = vst.msk [vmem:[%s111] ss:$8 sm:$0xc0] %vm106, %v105
  %s113 = scalar_lea.vmem %s0, 576
  %v114 = vld [vmem:[%s113] ss:$8 sm:$0xf]
  %s115 = scalar_lea.vmem %s0, 576
  %v116 = vld [vmem:[%s115] ss:$8 sm:$0xf0]
  %vm117 = vcmask 1047556
  %v118 = vsel %vm117, %v116, %v114
  %vm119 = vcmask 130048
  %s120 = scalar_lea.vmem %s1, 74
  %121 = vst.msk [vmem:[%s120] ss:$8 sm:$0xf] %vm119, %v118
  %s122 = scalar_lea.vmem %s1, 294
  %123 = vst.msk [vmem:[%s122] ss:$-47 sm:$0x30] %vm119, %v118
  %s124 = scalar_lea.vmem %s1, 19
  %125 = vst.msk [vmem:[%s124] ss:$8 sm:$0xc0] %vm119, %v118
  %s126 = scalar_lea.vmem %s0, 640
  %v127 = vld [vmem:[%s126] ss:$8 sm:$0xf]
  %s128 = scalar_lea.vmem %s0, 640
  %v129 = vld [vmem:[%s128] ss:$8 sm:$0xf0]
  %vm130 = vcmask 1047556
  %v131 = vsel %vm130, %v129, %v127
  %vm132 = vcmask 130048
  %s133 = scalar_lea.vmem %s1, 83
  %134 = vst.msk [vmem:[%s133] ss:$8 sm:$0xf] %vm132, %v131
  %s135 = scalar_lea.vmem %s1, 28
  %136 = vst.msk [vmem:[%s135] ss:$8 sm:$0xf0] %vm132, %v131
  %s137 = scalar_lea.vmem %s0, 704
  %v138 = vld [vmem:[%s137] ss:$8 sm:$0xf]
  %s139 = scalar_lea.vmem %s0, 704
  %v140 = vld [vmem:[%s139] ss:$8 sm:$0xf0]
  %vm141 = vcmask 1047556
  %v142 = vsel %vm141, %v140, %v138
  %vm143 = vcmask 130048
  %s144 = scalar_lea.vmem %s1, 92
  %145 = vst.msk [vmem:[%s144] ss:$8 sm:$0x7] %vm143, %v142
  %s146 = scalar_lea.vmem %s1, 37
  %147 = vst.msk [vmem:[%s146] ss:$8 sm:$0x78] %vm143, %v142
  %s148 = scalar_lea.vmem %s1, 86
  %149 = vst.msk [vmem:[%s148] sm:$0x80] %vm143, %v142
  %s150 = scalar_lea.vmem %s0, 768
  %v151 = vld [vmem:[%s150] ss:$8 sm:$0xf]
  %s152 = scalar_lea.vmem %s0, 768
  %v153 = vld [vmem:[%s152] ss:$8 sm:$0xf0]
  %vm154 = vcmask 1047556
  %v155 = vsel %vm154, %v153, %v151
  %vm156 = vcmask 130048
  %s157 = scalar_lea.vmem %s1, 101
  %158 = vst.msk [vmem:[%s157] ss:$8 sm:$0x3] %vm156, %v155
  %s159 = scalar_lea.vmem %s1, 46
  %160 = vst.msk [vmem:[%s159] ss:$8 sm:$0x3c] %vm156, %v155
  %s161 = scalar_lea.vmem %s1, 46
  %162 = vst.msk [vmem:[%s161] ss:$8 sm:$0xc0] %vm156, %v155
  %s163 = scalar_lea.vmem %s0, 832
  %v164 = vld [vmem:[%s163] ss:$8 sm:$0xf]
  %s165 = scalar_lea.vmem %s0, 832
  %v166 = vld [vmem:[%s165] ss:$8 sm:$0xf0]
  %vm167 = vcmask 1047556
  %v168 = vsel %vm167, %v166, %v164
  %vm169 = vcmask 130048
  %s170 = scalar_lea.vmem %s1, 110
  %171 = vst.msk [vmem:[%s170] ss:$-47 sm:$0x3] %vm169, %v168
  %s172 = scalar_lea.vmem %s1, 55
  %173 = vst.msk [vmem:[%s172] ss:$8 sm:$0x3c] %vm169, %v168
  %s174 = scalar_lea.vmem %s1, 55
  %175 = vst.msk [vmem:[%s174] ss:$8 sm:$0xc0] %vm169, %v168
  %s176 = scalar_lea.vmem %s0, 7
  %v177 = vld [vmem:[%s176] ss:$56 sm:$0xf]
  %s178 = scalar_lea.vmem %s0, 7
  %v179 = vld [vmem:[%s178] ss:$56 sm:$0xf0]
  %vm180 = vcmask 1047556
  %v181 = vsel %vm180, %v179, %v177
  %182 = vrot.lane.b32.xlu0 %v181, 112
  %v183 = vpop.permute.xlu0 %182
  %vm184 = vcmask 1048448
  %185 = vst.msk [vmem:[%s1] sm:$0xff] %vm184, %v183
  %s186 = scalar_lea.vmem %s0, 39
  %v187 = vld [vmem:[%s186] ss:$56 sm:$0xf]
  %s188 = scalar_lea.vmem %s0, 39
  %v189 = vld [vmem:[%s188] ss:$56 sm:$0xf0]
  %vm190 = vcmask 1047556
  %v191 = vsel %vm190, %v189, %v187
  %192 = vrot.lane.b32.xlu0 %v191, 112
  %v193 = vpop.permute.xlu0 %192
  %vm194 = vcmask 1048448
  %s195 = scalar_lea.vmem %s1, 32
  %196 = vst.msk [vmem:[%s195] sm:$0xff] %vm194, %v193
  %s197 = scalar_lea.vmem %s0, 463
  %v198 = vld [vmem:[%s197] ss:$56 sm:$0xf]
  %s199 = scalar_lea.vmem %s0, 463
  %v200 = vld [vmem:[%s199] ss:$56 sm:$0xf0]
  %vm201 = vcmask 1047556
  %v202 = vsel %vm201, %v200, %v198
  %203 = vrot.lane.b32.xlu0 %v202, 112
  %v204 = vpop.permute.xlu0 %203
  %vm205 = vcmask 1048448
  %s206 = scalar_lea.vmem %s1, 64
  %207 = vst.msk [vmem:[%s206] sm:$0xff] %vm205, %v204
  %s208 = scalar_lea.vmem %s0, 495
  %v209 = vld [vmem:[%s208] ss:$56 sm:$0xf]
  %s210 = scalar_lea.vmem %s0, 495
  %v211 = vld [vmem:[%s210] ss:$56 sm:$0xf0]
  %vm212 = vcmask 1047556
  %v213 = vsel %vm212, %v211, %v209
  %214 = vrot.lane.b32.xlu0 %v213, 112
  %v215 = vpop.permute.xlu0 %214
  %vm216 = vcmask 1048448
  %s217 = scalar_lea.vmem %s1, 96
  %218 = vst.msk [vmem:[%s217] sm:$0xff] %vm216, %v215
  %s219 = scalar_lea.vmem %s0, 15
  %v220 = vld [vmem:[%s219] ss:$56 sm:$0xf]
  %s221 = scalar_lea.vmem %s0, 15
  %v222 = vld [vmem:[%s221] ss:$56 sm:$0xf0]
  %vm223 = vcmask 1047556
  %v224 = vsel %vm223, %v222, %v220
  %225 = vrot.lane.b32.xlu0 %v224, 112
  %v226 = vpop.permute.xlu0 %225
  %vm227 = vcmask 1048448
  %s228 = scalar_lea.vmem %s1, 8
  %229 = vst.msk [vmem:[%s228] sm:$0xff] %vm227, %v226
  %s230 = scalar_lea.vmem %s0, 47
  %v231 = vld [vmem:[%s230] ss:$56 sm:$0xf]
  %s232 = scalar_lea.vmem %s0, 47
  %v233 = vld [vmem:[%s232] ss:$56 sm:$0xf0]
  %vm234 = vcmask 1047556
  %v235 = vsel %vm234, %v233, %v231
  %236 = vrot.lane.b32.xlu0 %v235, 112
  %v237 = vpop.permute.xlu0 %236
  %vm238 = vcmask 1048448
  %s239 = scalar_lea.vmem %s1, 40
  %240 = vst.msk [vmem:[%s239] sm:$0xff] %vm238, %v237
  %s241 = scalar_lea.vmem %s0, 471
  %v242 = vld [vmem:[%s241] ss:$56 sm:$0xf]
  %s243 = scalar_lea.vmem %s0, 471
  %v244 = vld [vmem:[%s243] ss:$56 sm:$0xf0]
  %vm245 = vcmask 1047556
  %v246 = vsel %vm245, %v244, %v242
  %247 = vrot.lane.b32.xlu0 %v246, 112
  %v248 = vpop.permute.xlu0 %247
  %vm249 = vcmask 1048448
  %s250 = scalar_lea.vmem %s1, 72
  %251 = vst.msk [vmem:[%s250] sm:$0xff] %vm249, %v248
  %s252 = scalar_lea.vmem %s0, 23
  %v253 = vld [vmem:[%s252] ss:$56 sm:$0xf]
  %s254 = scalar_lea.vmem %s0, 23
  %v255 = vld [vmem:[%s254] ss:$56 sm:$0xf0]
  %vm256 = vcmask 1047556
  %v257 = vsel %vm256, %v255, %v253
  %258 = vrot.lane.b32.xlu0 %v257, 112
  %v259 = vpop.permute.xlu0 %258
  %vm260 = vcmask 1048448
  %s261 = scalar_lea.vmem %s1, 16
  %262 = vst.msk [vmem:[%s261] sm:$0xff] %vm260, %v259
  %s263 = scalar_lea.vmem %s0, 479
  %v264 = vld [vmem:[%s263] ss:$56 sm:$0xf]
  %s265 = scalar_lea.vmem %s0, 479
  %v266 = vld [vmem:[%s265] ss:$56 sm:$0xf0]
  %vm267 = vcmask 1047556
  %v268 = vsel %vm267, %v266, %v264
  %269 = vrot.lane.b32.xlu0 %v268, 112
  %v270 = vpop.permute.xlu0 %269
  %vm271 = vcmask 1048448
  %s272 = scalar_lea.vmem %s1, 80
  %273 = vst.msk [vmem:[%s272] sm:$0xff] %vm271, %v270
  %s274 = scalar_lea.vmem %s0, 31
  %v275 = vld [vmem:[%s274] ss:$56 sm:$0xf]
  %s276 = scalar_lea.vmem %s0, 31
  %v277 = vld [vmem:[%s276] ss:$56 sm:$0xf0]
  %vm278 = vcmask 1047556
  %v279 = vsel %vm278, %v277, %v275
  %280 = vrot.lane.b32.xlu0 %v279, 112
  %v281 = vpop.permute.xlu0 %280
  %vm282 = vcmask 1048448
  %s283 = scalar_lea.vmem %s1, 24
  %284 = vst.msk [vmem:[%s283] sm:$0xff] %vm282, %v281
  %s285 = scalar_lea.vmem %s0, 455
  %v286 = vld [vmem:[%s285] ss:$56 sm:$0xf]
  %s287 = scalar_lea.vmem %s0, 455
  %v288 = vld [vmem:[%s287] ss:$56 sm:$0xf0]
  %vm289 = vcmask 1047556
  %v290 = vsel %vm289, %v288, %v286
  %291 = vrot.lane.b32.xlu0 %v290, 112
  %v292 = vpop.permute.xlu0 %291
  %vm293 = vcmask 1048448
  %s294 = scalar_lea.vmem %s1, 56
  %295 = vst.msk [vmem:[%s294] sm:$0xff] %vm293, %v292
  %s296 = scalar_lea.vmem %s0, 487
  %v297 = vld [vmem:[%s296] ss:$56 sm:$0xf]
  %s298 = scalar_lea.vmem %s0, 487
  %v299 = vld [vmem:[%s298] ss:$56 sm:$0xf0]
  %vm300 = vcmask 1047556
  %v301 = vsel %vm300, %v299, %v297
  %302 = vrot.lane.b32.xlu0 %v301, 112
  %v303 = vpop.permute.xlu0 %302
  %vm304 = vcmask 1048448
  %s305 = scalar_lea.vmem %s1, 88
  %306 = vst.msk [vmem:[%s305] sm:$0xff] %vm304, %v303
  %s307 = scalar_lea.vmem %s0, 6
  %v308 = vld [vmem:[%s307] ss:$56 sm:$0xf]
  %s309 = scalar_lea.vmem %s0, 6
  %v310 = vld [vmem:[%s309] ss:$56 sm:$0xf0]
  %vm311 = vcmask 1047556
  %v312 = vsel %vm311, %v310, %v308
  %313 = vrot.lane.b32.xlu0 %v312, 96
  %v314 = vpop.permute.xlu0 %313
  %vm315 = vcmask 917248
  %316 = vst.msk [vmem:[%s1] sm:$0xff] %vm315, %v314
  %s317 = scalar_lea.vmem %s0, 38
  %v318 = vld [vmem:[%s317] ss:$56 sm:$0xf]
  %s319 = scalar_lea.vmem %s0, 38
  %v320 = vld [vmem:[%s319] ss:$56 sm:$0xf0]
  %vm321 = vcmask 1047556
  %v322 = vsel %vm321, %v320, %v318
  %323 = vrot.lane.b32.xlu0 %v322, 96
  %v324 = vpop.permute.xlu0 %323
  %vm325 = vcmask 917248
  %s326 = scalar_lea.vmem %s1, 32
  %327 = vst.msk [vmem:[%s326] sm:$0xff] %vm325, %v324
  %s328 = scalar_lea.vmem %s0, 462
  %v329 = vld [vmem:[%s328] ss:$56 sm:$0xf]
  %s330 = scalar_lea.vmem %s0, 462
  %v331 = vld [vmem:[%s330] ss:$56 sm:$0xf0]
  %vm332 = vcmask 1047556
  %v333 = vsel %vm332, %v331, %v329
  %334 = vrot.lane.b32.xlu0 %v333, 96
  %v335 = vpop.permute.xlu0 %334
  %vm336 = vcmask 917248
  %s337 = scalar_lea.vmem %s1, 64
  %338 = vst.msk [vmem:[%s337] sm:$0xff] %vm336, %v335
  %s339 = scalar_lea.vmem %s0, 494
  %v340 = vld [vmem:[%s339] ss:$56 sm:$0xf]
  %s341 = scalar_lea.vmem %s0, 494
  %v342 = vld [vmem:[%s341] ss:$56 sm:$0xf0]
  %vm343 = vcmask 1047556
  %v344 = vsel %vm343, %v342, %v340
  %345 = vrot.lane.b32.xlu0 %v344, 96
  %v346 = vpop.permute.xlu0 %345
  %vm347 = vcmask 917248
  %s348 = scalar_lea.vmem %s1, 96
  %349 = vst.msk [vmem:[%s348] sm:$0xff] %vm347, %v346
  %s350 = scalar_lea.vmem %s0, 14
  %v351 = vld [vmem:[%s350] ss:$56 sm:$0xf]
  %s352 = scalar_lea.vmem %s0, 14
  %v353 = vld [vmem:[%s352] ss:$56 sm:$0xf0]
  %vm354 = vcmask 1047556
  %v355 = vsel %vm354, %v353, %v351
  %356 = vrot.lane.b32.xlu0 %v355, 96
  %v357 = vpop.permute.xlu0 %356
  %vm358 = vcmask 917248
  %s359 = scalar_lea.vmem %s1, 8
  %360 = vst.msk [vmem:[%s359] sm:$0xff] %vm358, %v357
  %s361 = scalar_lea.vmem %s0, 46
  %v362 = vld [vmem:[%s361] ss:$56 sm:$0xf]
  %s363 = scalar_lea.vmem %s0, 46
  %v364 = vld [vmem:[%s363] ss:$56 sm:$0xf0]
  %vm365 = vcmask 1047556
  %v366 = vsel %vm365, %v364, %v362
  %367 = vrot.lane.b32.xlu0 %v366, 96
  %v368 = vpop.permute.xlu0 %367
  %vm369 = vcmask 917248
  %s370 = scalar_lea.vmem %s1, 40
  %371 = vst.msk [vmem:[%s370] sm:$0xff] %vm369, %v368
  %s372 = scalar_lea.vmem %s0, 470
  %v373 = vld [vmem:[%s372] ss:$56 sm:$0xf]
  %s374 = scalar_lea.vmem %s0, 470
  %v375 = vld [vmem:[%s374] ss:$56 sm:$0xf0]
  %vm376 = vcmask 1047556
  %v377 = vsel %vm376, %v375, %v373
  %378 = vrot.lane.b32.xlu0 %v377, 96
  %v379 = vpop.permute.xlu0 %378
  %vm380 = vcmask 917248
  %s381 = scalar_lea.vmem %s1, 72
  %382 = vst.msk [vmem:[%s381] sm:$0xff] %vm380, %v379
  %s383 = scalar_lea.vmem %s0, 22
  %v384 = vld [vmem:[%s383] ss:$56 sm:$0xf]
  %s385 = scalar_lea.vmem %s0, 22
  %v386 = vld [vmem:[%s385] ss:$56 sm:$0xf0]
  %vm387 = vcmask 1047556
  %v388 = vsel %vm387, %v386, %v384
  %389 = vrot.lane.b32.xlu0 %v388, 96
  %v390 = vpop.permute.xlu0 %389
  %vm391 = vcmask 917248
  %s392 = scalar_lea.vmem %s1, 16
  %393 = vst.msk [vmem:[%s392] sm:$0xff] %vm391, %v390
  %s394 = scalar_lea.vmem %s0, 478
  %v395 = vld [vmem:[%s394] ss:$56 sm:$0xf]
  %s396 = scalar_lea.vmem %s0, 478
  %v397 = vld [vmem:[%s396] ss:$56 sm:$0xf0]
  %vm398 = vcmask 1047556
  %v399 = vsel %vm398, %v397, %v395
  %400 = vrot.lane.b32.xlu0 %v399, 96
  %v401 = vpop.permute.xlu0 %400
  %vm402 = vcmask 917248
  %s403 = scalar_lea.vmem %s1, 80
  %404 = vst.msk [vmem:[%s403] sm:$0xff] %vm402, %v401
  %s405 = scalar_lea.vmem %s0, 30
  %v406 = vld [vmem:[%s405] ss:$56 sm:$0xf]
  %s407 = scalar_lea.vmem %s0, 30
  %v408 = vld [vmem:[%s407] ss:$56 sm:$0xf0]
  %vm409 = vcmask 1047556
  %v410 = vsel %vm409, %v408, %v406
  %411 = vrot.lane.b32.xlu0 %v410, 96
  %v412 = vpop.permute.xlu0 %411
  %vm413 = vcmask 917248
  %s414 = scalar_lea.vmem %s1, 24
  %415 = vst.msk [vmem:[%s414] sm:$0xff] %vm413, %v412
  %s416 = scalar_lea.vmem %s0, 454
  %v417 = vld [vmem:[%s416] ss:$56 sm:$0xf]
  %s418 = scalar_lea.vmem %s0, 454
  %v419 = vld [vmem:[%s418] ss:$56 sm:$0xf0]
  %vm420 = vcmask 1047556
  %v421 = vsel %vm420, %v419, %v417
  %422 = vrot.lane.b32.xlu0 %v421, 96
  %v423 = vpop.permute.xlu0 %422
  %vm424 = vcmask 917248
  %s425 = scalar_lea.vmem %s1, 56
  %426 = vst.msk [vmem:[%s425] sm:$0xff] %vm424, %v423
  %s427 = scalar_lea.vmem %s0, 486
  %v428 = vld [vmem:[%s427] ss:$56 sm:$0xf]
  %s429 = scalar_lea.vmem %s0, 486
  %v430 = vld [vmem:[%s429] ss:$56 sm:$0xf0]
  %vm431 = vcmask 1047556
  %v432 = vsel %vm431, %v430, %v428
  %433 = vrot.lane.b32.xlu0 %v432, 96
  %v434 = vpop.permute.xlu0 %433
  %vm435 = vcmask 917248
  %s436 = scalar_lea.vmem %s1, 88
  %437 = vst.msk [vmem:[%s436] sm:$0xff] %vm435, %v434
  %s438 = scalar_lea.vmem %s0, 5
  %v439 = vld [vmem:[%s438] ss:$56 sm:$0xf]
  %s440 = scalar_lea.vmem %s0, 5
  %v441 = vld [vmem:[%s440] ss:$56 sm:$0xf0]
  %vm442 = vcmask 1047556
  %v443 = vsel %vm442, %v441, %v439
  %444 = vrot.lane.b32.xlu0 %v443, 80
  %v445 = vpop.permute.xlu0 %444
  %vm446 = vcmask 786048
  %447 = vst.msk [vmem:[%s1] sm:$0xff] %vm446, %v445
  %s448 = scalar_lea.vmem %s0, 37
  %v449 = vld [vmem:[%s448] ss:$56 sm:$0xf]
  %s450 = scalar_lea.vmem %s0, 37
  %v451 = vld [vmem:[%s450] ss:$56 sm:$0xf0]
  %vm452 = vcmask 1047556
  %v453 = vsel %vm452, %v451, %v449
  %454 = vrot.lane.b32.xlu0 %v453, 80
  %v455 = vpop.permute.xlu0 %454
  %vm456 = vcmask 786048
  %s457 = scalar_lea.vmem %s1, 32
  %458 = vst.msk [vmem:[%s457] sm:$0xff] %vm456, %v455
  %s459 = scalar_lea.vmem %s0, 461
  %v460 = vld [vmem:[%s459] ss:$56 sm:$0xf]
  %s461 = scalar_lea.vmem %s0, 461
  %v462 = vld [vmem:[%s461] ss:$56 sm:$0xf0]
  %vm463 = vcmask 1047556
  %v464 = vsel %vm463, %v462, %v460
  %465 = vrot.lane.b32.xlu0 %v464, 80
  %v466 = vpop.permute.xlu0 %465
  %vm467 = vcmask 786048
  %s468 = scalar_lea.vmem %s1, 64
  %469 = vst.msk [vmem:[%s468] sm:$0xff] %vm467, %v466
  %s470 = scalar_lea.vmem %s0, 493
  %v471 = vld [vmem:[%s470] ss:$56 sm:$0xf]
  %s472 = scalar_lea.vmem %s0, 493
  %v473 = vld [vmem:[%s472] ss:$56 sm:$0xf0]
  %vm474 = vcmask 1047556
  %v475 = vsel %vm474, %v473, %v471
  %476 = vrot.lane.b32.xlu0 %v475, 80
  %v477 = vpop.permute.xlu0 %476
  %vm478 = vcmask 786048
  %s479 = scalar_lea.vmem %s1, 96
  %480 = vst.msk [vmem:[%s479] sm:$0xff] %vm478, %v477
  %s481 = scalar_lea.vmem %s0, 13
  %v482 = vld [vmem:[%s481] ss:$56 sm:$0xf]
  %s483 = scalar_lea.vmem %s0, 13
  %v484 = vld [vmem:[%s483] ss:$56 sm:$0xf0]
  %vm485 = vcmask 1047556
  %v486 = vsel %vm485, %v484, %v482
  %487 = vrot.lane.b32.xlu0 %v486, 80
  %v488 = vpop.permute.xlu0 %487
  %vm489 = vcmask 786048
  %s490 = scalar_lea.vmem %s1, 8
  %491 = vst.msk [vmem:[%s490] sm:$0xff] %vm489, %v488
  %s492 = scalar_lea.vmem %s0, 45
  %v493 = vld [vmem:[%s492] ss:$56 sm:$0xf]
  %s494 = scalar_lea.vmem %s0, 45
  %v495 = vld [vmem:[%s494] ss:$56 sm:$0xf0]
  %vm496 = vcmask 1047556
  %v497 = vsel %vm496, %v495, %v493
  %498 = vrot.lane.b32.xlu0 %v497, 80
  %v499 = vpop.permute.xlu0 %498
  %vm500 = vcmask 786048
  %s501 = scalar_lea.vmem %s1, 40
  %502 = vst.msk [vmem:[%s501] sm:$0xff] %vm500, %v499
  %s503 = scalar_lea.vmem %s0, 469
  %v504 = vld [vmem:[%s503] ss:$56 sm:$0xf]
  %s505 = scalar_lea.vmem %s0, 469
  %v506 = vld [vmem:[%s505] ss:$56 sm:$0xf0]
  %vm507 = vcmask 1047556
  %v508 = vsel %vm507, %v506, %v504
  %509 = vrot.lane.b32.xlu0 %v508, 80
  %v510 = vpop.permute.xlu0 %509
  %vm511 = vcmask 786048
  %s512 = scalar_lea.vmem %s1, 72
  %513 = vst.msk [vmem:[%s512] sm:$0xff] %vm511, %v510
  %s514 = scalar_lea.vmem %s0, 21
  %v515 = vld [vmem:[%s514] ss:$56 sm:$0xf]
  %s516 = scalar_lea.vmem %s0, 21
  %v517 = vld [vmem:[%s516] ss:$56 sm:$0xf0]
  %vm518 = vcmask 1047556
  %v519 = vsel %vm518, %v517, %v515
  %520 = vrot.lane.b32.xlu0 %v519, 80
  %v521 = vpop.permute.xlu0 %520
  %vm522 = vcmask 786048
  %s523 = scalar_lea.vmem %s1, 16
  %524 = vst.msk [vmem:[%s523] sm:$0xff] %vm522, %v521
  %s525 = scalar_lea.vmem %s0, 477
  %v526 = vld [vmem:[%s525] ss:$56 sm:$0xf]
  %s527 = scalar_lea.vmem %s0, 477
  %v528 = vld [vmem:[%s527] ss:$56 sm:$0xf0]
  %vm529 = vcmask 1047556
  %v530 = vsel %vm529, %v528, %v526
  %531 = vrot.lane.b32.xlu0 %v530, 80
  %v532 = vpop.permute.xlu0 %531
  %vm533 = vcmask 786048
  %s534 = scalar_lea.vmem %s1, 80
  %535 = vst.msk [vmem:[%s534] sm:$0xff] %vm533, %v532
  %s536 = scalar_lea.vmem %s0, 29
  %v537 = vld [vmem:[%s536] ss:$56 sm:$0xf]
  %s538 = scalar_lea.vmem %s0, 29
  %v539 = vld [vmem:[%s538] ss:$56 sm:$0xf0]
  %vm540 = vcmask 1047556
  %v541 = vsel %vm540, %v539, %v537
  %542 = vrot.lane.b32.xlu0 %v541, 80
  %v543 = vpop.permute.xlu0 %542
  %vm544 = vcmask 786048
  %s545 = scalar_lea.vmem %s1, 24
  %546 = vst.msk [vmem:[%s545] sm:$0xff] %vm544, %v543
  %s547 = scalar_lea.vmem %s0, 453
  %v548 = vld [vmem:[%s547] ss:$56 sm:$0xf]
  %s549 = scalar_lea.vmem %s0, 453
  %v550 = vld [vmem:[%s549] ss:$56 sm:$0xf0]
  %vm551 = vcmask 1047556
  %v552 = vsel %vm551, %v550, %v548
  %553 = vrot.lane.b32.xlu0 %v552, 80
  %v554 = vpop.permute.xlu0 %553
  %vm555 = vcmask 786048
  %s556 = scalar_lea.vmem %s1, 56
  %557 = vst.msk [vmem:[%s556] sm:$0xff] %vm555, %v554
  %s558 = scalar_lea.vmem %s0, 485
  %v559 = vld [vmem:[%s558] ss:$56 sm:$0xf]
  %s560 = scalar_lea.vmem %s0, 485
  %v561 = vld [vmem:[%s560] ss:$56 sm:$0xf0]
  %vm562 = vcmask 1047556
  %v563 = vsel %vm562, %v561, %v559
  %564 = vrot.lane.b32.xlu0 %v563, 80
  %v565 = vpop.permute.xlu0 %564
  %vm566 = vcmask 786048
  %s567 = scalar_lea.vmem %s1, 88
  %568 = vst.msk [vmem:[%s567] sm:$0xff] %vm566, %v565
  %s569 = scalar_lea.vmem %s0, 4
  %v570 = vld [vmem:[%s569] ss:$56 sm:$0xf]
  %s571 = scalar_lea.vmem %s0, 4
  %v572 = vld [vmem:[%s571] ss:$56 sm:$0xf0]
  %vm573 = vcmask 1047556
  %v574 = vsel %vm573, %v572, %v570
  %575 = vrot.lane.b32.xlu0 %v574, 64
  %v576 = vpop.permute.xlu0 %575
  %vm577 = vcmask 654848
  %578 = vst.msk [vmem:[%s1] sm:$0xff] %vm577, %v576
  %s579 = scalar_lea.vmem %s0, 36
  %v580 = vld [vmem:[%s579] ss:$56 sm:$0xf]
  %s581 = scalar_lea.vmem %s0, 36
  %v582 = vld [vmem:[%s581] ss:$56 sm:$0xf0]
  %vm583 = vcmask 1047556
  %v584 = vsel %vm583, %v582, %v580
  %585 = vrot.lane.b32.xlu0 %v584, 64
  %v586 = vpop.permute.xlu0 %585
  %vm587 = vcmask 654848
  %s588 = scalar_lea.vmem %s1, 32
  %589 = vst.msk [vmem:[%s588] sm:$0xff] %vm587, %v586
  %s590 = scalar_lea.vmem %s0, 460
  %v591 = vld [vmem:[%s590] ss:$56 sm:$0xf]
  %s592 = scalar_lea.vmem %s0, 460
  %v593 = vld [vmem:[%s592] ss:$56 sm:$0xf0]
  %vm594 = vcmask 1047556
  %v595 = vsel %vm594, %v593, %v591
  %596 = vrot.lane.b32.xlu0 %v595, 64
  %v597 = vpop.permute.xlu0 %596
  %vm598 = vcmask 654848
  %s599 = scalar_lea.vmem %s1, 64
  %600 = vst.msk [vmem:[%s599] sm:$0xff] %vm598, %v597
  %s601 = scalar_lea.vmem %s0, 492
  %v602 = vld [vmem:[%s601] ss:$56 sm:$0xf]
  %s603 = scalar_lea.vmem %s0, 492
  %v604 = vld [vmem:[%s603] ss:$56 sm:$0xf0]
  %vm605 = vcmask 1047556
  %v606 = vsel %vm605, %v604, %v602
  %607 = vrot.lane.b32.xlu0 %v606, 64
  %v608 = vpop.permute.xlu0 %607
  %vm609 = vcmask 654848
  %s610 = scalar_lea.vmem %s1, 96
  %611 = vst.msk [vmem:[%s610] sm:$0xff] %vm609, %v608
  %s612 = scalar_lea.vmem %s0, 12
  %v613 = vld [vmem:[%s612] ss:$56 sm:$0xf]
  %s614 = scalar_lea.vmem %s0, 12
  %v615 = vld [vmem:[%s614] ss:$56 sm:$0xf0]
  %vm616 = vcmask 1047556
  %v617 = vsel %vm616, %v615, %v613
  %618 = vrot.lane.b32.xlu0 %v617, 64
  %v619 = vpop.permute.xlu0 %618
  %vm620 = vcmask 654848
  %s621 = scalar_lea.vmem %s1, 8
  %622 = vst.msk [vmem:[%s621] sm:$0xff] %vm620, %v619
  %s623 = scalar_lea.vmem %s0, 44
  %v624 = vld [vmem:[%s623] ss:$56 sm:$0xf]
  %s625 = scalar_lea.vmem %s0, 44
  %v626 = vld [vmem:[%s625] ss:$56 sm:$0xf0]
  %vm627 = vcmask 1047556
  %v628 = vsel %vm627, %v626, %v624
  %629 = vrot.lane.b32.xlu0 %v628, 64
  %v630 = vpop.permute.xlu0 %629
  %vm631 = vcmask 654848
  %s632 = scalar_lea.vmem %s1, 40
  %633 = vst.msk [vmem:[%s632] sm:$0xff] %vm631, %v630
  %s634 = scalar_lea.vmem %s0, 468
  %v635 = vld [vmem:[%s634] ss:$56 sm:$0xf]
  %s636 = scalar_lea.vmem %s0, 468
  %v637 = vld [vmem:[%s636] ss:$56 sm:$0xf0]
  %vm638 = vcmask 1047556
  %v639 = vsel %vm638, %v637, %v635
  %640 = vrot.lane.b32.xlu0 %v639, 64
  %v641 = vpop.permute.xlu0 %640
  %vm642 = vcmask 654848
  %s643 = scalar_lea.vmem %s1, 72
  %644 = vst.msk [vmem:[%s643] sm:$0xff] %vm642, %v641
  %s645 = scalar_lea.vmem %s0, 20
  %v646 = vld [vmem:[%s645] ss:$56 sm:$0xf]
  %s647 = scalar_lea.vmem %s0, 20
  %v648 = vld [vmem:[%s647] ss:$56 sm:$0xf0]
  %vm649 = vcmask 1047556
  %v650 = vsel %vm649, %v648, %v646
  %651 = vrot.lane.b32.xlu0 %v650, 64
  %v652 = vpop.permute.xlu0 %651
  %vm653 = vcmask 654848
  %s654 = scalar_lea.vmem %s1, 16
  %655 = vst.msk [vmem:[%s654] sm:$0xff] %vm653, %v652
  %s656 = scalar_lea.vmem %s0, 476
  %v657 = vld [vmem:[%s656] ss:$56 sm:$0xf]
  %s658 = scalar_lea.vmem %s0, 476
  %v659 = vld [vmem:[%s658] ss:$56 sm:$0xf0]
  %vm660 = vcmask 1047556
  %v661 = vsel %vm660, %v659, %v657
  %662 = vrot.lane.b32.xlu0 %v661, 64
  %v663 = vpop.permute.xlu0 %662
  %vm664 = vcmask 654848
  %s665 = scalar_lea.vmem %s1, 80
  %666 = vst.msk [vmem:[%s665] sm:$0xff] %vm664, %v663
  %s667 = scalar_lea.vmem %s0, 28
  %v668 = vld [vmem:[%s667] ss:$56 sm:$0xf]
  %s669 = scalar_lea.vmem %s0, 28
  %v670 = vld [vmem:[%s669] ss:$56 sm:$0xf0]
  %vm671 = vcmask 1047556
  %v672 = vsel %vm671, %v670, %v668
  %673 = vrot.lane.b32.xlu0 %v672, 64
  %v674 = vpop.permute.xlu0 %673
  %vm675 = vcmask 654848
  %s676 = scalar_lea.vmem %s1, 24
  %677 = vst.msk [vmem:[%s676] sm:$0xff] %vm675, %v674
  %s678 = scalar_lea.vmem %s0, 452
  %v679 = vld [vmem:[%s678] ss:$56 sm:$0xf]
  %s680 = scalar_lea.vmem %s0, 452
  %v681 = vld [vmem:[%s680] ss:$56 sm:$0xf0]
  %vm682 = vcmask 1047556
  %v683 = vsel %vm682, %v681, %v679
  %684 = vrot.lane.b32.xlu0 %v683, 64
  %v685 = vpop.permute.xlu0 %684
  %vm686 = vcmask 654848
  %s687 = scalar_lea.vmem %s1, 56
  %688 = vst.msk [vmem:[%s687] sm:$0xff] %vm686, %v685
  %s689 = scalar_lea.vmem %s0, 484
  %v690 = vld [vmem:[%s689] ss:$56 sm:$0xf]
  %s691 = scalar_lea.vmem %s0, 484
  %v692 = vld [vmem:[%s691] ss:$56 sm:$0xf0]
  %vm693 = vcmask 1047556
  %v694 = vsel %vm693, %v692, %v690
  %695 = vrot.lane.b32.xlu0 %v694, 64
  %v696 = vpop.permute.xlu0 %695
  %vm697 = vcmask 654848
  %s698 = scalar_lea.vmem %s1, 88
  %699 = vst.msk [vmem:[%s698] sm:$0xff] %vm697, %v696
  %s700 = scalar_lea.vmem %s0, 3
  %v701 = vld [vmem:[%s700] ss:$56 sm:$0xf]
  %s702 = scalar_lea.vmem %s0, 3
  %v703 = vld [vmem:[%s702] ss:$56 sm:$0xf0]
  %vm704 = vcmask 1047556
  %v705 = vsel %vm704, %v703, %v701
  %706 = vrot.lane.b32.xlu0 %v705, 48
  %v707 = vpop.permute.xlu0 %706
  %vm708 = vcmask 523648
  %709 = vst.msk [vmem:[%s1] sm:$0xff] %vm708, %v707
  %s710 = scalar_lea.vmem %s0, 35
  %v711 = vld [vmem:[%s710] ss:$56 sm:$0xf]
  %s712 = scalar_lea.vmem %s0, 35
  %v713 = vld [vmem:[%s712] ss:$56 sm:$0xf0]
  %vm714 = vcmask 1047556
  %v715 = vsel %vm714, %v713, %v711
  %716 = vrot.lane.b32.xlu0 %v715, 48
  %v717 = vpop.permute.xlu0 %716
  %vm718 = vcmask 523648
  %s719 = scalar_lea.vmem %s1, 32
  %720 = vst.msk [vmem:[%s719] sm:$0xff] %vm718, %v717
  %s721 = scalar_lea.vmem %s0, 459
  %v722 = vld [vmem:[%s721] ss:$56 sm:$0xf]
  %s723 = scalar_lea.vmem %s0, 459
  %v724 = vld [vmem:[%s723] ss:$56 sm:$0xf0]
  %vm725 = vcmask 1047556
  %v726 = vsel %vm725, %v724, %v722
  %727 = vrot.lane.b32.xlu0 %v726, 48
  %v728 = vpop.permute.xlu0 %727
  %vm729 = vcmask 523648
  %s730 = scalar_lea.vmem %s1, 64
  %731 = vst.msk [vmem:[%s730] sm:$0xff] %vm729, %v728
  %s732 = scalar_lea.vmem %s0, 491
  %v733 = vld [vmem:[%s732] ss:$56 sm:$0xf]
  %s734 = scalar_lea.vmem %s0, 491
  %v735 = vld [vmem:[%s734] ss:$56 sm:$0xf0]
  %vm736 = vcmask 1047556
  %v737 = vsel %vm736, %v735, %v733
  %738 = vrot.lane.b32.xlu0 %v737, 48
  %v739 = vpop.permute.xlu0 %738
  %vm740 = vcmask 523648
  %s741 = scalar_lea.vmem %s1, 96
  %742 = vst.msk [vmem:[%s741] sm:$0xff] %vm740, %v739
  %s743 = scalar_lea.vmem %s0, 11
  %v744 = vld [vmem:[%s743] ss:$56 sm:$0xf]
  %s745 = scalar_lea.vmem %s0, 11
  %v746 = vld [vmem:[%s745] ss:$56 sm:$0xf0]
  %vm747 = vcmask 1047556
  %v748 = vsel %vm747, %v746, %v744
  %749 = vrot.lane.b32.xlu0 %v748, 48
  %v750 = vpop.permute.xlu0 %749
  %vm751 = vcmask 523648
  %s752 = scalar_lea.vmem %s1, 8
  %753 = vst.msk [vmem:[%s752] sm:$0xff] %vm751, %v750
  %s754 = scalar_lea.vmem %s0, 43
  %v755 = vld [vmem:[%s754] ss:$56 sm:$0xf]
  %s756 = scalar_lea.vmem %s0, 43
  %v757 = vld [vmem:[%s756] ss:$56 sm:$0xf0]
  %vm758 = vcmask 1047556
  %v759 = vsel %vm758, %v757, %v755
  %760 = vrot.lane.b32.xlu0 %v759, 48
  %v761 = vpop.permute.xlu0 %760
  %vm762 = vcmask 523648
  %s763 = scalar_lea.vmem %s1, 40
  %764 = vst.msk [vmem:[%s763] sm:$0xff] %vm762, %v761
  %s765 = scalar_lea.vmem %s0, 467
  %v766 = vld [vmem:[%s765] ss:$56 sm:$0xf]
  %s767 = scalar_lea.vmem %s0, 467
  %v768 = vld [vmem:[%s767] ss:$56 sm:$0xf0]
  %vm769 = vcmask 1047556
  %v770 = vsel %vm769, %v768, %v766
  %771 = vrot.lane.b32.xlu0 %v770, 48
  %v772 = vpop.permute.xlu0 %771
  %vm773 = vcmask 523648
  %s774 = scalar_lea.vmem %s1, 72
  %775 = vst.msk [vmem:[%s774] sm:$0xff] %vm773, %v772
  %s776 = scalar_lea.vmem %s0, 19
  %v777 = vld [vmem:[%s776] ss:$56 sm:$0xf]
  %s778 = scalar_lea.vmem %s0, 19
  %v779 = vld [vmem:[%s778] ss:$56 sm:$0xf0]
  %vm780 = vcmask 1047556
  %v781 = vsel %vm780, %v779, %v777
  %782 = vrot.lane.b32.xlu0 %v781, 48
  %v783 = vpop.permute.xlu0 %782
  %vm784 = vcmask 523648
  %s785 = scalar_lea.vmem %s1, 16
  %786 = vst.msk [vmem:[%s785] sm:$0xff] %vm784, %v783
  %s787 = scalar_lea.vmem %s0, 475
  %v788 = vld [vmem:[%s787] ss:$56 sm:$0xf]
  %s789 = scalar_lea.vmem %s0, 475
  %v790 = vld [vmem:[%s789] ss:$56 sm:$0xf0]
  %vm791 = vcmask 1047556
  %v792 = vsel %vm791, %v790, %v788
  %793 = vrot.lane.b32.xlu0 %v792, 48
  %v794 = vpop.permute.xlu0 %793
  %vm795 = vcmask 523648
  %s796 = scalar_lea.vmem %s1, 80
  %797 = vst.msk [vmem:[%s796] sm:$0xff] %vm795, %v794
  %s798 = scalar_lea.vmem %s0, 27
  %v799 = vld [vmem:[%s798] ss:$56 sm:$0xf]
  %s800 = scalar_lea.vmem %s0, 27
  %v801 = vld [vmem:[%s800] ss:$56 sm:$0xf0]
  %vm802 = vcmask 1047556
  %v803 = vsel %vm802, %v801, %v799
  %804 = vrot.lane.b32.xlu0 %v803, 48
  %v805 = vpop.permute.xlu0 %804
  %vm806 = vcmask 523648
  %s807 = scalar_lea.vmem %s1, 24
  %808 = vst.msk [vmem:[%s807] sm:$0xff] %vm806, %v805
  %s809 = scalar_lea.vmem %s0, 451
  %v810 = vld [vmem:[%s809] ss:$56 sm:$0xf]
  %s811 = scalar_lea.vmem %s0, 451
  %v812 = vld [vmem:[%s811] ss:$56 sm:$0xf0]
  %vm813 = vcmask 1047556
  %v814 = vsel %vm813, %v812, %v810
  %815 = vrot.lane.b32.xlu0 %v814, 48
  %v816 = vpop.permute.xlu0 %815
  %vm817 = vcmask 523648
  %s818 = scalar_lea.vmem %s1, 56
  %819 = vst.msk [vmem:[%s818] sm:$0xff] %vm817, %v816
  %s820 = scalar_lea.vmem %s0, 483
  %v821 = vld [vmem:[%s820] ss:$56 sm:$0xf]
  %s822 = scalar_lea.vmem %s0, 483
  %v823 = vld [vmem:[%s822] ss:$56 sm:$0xf0]
  %vm824 = vcmask 1047556
  %v825 = vsel %vm824, %v823, %v821
  %826 = vrot.lane.b32.xlu0 %v825, 48
  %v827 = vpop.permute.xlu0 %826
  %vm828 = vcmask 523648
  %s829 = scalar_lea.vmem %s1, 88
  %830 = vst.msk [vmem:[%s829] sm:$0xff] %vm828, %v827
  %s831 = scalar_lea.vmem %s0, 2
  %v832 = vld [vmem:[%s831] ss:$56 sm:$0xf]
  %s833 = scalar_lea.vmem %s0, 2
  %v834 = vld [vmem:[%s833] ss:$56 sm:$0xf0]
  %vm835 = vcmask 1047556
  %v836 = vsel %vm835, %v834, %v832
  %837 = vrot.lane.b32.xlu0 %v836, 32
  %v838 = vpop.permute.xlu0 %837
  %vm839 = vcmask 392448
  %840 = vst.msk [vmem:[%s1] sm:$0xff] %vm839, %v838
  %s841 = scalar_lea.vmem %s0, 34
  %v842 = vld [vmem:[%s841] ss:$56 sm:$0xf]
  %s843 = scalar_lea.vmem %s0, 34
  %v844 = vld [vmem:[%s843] ss:$56 sm:$0xf0]
  %vm845 = vcmask 1047556
  %v846 = vsel %vm845, %v844, %v842
  %847 = vrot.lane.b32.xlu0 %v846, 32
  %v848 = vpop.permute.xlu0 %847
  %vm849 = vcmask 392448
  %s850 = scalar_lea.vmem %s1, 32
  %851 = vst.msk [vmem:[%s850] sm:$0xff] %vm849, %v848
  %s852 = scalar_lea.vmem %s0, 458
  %v853 = vld [vmem:[%s852] ss:$56 sm:$0xf]
  %s854 = scalar_lea.vmem %s0, 458
  %v855 = vld [vmem:[%s854] ss:$56 sm:$0xf0]
  %vm856 = vcmask 1047556
  %v857 = vsel %vm856, %v855, %v853
  %858 = vrot.lane.b32.xlu0 %v857, 32
  %v859 = vpop.permute.xlu0 %858
  %vm860 = vcmask 392448
  %s861 = scalar_lea.vmem %s1, 64
  %862 = vst.msk [vmem:[%s861] sm:$0xff] %vm860, %v859
  %s863 = scalar_lea.vmem %s0, 490
  %v864 = vld [vmem:[%s863] ss:$56 sm:$0xf]
  %s865 = scalar_lea.vmem %s0, 490
  %v866 = vld [vmem:[%s865] ss:$56 sm:$0xf0]
  %vm867 = vcmask 1047556
  %v868 = vsel %vm867, %v866, %v864
  %869 = vrot.lane.b32.xlu0 %v868, 32
  %v870 = vpop.permute.xlu0 %869
  %vm871 = vcmask 392448
  %s872 = scalar_lea.vmem %s1, 96
  %873 = vst.msk [vmem:[%s872] sm:$0xff] %vm871, %v870
  %s874 = scalar_lea.vmem %s0, 10
  %v875 = vld [vmem:[%s874] ss:$56 sm:$0xf]
  %s876 = scalar_lea.vmem %s0, 10
  %v877 = vld [vmem:[%s876] ss:$56 sm:$0xf0]
  %vm878 = vcmask 1047556
  %v879 = vsel %vm878, %v877, %v875
  %880 = vrot.lane.b32.xlu0 %v879, 32
  %v881 = vpop.permute.xlu0 %880
  %vm882 = vcmask 392448
  %s883 = scalar_lea.vmem %s1, 8
  %884 = vst.msk [vmem:[%s883] sm:$0xff] %vm882, %v881
  %s885 = scalar_lea.vmem %s0, 42
  %v886 = vld [vmem:[%s885] ss:$56 sm:$0xf]
  %s887 = scalar_lea.vmem %s0, 42
  %v888 = vld [vmem:[%s887] ss:$56 sm:$0xf0]
  %vm889 = vcmask 1047556
  %v890 = vsel %vm889, %v888, %v886
  %891 = vrot.lane.b32.xlu0 %v890, 32
  %v892 = vpop.permute.xlu0 %891
  %vm893 = vcmask 392448
  %s894 = scalar_lea.vmem %s1, 40
  %895 = vst.msk [vmem:[%s894] sm:$0xff] %vm893, %v892
  %s896 = scalar_lea.vmem %s0, 466
  %v897 = vld [vmem:[%s896] ss:$56 sm:$0xf]
  %s898 = scalar_lea.vmem %s0, 466
  %v899 = vld [vmem:[%s898] ss:$56 sm:$0xf0]
  %vm900 = vcmask 1047556
  %v901 = vsel %vm900, %v899, %v897
  %902 = vrot.lane.b32.xlu0 %v901, 32
  %v903 = vpop.permute.xlu0 %902
  %vm904 = vcmask 392448
  %s905 = scalar_lea.vmem %s1, 72
  %906 = vst.msk [vmem:[%s905] sm:$0xff] %vm904, %v903
  %s907 = scalar_lea.vmem %s0, 18
  %v908 = vld [vmem:[%s907] ss:$56 sm:$0xf]
  %s909 = scalar_lea.vmem %s0, 18
  %v910 = vld [vmem:[%s909] ss:$56 sm:$0xf0]
  %vm911 = vcmask 1047556
  %v912 = vsel %vm911, %v910, %v908
  %913 = vrot.lane.b32.xlu0 %v912, 32
  %v914 = vpop.permute.xlu0 %913
  %vm915 = vcmask 392448
  %s916 = scalar_lea.vmem %s1, 16
  %917 = vst.msk [vmem:[%s916] sm:$0xff] %vm915, %v914
  %s918 = scalar_lea.vmem %s0, 474
  %v919 = vld [vmem:[%s918] ss:$56 sm:$0xf]
  %s920 = scalar_lea.vmem %s0, 474
  %v921 = vld [vmem:[%s920] ss:$56 sm:$0xf0]
  %vm922 = vcmask 1047556
  %v923 = vsel %vm922, %v921, %v919
  %924 = vrot.lane.b32.xlu0 %v923, 32
  %v925 = vpop.permute.xlu0 %924
  %vm926 = vcmask 392448
  %s927 = scalar_lea.vmem %s1, 80
  %928 = vst.msk [vmem:[%s927] sm:$0xff] %vm926, %v925
  %s929 = scalar_lea.vmem %s0, 26
  %v930 = vld [vmem:[%s929] ss:$56 sm:$0xf]
  %s931 = scalar_lea.vmem %s0, 26
  %v932 = vld [vmem:[%s931] ss:$56 sm:$0xf0]
  %vm933 = vcmask 1047556
  %v934 = vsel %vm933, %v932, %v930
  %935 = vrot.lane.b32.xlu0 %v934, 32
  %v936 = vpop.permute.xlu0 %935
  %vm937 = vcmask 392448
  %s938 = scalar_lea.vmem %s1, 24
  %939 = vst.msk [vmem:[%s938] sm:$0xff] %vm937, %v936
  %s940 = scalar_lea.vmem %s0, 450
  %v941 = vld [vmem:[%s940] ss:$56 sm:$0xf]
  %s942 = scalar_lea.vmem %s0, 450
  %v943 = vld [vmem:[%s942] ss:$56 sm:$0xf0]
  %vm944 = vcmask 1047556
  %v945 = vsel %vm944, %v943, %v941
  %946 = vrot.lane.b32.xlu0 %v945, 32
  %v947 = vpop.permute.xlu0 %946
  %vm948 = vcmask 392448
  %s949 = scalar_lea.vmem %s1, 56
  %950 = vst.msk [vmem:[%s949] sm:$0xff] %vm948, %v947
  %s951 = scalar_lea.vmem %s0, 482
  %v952 = vld [vmem:[%s951] ss:$56 sm:$0xf]
  %s953 = scalar_lea.vmem %s0, 482
  %v954 = vld [vmem:[%s953] ss:$56 sm:$0xf0]
  %vm955 = vcmask 1047556
  %v956 = vsel %vm955, %v954, %v952
  %957 = vrot.lane.b32.xlu0 %v956, 32
  %v958 = vpop.permute.xlu0 %957
  %vm959 = vcmask 392448
  %s960 = scalar_lea.vmem %s1, 88
  %961 = vst.msk [vmem:[%s960] sm:$0xff] %vm959, %v958
  %s962 = scalar_lea.vmem %s0, 1
  %v963 = vld [vmem:[%s962] ss:$56 sm:$0xf]
  %s964 = scalar_lea.vmem %s0, 1
  %v965 = vld [vmem:[%s964] ss:$56 sm:$0xf0]
  %vm966 = vcmask 1047556
  %v967 = vsel %vm966, %v965, %v963
  %968 = vrot.lane.b32.xlu0 %v967, 16
  %v969 = vpop.permute.xlu0 %968
  %vm970 = vcmask 261248
  %971 = vst.msk [vmem:[%s1] sm:$0xff] %vm970, %v969
  %s972 = scalar_lea.vmem %s0, 33
  %v973 = vld [vmem:[%s972] ss:$56 sm:$0xf]
  %s974 = scalar_lea.vmem %s0, 33
  %v975 = vld [vmem:[%s974] ss:$56 sm:$0xf0]
  %vm976 = vcmask 1047556
  %v977 = vsel %vm976, %v975, %v973
  %978 = vrot.lane.b32.xlu0 %v977, 16
  %v979 = vpop.permute.xlu0 %978
  %vm980 = vcmask 261248
  %s981 = scalar_lea.vmem %s1, 32
  %982 = vst.msk [vmem:[%s981] sm:$0xff] %vm980, %v979
  %s983 = scalar_lea.vmem %s0, 457
  %v984 = vld [vmem:[%s983] ss:$56 sm:$0xf]
  %s985 = scalar_lea.vmem %s0, 457
  %v986 = vld [vmem:[%s985] ss:$56 sm:$0xf0]
  %vm987 = vcmask 1047556
  %v988 = vsel %vm987, %v986, %v984
  %989 = vrot.lane.b32.xlu0 %v988, 16
  %v990 = vpop.permute.xlu0 %989
  %vm991 = vcmask 261248
  %s992 = scalar_lea.vmem %s1, 64
  %993 = vst.msk [vmem:[%s992] sm:$0xff] %vm991, %v990
  %s994 = scalar_lea.vmem %s0, 489
  %v995 = vld [vmem:[%s994] ss:$56 sm:$0xf]
  %s996 = scalar_lea.vmem %s0, 489
  %v997 = vld [vmem:[%s996] ss:$56 sm:$0xf0]
  %vm998 = vcmask 1047556
  %v999 = vsel %vm998, %v997, %v995
  %1000 = vrot.lane.b32.xlu0 %v999, 16
  %v1001 = vpop.permute.xlu0 %1000
  %vm1002 = vcmask 261248
  %s1003 = scalar_lea.vmem %s1, 96
  %1004 = vst.msk [vmem:[%s1003] sm:$0xff] %vm1002, %v1001
  %s1005 = scalar_lea.vmem %s0, 9
  %v1006 = vld [vmem:[%s1005] ss:$56 sm:$0xf]
  %s1007 = scalar_lea.vmem %s0, 9
  %v1008 = vld [vmem:[%s1007] ss:$56 sm:$0xf0]
  %vm1009 = vcmask 1047556
  %v1010 = vsel %vm1009, %v1008, %v1006
  %1011 = vrot.lane.b32.xlu0 %v1010, 16
  %v1012 = vpop.permute.xlu0 %1011
  %vm1013 = vcmask 261248
  %s1014 = scalar_lea.vmem %s1, 8
  %1015 = vst.msk [vmem:[%s1014] sm:$0xff] %vm1013, %v1012
  %s1016 = scalar_lea.vmem %s0, 41
  %v1017 = vld [vmem:[%s1016] ss:$56 sm:$0xf]
  %s1018 = scalar_lea.vmem %s0, 41
  %v1019 = vld [vmem:[%s1018] ss:$56 sm:$0xf0]
  %vm1020 = vcmask 1047556
  %v1021 = vsel %vm1020, %v1019, %v1017
  %1022 = vrot.lane.b32.xlu0 %v1021, 16
  %v1023 = vpop.permute.xlu0 %1022
  %vm1024 = vcmask 261248
  %s1025 = scalar_lea.vmem %s1, 40
  %1026 = vst.msk [vmem:[%s1025] sm:$0xff] %vm1024, %v1023
  %s1027 = scalar_lea.vmem %s0, 465
  %v1028 = vld [vmem:[%s1027] ss:$56 sm:$0xf]
  %s1029 = scalar_lea.vmem %s0, 465
  %v1030 = vld [vmem:[%s1029] ss:$56 sm:$0xf0]
  %vm1031 = vcmask 1047556
  %v1032 = vsel %vm1031, %v1030, %v1028
  %1033 = vrot.lane.b32.xlu0 %v1032, 16
  %v1034 = vpop.permute.xlu0 %1033
  %vm1035 = vcmask 261248
  %s1036 = scalar_lea.vmem %s1, 72
  %1037 = vst.msk [vmem:[%s1036] sm:$0xff] %vm1035, %v1034
  %s1038 = scalar_lea.vmem %s0, 17
  %v1039 = vld [vmem:[%s1038] ss:$56 sm:$0xf]
  %s1040 = scalar_lea.vmem %s0, 17
  %v1041 = vld [vmem:[%s1040] ss:$56 sm:$0xf0]
  %vm1042 = vcmask 1047556
  %v1043 = vsel %vm1042, %v1041, %v1039
  %1044 = vrot.lane.b32.xlu0 %v1043, 16
  %v1045 = vpop.permute.xlu0 %1044
  %vm1046 = vcmask 261248
  %s1047 = scalar_lea.vmem %s1, 16
  %1048 = vst.msk [vmem:[%s1047] sm:$0xff] %vm1046, %v1045
  %s1049 = scalar_lea.vmem %s0, 473
  %v1050 = vld [vmem:[%s1049] ss:$56 sm:$0xf]
  %s1051 = scalar_lea.vmem %s0, 473
  %v1052 = vld [vmem:[%s1051] ss:$56 sm:$0xf0]
  %vm1053 = vcmask 1047556
  %v1054 = vsel %vm1053, %v1052, %v1050
  %1055 = vrot.lane.b32.xlu0 %v1054, 16
  %v1056 = vpop.permute.xlu0 %1055
  %vm1057 = vcmask 261248
  %s1058 = scalar_lea.vmem %s1, 80
  %1059 = vst.msk [vmem:[%s1058] sm:$0xff] %vm1057, %v1056
  %s1060 = scalar_lea.vmem %s0, 25
  %v1061 = vld [vmem:[%s1060] ss:$56 sm:$0xf]
  %s1062 = scalar_lea.vmem %s0, 25
  %v1063 = vld [vmem:[%s1062] ss:$56 sm:$0xf0]
  %vm1064 = vcmask 1047556
  %v1065 = vsel %vm1064, %v1063, %v1061
  %1066 = vrot.lane.b32.xlu0 %v1065, 16
  %v1067 = vpop.permute.xlu0 %1066
  %vm1068 = vcmask 261248
  %s1069 = scalar_lea.vmem %s1, 24
  %1070 = vst.msk [vmem:[%s1069] sm:$0xff] %vm1068, %v1067
  %s1071 = scalar_lea.vmem %s0, 449
  %v1072 = vld [vmem:[%s1071] ss:$56 sm:$0xf]
  %s1073 = scalar_lea.vmem %s0, 449
  %v1074 = vld [vmem:[%s1073] ss:$56 sm:$0xf0]
  %vm1075 = vcmask 1047556
  %v1076 = vsel %vm1075, %v1074, %v1072
  %1077 = vrot.lane.b32.xlu0 %v1076, 16
  %v1078 = vpop.permute.xlu0 %1077
  %vm1079 = vcmask 261248
  %s1080 = scalar_lea.vmem %s1, 56
  %1081 = vst.msk [vmem:[%s1080] sm:$0xff] %vm1079, %v1078
  %s1082 = scalar_lea.vmem %s0, 481
  %v1083 = vld [vmem:[%s1082] ss:$56 sm:$0xf]
  %s1084 = scalar_lea.vmem %s0, 481
  %v1085 = vld [vmem:[%s1084] ss:$56 sm:$0xf0]
  %vm1086 = vcmask 1047556
  %v1087 = vsel %vm1086, %v1085, %v1083
  %1088 = vrot.lane.b32.xlu0 %v1087, 16
  %v1089 = vpop.permute.xlu0 %1088
  %vm1090 = vcmask 261248
  %s1091 = scalar_lea.vmem %s1, 88
  %1092 = vst.msk [vmem:[%s1091] sm:$0xff] %vm1090, %v1089

// kernel: tile.29
$region0: #{tile.29}
  %s0 = inlined_call_operand.vmem [shape: f32[49,16], index: 0, kind: input, shape index: {}]
  %s1 = inlined_call_operand.vmem [shape: f32[1,784], index: 1, kind: output, shape index: {}]
  $region1: #{tile.29} parent=0
    #allocation0 [shape = 'u8[28672]{0}', space=vmem, size = 0x7000, scoped, tag = 'scoped mem for output reshape']
    %v2 = vld [vmem:[%s0] ss:$8 sm:$0xf]
    %v3 = vld [vmem:[%s0] ss:$8 sm:$0x70]
    %vm4 = vcmask 1046532
    %v5 = vsel %vm4, %v3, %v2
    %vm6 = vcmask 130048
    %7 = vst.msk [vmem:[#allocation0] ss:$8 sm:$0xf] %vm6, %v5
    %8 = vst.msk [vmem:[#allocation0] ss:$8 sm:$0x70] %vm6, %v5
    %s9 = scalar_lea.vmem %s0, 7
    %v10 = vld [vmem:[%s9] ss:$8 sm:$0xf]
    %s11 = scalar_lea.vmem %s0, 7
    %s12 = smov 48
    %v13 = vld [vmem:[%s11] ss:$8 sm:%s12]
    %vm14 = vcmask 1045508
    %v15 = vsel %vm14, %v13, %v10
    %16 = vrot.lane.b32.xlu0 %v15, 112
    %v17 = vpop.permute.xlu0 %16
    %vm18 = vcmask 1048448
    %19 = vst.msk [vmem:[#allocation0] ss:$8 sm:$0xf] %vm18, %v17
    %20 = vst.msk [vmem:[#allocation0] ss:$8 sm:$0x30] %vm18, %v17
    %s21 = scalar_lea.vmem %s0, 6
    %v22 = vld [vmem:[%s21] ss:$8 sm:$0xf]
    %s23 = scalar_lea.vmem %s0, 6
    %s24 = smov 48
    %v25 = vld [vmem:[%s23] ss:$8 sm:%s24]
    %vm26 = vcmask 1045508
    %v27 = vsel %vm26, %v25, %v22
    %28 = vrot.lane.b32.xlu0 %v27, 96
    %v29 = vpop.permute.xlu0 %28
    %vm30 = vcmask 917248
    %31 = vst.msk [vmem:[#allocation0] ss:$8 sm:$0xf] %vm30, %v29
    %32 = vst.msk [vmem:[#allocation0] ss:$8 sm:$0x30] %vm30, %v29
    %s33 = scalar_lea.vmem %s0, 5
    %v34 = vld [vmem:[%s33] ss:$8 sm:$0xf]
    %s35 = scalar_lea.vmem %s0, 5
    %s36 = smov 48
    %v37 = vld [vmem:[%s35] ss:$8 sm:%s36]
    %vm38 = vcmask 1045508
    %v39 = vsel %vm38, %v37, %v34
    %40 = vrot.lane.b32.xlu0 %v39, 80
    %v41 = vpop.permute.xlu0 %40
    %vm42 = vcmask 786048
    %43 = vst.msk [vmem:[#allocation0] ss:$8 sm:$0xf] %vm42, %v41
    %44 = vst.msk [vmem:[#allocation0] ss:$8 sm:$0x30] %vm42, %v41
    %s45 = scalar_lea.vmem %s0, 4
    %v46 = vld [vmem:[%s45] ss:$8 sm:$0xf]
    %s47 = scalar_lea.vmem %s0, 4
    %s48 = smov 48
    %v49 = vld [vmem:[%s47] ss:$8 sm:%s48]
    %vm50 = vcmask 1045508
    %v51 = vsel %vm50, %v49, %v46
    %52 = vrot.lane.b32.xlu0 %v51, 64
    %v53 = vpop.permute.xlu0 %52
    %vm54 = vcmask 654848
    %55 = vst.msk [vmem:[#allocation0] ss:$8 sm:$0xf] %vm54, %v53
    %56 = vst.msk [vmem:[#allocation0] ss:$8 sm:$0x30] %vm54, %v53
    %s57 = scalar_lea.vmem %s0, 3
    %v58 = vld [vmem:[%s57] ss:$8 sm:$0xf]
    %s59 = scalar_lea.vmem %s0, 3
    %s60 = smov 48
    %v61 = vld [vmem:[%s59] ss:$8 sm:%s60]
    %vm62 = vcmask 1045508
    %v63 = vsel %vm62, %v61, %v58
    %64 = vrot.lane.b32.xlu0 %v63, 48
    %v65 = vpop.permute.xlu0 %64
    %vm66 = vcmask 523648
    %67 = vst.msk [vmem:[#allocation0] ss:$8 sm:$0xf] %vm66, %v65
    %68 = vst.msk [vmem:[#allocation0] ss:$8 sm:$0x30] %vm66, %v65
    %s69 = scalar_lea.vmem %s0, 2
    %v70 = vld [vmem:[%s69] ss:$8 sm:$0xf]
    %s71 = scalar_lea.vmem %s0, 2
    %s72 = smov 48
    %v73 = vld [vmem:[%s71] ss:$8 sm:%s72]
    %vm74 = vcmask 1045508
    %v75 = vsel %vm74, %v73, %v70
    %76 = vrot.lane.b32.xlu0 %v75, 32
    %v77 = vpop.permute.xlu0 %76
    %vm78 = vcmask 392448
    %79 = vst.msk [vmem:[#allocation0] ss:$8 sm:$0xf] %vm78, %v77
    %80 = vst.msk [vmem:[#allocation0] ss:$8 sm:$0x30] %vm78, %v77
    %s81 = scalar_lea.vmem %s0, 1
    %v82 = vld [vmem:[%s81] ss:$8 sm:$0xf]
    %s83 = scalar_lea.vmem %s0, 1
    %s84 = smov 48
    %v85 = vld [vmem:[%s83] ss:$8 sm:%s84]
    %vm86 = vcmask 1045508
    %v87 = vsel %vm86, %v85, %v82
    %88 = vrot.lane.b32.xlu0 %v87, 16
    %v89 = vpop.permute.xlu0 %88
    %vm90 = vcmask 261248
    %91 = vst.msk [vmem:[#allocation0] ss:$8 sm:$0xf] %vm90, %v89
    %92 = vst.msk [vmem:[#allocation0] ss:$8 sm:$0x30] %vm90, %v89
    %s94 = sshllo.u32 0, 1
    %v96 = vld [vmem:[#allocation0] sm:%s94]
    %s97 = sshllo.u32 0, 1
    %98 = vst [vmem:[%s1] sm:%s97] %v96
    %s99 = scalar_lea.vmem [#allocation0], 8
    %v100 = vld [vmem:[%s99] sm:%s94]
    %s101 = sshllo.u32 0, 1
    %s102 = scalar_lea.vmem %s1, 1
    %103 = vst [vmem:[%s102] sm:%s101] %v100
    %s104 = scalar_lea.vmem [#allocation0], 16
    %v105 = vld [vmem:[%s104] sm:%s94]
    %s106 = sshllo.u32 0, 1
    %s107 = smul.addr 1, 2
    %s108 = scalar_lea.vmem %s1, %s107
    %109 = vst [vmem:[%s108] sm:%s106] %v105
    %s110 = scalar_lea.vmem [#allocation0], 24
    %v111 = vld [vmem:[%s110] sm:%s94]
    %s112 = sshllo.u32 0, 1
    %s113 = smul.addr 1, 3
    %s114 = scalar_lea.vmem %s1, %s113
    %115 = vst [vmem:[%s114] sm:%s112] %v111
    %s116 = scalar_lea.vmem [#allocation0], 32
    %v117 = vld [vmem:[%s116] sm:%s94]
    %s118 = sshllo.u32 0, 1
    %s119 = smul.addr 1, 4
    %s120 = scalar_lea.vmem %s1, %s119
    %121 = vst [vmem:[%s120] sm:%s118] %v117
    %s122 = scalar_lea.vmem [#allocation0], 40
    %v123 = vld [vmem:[%s122] sm:%s94]
    %s124 = sshllo.u32 0, 1
    %s125 = smul.addr 1, 5
    %s126 = scalar_lea.vmem %s1, %s125
    %127 = vst [vmem:[%s126] sm:%s124] %v123
    %s128 = scalar_lea.vmem [#allocation0], 48
    %v129 = vld [vmem:[%s128] sm:%s94]
    %s130 = sshllo.u32 0, 1
    %s131 = smul.addr 1, 6
    %s132 = scalar_lea.vmem %s1, %s131
    %133 = vst [vmem:[%s132] sm:%s130] %v129

// kernel: tile.39
$region0: #{tile.39}
  %s0 = inlined_call_operand.vmem [shape: f32[4,8,8], index: 0, kind: input, shape index: {}]
  %s1 = inlined_call_operand.vmem [shape: f32[32,8], index: 1, kind: output, shape index: {}]
  $region1: #{tile.39} parent=0
    #allocation0 [shape = 'u8[32768]{0}', space=vmem, size = 0x8000, scoped, tag = 'scoped mem for input reshape']
    %s3 = sshllo.u32 0, 4
    %s4 = smul.addr 4, 7
    %s5 = scalar_lea.vmem %s0, %s4
    %v6 = vld [vmem:[%s5] sm:%s3]
    %s7 = scalar_lea.vmem [#allocation0], 56
    %8 = vst [vmem:[%s7] sm:%s3] %v6
    %s9 = smul.addr 4, 6
    %s10 = scalar_lea.vmem %s0, %s9
    %v11 = vld [vmem:[%s10] sm:%s3]
    %s12 = scalar_lea.vmem [#allocation0], 48
    %13 = vst [vmem:[%s12] sm:%s3] %v11
    %s14 = smul.addr 4, 5
    %s15 = scalar_lea.vmem %s0, %s14
    %v16 = vld [vmem:[%s15] sm:%s3]
    %s17 = scalar_lea.vmem [#allocation0], 40
    %18 = vst [vmem:[%s17] sm:%s3] %v16
    %s19 = smul.addr 4, 4
    %s20 = scalar_lea.vmem %s0, %s19
    %v21 = vld [vmem:[%s20] sm:%s3]
    %s22 = scalar_lea.vmem [#allocation0], 32
    %23 = vst [vmem:[%s22] sm:%s3] %v21
    %s24 = smul.addr 4, 3
    %s25 = scalar_lea.vmem %s0, %s24
    %v26 = vld [vmem:[%s25] sm:%s3]
    %s27 = scalar_lea.vmem [#allocation0], 24
    %28 = vst [vmem:[%s27] sm:%s3] %v26
    %s29 = smul.addr 4, 2
    %s30 = scalar_lea.vmem %s0, %s29
    %v31 = vld [vmem:[%s30] sm:%s3]
    %s32 = scalar_lea.vmem [#allocation0], 16
    %33 = vst [vmem:[%s32] sm:%s3] %v31
    %s34 = scalar_lea.vmem %s0, 4
    %v35 = vld [vmem:[%s34] sm:%s3]
    %s36 = scalar_lea.vmem [#allocation0], 8
    %37 = vst [vmem:[%s36] sm:%s3] %v35
    %v38 = vld [vmem:[%s0] sm:%s3]
    %39 = vst [vmem:[#allocation0] sm:%s3] %v38
    %v40 = vld [vmem:[#allocation0] ss:$8 sm:$0xf]
    %v41 = vld [vmem:[#allocation0] ss:$8 sm:$0xf0]
    %vm42 = vcmask 1047556
    %v43 = vsel %vm42, %v41, %v40
    %vm44 = vcmask 64512
    %45 = vst.msk [vmem:[%s1] sm:$0xff] %vm44, %v43
    %s46 = scalar_lea.vmem [#allocation0], 3
    %v47 = vld [vmem:[%s46] ss:$8 sm:$0xf]
    %s48 = scalar_lea.vmem [#allocation0], 3
    %v49 = vld [vmem:[%s48] ss:$8 sm:$0xf0]
    %vm50 = vcmask 1047556
    %v51 = vsel %vm50, %v49, %v47
    %52 = vrot.lane.b32.xlu0 %v51, 24
    %v53 = vpop.permute.xlu0 %52
    %vm54 = vcmask 261312
    %55 = vst.msk [vmem:[%s1] sm:$0xff] %vm54, %v53
    %s56 = scalar_lea.vmem [#allocation0], 2
    %v57 = vld [vmem:[%s56] ss:$8 sm:$0xf]
    %s58 = scalar_lea.vmem [#allocation0], 2
    %v59 = vld [vmem:[%s58] ss:$8 sm:$0xf0]
    %vm60 = vcmask 1047556
    %v61 = vsel %vm60, %v59, %v57
    %62 = vrot.lane.b32.xlu0 %v61, 16
    %v63 = vpop.permute.xlu0 %62
    %vm64 = vcmask 195712
    %65 = vst.msk [vmem:[%s1] sm:$0xff] %vm64, %v63
    %s66 = scalar_lea.vmem [#allocation0], 1
    %v67 = vld [vmem:[%s66] ss:$8 sm:$0xf]
    %s68 = scalar_lea.vmem [#allocation0], 1
    %v69 = vld [vmem:[%s68] ss:$8 sm:$0xf0]
    %vm70 = vcmask 1047556
    %v71 = vsel %vm70, %v69, %v67
    %72 = vrot.lane.b32.xlu0 %v71, 8
    %v73 = vpop.permute.xlu0 %72
    %vm74 = vcmask 130112
    %75 = vst.msk [vmem:[%s1] sm:$0xff] %vm74, %v73

// kernel: netg_forward.3
$region0: #{netg_forward.3}
  #allocation0 [shape = 'u32[]', space=smem, size = 0x4, offset = 0x4, fixed_abs, tag = 'smem constant byte address 0x4 - core index']
  #allocation1 [shape = 'u32[144,128]{1,0:T(1,128)}', space=vmem, size = 0x12000, scoped, tag = 'internal scratch']
  %s0 = inlined_call_operand.vmem [shape: bf16[2,16], index: 0, kind: input, shape index: {}]
  %s1 = inlined_call_operand.vmem [shape: bf16[16,784], index: 1, kind: input, shape index: {}]
  %s2 = inlined_call_operand.vmem [shape: f32[784,16], index: 2, kind: input, shape index: {}]
  %s3 = inlined_call_operand.vmem [shape: f32[16,784], index: 3, kind: input, shape index: {}]
  %s4 = inlined_call_operand.vmem [shape: f32[1,784], index: 4, kind: input, shape index: {}]
  %s5 = inlined_call_operand.vmem [shape: f32[1,784], index: 5, kind: input, shape index: {}]
  %s6 = inlined_call_operand.vmem [shape: bf16[2,784], index: 6, kind: output, shape index: {}]
  %s7 = sld [smem:[#allocation0]]
  $region34: #{netg_forward.3} parent=0
    _
  %s9 = ssub.s32 1, %s7
  %s10 = scalar_select 0, %s9, %s7
  // Predicated region
  $region2: #{netg_forward.3} parent=0 // pred_check
    _
  $region3: #{netg_forward.3} parent=0 // pred_check_branch
    %12 = sbr.rel (0) target = $region5
  $region4: #{netg_forward.3} parent=0 // pred_region
    _
  $region5: #{netg_forward.3} parent=0 // pred_fallthru
    _
  // Predicated region
  $region6: #{netg_forward.3} parent=0 // pred_check
    _
  $region7: #{netg_forward.3} parent=0 // pred_check_branch
    %14 = sbr.rel (0) target = $region9
  $region8: #{netg_forward.3} parent=0 // pred_region
    _
  $region9: #{netg_forward.3} parent=0 // pred_fallthru
    _
  // Predicated region
  $region10: #{netg_forward.3} parent=0 // pred_check
    _
  $region11: #{netg_forward.3} parent=0 // pred_check_branch
    %16 = sbr.rel (0) target = $region13
  $region12: #{netg_forward.3} parent=0 // pred_region
    _
  $region13: #{netg_forward.3} parent=0 // pred_fallthru
    _
  // Predicated region
  $region14: #{netg_forward.3} parent=0 // pred_check
    _
  $region15: #{netg_forward.3} parent=0 // pred_check_branch
    %18 = sbr.rel (0) target = $region17
  $region16: #{netg_forward.3} parent=0 // pred_region
    _
  $region17: #{netg_forward.3} parent=0 // pred_fallthru
    _
  // Predicated region
  $region18: #{netg_forward.3} parent=0 // pred_check
    _
  $region19: #{netg_forward.3} parent=0 // pred_check_branch
    %20 = sbr.rel (0) target = $region21
  $region20: #{netg_forward.3} parent=0 // pred_region
    _
  $region21: #{netg_forward.3} parent=0 // pred_fallthru
    _
  // Predicated region
  $region22: #{netg_forward.3} parent=0 // pred_check
    _
  $region23: #{netg_forward.3} parent=0 // pred_check_branch
    %22 = sbr.rel (0) target = $region25
  $region24: #{netg_forward.3} parent=0 // pred_region
    _
  $region25: #{netg_forward.3} parent=0 // pred_fallthru
    _
  %v24 = vld [vmem:[%s0] sm:$0x1]
  %v25 = vld [vmem:[%s1] sm:$0xff]
  %v26 = vld [vmem:[%s1 + $0x8] sm:$0xff]
  %v27 = vld [vmem:[%s1 + $0x10] sm:$0xff]
  %v28 = vld [vmem:[%s1 + $0x18] sm:$0xf]
  %v29 = vld [vmem:[%s1 + $0x1c] sm:$0xff]
  %v30 = vld [vmem:[%s1 + $0x24] sm:$0xff]
  %v31 = vld [vmem:[%s1 + $0x2c] sm:$0xff]
  %v32 = vld [vmem:[%s1 + $0x34] sm:$0xf]
  %v41 = vunpack.c.l.b16 %v25
  %v42 = vunpack.c.h.b16 %v25
  %v43 = vunpack.c.l.b16 %v26
  %v44 = vunpack.c.h.b16 %v26
  %v45 = vunpack.c.l.b16 %v27
  %v46 = vunpack.c.h.b16 %v27
  %v47 = vunpack.c.l.b16 %v28
  %v48 = vunpack.c.l.b16 %v29
  %v49 = vunpack.c.h.b16 %v29
  %v50 = vunpack.c.l.b16 %v30
  %v51 = vunpack.c.h.b16 %v30
  %v52 = vunpack.c.l.b16 %v31
  %v53 = vunpack.c.h.b16 %v31
  %v54 = vunpack.c.l.b16 %v32
  %v55 = vpack.c.b16 %v48, %v41
  %v56 = vpack.c.b16 %v49, %v42
  %v57 = vpack.c.b16 %v50, %v43
  %v58 = vpack.c.b16 %v51, %v44
  %v59 = vpack.c.b16 %v52, %v45
  %v60 = vpack.c.b16 %v53, %v46
  %v61 = vpack.c.b16 %v54, %v47
  %vm69 = vcmask 130048
  %v71 = vsel %vm69, %v24, 0
  %73 = vmatprep.subr.bf16.mxu0 %v56
  %74 = vmatpush1.bf16.msra.mxu0 %v55
  %75 = vmatprep.subr.bf16.mxu0 0
  %76 = vmatpush1.bf16.msra.mxu0 0
  %77 = vmatprep.subr.bf16.mxu0 0
  %78 = vmatpush1.bf16.msra.mxu0 0
  %79 = vmatprep.subr.bf16.mxu0 0
  %80 = vmatpush1.bf16.msra.mxu0 0
  %81 = vmatprep.subr.bf16.mxu0 0
  %82 = vmatpush1.bf16.msra.mxu0 0
  %83 = vmatprep.subr.bf16.mxu0 0
  %84 = vmatpush1.bf16.msra.mxu0 0
  %85 = vmatprep.subr.bf16.mxu0 0
  %86 = vmatpush1.bf16.msra.mxu0 0
  %87 = vmatprep.subr.bf16.mxu0 0
  %88 = vmatpush1.bf16.msra.mxu0 0
  %89 = vmatprep.subr.bf16.mxu0 0
  %90 = vmatpush1.bf16.msra.mxu0 0
  %91 = vmatprep.subr.bf16.mxu0 0
  %92 = vmatpush1.bf16.msra.mxu0 0
  %93 = vmatprep.subr.bf16.mxu0 0
  %94 = vmatpush1.bf16.msra.mxu0 0
  %95 = vmatprep.subr.bf16.mxu0 0
  %96 = vmatpush1.bf16.msra.mxu0 0
  %97 = vmatprep.subr.bf16.mxu0 0
  %98 = vmatpush1.bf16.msra.mxu0 0
  %99 = vmatprep.subr.bf16.mxu0 0
  %100 = vmatpush1.bf16.msra.mxu0 0
  %101 = vmatprep.subr.bf16.mxu0 0
  %102 = vmatpush1.bf16.msra.mxu0 0
  %103 = vmatprep.subr.bf16.mxu0 0
  %104 = vmatpush1.bf16.msra.mxu0 0
  %105 = vmatprep.mubr.bf16.mxu0 0
  %106 = vmatmul.mubr.bf16.gmra.mrb[0].mxu0 %v71
  %v107 = vpop.f32.mrb[0].mxu0
  %v108 = vadd.f32 0.0, %v107
  %v109 = vpop.f32.mrb[0].mxu0
  %v110 = vadd.f32 0.0, %v109
  %v111 = vpop.f32.mrb[0].mxu0
  %v112 = vpop.f32.mrb[0].mxu0
  %113 = vdwg.mxu0
  %114 = vmatprep.subr.bf16.mxu0 %v58
  %115 = vmatpush1.bf16.msra.mxu0 %v57
  %116 = vmatprep.subr.bf16.mxu0 0
  %117 = vmatpush1.bf16.msra.mxu0 0
  %118 = vmatprep.subr.bf16.mxu0 0
  %119 = vmatpush1.bf16.msra.mxu0 0
  %120 = vmatprep.subr.bf16.mxu0 0
  %121 = vmatpush1.bf16.msra.mxu0 0
  %122 = vmatprep.subr.bf16.mxu0 0
  %123 = vmatpush1.bf16.msra.mxu0 0
  %124 = vmatprep.subr.bf16.mxu0 0
  %125 = vmatpush1.bf16.msra.mxu0 0
  %126 = vmatprep.subr.bf16.mxu0 0
  %127 = vmatpush1.bf16.msra.mxu0 0
  %128 = vmatprep.subr.bf16.mxu0 0
  %129 = vmatpush1.bf16.msra.mxu0 0
  %130 = vmatprep.subr.bf16.mxu0 0
  %131 = vmatpush1.bf16.msra.mxu0 0
  %132 = vmatprep.subr.bf16.mxu0 0
  %133 = vmatpush1.bf16.msra.mxu0 0
  %134 = vmatprep.subr.bf16.mxu0 0
  %135 = vmatpush1.bf16.msra.mxu0 0
  %136 = vmatprep.subr.bf16.mxu0 0
  %137 = vmatpush1.bf16.msra.mxu0 0
  %138 = vmatprep.subr.bf16.mxu0 0
  %139 = vmatpush1.bf16.msra.mxu0 0
  %140 = vmatprep.subr.bf16.mxu0 0
  %141 = vmatpush1.bf16.msra.mxu0 0
  %142 = vmatprep.subr.bf16.mxu0 0
  %143 = vmatpush1.bf16.msra.mxu0 0
  %144 = vmatprep.subr.bf16.mxu0 0
  %145 = vmatpush1.bf16.msra.mxu0 0
  %146 = vmatprep.mubr.bf16.mxu0 0
  %147 = vmatmul.mubr.bf16.gmra.mrb[0].mxu0 %v71
  %v148 = vpop.f32.mrb[0].mxu0
  %v149 = vadd.f32 0.0, %v148
  %v150 = vpop.f32.mrb[0].mxu0
  %v151 = vadd.f32 0.0, %v150
  %v152 = vpop.f32.mrb[0].mxu0
  %v153 = vpop.f32.mrb[0].mxu0
  %154 = vdwg.mxu0
  %155 = vmatprep.subr.bf16.mxu0 %v60
  %156 = vmatpush1.bf16.msra.mxu0 %v59
  %157 = vmatprep.subr.bf16.mxu0 0
  %158 = vmatpush1.bf16.msra.mxu0 0
  %159 = vmatprep.subr.bf16.mxu0 0
  %160 = vmatpush1.bf16.msra.mxu0 0
  %161 = vmatprep.subr.bf16.mxu0 0
  %162 = vmatpush1.bf16.msra.mxu0 0
  %163 = vmatprep.subr.bf16.mxu0 0
  %164 = vmatpush1.bf16.msra.mxu0 0
  %165 = vmatprep.subr.bf16.mxu0 0
  %166 = vmatpush1.bf16.msra.mxu0 0
  %167 = vmatprep.subr.bf16.mxu0 0
  %168 = vmatpush1.bf16.msra.mxu0 0
  %169 = vmatprep.subr.bf16.mxu0 0
  %170 = vmatpush1.bf16.msra.mxu0 0
  %171 = vmatprep.subr.bf16.mxu0 0
  %172 = vmatpush1.bf16.msra.mxu0 0
  %173 = vmatprep.subr.bf16.mxu0 0
  %174 = vmatpush1.bf16.msra.mxu0 0
  %175 = vmatprep.subr.bf16.mxu0 0
  %176 = vmatpush1.bf16.msra.mxu0 0
  %177 = vmatprep.subr.bf16.mxu0 0
  %178 = vmatpush1.bf16.msra.mxu0 0
  %179 = vmatprep.subr.bf16.mxu0 0
  %180 = vmatpush1.bf16.msra.mxu0 0
  %181 = vmatprep.subr.bf16.mxu0 0
  %182 = vmatpush1.bf16.msra.mxu0 0
  %183 = vmatprep.subr.bf16.mxu0 0
  %184 = vmatpush1.bf16.msra.mxu0 0
  %185 = vmatprep.subr.bf16.mxu0 0
  %186 = vmatpush1.bf16.msra.mxu0 0
  %187 = vmatprep.mubr.bf16.mxu0 0
  %188 = vmatmul.mubr.bf16.gmra.mrb[0].mxu0 %v71
  %v189 = vpop.f32.mrb[0].mxu0
  %v190 = vadd.f32 0.0, %v189
  %v191 = vpop.f32.mrb[0].mxu0
  %v192 = vadd.f32 0.0, %v191
  %v193 = vpop.f32.mrb[0].mxu0
  %v194 = vpop.f32.mrb[0].mxu0
  %195 = vdwg.mxu0
  %196 = vmatprep.subr.bf16.mxu0 0
  %197 = vmatpush1.bf16.msra.mxu0 %v61
  %198 = vmatprep.subr.bf16.mxu0 0
  %199 = vmatpush1.bf16.msra.mxu0 0
  %200 = vmatprep.subr.bf16.mxu0 0
  %201 = vmatpush1.bf16.msra.mxu0 0
  %202 = vmatprep.subr.bf16.mxu0 0
  %203 = vmatpush1.bf16.msra.mxu0 0
  %204 = vmatprep.subr.bf16.mxu0 0
  %205 = vmatpush1.bf16.msra.mxu0 0
  %206 = vmatprep.subr.bf16.mxu0 0
  %207 = vmatpush1.bf16.msra.mxu0 0
  %208 = vmatprep.subr.bf16.mxu0 0
  %209 = vmatpush1.bf16.msra.mxu0 0
  %210 = vmatprep.subr.bf16.mxu0 0
  %211 = vmatpush1.bf16.msra.mxu0 0
  %212 = vmatprep.subr.bf16.mxu0 0
  %213 = vmatpush1.bf16.msra.mxu0 0
  %214 = vmatprep.subr.bf16.mxu0 0
  %215 = vmatpush1.bf16.msra.mxu0 0
  %216 = vmatprep.subr.bf16.mxu0 0
  %217 = vmatpush1.bf16.msra.mxu0 0
  %218 = vmatprep.subr.bf16.mxu0 0
  %219 = vmatpush1.bf16.msra.mxu0 0
  %220 = vmatprep.subr.bf16.mxu0 0
  %221 = vmatpush1.bf16.msra.mxu0 0
  %222 = vmatprep.subr.bf16.mxu0 0
  %223 = vmatpush1.bf16.msra.mxu0 0
  %224 = vmatprep.subr.bf16.mxu0 0
  %225 = vmatpush1.bf16.msra.mxu0 0
  %226 = vmatprep.subr.bf16.mxu0 0
  %227 = vmatpush1.bf16.msra.mxu0 0
  %228 = vmatprep.mubr.bf16.mxu0 0
  %229 = vmatmul.mubr.bf16.gmra.mrb[0].mxu0 %v71
  %v230 = vpop.f32.mrb[0].mxu0
  %v231 = vadd.f32 0.0, %v230
  %v232 = vpop.f32.mrb[0].mxu0
  %v233 = vpop.f32.mrb[0].mxu0
  %v234 = vpop.f32.mrb[0].mxu0
  %235 = vdwg.mxu0
  %vm236 = vcmask 1041408
  %v237 = vsel %vm236, %v108, 0.0
  %v238 = vrot.slane %v237, 4
  %v239 = vadd.f32 %v237, %v238
  %v240 = vrot.slane %v239, 2
  %v241 = vadd.f32 %v239, %v240
  %v242 = vrot.slane %v241, 1
  %v243 = vadd.f32 %v241, %v242
  %v244 = vsel %vm236, %v110, 0.0
  %v245 = vrot.slane %v244, 4
  %v246 = vadd.f32 %v244, %v245
  %v247 = vrot.slane %v246, 2
  %v248 = vadd.f32 %v246, %v247
  %v249 = vrot.slane %v248, 1
  %v250 = vadd.f32 %v248, %v249
  %v251 = vsel %vm236, %v149, 0.0
  %v252 = vrot.slane %v251, 4
  %v253 = vadd.f32 %v251, %v252
  %v254 = vrot.slane %v253, 2
  %v255 = vadd.f32 %v253, %v254
  %v256 = vrot.slane %v255, 1
  %v257 = vadd.f32 %v255, %v256
  %v258 = vsel %vm236, %v151, 0.0
  %v259 = vrot.slane %v258, 4
  %v260 = vadd.f32 %v258, %v259
  %v261 = vrot.slane %v260, 2
  %v262 = vadd.f32 %v260, %v261
  %v263 = vrot.slane %v262, 1
  %v264 = vadd.f32 %v262, %v263
  %v265 = vsel %vm236, %v190, 0.0
  %v266 = vrot.slane %v265, 4
  %v267 = vadd.f32 %v265, %v266
  %v268 = vrot.slane %v267, 2
  %v269 = vadd.f32 %v267, %v268
  %v270 = vrot.slane %v269, 1
  %v271 = vadd.f32 %v269, %v270
  %v272 = vsel %vm236, %v192, 0.0
  %v273 = vrot.slane %v272, 4
  %v274 = vadd.f32 %v272, %v273
  %v275 = vrot.slane %v274, 2
  %v276 = vadd.f32 %v274, %v275
  %v277 = vrot.slane %v276, 1
  %v278 = vadd.f32 %v276, %v277
  %vm279 = vcmask 123904
  %v280 = vsel %vm279, %v231, 0.0
  %v281 = vrot.slane %v280, 4
  %v282 = vadd.f32 %v280, %v281
  %v283 = vrot.slane %v282, 2
  %v284 = vadd.f32 %v282, %v283
  %v285 = vrot.slane %v284, 1
  %v286 = vadd.f32 %v284, %v285
  %v287 = vmul.f32 %v108, %v108
  %v288 = vmul.f32 %v110, %v110
  %v289 = vmul.f32 %v149, %v149
  %v290 = vmul.f32 %v151, %v151
  %v291 = vmul.f32 %v190, %v190
  %v292 = vmul.f32 %v192, %v192
  %v293 = vmul.f32 %v231, %v231
  %v294 = vsel %vm236, %v287, 0.0
  %v295 = vrot.slane %v294, 4
  %v296 = vadd.f32 %v294, %v295
  %v297 = vrot.slane %v296, 2
  %v298 = vadd.f32 %v296, %v297
  %v299 = vrot.slane %v298, 1
  %v300 = vadd.f32 %v298, %v299
  %v301 = vsel %vm236, %v288, 0.0
  %v302 = vrot.slane %v301, 4
  %v303 = vadd.f32 %v301, %v302
  %v304 = vrot.slane %v303, 2
  %v305 = vadd.f32 %v303, %v304
  %v306 = vrot.slane %v305, 1
  %v307 = vadd.f32 %v305, %v306
  %v308 = vsel %vm236, %v289, 0.0
  %v309 = vrot.slane %v308, 4
  %v310 = vadd.f32 %v308, %v309
  %v311 = vrot.slane %v310, 2
  %v312 = vadd.f32 %v310, %v311
  %v313 = vrot.slane %v312, 1
  %v314 = vadd.f32 %v312, %v313
  %v315 = vsel %vm236, %v290, 0.0
  %v316 = vrot.slane %v315, 4
  %v317 = vadd.f32 %v315, %v316
  %v318 = vrot.slane %v317, 2
  %v319 = vadd.f32 %v317, %v318
  %v320 = vrot.slane %v319, 1
  %v321 = vadd.f32 %v319, %v320
  %v322 = vsel %vm236, %v291, 0.0
  %v323 = vrot.slane %v322, 4
  %v324 = vadd.f32 %v322, %v323
  %v325 = vrot.slane %v324, 2
  %v326 = vadd.f32 %v324, %v325
  %v327 = vrot.slane %v326, 1
  %v328 = vadd.f32 %v326, %v327
  %v329 = vsel %vm236, %v292, 0.0
  %v330 = vrot.slane %v329, 4
  %v331 = vadd.f32 %v329, %v330
  %v332 = vrot.slane %v331, 2
  %v333 = vadd.f32 %v331, %v332
  %v334 = vrot.slane %v333, 1
  %v335 = vadd.f32 %v333, %v334
  %v336 = vsel %vm279, %v293, 0.0
  %v337 = vrot.slane %v336, 4
  %v338 = vadd.f32 %v336, %v337
  %v339 = vrot.slane %v338, 2
  %v340 = vadd.f32 %v338, %v339
  %v341 = vrot.slane %v340, 1
  %v342 = vadd.f32 %v340, %v341
  %v343 = vld [vmem:[%s2] sm:$0xff]
  %v344 = vld [vmem:[%s2 + $0x8] sm:$0xff]
  %v345 = vld [vmem:[%s2 + $0x10] sm:$0xff]
  %v346 = vld [vmem:[%s2 + $0x18] sm:$0xff]
  %v347 = vld [vmem:[%s2 + $0x20] sm:$0xff]
  %v348 = vld [vmem:[%s2 + $0x28] sm:$0xff]
  %v349 = vld [vmem:[%s2 + $0x30] sm:$0xff]
  %v350 = vld [vmem:[%s2 + $0x38] sm:$0xff]
  %v351 = vld [vmem:[%s2 + $0x40] sm:$0xff]
  %v352 = vld [vmem:[%s2 + $0x48] sm:$0xff]
  %v353 = vld [vmem:[%s2 + $0x50] sm:$0xff]
  %v354 = vld [vmem:[%s2 + $0x58] sm:$0xff]
  %v355 = vld [vmem:[%s2 + $0x60] sm:$0xff]
  %v356 = vld [vmem:[%s2 + $0x68] sm:$0xff]
  %v357 = vld [vmem:[%s2 + $0x70] sm:$0xff]
  %v358 = vld [vmem:[%s2 + $0x78] sm:$0xff]
  %v359 = vld [vmem:[%s2 + $0x80] sm:$0xff]
  %v360 = vld [vmem:[%s2 + $0x88] sm:$0xff]
  %v361 = vld [vmem:[%s2 + $0x90] sm:$0xff]
  %v362 = vld [vmem:[%s2 + $0x98] sm:$0xff]
  %v363 = vld [vmem:[%s2 + $0xa0] sm:$0xff]
  %v364 = vld [vmem:[%s2 + $0xa8] sm:$0xff]
  %v365 = vld [vmem:[%s2 + $0xb0] sm:$0xff]
  %v366 = vld [vmem:[%s2 + $0xb8] sm:$0xff]
  %v367 = vld [vmem:[%s2 + $0xc0] sm:$0xff]
  %v368 = vld [vmem:[%s2 + $0xc8] sm:$0xff]
  %v369 = vld [vmem:[%s2 + $0xd0] sm:$0xff]
  %v370 = vld [vmem:[%s2 + $0xd8] sm:$0xff]
  %v371 = vld [vmem:[%s2 + $0xe0] sm:$0xff]
  %v372 = vld [vmem:[%s2 + $0xe8] sm:$0xff]
  %v373 = vld [vmem:[%s2 + $0xf0] sm:$0xff]
  %v374 = vld [vmem:[%s2 + $0xf8] sm:$0xff]
  %v375 = vld [vmem:[%s2 + $0x100] sm:$0xff]
  %v376 = vld [vmem:[%s2 + $0x108] sm:$0xff]
  %v377 = vld [vmem:[%s2 + $0x110] sm:$0xff]
  %v378 = vld [vmem:[%s2 + $0x118] sm:$0xff]
  %v379 = vld [vmem:[%s2 + $0x120] sm:$0xff]
  %v380 = vld [vmem:[%s2 + $0x128] sm:$0xff]
  %v381 = vld [vmem:[%s2 + $0x130] sm:$0xff]
  %v382 = vld [vmem:[%s2 + $0x138] sm:$0xff]
  %v383 = vld [vmem:[%s2 + $0x140] sm:$0xff]
  %v384 = vld [vmem:[%s2 + $0x148] sm:$0xff]
  %v385 = vld [vmem:[%s2 + $0x150] sm:$0xff]
  %v386 = vld [vmem:[%s2 + $0x158] sm:$0xff]
  %v387 = vld [vmem:[%s2 + $0x160] sm:$0xff]
  %v388 = vld [vmem:[%s2 + $0x168] sm:$0xff]
  %v389 = vld [vmem:[%s2 + $0x170] sm:$0xff]
  %v390 = vld [vmem:[%s2 + $0x178] sm:$0xff]
  %v391 = vld [vmem:[%s2 + $0x180] sm:$0xff]
  %v392 = vld [vmem:[%s2 + $0x188] sm:$0xff]
  %v393 = vld [vmem:[%s2 + $0x190] sm:$0xff]
  %v394 = vld [vmem:[%s2 + $0x198] sm:$0xff]
  %v395 = vld [vmem:[%s2 + $0x1a0] sm:$0xff]
  %v396 = vld [vmem:[%s2 + $0x1a8] sm:$0xff]
  %v397 = vld [vmem:[%s2 + $0x1b0] sm:$0xff]
  %v398 = vld [vmem:[%s2 + $0x1b8] sm:$0xff]
  %v399 = vld [vmem:[%s2 + $0x1c0] sm:$0xff]
  %v400 = vld [vmem:[%s2 + $0x1c8] sm:$0xff]
  %v401 = vld [vmem:[%s2 + $0x1d0] sm:$0xff]
  %v402 = vld [vmem:[%s2 + $0x1d8] sm:$0xff]
  %v403 = vld [vmem:[%s2 + $0x1e0] sm:$0xff]
  %v404 = vld [vmem:[%s2 + $0x1e8] sm:$0xff]
  %v405 = vld [vmem:[%s2 + $0x1f0] sm:$0xff]
  %v406 = vld [vmem:[%s2 + $0x1f8] sm:$0xff]
  %v407 = vld [vmem:[%s2 + $0x200] sm:$0xff]
  %v408 = vld [vmem:[%s2 + $0x208] sm:$0xff]
  %v409 = vld [vmem:[%s2 + $0x210] sm:$0xff]
  %v410 = vld [vmem:[%s2 + $0x218] sm:$0xff]
  %v411 = vld [vmem:[%s2 + $0x220] sm:$0xff]
  %v412 = vld [vmem:[%s2 + $0x228] sm:$0xff]
  %v413 = vld [vmem:[%s2 + $0x230] sm:$0xff]
  %v414 = vld [vmem:[%s2 + $0x238] sm:$0xff]
  %v415 = vld [vmem:[%s2 + $0x240] sm:$0xff]
  %v416 = vld [vmem:[%s2 + $0x248] sm:$0xff]
  %v417 = vld [vmem:[%s2 + $0x250] sm:$0xff]
  %v418 = vld [vmem:[%s2 + $0x258] sm:$0xff]
  %v419 = vld [vmem:[%s2 + $0x260] sm:$0xff]
  %v420 = vld [vmem:[%s2 + $0x268] sm:$0xff]
  %v421 = vld [vmem:[%s2 + $0x270] sm:$0xff]
  %v422 = vld [vmem:[%s2 + $0x278] sm:$0xff]
  %v423 = vld [vmem:[%s2 + $0x280] sm:$0xff]
  %v424 = vld [vmem:[%s2 + $0x288] sm:$0xff]
  %v425 = vld [vmem:[%s2 + $0x290] sm:$0xff]
  %v426 = vld [vmem:[%s2 + $0x298] sm:$0xff]
  %v427 = vld [vmem:[%s2 + $0x2a0] sm:$0xff]
  %v428 = vld [vmem:[%s2 + $0x2a8] sm:$0xff]
  %v429 = vld [vmem:[%s2 + $0x2b0] sm:$0xff]
  %v430 = vld [vmem:[%s2 + $0x2b8] sm:$0xff]
  %v431 = vld [vmem:[%s2 + $0x2c0] sm:$0xff]
  %v432 = vld [vmem:[%s2 + $0x2c8] sm:$0xff]
  %v433 = vld [vmem:[%s2 + $0x2d0] sm:$0xff]
  %v434 = vld [vmem:[%s2 + $0x2d8] sm:$0xff]
  %v435 = vld [vmem:[%s2 + $0x2e0] sm:$0xff]
  %v436 = vld [vmem:[%s2 + $0x2e8] sm:$0xff]
  %v437 = vld [vmem:[%s2 + $0x2f0] sm:$0xff]
  %v438 = vld [vmem:[%s2 + $0x2f8] sm:$0xff]
  %v439 = vld [vmem:[%s2 + $0x300] sm:$0xff]
  %v440 = vld [vmem:[%s2 + $0x308] sm:$0xff]
  %v442 = vsel %vm69, %v286, 0
  %444 = vmatprep.subr.mxu0 0.0
  %445 = vmatpush1.msra.mxu0 %v343
  %446 = vmatprep.subr.mxu0 0.0
  %447 = vmatpush1.msra.mxu0 %v344
  %448 = vmatprep.subr.mxu0 0.0
  %449 = vmatpush1.msra.mxu0 %v345
  %450 = vmatprep.subr.mxu0 0.0
  %451 = vmatpush1.msra.mxu0 %v346
  %452 = vmatprep.subr.mxu0 0.0
  %453 = vmatpush1.msra.mxu0 %v347
  %454 = vmatprep.subr.mxu0 0.0
  %455 = vmatpush1.msra.mxu0 %v348
  %456 = vmatprep.subr.mxu0 0.0
  %457 = vmatpush1.msra.mxu0 %v349
  %458 = vmatprep.subr.mxu0 0.0
  %459 = vmatpush1.msra.mxu0 %v350
  %460 = vmatprep.subr.mxu0 0.0
  %461 = vmatpush1.msra.mxu0 %v351
  %462 = vmatprep.subr.mxu0 0.0
  %463 = vmatpush1.msra.mxu0 %v352
  %464 = vmatprep.subr.mxu0 0.0
  %465 = vmatpush1.msra.mxu0 %v353
  %466 = vmatprep.subr.mxu0 0.0
  %467 = vmatpush1.msra.mxu0 %v354
  %468 = vmatprep.subr.mxu0 0.0
  %469 = vmatpush1.msra.mxu0 %v355
  %470 = vmatprep.subr.mxu0 0.0
  %471 = vmatpush1.msra.mxu0 %v356
  %472 = vmatprep.subr.mxu0 0.0
  %473 = vmatpush1.msra.mxu0 %v357
  %474 = vmatprep.subr.mxu0 0.0
  %475 = vmatpush1.msra.mxu0 %v358
  %476 = vmatprep.subr.mxu0 0.0
  %477 = vmatpush1.msra.mxu0 %v359
  %478 = vmatprep.subr.mxu0 0.0
  %479 = vmatpush1.msra.mxu0 %v360
  %480 = vmatprep.subr.mxu0 0.0
  %481 = vmatpush1.msra.mxu0 %v361
  %482 = vmatprep.subr.mxu0 0.0
  %483 = vmatpush1.msra.mxu0 %v362
  %484 = vmatprep.subr.mxu0 0.0
  %485 = vmatpush1.msra.mxu0 %v363
  %486 = vmatprep.subr.mxu0 0.0
  %487 = vmatpush1.msra.mxu0 %v364
  %488 = vmatprep.subr.mxu0 0.0
  %489 = vmatpush1.msra.mxu0 %v365
  %490 = vmatprep.subr.mxu0 0.0
  %491 = vmatpush1.msra.mxu0 %v366
  %492 = vmatprep.subr.mxu0 0.0
  %493 = vmatpush1.msra.mxu0 %v367
  %494 = vmatprep.subr.mxu0 0.0
  %495 = vmatpush1.msra.mxu0 %v368
  %496 = vmatprep.subr.mxu0 0.0
  %497 = vmatpush1.msra.mxu0 %v369
  %498 = vmatprep.subr.mxu0 0.0
  %499 = vmatpush1.msra.mxu0 %v370
  %500 = vmatprep.subr.mxu0 0.0
  %501 = vmatpush1.msra.mxu0 %v371
  %502 = vmatprep.subr.mxu0 0.0
  %503 = vmatpush1.msra.mxu0 %v372
  %504 = vmatprep.subr.mxu0 0.0
  %505 = vmatpush1.msra.mxu0 %v373
  %506 = vmatprep.subr.mxu0 0.0
  %507 = vmatpush1.msra.mxu0 %v374
  %508 = vmatprep.mubr.f32.mxu0 %v250
  %509 = vmatmul.mubr.f32.gmra.mrb[0].mxu0 %v243
  %v510 = vpop.f32.mrb[0].mxu0
  %v511 = vadd.f32 0.0, %v510
  %v512 = vpop.f32.mrb[0].mxu0
  %513 = vdwg.mxu0
  %514 = vmatprep.subr.mxu0 0.0
  %515 = vmatpush1.msra.mxu0 %v375
  %516 = vmatprep.subr.mxu0 0.0
  %517 = vmatpush1.msra.mxu0 %v376
  %518 = vmatprep.subr.mxu0 0.0
  %519 = vmatpush1.msra.mxu0 %v377
  %520 = vmatprep.subr.mxu0 0.0
  %521 = vmatpush1.msra.mxu0 %v378
  %522 = vmatprep.subr.mxu0 0.0
  %523 = vmatpush1.msra.mxu0 %v379
  %524 = vmatprep.subr.mxu0 0.0
  %525 = vmatpush1.msra.mxu0 %v380
  %526 = vmatprep.subr.mxu0 0.0
  %527 = vmatpush1.msra.mxu0 %v381
  %528 = vmatprep.subr.mxu0 0.0
  %529 = vmatpush1.msra.mxu0 %v382
  %530 = vmatprep.subr.mxu0 0.0
  %531 = vmatpush1.msra.mxu0 %v383
  %532 = vmatprep.subr.mxu0 0.0
  %533 = vmatpush1.msra.mxu0 %v384
  %534 = vmatprep.subr.mxu0 0.0
  %535 = vmatpush1.msra.mxu0 %v385
  %536 = vmatprep.subr.mxu0 0.0
  %537 = vmatpush1.msra.mxu0 %v386
  %538 = vmatprep.subr.mxu0 0.0
  %539 = vmatpush1.msra.mxu0 %v387
  %540 = vmatprep.subr.mxu0 0.0
  %541 = vmatpush1.msra.mxu0 %v388
  %542 = vmatprep.subr.mxu0 0.0
  %543 = vmatpush1.msra.mxu0 %v389
  %544 = vmatprep.subr.mxu0 0.0
  %545 = vmatpush1.msra.mxu0 %v390
  %546 = vmatprep.subr.mxu0 0.0
  %547 = vmatpush1.msra.mxu0 %v391
  %548 = vmatprep.subr.mxu0 0.0
  %549 = vmatpush1.msra.mxu0 %v392
  %550 = vmatprep.subr.mxu0 0.0
  %551 = vmatpush1.msra.mxu0 %v393
  %552 = vmatprep.subr.mxu0 0.0
  %553 = vmatpush1.msra.mxu0 %v394
  %554 = vmatprep.subr.mxu0 0.0
  %555 = vmatpush1.msra.mxu0 %v395
  %556 = vmatprep.subr.mxu0 0.0
  %557 = vmatpush1.msra.mxu0 %v396
  %558 = vmatprep.subr.mxu0 0.0
  %559 = vmatpush1.msra.mxu0 %v397
  %560 = vmatprep.subr.mxu0 0.0
  %561 = vmatpush1.msra.mxu0 %v398
  %562 = vmatprep.subr.mxu0 0.0
  %563 = vmatpush1.msra.mxu0 %v399
  %564 = vmatprep.subr.mxu0 0.0
  %565 = vmatpush1.msra.mxu0 %v400
  %566 = vmatprep.subr.mxu0 0.0
  %567 = vmatpush1.msra.mxu0 %v401
  %568 = vmatprep.subr.mxu0 0.0
  %569 = vmatpush1.msra.mxu0 %v402
  %570 = vmatprep.subr.mxu0 0.0
  %571 = vmatpush1.msra.mxu0 %v403
  %572 = vmatprep.subr.mxu0 0.0
  %573 = vmatpush1.msra.mxu0 %v404
  %574 = vmatprep.subr.mxu0 0.0
  %575 = vmatpush1.msra.mxu0 %v405
  %576 = vmatprep.subr.mxu0 0.0
  %577 = vmatpush1.msra.mxu0 %v406
  %578 = vmatprep.mubr.f32.mxu0 %v264
  %579 = vmatmul.mubr.f32.gmra.mrb[0].mxu0 %v257
  %v580 = vpop.f32.mrb[0].mxu0
  %v581 = vadd.f32 %v511, %v580
  %v582 = vpop.f32.mrb[0].mxu0
  %583 = vdwg.mxu0
  %584 = vmatprep.subr.mxu0 0.0
  %585 = vmatpush1.msra.mxu0 %v407
  %586 = vmatprep.subr.mxu0 0.0
  %587 = vmatpush1.msra.mxu0 %v408
  %588 = vmatprep.subr.mxu0 0.0
  %589 = vmatpush1.msra.mxu0 %v409
  %590 = vmatprep.subr.mxu0 0.0
  %591 = vmatpush1.msra.mxu0 %v410
  %592 = vmatprep.subr.mxu0 0.0
  %593 = vmatpush1.msra.mxu0 %v411
  %594 = vmatprep.subr.mxu0 0.0
  %595 = vmatpush1.msra.mxu0 %v412
  %596 = vmatprep.subr.mxu0 0.0
  %597 = vmatpush1.msra.mxu0 %v413
  %598 = vmatprep.subr.mxu0 0.0
  %599 = vmatpush1.msra.mxu0 %v414
  %600 = vmatprep.subr.mxu0 0.0
  %601 = vmatpush1.msra.mxu0 %v415
  %602 = vmatprep.subr.mxu0 0.0
  %603 = vmatpush1.msra.mxu0 %v416
  %604 = vmatprep.subr.mxu0 0.0
  %605 = vmatpush1.msra.mxu0 %v417
  %606 = vmatprep.subr.mxu0 0.0
  %607 = vmatpush1.msra.mxu0 %v418
  %608 = vmatprep.subr.mxu0 0.0
  %609 = vmatpush1.msra.mxu0 %v419
  %610 = vmatprep.subr.mxu0 0.0
  %611 = vmatpush1.msra.mxu0 %v420
  %612 = vmatprep.subr.mxu0 0.0
  %613 = vmatpush1.msra.mxu0 %v421
  %614 = vmatprep.subr.mxu0 0.0
  %615 = vmatpush1.msra.mxu0 %v422
  %616 = vmatprep.subr.mxu0 0.0
  %617 = vmatpush1.msra.mxu0 %v423
  %618 = vmatprep.subr.mxu0 0.0
  %619 = vmatpush1.msra.mxu0 %v424
  %620 = vmatprep.subr.mxu0 0.0
  %621 = vmatpush1.msra.mxu0 %v425
  %622 = vmatprep.subr.mxu0 0.0
  %623 = vmatpush1.msra.mxu0 %v426
  %624 = vmatprep.subr.mxu0 0.0
  %625 = vmatpush1.msra.mxu0 %v427
  %626 = vmatprep.subr.mxu0 0.0
  %627 = vmatpush1.msra.mxu0 %v428
  %628 = vmatprep.subr.mxu0 0.0
  %629 = vmatpush1.msra.mxu0 %v429
  %630 = vmatprep.subr.mxu0 0.0
  %631 = vmatpush1.msra.mxu0 %v430
  %632 = vmatprep.subr.mxu0 0.0
  %633 = vmatpush1.msra.mxu0 %v431
  %634 = vmatprep.subr.mxu0 0.0
  %635 = vmatpush1.msra.mxu0 %v432
  %636 = vmatprep.subr.mxu0 0.0
  %637 = vmatpush1.msra.mxu0 %v433
  %638 = vmatprep.subr.mxu0 0.0
  %639 = vmatpush1.msra.mxu0 %v434
  %640 = vmatprep.subr.mxu0 0.0
  %641 = vmatpush1.msra.mxu0 %v435
  %642 = vmatprep.subr.mxu0 0.0
  %643 = vmatpush1.msra.mxu0 %v436
  %644 = vmatprep.subr.mxu0 0.0
  %645 = vmatpush1.msra.mxu0 %v437
  %646 = vmatprep.subr.mxu0 0.0
  %647 = vmatpush1.msra.mxu0 %v438
  %648 = vmatprep.mubr.f32.mxu0 %v278
  %649 = vmatmul.mubr.f32.gmra.mrb[0].mxu0 %v271
  %v650 = vpop.f32.mrb[0].mxu0
  %v651 = vadd.f32 %v581, %v650
  %v652 = vpop.f32.mrb[0].mxu0
  %653 = vdwg.mxu0
  %654 = vmatprep.subr.mxu0 0.0
  %655 = vmatpush1.msra.mxu0 %v439
  %656 = vmatprep.subr.mxu0 0.0
  %657 = vmatpush1.msra.mxu0 %v440
  %658 = vmatprep.subr.mxu0 0.0
  %659 = vmatpush1.msra.mxu0 0.0
  %660 = vmatprep.subr.mxu0 0.0
  %661 = vmatpush1.msra.mxu0 0.0
  %662 = vmatprep.subr.mxu0 0.0
  %663 = vmatpush1.msra.mxu0 0.0
  %664 = vmatprep.subr.mxu0 0.0
  %665 = vmatpush1.msra.mxu0 0.0
  %666 = vmatprep.subr.mxu0 0.0
  %667 = vmatpush1.msra.mxu0 0.0
  %668 = vmatprep.subr.mxu0 0.0
  %669 = vmatpush1.msra.mxu0 0.0
  %670 = vmatprep.subr.mxu0 0.0
  %671 = vmatpush1.msra.mxu0 0.0
  %672 = vmatprep.subr.mxu0 0.0
  %673 = vmatpush1.msra.mxu0 0.0
  %674 = vmatprep.subr.mxu0 0.0
  %675 = vmatpush1.msra.mxu0 0.0
  %676 = vmatprep.subr.mxu0 0.0
  %677 = vmatpush1.msra.mxu0 0.0
  %678 = vmatprep.subr.mxu0 0.0
  %679 = vmatpush1.msra.mxu0 0.0
  %680 = vmatprep.subr.mxu0 0.0
  %681 = vmatpush1.msra.mxu0 0.0
  %682 = vmatprep.subr.mxu0 0.0
  %683 = vmatpush1.msra.mxu0 0.0
  %684 = vmatprep.subr.mxu0 0.0
  %685 = vmatpush1.msra.mxu0 0.0
  %686 = vmatprep.subr.mxu0 0.0
  %687 = vmatpush1.msra.mxu0 0.0
  %688 = vmatprep.subr.mxu0 0.0
  %689 = vmatpush1.msra.mxu0 0.0
  %690 = vmatprep.subr.mxu0 0.0
  %691 = vmatpush1.msra.mxu0 0.0
  %692 = vmatprep.subr.mxu0 0.0
  %693 = vmatpush1.msra.mxu0 0.0
  %694 = vmatprep.subr.mxu0 0.0
  %695 = vmatpush1.msra.mxu0 0.0
  %696 = vmatprep.subr.mxu0 0.0
  %697 = vmatpush1.msra.mxu0 0.0
  %698 = vmatprep.subr.mxu0 0.0
  %699 = vmatpush1.msra.mxu0 0.0
  %700 = vmatprep.subr.mxu0 0.0
  %701 = vmatpush1.msra.mxu0 0.0
  %702 = vmatprep.subr.mxu0 0.0
  %703 = vmatpush1.msra.mxu0 0.0
  %704 = vmatprep.subr.mxu0 0.0
  %705 = vmatpush1.msra.mxu0 0.0
  %706 = vmatprep.subr.mxu0 0.0
  %707 = vmatpush1.msra.mxu0 0.0
  %708 = vmatprep.subr.mxu0 0.0
  %709 = vmatpush1.msra.mxu0 0.0
  %710 = vmatprep.subr.mxu0 0.0
  %711 = vmatpush1.msra.mxu0 0.0
  %712 = vmatprep.subr.mxu0 0.0
  %713 = vmatpush1.msra.mxu0 0.0
  %714 = vmatprep.subr.mxu0 0.0
  %715 = vmatpush1.msra.mxu0 0.0
  %716 = vmatprep.subr.mxu0 0.0
  %717 = vmatpush1.msra.mxu0 0.0
  %718 = vmatprep.mubr.f32.mxu0 0.0
  %719 = vmatmul.mubr.f32.gmra.mrb[0].mxu0 %v442
  %v720 = vpop.f32.mrb[0].mxu0
  %v721 = vadd.f32 %v651, %v720
  %v722 = vpop.f32.mrb[0].mxu0
  %723 = vdwg.mxu0
  %v725 = vsel %vm69, %v342, 0
  %727 = vmatprep.subr.mxu0 0.0
  %728 = vmatpush1.msra.mxu0 %v343
  %729 = vmatprep.subr.mxu0 0.0
  %730 = vmatpush1.msra.mxu0 %v344
  %731 = vmatprep.subr.mxu0 0.0
  %732 = vmatpush1.msra.mxu0 %v345
  %733 = vmatprep.subr.mxu0 0.0
  %734 = vmatpush1.msra.mxu0 %v346
  %735 = vmatprep.subr.mxu0 0.0
  %736 = vmatpush1.msra.mxu0 %v347
  %737 = vmatprep.subr.mxu0 0.0
  %738 = vmatpush1.msra.mxu0 %v348
  %739 = vmatprep.subr.mxu0 0.0
  %740 = vmatpush1.msra.mxu0 %v349
  %741 = vmatprep.subr.mxu0 0.0
  %742 = vmatpush1.msra.mxu0 %v350
  %743 = vmatprep.subr.mxu0 0.0
  %744 = vmatpush1.msra.mxu0 %v351
  %745 = vmatprep.subr.mxu0 0.0
  %746 = vmatpush1.msra.mxu0 %v352
  %747 = vmatprep.subr.mxu0 0.0
  %748 = vmatpush1.msra.mxu0 %v353
  %749 = vmatprep.subr.mxu0 0.0
  %750 = vmatpush1.msra.mxu0 %v354
  %751 = vmatprep.subr.mxu0 0.0
  %752 = vmatpush1.msra.mxu0 %v355
  %753 = vmatprep.subr.mxu0 0.0
  %754 = vmatpush1.msra.mxu0 %v356
  %755 = vmatprep.subr.mxu0 0.0
  %756 = vmatpush1.msra.mxu0 %v357
  %757 = vmatprep.subr.mxu0 0.0
  %758 = vmatpush1.msra.mxu0 %v358
  %759 = vmatprep.subr.mxu0 0.0
  %760 = vmatpush1.msra.mxu0 %v359
  %761 = vmatprep.subr.mxu0 0.0
  %762 = vmatpush1.msra.mxu0 %v360
  %763 = vmatprep.subr.mxu0 0.0
  %764 = vmatpush1.msra.mxu0 %v361
  %765 = vmatprep.subr.mxu0 0.0
  %766 = vmatpush1.msra.mxu0 %v362
  %767 = vmatprep.subr.mxu0 0.0
  %768 = vmatpush1.msra.mxu0 %v363
  %769 = vmatprep.subr.mxu0 0.0
  %770 = vmatpush1.msra.mxu0 %v364
  %771 = vmatprep.subr.mxu0 0.0
  %772 = vmatpush1.msra.mxu0 %v365
  %773 = vmatprep.subr.mxu0 0.0
  %774 = vmatpush1.msra.mxu0 %v366
  %775 = vmatprep.subr.mxu0 0.0
  %776 = vmatpush1.msra.mxu0 %v367
  %777 = vmatprep.subr.mxu0 0.0
  %778 = vmatpush1.msra.mxu0 %v368
  %779 = vmatprep.subr.mxu0 0.0
  %780 = vmatpush1.msra.mxu0 %v369
  %781 = vmatprep.subr.mxu0 0.0
  %782 = vmatpush1.msra.mxu0 %v370
  %783 = vmatprep.subr.mxu0 0.0
  %784 = vmatpush1.msra.mxu0 %v371
  %785 = vmatprep.subr.mxu0 0.0
  %786 = vmatpush1.msra.mxu0 %v372
  %787 = vmatprep.subr.mxu0 0.0
  %788 = vmatpush1.msra.mxu0 %v373
  %789 = vmatprep.subr.mxu0 0.0
  %790 = vmatpush1.msra.mxu0 %v374
  %791 = vmatprep.mubr.f32.mxu0 %v307
  %792 = vmatmul.mubr.f32.gmra.mrb[0].mxu0 %v300
  %v793 = vpop.f32.mrb[0].mxu0
  %v794 = vadd.f32 0.0, %v793
  %v795 = vpop.f32.mrb[0].mxu0
  %796 = vdwg.mxu0
  %797 = vmatprep.subr.mxu0 0.0
  %798 = vmatpush1.msra.mxu0 %v375
  %799 = vmatprep.subr.mxu0 0.0
  %800 = vmatpush1.msra.mxu0 %v376
  %801 = vmatprep.subr.mxu0 0.0
  %802 = vmatpush1.msra.mxu0 %v377
  %803 = vmatprep.subr.mxu0 0.0
  %804 = vmatpush1.msra.mxu0 %v378
  %805 = vmatprep.subr.mxu0 0.0
  %806 = vmatpush1.msra.mxu0 %v379
  %807 = vmatprep.subr.mxu0 0.0
  %808 = vmatpush1.msra.mxu0 %v380
  %809 = vmatprep.subr.mxu0 0.0
  %810 = vmatpush1.msra.mxu0 %v381
  %811 = vmatprep.subr.mxu0 0.0
  %812 = vmatpush1.msra.mxu0 %v382
  %813 = vmatprep.subr.mxu0 0.0
  %814 = vmatpush1.msra.mxu0 %v383
  %815 = vmatprep.subr.mxu0 0.0
  %816 = vmatpush1.msra.mxu0 %v384
  %817 = vmatprep.subr.mxu0 0.0
  %818 = vmatpush1.msra.mxu0 %v385
  %819 = vmatprep.subr.mxu0 0.0
  %820 = vmatpush1.msra.mxu0 %v386
  %821 = vmatprep.subr.mxu0 0.0
  %822 = vmatpush1.msra.mxu0 %v387
  %823 = vmatprep.subr.mxu0 0.0
  %824 = vmatpush1.msra.mxu0 %v388
  %825 = vmatprep.subr.mxu0 0.0
  %826 = vmatpush1.msra.mxu0 %v389
  %827 = vmatprep.subr.mxu0 0.0
  %828 = vmatpush1.msra.mxu0 %v390
  %829 = vmatprep.subr.mxu0 0.0
  %830 = vmatpush1.msra.mxu0 %v391
  %831 = vmatprep.subr.mxu0 0.0
  %832 = vmatpush1.msra.mxu0 %v392
  %833 = vmatprep.subr.mxu0 0.0
  %834 = vmatpush1.msra.mxu0 %v393
  %835 = vmatprep.subr.mxu0 0.0
  %836 = vmatpush1.msra.mxu0 %v394
  %837 = vmatprep.subr.mxu0 0.0
  %838 = vmatpush1.msra.mxu0 %v395
  %839 = vmatprep.subr.mxu0 0.0
  %840 = vmatpush1.msra.mxu0 %v396
  %841 = vmatprep.subr.mxu0 0.0
  %842 = vmatpush1.msra.mxu0 %v397
  %843 = vmatprep.subr.mxu0 0.0
  %844 = vmatpush1.msra.mxu0 %v398
  %845 = vmatprep.subr.mxu0 0.0
  %846 = vmatpush1.msra.mxu0 %v399
  %847 = vmatprep.subr.mxu0 0.0
  %848 = vmatpush1.msra.mxu0 %v400
  %849 = vmatprep.subr.mxu0 0.0
  %850 = vmatpush1.msra.mxu0 %v401
  %851 = vmatprep.subr.mxu0 0.0
  %852 = vmatpush1.msra.mxu0 %v402
  %853 = vmatprep.subr.mxu0 0.0
  %854 = vmatpush1.msra.mxu0 %v403
  %855 = vmatprep.subr.mxu0 0.0
  %856 = vmatpush1.msra.mxu0 %v404
  %857 = vmatprep.subr.mxu0 0.0
  %858 = vmatpush1.msra.mxu0 %v405
  %859 = vmatprep.subr.mxu0 0.0
  %860 = vmatpush1.msra.mxu0 %v406
  %861 = vmatprep.mubr.f32.mxu0 %v321
  %862 = vmatmul.mubr.f32.gmra.mrb[0].mxu0 %v314
  %v863 = vpop.f32.mrb[0].mxu0
  %v864 = vadd.f32 %v794, %v863
  %v865 = vpop.f32.mrb[0].mxu0
  %866 = vdwg.mxu0
  %867 = vmatprep.subr.mxu0 0.0
  %868 = vmatpush1.msra.mxu0 %v407
  %869 = vmatprep.subr.mxu0 0.0
  %870 = vmatpush1.msra.mxu0 %v408
  %871 = vmatprep.subr.mxu0 0.0
  %872 = vmatpush1.msra.mxu0 %v409
  %873 = vmatprep.subr.mxu0 0.0
  %874 = vmatpush1.msra.mxu0 %v410
  %875 = vmatprep.subr.mxu0 0.0
  %876 = vmatpush1.msra.mxu0 %v411
  %877 = vmatprep.subr.mxu0 0.0
  %878 = vmatpush1.msra.mxu0 %v412
  %879 = vmatprep.subr.mxu0 0.0
  %880 = vmatpush1.msra.mxu0 %v413
  %881 = vmatprep.subr.mxu0 0.0
  %882 = vmatpush1.msra.mxu0 %v414
  %883 = vmatprep.subr.mxu0 0.0
  %884 = vmatpush1.msra.mxu0 %v415
  %885 = vmatprep.subr.mxu0 0.0
  %886 = vmatpush1.msra.mxu0 %v416
  %887 = vmatprep.subr.mxu0 0.0
  %888 = vmatpush1.msra.mxu0 %v417
  %889 = vmatprep.subr.mxu0 0.0
  %890 = vmatpush1.msra.mxu0 %v418
  %891 = vmatprep.subr.mxu0 0.0
  %892 = vmatpush1.msra.mxu0 %v419
  %893 = vmatprep.subr.mxu0 0.0
  %894 = vmatpush1.msra.mxu0 %v420
  %895 = vmatprep.subr.mxu0 0.0
  %896 = vmatpush1.msra.mxu0 %v421
  %897 = vmatprep.subr.mxu0 0.0
  %898 = vmatpush1.msra.mxu0 %v422
  %899 = vmatprep.subr.mxu0 0.0
  %900 = vmatpush1.msra.mxu0 %v423
  %901 = vmatprep.subr.mxu0 0.0
  %902 = vmatpush1.msra.mxu0 %v424
  %903 = vmatprep.subr.mxu0 0.0
  %904 = vmatpush1.msra.mxu0 %v425
  %905 = vmatprep.subr.mxu0 0.0
  %906 = vmatpush1.msra.mxu0 %v426
  %907 = vmatprep.subr.mxu0 0.0
  %908 = vmatpush1.msra.mxu0 %v427
  %909 = vmatprep.subr.mxu0 0.0
  %910 = vmatpush1.msra.mxu0 %v428
  %911 = vmatprep.subr.mxu0 0.0
  %912 = vmatpush1.msra.mxu0 %v429
  %913 = vmatprep.subr.mxu0 0.0
  %914 = vmatpush1.msra.mxu0 %v430
  %915 = vmatprep.subr.mxu0 0.0
  %916 = vmatpush1.msra.mxu0 %v431
  %917 = vmatprep.subr.mxu0 0.0
  %918 = vmatpush1.msra.mxu0 %v432
  %919 = vmatprep.subr.mxu0 0.0
  %920 = vmatpush1.msra.mxu0 %v433
  %921 = vmatprep.subr.mxu0 0.0
  %922 = vmatpush1.msra.mxu0 %v434
  %923 = vmatprep.subr.mxu0 0.0
  %924 = vmatpush1.msra.mxu0 %v435
  %925 = vmatprep.subr.mxu0 0.0
  %926 = vmatpush1.msra.mxu0 %v436
  %927 = vmatprep.subr.mxu0 0.0
  %928 = vmatpush1.msra.mxu0 %v437
  %929 = vmatprep.subr.mxu0 0.0
  %930 = vmatpush1.msra.mxu0 %v438
  %931 = vmatprep.mubr.f32.mxu0 %v335
  %932 = vmatmul.mubr.f32.gmra.mrb[0].mxu0 %v328
  %v933 = vpop.f32.mrb[0].mxu0
  %v934 = vadd.f32 %v864, %v933
  %v935 = vpop.f32.mrb[0].mxu0
  %936 = vdwg.mxu0
  %937 = vmatprep.subr.mxu0 0.0
  %938 = vmatpush1.msra.mxu0 %v439
  %939 = vmatprep.subr.mxu0 0.0
  %940 = vmatpush1.msra.mxu0 %v440
  %941 = vmatprep.subr.mxu0 0.0
  %942 = vmatpush1.msra.mxu0 0.0
  %943 = vmatprep.subr.mxu0 0.0
  %944 = vmatpush1.msra.mxu0 0.0
  %945 = vmatprep.subr.mxu0 0.0
  %946 = vmatpush1.msra.mxu0 0.0
  %947 = vmatprep.subr.mxu0 0.0
  %948 = vmatpush1.msra.mxu0 0.0
  %949 = vmatprep.subr.mxu0 0.0
  %950 = vmatpush1.msra.mxu0 0.0
  %951 = vmatprep.subr.mxu0 0.0
  %952 = vmatpush1.msra.mxu0 0.0
  %953 = vmatprep.subr.mxu0 0.0
  %954 = vmatpush1.msra.mxu0 0.0
  %955 = vmatprep.subr.mxu0 0.0
  %956 = vmatpush1.msra.mxu0 0.0
  %957 = vmatprep.subr.mxu0 0.0
  %958 = vmatpush1.msra.mxu0 0.0
  %959 = vmatprep.subr.mxu0 0.0
  %960 = vmatpush1.msra.mxu0 0.0
  %961 = vmatprep.subr.mxu0 0.0
  %962 = vmatpush1.msra.mxu0 0.0
  %963 = vmatprep.subr.mxu0 0.0
  %964 = vmatpush1.msra.mxu0 0.0
  %965 = vmatprep.subr.mxu0 0.0
  %966 = vmatpush1.msra.mxu0 0.0
  %967 = vmatprep.subr.mxu0 0.0
  %968 = vmatpush1.msra.mxu0 0.0
  %969 = vmatprep.subr.mxu0 0.0
  %970 = vmatpush1.msra.mxu0 0.0
  %971 = vmatprep.subr.mxu0 0.0
  %972 = vmatpush1.msra.mxu0 0.0
  %973 = vmatprep.subr.mxu0 0.0
  %974 = vmatpush1.msra.mxu0 0.0
  %975 = vmatprep.subr.mxu0 0.0
  %976 = vmatpush1.msra.mxu0 0.0
  %977 = vmatprep.subr.mxu0 0.0
  %978 = vmatpush1.msra.mxu0 0.0
  %979 = vmatprep.subr.mxu0 0.0
  %980 = vmatpush1.msra.mxu0 0.0
  %981 = vmatprep.subr.mxu0 0.0
  %982 = vmatpush1.msra.mxu0 0.0
  %983 = vmatprep.subr.mxu0 0.0
  %984 = vmatpush1.msra.mxu0 0.0
  %985 = vmatprep.subr.mxu0 0.0
  %986 = vmatpush1.msra.mxu0 0.0
  %987 = vmatprep.subr.mxu0 0.0
  %988 = vmatpush1.msra.mxu0 0.0
  %989 = vmatprep.subr.mxu0 0.0
  %990 = vmatpush1.msra.mxu0 0.0
  %991 = vmatprep.subr.mxu0 0.0
  %992 = vmatpush1.msra.mxu0 0.0
  %993 = vmatprep.subr.mxu0 0.0
  %994 = vmatpush1.msra.mxu0 0.0
  %995 = vmatprep.subr.mxu0 0.0
  %996 = vmatpush1.msra.mxu0 0.0
  %997 = vmatprep.subr.mxu0 0.0
  %998 = vmatpush1.msra.mxu0 0.0
  %999 = vmatprep.subr.mxu0 0.0
  %1000 = vmatpush1.msra.mxu0 0.0
  %1001 = vmatprep.mubr.f32.mxu0 0.0
  %1002 = vmatmul.mubr.f32.gmra.mrb[0].mxu0 %v725
  %v1003 = vpop.f32.mrb[0].mxu0
  %v1004 = vadd.f32 %v934, %v1003
  %v1005 = vpop.f32.mrb[0].mxu0
  %1006 = vdwg.mxu0
  %v1007 = vmul.f32 %v721, 0.010204081
  %v1008 = vmul.f32 %v1004, 0.010204081
  %v1009 = vmul.f32 %v1007, %v1007
  %v1010 = vsub.f32 %v1008, %v1009
  %v1011 = vadd.f32 %v1010, 1e-05
  %v1012 = vrsqrt.pop %v1011
  %v1013 = vld [vmem:[%s3] sm:$0xff]
  %v1014 = vld [vmem:[%s3 + $0x8] sm:$0xff]
  %v1015 = vld [vmem:[%s3 + $0x10] sm:$0xff]
  %v1016 = vld [vmem:[%s3 + $0x18] sm:$0xff]
  %v1017 = vld [vmem:[%s3 + $0x20] sm:$0xff]
  %v1018 = vld [vmem:[%s3 + $0x28] sm:$0xff]
  %v1019 = vld [vmem:[%s3 + $0x30] sm:$0xff]
  %v1020 = vld [vmem:[%s3 + $0x38] sm:$0xff]
  %v1021 = vld [vmem:[%s3 + $0x40] sm:$0xff]
  %v1022 = vld [vmem:[%s3 + $0x48] sm:$0xff]
  %v1023 = vld [vmem:[%s3 + $0x50] sm:$0xff]
  %v1024 = vld [vmem:[%s3 + $0x58] sm:$0xff]
  %v1025 = vld [vmem:[%s3 + $0x60] sm:$0xff]
  %v1026 = vld [vmem:[%s3 + $0x68] sm:$0xff]
  %v1028 = vsel %vm69, %v1007, 0
  %1030 = vmatprep.subr.mxu0 %v1014
  %1031 = vmatpush1.msra.mxu0 %v1013
  %1032 = vmatprep.subr.mxu0 %v1021
  %1033 = vmatpush1.msra.mxu0 %v1020
  %1034 = vmatprep.subr.mxu0 0.0
  %1035 = vmatpush1.msra.mxu0 0.0
  %1036 = vmatprep.subr.mxu0 0.0
  %1037 = vmatpush1.msra.mxu0 0.0
  %1038 = vmatprep.subr.mxu0 0.0
  %1039 = vmatpush1.msra.mxu0 0.0
  %1040 = vmatprep.subr.mxu0 0.0
  %1041 = vmatpush1.msra.mxu0 0.0
  %1042 = vmatprep.subr.mxu0 0.0
  %1043 = vmatpush1.msra.mxu0 0.0
  %1044 = vmatprep.subr.mxu0 0.0
  %1045 = vmatpush1.msra.mxu0 0.0
  %1046 = vmatprep.subr.mxu0 0.0
  %1047 = vmatpush1.msra.mxu0 0.0
  %1048 = vmatprep.subr.mxu0 0.0
  %1049 = vmatpush1.msra.mxu0 0.0
  %1050 = vmatprep.subr.mxu0 0.0
  %1051 = vmatpush1.msra.mxu0 0.0
  %1052 = vmatprep.subr.mxu0 0.0
  %1053 = vmatpush1.msra.mxu0 0.0
  %1054 = vmatprep.subr.mxu0 0.0
  %1055 = vmatpush1.msra.mxu0 0.0
  %1056 = vmatprep.subr.mxu0 0.0
  %1057 = vmatpush1.msra.mxu0 0.0
  %1058 = vmatprep.subr.mxu0 0.0
  %1059 = vmatpush1.msra.mxu0 0.0
  %1060 = vmatprep.subr.mxu0 0.0
  %1061 = vmatpush1.msra.mxu0 0.0
  %1062 = vmatprep.subr.mxu0 0.0
  %1063 = vmatpush1.msra.mxu0 0.0
  %1064 = vmatprep.subr.mxu0 0.0
  %1065 = vmatpush1.msra.mxu0 0.0
  %1066 = vmatprep.subr.mxu0 0.0
  %1067 = vmatpush1.msra.mxu0 0.0
  %1068 = vmatprep.subr.mxu0 0.0
  %1069 = vmatpush1.msra.mxu0 0.0
  %1070 = vmatprep.subr.mxu0 0.0
  %1071 = vmatpush1.msra.mxu0 0.0
  %1072 = vmatprep.subr.mxu0 0.0
  %1073 = vmatpush1.msra.mxu0 0.0
  %1074 = vmatprep.subr.mxu0 0.0
  %1075 = vmatpush1.msra.mxu0 0.0
  %1076 = vmatprep.subr.mxu0 0.0
  %1077 = vmatpush1.msra.mxu0 0.0
  %1078 = vmatprep.subr.mxu0 0.0
  %1079 = vmatpush1.msra.mxu0 0.0
  %1080 = vmatprep.subr.mxu0 0.0
  %1081 = vmatpush1.msra.mxu0 0.0
  %1082 = vmatprep.subr.mxu0 0.0
  %1083 = vmatpush1.msra.mxu0 0.0
  %1084 = vmatprep.subr.mxu0 0.0
  %1085 = vmatpush1.msra.mxu0 0.0
  %1086 = vmatprep.subr.mxu0 0.0
  %1087 = vmatpush1.msra.mxu0 0.0
  %1088 = vmatprep.subr.mxu0 0.0
  %1089 = vmatpush1.msra.mxu0 0.0
  %1090 = vmatprep.subr.mxu0 0.0
  %1091 = vmatpush1.msra.mxu0 0.0
  %1092 = vmatprep.subr.mxu0 0.0
  %1093 = vmatpush1.msra.mxu0 0.0
  %1094 = vmatprep.mubr.f32.mxu0 0.0
  %1095 = vmatmul.mubr.f32.gmra.mrb[0].mxu0 %v1028
  %v1096 = vpop.f32.mrb[0].mxu0
  %v1097 = vadd.f32 0.0, %v1096
  %v1098 = vpop.f32.mrb[0].mxu0
  %v1099 = vadd.f32 0.0, %v1098
  %1100 = vdwg.mxu0
  %1101 = vmatprep.subr.mxu0 %v1016
  %1102 = vmatpush1.msra.mxu0 %v1015
  %1103 = vmatprep.subr.mxu0 %v1023
  %1104 = vmatpush1.msra.mxu0 %v1022
  %1105 = vmatprep.subr.mxu0 0.0
  %1106 = vmatpush1.msra.mxu0 0.0
  %1107 = vmatprep.subr.mxu0 0.0
  %1108 = vmatpush1.msra.mxu0 0.0
  %1109 = vmatprep.subr.mxu0 0.0
  %1110 = vmatpush1.msra.mxu0 0.0
  %1111 = vmatprep.subr.mxu0 0.0
  %1112 = vmatpush1.msra.mxu0 0.0
  %1113 = vmatprep.subr.mxu0 0.0
  %1114 = vmatpush1.msra.mxu0 0.0
  %1115 = vmatprep.subr.mxu0 0.0
  %1116 = vmatpush1.msra.mxu0 0.0
  %1117 = vmatprep.subr.mxu0 0.0
  %1118 = vmatpush1.msra.mxu0 0.0
  %1119 = vmatprep.subr.mxu0 0.0
  %1120 = vmatpush1.msra.mxu0 0.0
  %1121 = vmatprep.subr.mxu0 0.0
  %1122 = vmatpush1.msra.mxu0 0.0
  %1123 = vmatprep.subr.mxu0 0.0
  %1124 = vmatpush1.msra.mxu0 0.0
  %1125 = vmatprep.subr.mxu0 0.0
  %1126 = vmatpush1.msra.mxu0 0.0
  %1127 = vmatprep.subr.mxu0 0.0
  %1128 = vmatpush1.msra.mxu0 0.0
  %1129 = vmatprep.subr.mxu0 0.0
  %1130 = vmatpush1.msra.mxu0 0.0
  %1131 = vmatprep.subr.mxu0 0.0
  %1132 = vmatpush1.msra.mxu0 0.0
  %1133 = vmatprep.subr.mxu0 0.0
  %1134 = vmatpush1.msra.mxu0 0.0
  %1135 = vmatprep.subr.mxu0 0.0
  %1136 = vmatpush1.msra.mxu0 0.0
  %1137 = vmatprep.subr.mxu0 0.0
  %1138 = vmatpush1.msra.mxu0 0.0
  %1139 = vmatprep.subr.mxu0 0.0
  %1140 = vmatpush1.msra.mxu0 0.0
  %1141 = vmatprep.subr.mxu0 0.0
  %1142 = vmatpush1.msra.mxu0 0.0
  %1143 = vmatprep.subr.mxu0 0.0
  %1144 = vmatpush1.msra.mxu0 0.0
  %1145 = vmatprep.subr.mxu0 0.0
  %1146 = vmatpush1.msra.mxu0 0.0
  %1147 = vmatprep.subr.mxu0 0.0
  %1148 = vmatpush1.msra.mxu0 0.0
  %1149 = vmatprep.subr.mxu0 0.0
  %1150 = vmatpush1.msra.mxu0 0.0
  %1151 = vmatprep.subr.mxu0 0.0
  %1152 = vmatpush1.msra.mxu0 0.0
  %1153 = vmatprep.subr.mxu0 0.0
  %1154 = vmatpush1.msra.mxu0 0.0
  %1155 = vmatprep.subr.mxu0 0.0
  %1156 = vmatpush1.msra.mxu0 0.0
  %1157 = vmatprep.subr.mxu0 0.0
  %1158 = vmatpush1.msra.mxu0 0.0
  %1159 = vmatprep.subr.mxu0 0.0
  %1160 = vmatpush1.msra.mxu0 0.0
  %1161 = vmatprep.subr.mxu0 0.0
  %1162 = vmatpush1.msra.mxu0 0.0
  %1163 = vmatprep.subr.mxu0 0.0
  %1164 = vmatpush1.msra.mxu0 0.0
  %1165 = vmatprep.mubr.f32.mxu0 0.0
  %1166 = vmatmul.mubr.f32.gmra.mrb[0].mxu0 %v1028
  %v1167 = vpop.f32.mrb[0].mxu0
  %v1168 = vadd.f32 0.0, %v1167
  %v1169 = vpop.f32.mrb[0].mxu0
  %v1170 = vadd.f32 0.0, %v1169
  %1171 = vdwg.mxu0
  %1172 = vmatprep.subr.mxu0 %v1018
  %1173 = vmatpush1.msra.mxu0 %v1017
  %1174 = vmatprep.subr.mxu0 %v1025
  %1175 = vmatpush1.msra.mxu0 %v1024
  %1176 = vmatprep.subr.mxu0 0.0
  %1177 = vmatpush1.msra.mxu0 0.0
  %1178 = vmatprep.subr.mxu0 0.0
  %1179 = vmatpush1.msra.mxu0 0.0
  %1180 = vmatprep.subr.mxu0 0.0
  %1181 = vmatpush1.msra.mxu0 0.0
  %1182 = vmatprep.subr.mxu0 0.0
  %1183 = vmatpush1.msra.mxu0 0.0
  %1184 = vmatprep.subr.mxu0 0.0
  %1185 = vmatpush1.msra.mxu0 0.0
  %1186 = vmatprep.subr.mxu0 0.0
  %1187 = vmatpush1.msra.mxu0 0.0
  %1188 = vmatprep.subr.mxu0 0.0
  %1189 = vmatpush1.msra.mxu0 0.0
  %1190 = vmatprep.subr.mxu0 0.0
  %1191 = vmatpush1.msra.mxu0 0.0
  %1192 = vmatprep.subr.mxu0 0.0
  %1193 = vmatpush1.msra.mxu0 0.0
  %1194 = vmatprep.subr.mxu0 0.0
  %1195 = vmatpush1.msra.mxu0 0.0
  %1196 = vmatprep.subr.mxu0 0.0
  %1197 = vmatpush1.msra.mxu0 0.0
  %1198 = vmatprep.subr.mxu0 0.0
  %1199 = vmatpush1.msra.mxu0 0.0
  %1200 = vmatprep.subr.mxu0 0.0
  %1201 = vmatpush1.msra.mxu0 0.0
  %1202 = vmatprep.subr.mxu0 0.0
  %1203 = vmatpush1.msra.mxu0 0.0
  %1204 = vmatprep.subr.mxu0 0.0
  %1205 = vmatpush1.msra.mxu0 0.0
  %1206 = vmatprep.subr.mxu0 0.0
  %1207 = vmatpush1.msra.mxu0 0.0
  %1208 = vmatprep.subr.mxu0 0.0
  %1209 = vmatpush1.msra.mxu0 0.0
  %1210 = vmatprep.subr.mxu0 0.0
  %1211 = vmatpush1.msra.mxu0 0.0
  %1212 = vmatprep.subr.mxu0 0.0
  %1213 = vmatpush1.msra.mxu0 0.0
  %1214 = vmatprep.subr.mxu0 0.0
  %1215 = vmatpush1.msra.mxu0 0.0
  %1216 = vmatprep.subr.mxu0 0.0
  %1217 = vmatpush1.msra.mxu0 0.0
  %1218 = vmatprep.subr.mxu0 0.0
  %1219 = vmatpush1.msra.mxu0 0.0
  %1220 = vmatprep.subr.mxu0 0.0
  %1221 = vmatpush1.msra.mxu0 0.0
  %1222 = vmatprep.subr.mxu0 0.0
  %1223 = vmatpush1.msra.mxu0 0.0
  %1224 = vmatprep.subr.mxu0 0.0
  %1225 = vmatpush1.msra.mxu0 0.0
  %1226 = vmatprep.subr.mxu0 0.0
  %1227 = vmatpush1.msra.mxu0 0.0
  %1228 = vmatprep.subr.mxu0 0.0
  %1229 = vmatpush1.msra.mxu0 0.0
  %1230 = vmatprep.subr.mxu0 0.0
  %1231 = vmatpush1.msra.mxu0 0.0
  %1232 = vmatprep.subr.mxu0 0.0
  %1233 = vmatpush1.msra.mxu0 0.0
  %1234 = vmatprep.subr.mxu0 0.0
  %1235 = vmatpush1.msra.mxu0 0.0
  %1236 = vmatprep.mubr.f32.mxu0 0.0
  %1237 = vmatmul.mubr.f32.gmra.mrb[0].mxu0 %v1028
  %v1238 = vpop.f32.mrb[0].mxu0
  %v1239 = vadd.f32 0.0, %v1238
  %v1240 = vpop.f32.mrb[0].mxu0
  %v1241 = vadd.f32 0.0, %v1240
  %1242 = vdwg.mxu0
  %1243 = vmatprep.subr.mxu0 0.0
  %1244 = vmatpush1.msra.mxu0 %v1019
  %1245 = vmatprep.subr.mxu0 0.0
  %1246 = vmatpush1.msra.mxu0 %v1026
  %1247 = vmatprep.subr.mxu0 0.0
  %1248 = vmatpush1.msra.mxu0 0.0
  %1249 = vmatprep.subr.mxu0 0.0
  %1250 = vmatpush1.msra.mxu0 0.0
  %1251 = vmatprep.subr.mxu0 0.0
  %1252 = vmatpush1.msra.mxu0 0.0
  %1253 = vmatprep.subr.mxu0 0.0
  %1254 = vmatpush1.msra.mxu0 0.0
  %1255 = vmatprep.subr.mxu0 0.0
  %1256 = vmatpush1.msra.mxu0 0.0
  %1257 = vmatprep.subr.mxu0 0.0
  %1258 = vmatpush1.msra.mxu0 0.0
  %1259 = vmatprep.subr.mxu0 0.0
  %1260 = vmatpush1.msra.mxu0 0.0
  %1261 = vmatprep.subr.mxu0 0.0
  %1262 = vmatpush1.msra.mxu0 0.0
  %1263 = vmatprep.subr.mxu0 0.0
  %1264 = vmatpush1.msra.mxu0 0.0
  %1265 = vmatprep.subr.mxu0 0.0
  %1266 = vmatpush1.msra.mxu0 0.0
  %1267 = vmatprep.subr.mxu0 0.0
  %1268 = vmatpush1.msra.mxu0 0.0
  %1269 = vmatprep.subr.mxu0 0.0
  %1270 = vmatpush1.msra.mxu0 0.0
  %1271 = vmatprep.subr.mxu0 0.0
  %1272 = vmatpush1.msra.mxu0 0.0
  %1273 = vmatprep.subr.mxu0 0.0
  %1274 = vmatpush1.msra.mxu0 0.0
  %1275 = vmatprep.subr.mxu0 0.0
  %1276 = vmatpush1.msra.mxu0 0.0
  %1277 = vmatprep.subr.mxu0 0.0
  %1278 = vmatpush1.msra.mxu0 0.0
  %1279 = vmatprep.subr.mxu0 0.0
  %1280 = vmatpush1.msra.mxu0 0.0
  %1281 = vmatprep.subr.mxu0 0.0
  %1282 = vmatpush1.msra.mxu0 0.0
  %1283 = vmatprep.subr.mxu0 0.0
  %1284 = vmatpush1.msra.mxu0 0.0
  %1285 = vmatprep.subr.mxu0 0.0
  %1286 = vmatpush1.msra.mxu0 0.0
  %1287 = vmatprep.subr.mxu0 0.0
  %1288 = vmatpush1.msra.mxu0 0.0
  %1289 = vmatprep.subr.mxu0 0.0
  %1290 = vmatpush1.msra.mxu0 0.0
  %1291 = vmatprep.subr.mxu0 0.0
  %1292 = vmatpush1.msra.mxu0 0.0
  %1293 = vmatprep.subr.mxu0 0.0
  %1294 = vmatpush1.msra.mxu0 0.0
  %1295 = vmatprep.subr.mxu0 0.0
  %1296 = vmatpush1.msra.mxu0 0.0
  %1297 = vmatprep.subr.mxu0 0.0
  %1298 = vmatpush1.msra.mxu0 0.0
  %1299 = vmatprep.subr.mxu0 0.0
  %1300 = vmatpush1.msra.mxu0 0.0
  %1301 = vmatprep.subr.mxu0 0.0
  %1302 = vmatpush1.msra.mxu0 0.0
  %1303 = vmatprep.subr.mxu0 0.0
  %1304 = vmatpush1.msra.mxu0 0.0
  %1305 = vmatprep.subr.mxu0 0.0
  %1306 = vmatpush1.msra.mxu0 0.0
  %1307 = vmatprep.mubr.f32.mxu0 0.0
  %1308 = vmatmul.mubr.f32.gmra.mrb[0].mxu0 %v1028
  %v1309 = vpop.f32.mrb[0].mxu0
  %v1310 = vadd.f32 0.0, %v1309
  %v1311 = vpop.f32.mrb[0].mxu0
  %1312 = vdwg.mxu0
  %v1314 = vsel %vm69, %v1012, 0
  %1316 = vmatprep.subr.mxu0 %v1014
  %1317 = vmatpush1.msra.mxu0 %v1013
  %1318 = vmatprep.subr.mxu0 %v1021
  %1319 = vmatpush1.msra.mxu0 %v1020
  %1320 = vmatprep.subr.mxu0 0.0
  %1321 = vmatpush1.msra.mxu0 0.0
  %1322 = vmatprep.subr.mxu0 0.0
  %1323 = vmatpush1.msra.mxu0 0.0
  %1324 = vmatprep.subr.mxu0 0.0
  %1325 = vmatpush1.msra.mxu0 0.0
  %1326 = vmatprep.subr.mxu0 0.0
  %1327 = vmatpush1.msra.mxu0 0.0
  %1328 = vmatprep.subr.mxu0 0.0
  %1329 = vmatpush1.msra.mxu0 0.0
  %1330 = vmatprep.subr.mxu0 0.0
  %1331 = vmatpush1.msra.mxu0 0.0
  %1332 = vmatprep.subr.mxu0 0.0
  %1333 = vmatpush1.msra.mxu0 0.0
  %1334 = vmatprep.subr.mxu0 0.0
  %1335 = vmatpush1.msra.mxu0 0.0
  %1336 = vmatprep.subr.mxu0 0.0
  %1337 = vmatpush1.msra.mxu0 0.0
  %1338 = vmatprep.subr.mxu0 0.0
  %1339 = vmatpush1.msra.mxu0 0.0
  %1340 = vmatprep.subr.mxu0 0.0
  %1341 = vmatpush1.msra.mxu0 0.0
  %1342 = vmatprep.subr.mxu0 0.0
  %1343 = vmatpush1.msra.mxu0 0.0
  %1344 = vmatprep.subr.mxu0 0.0
  %1345 = vmatpush1.msra.mxu0 0.0
  %1346 = vmatprep.subr.mxu0 0.0
  %1347 = vmatpush1.msra.mxu0 0.0
  %1348 = vmatprep.subr.mxu0 0.0
  %1349 = vmatpush1.msra.mxu0 0.0
  %1350 = vmatprep.subr.mxu0 0.0
  %1351 = vmatpush1.msra.mxu0 0.0
  %1352 = vmatprep.subr.mxu0 0.0
  %1353 = vmatpush1.msra.mxu0 0.0
  %1354 = vmatprep.subr.mxu0 0.0
  %1355 = vmatpush1.msra.mxu0 0.0
  %1356 = vmatprep.subr.mxu0 0.0
  %1357 = vmatpush1.msra.mxu0 0.0
  %1358 = vmatprep.subr.mxu0 0.0
  %1359 = vmatpush1.msra.mxu0 0.0
  %1360 = vmatprep.subr.mxu0 0.0
  %1361 = vmatpush1.msra.mxu0 0.0
  %1362 = vmatprep.subr.mxu0 0.0
  %1363 = vmatpush1.msra.mxu0 0.0
  %1364 = vmatprep.subr.mxu0 0.0
  %1365 = vmatpush1.msra.mxu0 0.0
  %1366 = vmatprep.subr.mxu0 0.0
  %1367 = vmatpush1.msra.mxu0 0.0
  %1368 = vmatprep.subr.mxu0 0.0
  %1369 = vmatpush1.msra.mxu0 0.0
  %1370 = vmatprep.subr.mxu0 0.0
  %1371 = vmatpush1.msra.mxu0 0.0
  %1372 = vmatprep.subr.mxu0 0.0
  %1373 = vmatpush1.msra.mxu0 0.0
  %1374 = vmatprep.subr.mxu0 0.0
  %1375 = vmatpush1.msra.mxu0 0.0
  %1376 = vmatprep.subr.mxu0 0.0
  %1377 = vmatpush1.msra.mxu0 0.0
  %1378 = vmatprep.subr.mxu0 0.0
  %1379 = vmatpush1.msra.mxu0 0.0
  %1380 = vmatprep.mubr.f32.mxu0 0.0
  %1381 = vmatmul.mubr.f32.gmra.mrb[0].mxu0 %v1314
  %v1382 = vpop.f32.mrb[0].mxu0
  %v1383 = vadd.f32 0.0, %v1382
  %v1384 = vpop.f32.mrb[0].mxu0
  %v1385 = vadd.f32 0.0, %v1384
  %1386 = vdwg.mxu0
  %1387 = vmatprep.subr.mxu0 %v1016
  %1388 = vmatpush1.msra.mxu0 %v1015
  %1389 = vmatprep.subr.mxu0 %v1023
  %1390 = vmatpush1.msra.mxu0 %v1022
  %1391 = vmatprep.subr.mxu0 0.0
  %1392 = vmatpush1.msra.mxu0 0.0
  %1393 = vmatprep.subr.mxu0 0.0
  %1394 = vmatpush1.msra.mxu0 0.0
  %1395 = vmatprep.subr.mxu0 0.0
  %1396 = vmatpush1.msra.mxu0 0.0
  %1397 = vmatprep.subr.mxu0 0.0
  %1398 = vmatpush1.msra.mxu0 0.0
  %1399 = vmatprep.subr.mxu0 0.0
  %1400 = vmatpush1.msra.mxu0 0.0
  %1401 = vmatprep.subr.mxu0 0.0
  %1402 = vmatpush1.msra.mxu0 0.0
  %1403 = vmatprep.subr.mxu0 0.0
  %1404 = vmatpush1.msra.mxu0 0.0
  %1405 = vmatprep.subr.mxu0 0.0
  %1406 = vmatpush1.msra.mxu0 0.0
  %1407 = vmatprep.subr.mxu0 0.0
  %1408 = vmatpush1.msra.mxu0 0.0
  %1409 = vmatprep.subr.mxu0 0.0
  %1410 = vmatpush1.msra.mxu0 0.0
  %1411 = vmatprep.subr.mxu0 0.0
  %1412 = vmatpush1.msra.mxu0 0.0
  %1413 = vmatprep.subr.mxu0 0.0
  %1414 = vmatpush1.msra.mxu0 0.0
  %1415 = vmatprep.subr.mxu0 0.0
  %1416 = vmatpush1.msra.mxu0 0.0
  %1417 = vmatprep.subr.mxu0 0.0
  %1418 = vmatpush1.msra.mxu0 0.0
  %1419 = vmatprep.subr.mxu0 0.0
  %1420 = vmatpush1.msra.mxu0 0.0
  %1421 = vmatprep.subr.mxu0 0.0
  %1422 = vmatpush1.msra.mxu0 0.0
  %1423 = vmatprep.subr.mxu0 0.0
  %1424 = vmatpush1.msra.mxu0 0.0
  %1425 = vmatprep.subr.mxu0 0.0
  %1426 = vmatpush1.msra.mxu0 0.0
  %1427 = vmatprep.subr.mxu0 0.0
  %1428 = vmatpush1.msra.mxu0 0.0
  %1429 = vmatprep.subr.mxu0 0.0
  %1430 = vmatpush1.msra.mxu0 0.0
  %1431 = vmatprep.subr.mxu0 0.0
  %1432 = vmatpush1.msra.mxu0 0.0
  %1433 = vmatprep.subr.mxu0 0.0
  %1434 = vmatpush1.msra.mxu0 0.0
  %1435 = vmatprep.subr.mxu0 0.0
  %1436 = vmatpush1.msra.mxu0 0.0
  %1437 = vmatprep.subr.mxu0 0.0
  %1438 = vmatpush1.msra.mxu0 0.0
  %1439 = vmatprep.subr.mxu0 0.0
  %1440 = vmatpush1.msra.mxu0 0.0
  %1441 = vmatprep.subr.mxu0 0.0
  %1442 = vmatpush1.msra.mxu0 0.0
  %1443 = vmatprep.subr.mxu0 0.0
  %1444 = vmatpush1.msra.mxu0 0.0
  %1445 = vmatprep.subr.mxu0 0.0
  %1446 = vmatpush1.msra.mxu0 0.0
  %1447 = vmatprep.subr.mxu0 0.0
  %1448 = vmatpush1.msra.mxu0 0.0
  %1449 = vmatprep.subr.mxu0 0.0
  %1450 = vmatpush1.msra.mxu0 0.0
  %1451 = vmatprep.mubr.f32.mxu0 0.0
  %1452 = vmatmul.mubr.f32.gmra.mrb[0].mxu0 %v1314
  %v1453 = vpop.f32.mrb[0].mxu0
  %v1454 = vadd.f32 0.0, %v1453
  %v1455 = vpop.f32.mrb[0].mxu0
  %v1456 = vadd.f32 0.0, %v1455
  %1457 = vdwg.mxu0
  %1458 = vmatprep.subr.mxu0 %v1018
  %1459 = vmatpush1.msra.mxu0 %v1017
  %1460 = vmatprep.subr.mxu0 %v1025
  %1461 = vmatpush1.msra.mxu0 %v1024
  %1462 = vmatprep.subr.mxu0 0.0
  %1463 = vmatpush1.msra.mxu0 0.0
  %1464 = vmatprep.subr.mxu0 0.0
  %1465 = vmatpush1.msra.mxu0 0.0
  %1466 = vmatprep.subr.mxu0 0.0
  %1467 = vmatpush1.msra.mxu0 0.0
  %1468 = vmatprep.subr.mxu0 0.0
  %1469 = vmatpush1.msra.mxu0 0.0
  %1470 = vmatprep.subr.mxu0 0.0
  %1471 = vmatpush1.msra.mxu0 0.0
  %1472 = vmatprep.subr.mxu0 0.0
  %1473 = vmatpush1.msra.mxu0 0.0
  %1474 = vmatprep.subr.mxu0 0.0
  %1475 = vmatpush1.msra.mxu0 0.0
  %1476 = vmatprep.subr.mxu0 0.0
  %1477 = vmatpush1.msra.mxu0 0.0
  %1478 = vmatprep.subr.mxu0 0.0
  %1479 = vmatpush1.msra.mxu0 0.0
  %1480 = vmatprep.subr.mxu0 0.0
  %1481 = vmatpush1.msra.mxu0 0.0
  %1482 = vmatprep.subr.mxu0 0.0
  %1483 = vmatpush1.msra.mxu0 0.0
  %1484 = vmatprep.subr.mxu0 0.0
  %1485 = vmatpush1.msra.mxu0 0.0
  %1486 = vmatprep.subr.mxu0 0.0
  %1487 = vmatpush1.msra.mxu0 0.0
  %1488 = vmatprep.subr.mxu0 0.0
  %1489 = vmatpush1.msra.mxu0 0.0
  %1490 = vmatprep.subr.mxu0 0.0
  %1491 = vmatpush1.msra.mxu0 0.0
  %1492 = vmatprep.subr.mxu0 0.0
  %1493 = vmatpush1.msra.mxu0 0.0
  %1494 = vmatprep.subr.mxu0 0.0
  %1495 = vmatpush1.msra.mxu0 0.0
  %1496 = vmatprep.subr.mxu0 0.0
  %1497 = vmatpush1.msra.mxu0 0.0
  %1498 = vmatprep.subr.mxu0 0.0
  %1499 = vmatpush1.msra.mxu0 0.0
  %1500 = vmatprep.subr.mxu0 0.0
  %1501 = vmatpush1.msra.mxu0 0.0
  %1502 = vmatprep.subr.mxu0 0.0
  %1503 = vmatpush1.msra.mxu0 0.0
  %1504 = vmatprep.subr.mxu0 0.0
  %1505 = vmatpush1.msra.mxu0 0.0
  %1506 = vmatprep.subr.mxu0 0.0
  %1507 = vmatpush1.msra.mxu0 0.0
  %1508 = vmatprep.subr.mxu0 0.0
  %1509 = vmatpush1.msra.mxu0 0.0
  %1510 = vmatprep.subr.mxu0 0.0
  %1511 = vmatpush1.msra.mxu0 0.0
  %1512 = vmatprep.subr.mxu0 0.0
  %1513 = vmatpush1.msra.mxu0 0.0
  %1514 = vmatprep.subr.mxu0 0.0
  %1515 = vmatpush1.msra.mxu0 0.0
  %1516 = vmatprep.subr.mxu0 0.0
  %1517 = vmatpush1.msra.mxu0 0.0
  %1518 = vmatprep.subr.mxu0 0.0
  %1519 = vmatpush1.msra.mxu0 0.0
  %1520 = vmatprep.subr.mxu0 0.0
  %1521 = vmatpush1.msra.mxu0 0.0
  %1522 = vmatprep.mubr.f32.mxu0 0.0
  %1523 = vmatmul.mubr.f32.gmra.mrb[0].mxu0 %v1314
  %v1524 = vpop.f32.mrb[0].mxu0
  %v1525 = vadd.f32 0.0, %v1524
  %v1526 = vpop.f32.mrb[0].mxu0
  %v1527 = vadd.f32 0.0, %v1526
  %1528 = vdwg.mxu0
  %1529 = vmatprep.subr.mxu0 0.0
  %1530 = vmatpush1.msra.mxu0 %v1019
  %1531 = vmatprep.subr.mxu0 0.0
  %1532 = vmatpush1.msra.mxu0 %v1026
  %1533 = vmatprep.subr.mxu0 0.0
  %1534 = vmatpush1.msra.mxu0 0.0
  %1535 = vmatprep.subr.mxu0 0.0
  %1536 = vmatpush1.msra.mxu0 0.0
  %1537 = vmatprep.subr.mxu0 0.0
  %1538 = vmatpush1.msra.mxu0 0.0
  %1539 = vmatprep.subr.mxu0 0.0
  %1540 = vmatpush1.msra.mxu0 0.0
  %1541 = vmatprep.subr.mxu0 0.0
  %1542 = vmatpush1.msra.mxu0 0.0
  %1543 = vmatprep.subr.mxu0 0.0
  %1544 = vmatpush1.msra.mxu0 0.0
  %1545 = vmatprep.subr.mxu0 0.0
  %1546 = vmatpush1.msra.mxu0 0.0
  %1547 = vmatprep.subr.mxu0 0.0
  %1548 = vmatpush1.msra.mxu0 0.0
  %1549 = vmatprep.subr.mxu0 0.0
  %1550 = vmatpush1.msra.mxu0 0.0
  %1551 = vmatprep.subr.mxu0 0.0
  %1552 = vmatpush1.msra.mxu0 0.0
  %1553 = vmatprep.subr.mxu0 0.0
  %1554 = vmatpush1.msra.mxu0 0.0
  %1555 = vmatprep.subr.mxu0 0.0
  %1556 = vmatpush1.msra.mxu0 0.0
  %1557 = vmatprep.subr.mxu0 0.0
  %1558 = vmatpush1.msra.mxu0 0.0
  %1559 = vmatprep.subr.mxu0 0.0
  %1560 = vmatpush1.msra.mxu0 0.0
  %1561 = vmatprep.subr.mxu0 0.0
  %1562 = vmatpush1.msra.mxu0 0.0
  %1563 = vmatprep.subr.mxu0 0.0
  %1564 = vmatpush1.msra.mxu0 0.0
  %1565 = vmatprep.subr.mxu0 0.0
  %1566 = vmatpush1.msra.mxu0 0.0
  %1567 = vmatprep.subr.mxu0 0.0
  %1568 = vmatpush1.msra.mxu0 0.0
  %1569 = vmatprep.subr.mxu0 0.0
  %1570 = vmatpush1.msra.mxu0 0.0
  %1571 = vmatprep.subr.mxu0 0.0
  %1572 = vmatpush1.msra.mxu0 0.0
  %1573 = vmatprep.subr.mxu0 0.0
  %1574 = vmatpush1.msra.mxu0 0.0
  %1575 = vmatprep.subr.mxu0 0.0
  %1576 = vmatpush1.msra.mxu0 0.0
  %1577 = vmatprep.subr.mxu0 0.0
  %1578 = vmatpush1.msra.mxu0 0.0
  %1579 = vmatprep.subr.mxu0 0.0
  %1580 = vmatpush1.msra.mxu0 0.0
  %1581 = vmatprep.subr.mxu0 0.0
  %1582 = vmatpush1.msra.mxu0 0.0
  %1583 = vmatprep.subr.mxu0 0.0
  %1584 = vmatpush1.msra.mxu0 0.0
  %1585 = vmatprep.subr.mxu0 0.0
  %1586 = vmatpush1.msra.mxu0 0.0
  %1587 = vmatprep.subr.mxu0 0.0
  %1588 = vmatpush1.msra.mxu0 0.0
  %1589 = vmatprep.subr.mxu0 0.0
  %1590 = vmatpush1.msra.mxu0 0.0
  %1591 = vmatprep.subr.mxu0 0.0
  %1592 = vmatpush1.msra.mxu0 0.0
  %1593 = vmatprep.mubr.f32.mxu0 0.0
  %1594 = vmatmul.mubr.f32.gmra.mrb[0].mxu0 %v1314
  %v1595 = vpop.f32.mrb[0].mxu0
  %v1596 = vadd.f32 0.0, %v1595
  %v1597 = vpop.f32.mrb[0].mxu0
  %1598 = vdwg.mxu0
  %v1599 = vlaneseq
  %v1600 = vshrl.u32 %v1599, 7
  %v1601 = vsub.s32 0, %v1600
  %v1602 = vrot.slane %v1097, %v1601
  %v1603 = vlaneseq
  %v1604 = vshrl.u32 %v1603, 7
  %v1605 = vsub.s32 0, %v1604
  %v1606 = vrot.slane %v1099, %v1605
  %v1607 = vlaneseq
  %v1608 = vshrl.u32 %v1607, 7
  %v1609 = vsub.s32 0, %v1608
  %v1610 = vrot.slane %v1168, %v1609
  %v1611 = vlaneseq
  %v1612 = vshrl.u32 %v1611, 7
  %v1613 = vsub.s32 0, %v1612
  %v1614 = vrot.slane %v1170, %v1613
  %v1615 = vlaneseq
  %v1616 = vshrl.u32 %v1615, 7
  %v1617 = vsub.s32 0, %v1616
  %v1618 = vrot.slane %v1239, %v1617
  %v1619 = vlaneseq
  %v1620 = vshrl.u32 %v1619, 7
  %v1621 = vsub.s32 0, %v1620
  %v1622 = vrot.slane %v1241, %v1621
  %v1623 = vlaneseq
  %v1624 = vshrl.u32 %v1623, 7
  %v1625 = vsub.s32 0, %v1624
  %v1626 = vrot.slane %v1310, %v1625
  %v1627 = vsub.f32 %v108, %v1602
  %v1628 = vsub.f32 %v110, %v1606
  %v1629 = vsub.f32 %v149, %v1610
  %v1630 = vsub.f32 %v151, %v1614
  %v1631 = vsub.f32 %v190, %v1618
  %v1632 = vsub.f32 %v192, %v1622
  %v1633 = vsub.f32 %v231, %v1626
  %v1634 = vlaneseq
  %v1635 = vshrl.u32 %v1634, 7
  %v1636 = vsub.s32 0, %v1635
  %v1637 = vrot.slane %v1383, %v1636
  %v1638 = vlaneseq
  %v1639 = vshrl.u32 %v1638, 7
  %v1640 = vsub.s32 0, %v1639
  %v1641 = vrot.slane %v1385, %v1640
  %v1642 = vlaneseq
  %v1643 = vshrl.u32 %v1642, 7
  %v1644 = vsub.s32 0, %v1643
  %v1645 = vrot.slane %v1454, %v1644
  %v1646 = vlaneseq
  %v1647 = vshrl.u32 %v1646, 7
  %v1648 = vsub.s32 0, %v1647
  %v1649 = vrot.slane %v1456, %v1648
  %v1650 = vlaneseq
  %v1651 = vshrl.u32 %v1650, 7
  %v1652 = vsub.s32 0, %v1651
  %v1653 = vrot.slane %v1525, %v1652
  %v1654 = vlaneseq
  %v1655 = vshrl.u32 %v1654, 7
  %v1656 = vsub.s32 0, %v1655
  %v1657 = vrot.slane %v1527, %v1656
  %v1658 = vlaneseq
  %v1659 = vshrl.u32 %v1658, 7
  %v1660 = vsub.s32 0, %v1659
  %v1661 = vrot.slane %v1596, %v1660
  %v1662 = vmul.f32 %v1627, %v1637
  %v1663 = vmul.f32 %v1628, %v1641
  %v1664 = vmul.f32 %v1629, %v1645
  %v1665 = vmul.f32 %v1630, %v1649
  %v1666 = vmul.f32 %v1631, %v1653
  %v1667 = vmul.f32 %v1632, %v1657
  %v1668 = vmul.f32 %v1633, %v1661
  %v1669 = vld [vmem:[%s4] sm:$0x7f]
  %v1671 = vlaneseq
  %v1672 = vshrl.u32 %v1671, 7
  %v1673 = vsub.s32 0, %v1672
  %v1674 = vrot.slane %v1669, %v1673
  %v1675 = vlaneseq
  %v1676 = vshrl.u32 %v1675, 7
  %v1677 = vsub.s32 1, %v1676
  %v1678 = vrot.slane %v1669, %v1677
  %v1679 = vlaneseq
  %v1680 = vshrl.u32 %v1679, 7
  %v1681 = vsub.s32 2, %v1680
  %v1682 = vrot.slane %v1669, %v1681
  %v1683 = vlaneseq
  %v1684 = vshrl.u32 %v1683, 7
  %v1685 = vsub.s32 3, %v1684
  %v1686 = vrot.slane %v1669, %v1685
  %v1687 = vlaneseq
  %v1688 = vshrl.u32 %v1687, 7
  %v1689 = vsub.s32 4, %v1688
  %v1690 = vrot.slane %v1669, %v1689
  %v1691 = vlaneseq
  %v1692 = vshrl.u32 %v1691, 7
  %v1693 = vsub.s32 5, %v1692
  %v1694 = vrot.slane %v1669, %v1693
  %v1695 = vlaneseq
  %v1696 = vshrl.u32 %v1695, 7
  %v1697 = vsub.s32 6, %v1696
  %v1698 = vrot.slane %v1669, %v1697
  %v1706 = vmul.f32 %v1662, %v1674
  %v1707 = vmul.f32 %v1663, %v1678
  %v1708 = vmul.f32 %v1664, %v1682
  %v1709 = vmul.f32 %v1665, %v1686
  %v1710 = vmul.f32 %v1666, %v1690
  %v1711 = vmul.f32 %v1667, %v1694
  %v1712 = vmul.f32 %v1668, %v1698
  %v1713 = vld [vmem:[%s5] sm:$0x7f]
  %v1715 = vlaneseq
  %v1716 = vshrl.u32 %v1715, 7
  %v1717 = vsub.s32 0, %v1716
  %v1718 = vrot.slane %v1713, %v1717
  %v1719 = vlaneseq
  %v1720 = vshrl.u32 %v1719, 7
  %v1721 = vsub.s32 1, %v1720
  %v1722 = vrot.slane %v1713, %v1721
  %v1723 = vlaneseq
  %v1724 = vshrl.u32 %v1723, 7
  %v1725 = vsub.s32 2, %v1724
  %v1726 = vrot.slane %v1713, %v1725
  %v1727 = vlaneseq
  %v1728 = vshrl.u32 %v1727, 7
  %v1729 = vsub.s32 3, %v1728
  %v1730 = vrot.slane %v1713, %v1729
  %v1731 = vlaneseq
  %v1732 = vshrl.u32 %v1731, 7
  %v1733 = vsub.s32 4, %v1732
  %v1734 = vrot.slane %v1713, %v1733
  %v1735 = vlaneseq
  %v1736 = vshrl.u32 %v1735, 7
  %v1737 = vsub.s32 5, %v1736
  %v1738 = vrot.slane %v1713, %v1737
  %v1739 = vlaneseq
  %v1740 = vshrl.u32 %v1739, 7
  %v1741 = vsub.s32 6, %v1740
  %v1742 = vrot.slane %v1713, %v1741
  %v1750 = vadd.f32 %v1706, %v1718
  %v1751 = vadd.f32 %v1707, %v1722
  %v1752 = vadd.f32 %v1708, %v1726
  %v1753 = vadd.f32 %v1709, %v1730
  %v1754 = vadd.f32 %v1710, %v1734
  %v1755 = vadd.f32 %v1711, %v1738
  %v1756 = vadd.f32 %v1712, %v1742
  %v1757 = vmax.f32 %v1750, 0.0
  %v1758 = vmax.f32 %v1751, 0.0
  %v1759 = vmax.f32 %v1752, 0.0
  %v1760 = vmax.f32 %v1753, 0.0
  %v1761 = vmax.f32 %v1754, 0.0
  %v1762 = vmax.f32 %v1755, 0.0
  %v1763 = vmax.f32 %v1756, 0.0
  %v1764 = vpack.c.bf16 %v1757, %v1757
  %v1765 = vpack.c.bf16 %v1758, %v1758
  %v1766 = vpack.c.bf16 %v1759, %v1759
  %v1767 = vpack.c.bf16 %v1760, %v1760
  %v1768 = vpack.c.bf16 %v1761, %v1761
  %v1769 = vpack.c.bf16 %v1762, %v1762
  %v1770 = vpack.c.bf16 %v1763, %v1763
  %v1778 = vcombine.low %v1764, %v1765
  %v1779 = vcombine.low %v1766, %v1767
  %v1780 = vcombine.low %v1768, %v1769
  %v1782 = vunpack.c.l.s4 1966171168
  %v1783 = vunpack.c.0.s8 %v1782
  %v1784 = vlaneseq
  %v1785 = vshrl.u32 %v1784, 7
  %v1786 = vsub.s32 %v1783, %v1785
  %v1787 = vrot.slane %v1778, %v1786
  %v1789 = vunpack.c.l.s4 1966171168
  %v1790 = vunpack.c.0.s8 %v1789
  %v1791 = vlaneseq
  %v1792 = vshrl.u32 %v1791, 7
  %v1793 = vsub.s32 %v1790, %v1792
  %v1794 = vrot.slane %v1779, %v1793
  %v1796 = vunpack.c.l.s4 1966171168
  %v1797 = vunpack.c.0.s8 %v1796
  %v1798 = vlaneseq
  %v1799 = vshrl.u32 %v1798, 7
  %v1800 = vsub.s32 %v1797, %v1799
  %v1801 = vrot.slane %v1780, %v1800
  %v1803 = vunpack.c.l.s4 1966171168
  %v1804 = vunpack.c.0.s8 %v1803
  %v1805 = vlaneseq
  %v1806 = vshrl.u32 %v1805, 7
  %v1807 = vsub.s32 %v1804, %v1806
  %v1808 = vrot.slane %v1770, %v1807
  %v1809 = vcombine.low %v1787, %v1794
  %v1810 = vcombine.low %v1801, %v1808
  %v1812 = vunpack.c.l.s4 1966171168
  %v1813 = vunpack.c.0.s8 %v1812
  %v1814 = vlaneseq
  %v1815 = vshrl.u32 %v1814, 7
  %v1816 = vsub.s32 %v1813, %v1815
  %v1817 = vrot.slane %v1809, %v1816
  %v1819 = vunpack.c.l.s4 1966171168
  %v1820 = vunpack.c.0.s8 %v1819
  %v1821 = vlaneseq
  %v1822 = vshrl.u32 %v1821, 7
  %v1823 = vsub.s32 %v1820, %v1822
  %v1824 = vrot.slane %v1810, %v1823
  %v1825 = vcombine.low %v1817, %v1824
  %vm1827 = vcmask 1040384
  %vm1828 = vcmask 1041409
  %vm1829 = vmor %vm1828, %vm1827
  %vm1830 = vcmask 1042434
  %vm1831 = vmor %vm1830, %vm1829
  %vm1832 = vcmask 1043459
  %vm1833 = vmor %vm1832, %vm1831
  %vm1834 = vcmask 1044484
  %vm1835 = vmor %vm1834, %vm1833
  %vm1836 = vcmask 1045509
  %vm1837 = vmor %vm1836, %vm1835
  %vm1838 = vcmask 129030
  %vm1839 = vmor %vm1838, %vm1837
  %1840 = vst.msk [vmem:[%s6] sm:$0x7f] %vm1839, %v1825
  // Predicated region
  $region26: #{netg_forward.3} parent=0 // pred_check
    _
  $region27: #{netg_forward.3} parent=0 // pred_check_branch
    %1842 = sbr.rel (0) target = $region29
  $region28: #{netg_forward.3} parent=0 // pred_region
    _
  $region29: #{netg_forward.3} parent=0 // pred_fallthru
    _
  // Predicated region
  $region30: #{netg_forward.3} parent=0 // pred_check
    _
  $region31: #{netg_forward.3} parent=0 // pred_check_branch
    %1844 = sbr.rel (0) target = $region33
  $region32: #{netg_forward.3} parent=0 // pred_region
    _
  $region33: #{netg_forward.3} parent=0 // pred_fallthru
    _

// kernel: netg_forward.4
$region0: #{netg_forward.4}
  #allocation0 [shape = 'u32[]', space=smem, size = 0x4, offset = 0x4, fixed_abs, tag = 'smem constant byte address 0x4 - core index']
  #allocation1 [shape = 'u32[144,128]{1,0:T(1,128)}', space=vmem, size = 0x12000, scoped, tag = 'internal scratch']
  #allocation2 [shape = 'f32[2,128,32]{2,1,0:T(8,128)}', space=vmem, size = 0x20000, scoped, tag = 'scratch operand']
  #allocation3 [shape = 'f32[2,32]{1,0:T(2,128)}', space=vmem, size = 0x400, scoped, tag = 'scratch operand']
  %s0 = inlined_call_operand.hbm [shape: bf16[288,16], index: 0, kind: input, shape index: {}]
  %s1 = inlined_call_operand.hbm [shape: bf16[9,16,32], index: 1, kind: input, shape index: {}]
  %s2 = inlined_call_operand.hbm [shape: f32[256,1], index: 2, kind: input, shape index: {}]
  %s3 = inlined_call_operand.hbm [shape: f32[1,8], index: 3, kind: input, shape index: {}]
  %s4 = inlined_call_operand.hbm [shape: f32[1,8], index: 4, kind: input, shape index: {}]
  %s5 = inlined_call_operand.hbm [shape: f32[32,8], index: 5, kind: input, shape index: {}]
  %s6 = inlined_call_operand.hbm [shape: f32[8,32], index: 6, kind: input, shape index: {}]
  %s7 = inlined_call_operand.hbm [shape: bf16[256,32], index: 7, kind: output, shape index: {}]
  %s8 = sld [smem:[#allocation0]]
  $region97: #{netg_forward.4} parent=0
    _
  %s10 = ssub.s32 1, %s8
  %s11 = scalar_select 0, %s10, %s8
  $region1: #{netg_forward.4} parent=0
    #allocation4 [shape = 'u8[73728]{0}', space=vmem, size = 0x12000, scoped, tag = 'input window, operand 0, single buffered']
    #allocation5 [shape = 's32[2]{0}', space=sflag, size = 0x8, scoped, tag = 'scoped memory for netg_forward.4']
    #allocation6 [shape = 's32[2]{0}', space=sflag, size = 0x8, scoped, tag = 'scoped memory for netg_forward.4']
    #allocation7 [shape = 'u8[36864]{0}', space=vmem, size = 0x9000, scoped, tag = 'input window, operand 1, single buffered']
    #allocation8 [shape = 's32[1]{0}', space=sflag, size = 0x4, scoped, tag = 'scoped memory for netg_forward.4']
    #allocation9 [shape = 'u8[131072]{0}', space=vmem, size = 0x20000, scoped, tag = 'input window, operand 2']
    #allocation10 [shape = 'u8[512]{0}', space=vmem, size = 0x400, scoped, tag = 'input window, operand 3, single buffered']
    #allocation11 [shape = 'u8[512]{0}', space=vmem, size = 0x400, scoped, tag = 'input window, operand 4, single buffered']
    #allocation12 [shape = 's32[1]{0}', space=sflag, size = 0x4, scoped, tag = 'scoped memory for netg_forward.4']
    #allocation13 [shape = 'u8[16384]{0}', space=vmem, size = 0x4000, scoped, tag = 'input window, operand 5, single buffered']
    #allocation14 [shape = 'u8[4096]{0}', space=vmem, size = 0x1000, scoped, tag = 'input window, operand 6, single buffered']
    #allocation15 [shape = 's32[1]{0}', space=sflag, size = 0x4, scoped, tag = 'scoped memory for netg_forward.4']
    #allocation16 [shape = 'u8[65536]{0}', space=vmem, size = 0x10000, scoped, tag = 'output window, operand 0, single buffered']
    %12 = vsyncpa [#allocation5], 0
    %13 = vsyncpa [#allocation8], 0
    %14 = vsyncpa [#allocation12], 0
    %15 = vsyncpa [#allocation15], 0
    %16 = vsyncpa [#allocation6], 0
    loop: start=0, step=1, limit=4
    $region2: #{netg_forward.4} parent=1 // loop_pre_header
      _
    $region3: #{netg_forward.4} parent=1 // loop_header
      %s18 = sphi 0, %s22
      %p19 = scmp.ge.s32.totalorder %s18, 4
      %s26 = sphi 0, %s26
      %s28 = sphi 0, %s26
      %s29 = sphi 0, %s28
      %s43 = sphi 0, %s29
      %s47 = sphi 0, %s47
      %s49 = sphi 0, %s47
      %s50 = sphi 0, %s49
      %s64 = sphi 0, %s50
      %s70 = sphi 0, %s72
      %s73 = sphi 0, %s70
      %s74 = sphi 0, %s73
      %s90 = sphi 0, %s74
      %s94 = sphi 0, %s94
      %s96 = sphi 0, %s94
      %s97 = sphi 0, %s96
      %s111 = sphi 0, %s97
      %s115 = sphi 0, %s115
      %s117 = sphi 0, %s115
      %s118 = sphi 0, %s117
      %s132 = sphi 0, %s118
      %s136 = sphi 0, %s136
      %s138 = sphi 0, %s136
      %s139 = sphi 0, %s138
      %s153 = sphi 0, %s139
      %s157 = sphi 0, %s157
      %s159 = sphi 0, %s157
      %s160 = sphi 0, %s159
      %s174 = sphi 0, %s160
      %s178 = sphi 0, %s178
      %s180 = sphi 0, %s178
      %s181 = sphi 0, %s180
      %s195 = sphi 0, %s181
    $region4: #{netg_forward.4} parent=1 // loop_header_branch
      %21 = sbr.rel (%p19) target = $region8
    $region5: #{netg_forward.4} parent=1 // loop_body
      %s23 = ssub.s32 %s18, 1
      %s24 = ssub.s32 %s18, 2
      %s25 = sadd.s32 %s18, 1
      %s27 = sadd.s32 %s26, 1
      %p30 = scmp.eq.s32.totalorder %s18, 1
      %p31 = scmp.ne.s32.totalorder %s26, %s28
      %p32 = scmp.eq.s32.totalorder %s18, 0
      %p33 = por %p31, %p32
      %p34 = scmp.ne.s32.totalorder %s26, %s28
      %p35 = scmp.eq.s32.totalorder %s23, 1
      %p36 = por %p34, %p35
      %p37 = scmp.ne.s32.totalorder %s28, %s29
      %p38 = scmp.eq.s32.totalorder %s23, 0
      %p39 = por %p37, %p38
      %p40 = scmp.ne.s32.totalorder %s28, %s29
      %p41 = scmp.eq.s32.totalorder %s24, 1
      %p42 = por %p40, %p41
      %p44 = scmp.ne.s32.totalorder %s29, %s43
      %p45 = scmp.eq.s32.totalorder %s24, 0
      %p46 = por %p44, %p45
      %s48 = sadd.s32 %s47, 1
      %p51 = scmp.eq.s32.totalorder %s18, 1
      %p52 = scmp.ne.s32.totalorder %s47, %s49
      %p53 = scmp.eq.s32.totalorder %s18, 0
      %p54 = por %p52, %p53
      %p55 = scmp.ne.s32.totalorder %s47, %s49
      %p56 = scmp.eq.s32.totalorder %s23, 1
      %p57 = por %p55, %p56
      %p58 = scmp.ne.s32.totalorder %s49, %s50
      %p59 = scmp.eq.s32.totalorder %s23, 0
      %p60 = por %p58, %p59
      %p61 = scmp.ne.s32.totalorder %s49, %s50
      %p62 = scmp.eq.s32.totalorder %s24, 1
      %p63 = por %p61, %p62
      %p65 = scmp.ne.s32.totalorder %s50, %s64
      %p66 = scmp.eq.s32.totalorder %s24, 0
      %p67 = por %p65, %p66
      %s68 = ssub.s32 %s18, %s25
      %p69 = scmp.eq.s32.totalorder %s68, 0
      %s71 = sadd.s32 %s70, 1
      %s72 = scalar_select %p69, %s70, %s71
      %p75 = pneg %p69
      %p76 = scmp.eq.s32.totalorder %s18, 1
      %p77 = por %p75, %p76
      %p78 = scmp.ne.s32.totalorder %s70, %s73
      %p79 = scmp.eq.s32.totalorder %s18, 0
      %p80 = por %p78, %p79
      %p81 = scmp.ne.s32.totalorder %s70, %s73
      %p82 = scmp.eq.s32.totalorder %s23, 1
      %p83 = por %p81, %p82
      %p84 = scmp.ne.s32.totalorder %s73, %s74
      %p85 = scmp.eq.s32.totalorder %s23, 0
      %p86 = por %p84, %p85
      %p87 = scmp.ne.s32.totalorder %s73, %s74
      %p88 = scmp.eq.s32.totalorder %s24, 1
      %p89 = por %p87, %p88
      %p91 = scmp.ne.s32.totalorder %s74, %s90
      %p92 = scmp.eq.s32.totalorder %s24, 0
      %p93 = por %p91, %p92
      %s95 = sadd.s32 %s94, 1
      %p98 = scmp.eq.s32.totalorder %s18, 1
      %p99 = scmp.ne.s32.totalorder %s94, %s96
      %p100 = scmp.eq.s32.totalorder %s18, 0
      %p101 = por %p99, %p100
      %p102 = scmp.ne.s32.totalorder %s94, %s96
      %p103 = scmp.eq.s32.totalorder %s23, 1
      %p104 = por %p102, %p103
      %p105 = scmp.ne.s32.totalorder %s96, %s97
      %p106 = scmp.eq.s32.totalorder %s23, 0
      %p107 = por %p105, %p106
      %p108 = scmp.ne.s32.totalorder %s96, %s97
      %p109 = scmp.eq.s32.totalorder %s24, 1
      %p110 = por %p108, %p109
      %p112 = scmp.ne.s32.totalorder %s97, %s111
      %p113 = scmp.eq.s32.totalorder %s24, 0
      %p114 = por %p112, %p113
      %s116 = sadd.s32 %s115, 1
      %p119 = scmp.eq.s32.totalorder %s18, 1
      %p120 = scmp.ne.s32.totalorder %s115, %s117
      %p121 = scmp.eq.s32.totalorder %s18, 0
      %p122 = por %p120, %p121
      %p123 = scmp.ne.s32.totalorder %s115, %s117
      %p124 = scmp.eq.s32.totalorder %s23, 1
      %p125 = por %p123, %p124
      %p126 = scmp.ne.s32.totalorder %s117, %s118
      %p127 = scmp.eq.s32.totalorder %s23, 0
      %p128 = por %p126, %p127
      %p129 = scmp.ne.s32.totalorder %s117, %s118
      %p130 = scmp.eq.s32.totalorder %s24, 1
      %p131 = por %p129, %p130
      %p133 = scmp.ne.s32.totalorder %s118, %s132
      %p134 = scmp.eq.s32.totalorder %s24, 0
      %p135 = por %p133, %p134
      %s137 = sadd.s32 %s136, 1
      %p140 = scmp.eq.s32.totalorder %s18, 1
      %p141 = scmp.ne.s32.totalorder %s136, %s138
      %p142 = scmp.eq.s32.totalorder %s18, 0
      %p143 = por %p141, %p142
      %p144 = scmp.ne.s32.totalorder %s136, %s138
      %p145 = scmp.eq.s32.totalorder %s23, 1
      %p146 = por %p144, %p145
      %p147 = scmp.ne.s32.totalorder %s138, %s139
      %p148 = scmp.eq.s32.totalorder %s23, 0
      %p149 = por %p147, %p148
      %p150 = scmp.ne.s32.totalorder %s138, %s139
      %p151 = scmp.eq.s32.totalorder %s24, 1
      %p152 = por %p150, %p151
      %p154 = scmp.ne.s32.totalorder %s139, %s153
      %p155 = scmp.eq.s32.totalorder %s24, 0
      %p156 = por %p154, %p155
      %s158 = sadd.s32 %s157, 1
      %p161 = scmp.eq.s32.totalorder %s18, 1
      %p162 = scmp.ne.s32.totalorder %s157, %s159
      %p163 = scmp.eq.s32.totalorder %s18, 0
      %p164 = por %p162, %p163
      %p165 = scmp.ne.s32.totalorder %s157, %s159
      %p166 = scmp.eq.s32.totalorder %s23, 1
      %p167 = por %p165, %p166
      %p168 = scmp.ne.s32.totalorder %s159, %s160
      %p169 = scmp.eq.s32.totalorder %s23, 0
      %p170 = por %p168, %p169
      %p171 = scmp.ne.s32.totalorder %s159, %s160
      %p172 = scmp.eq.s32.totalorder %s24, 1
      %p173 = por %p171, %p172
      %p175 = scmp.ne.s32.totalorder %s160, %s174
      %p176 = scmp.eq.s32.totalorder %s24, 0
      %p177 = por %p175, %p176
      %s179 = sadd.s32 %s178, 1
      %p182 = scmp.eq.s32.totalorder %s18, 1
      %p183 = scmp.ne.s32.totalorder %s178, %s180
      %p184 = scmp.eq.s32.totalorder %s18, 0
      %p185 = por %p183, %p184
      %p186 = scmp.ne.s32.totalorder %s178, %s180
      %p187 = scmp.eq.s32.totalorder %s23, 1
      %p188 = por %p186, %p187
      %p189 = scmp.ne.s32.totalorder %s180, %s181
      %p190 = scmp.eq.s32.totalorder %s23, 0
      %p191 = por %p189, %p190
      %p192 = scmp.ne.s32.totalorder %s180, %s181
      %p193 = scmp.eq.s32.totalorder %s24, 1
      %p194 = por %p192, %p193
      %p196 = scmp.ne.s32.totalorder %s181, %s195
      %p197 = scmp.eq.s32.totalorder %s24, 0
      %p198 = por %p196, %p197
      %p199 = scmp.le.s32.totalorder 1, %s18
      %p200 = scmp.lt.s32.totalorder %s18, 3
      %p201 = pnand %p199, %p200
      %p202 = pneg %p201
      // Predicated region
      $region9: #{netg_forward.4} parent=5 // pred_check
        _
      $region10: #{netg_forward.4} parent=5 // pred_check_branch
        %204 = sbr.rel (%p201) target = $region12
      $region11: #{netg_forward.4} parent=5 // pred_region
        %s205 = ssub.s32 %s18, 1
        // Predicated region
        $region13: #{netg_forward.4} parent=11 // pred_check
          %p206 = pneg %p39
        $region14: #{netg_forward.4} parent=11 // pred_check_branch
          %208 = sbr.rel (%p206) target = $region16
        $region15: #{netg_forward.4} parent=11 // pred_region
          %s210 = ssub.s32 2304, 2304
          %211 = vsyncadd [#allocation5], %s210
          %s212 = sshll.u32 [#allocation4], 4
          %s213 = int_to_ptr.vmem [resolvable:$true] %s212
          %218 = dma.hbm_to_vmem [thread:$0]  %s0, 2304, %s213, [#allocation5], 64, 64, 4
        $region16: #{netg_forward.4} parent=11 // pred_fallthru
          _
        // Predicated region
        $region17: #{netg_forward.4} parent=11 // pred_check
          %p219 = pneg %p60
        $region18: #{netg_forward.4} parent=11 // pred_check_branch
          %221 = sbr.rel (%p219) target = $region20
        $region19: #{netg_forward.4} parent=11 // pred_region
          %s223 = ssub.s32 1152, 1152
          %224 = vsyncadd [#allocation8], %s223
          %s225 = sshll.u32 [#allocation7], 4
          %s226 = int_to_ptr.vmem [resolvable:$true] %s225
          %231 = dma.hbm_to_vmem [thread:$0]  %s1, 1152, %s226, [#allocation8], 64, 64, 4
        $region20: #{netg_forward.4} parent=11 // pred_fallthru
          _
        // Predicated region
        $region21: #{netg_forward.4} parent=11 // pred_check
          %p232 = pneg %p107
        $region22: #{netg_forward.4} parent=11 // pred_check_branch
          %234 = sbr.rel (%p232) target = $region24
        $region23: #{netg_forward.4} parent=11 // pred_region
          %s236 = ssub.s32 16, 16
          %237 = vsyncadd [#allocation8], %s236
          %s239 = sshll.u32 [#allocation10], 4
          %s240 = int_to_ptr.vmem [resolvable:$true] %s239
          %242 = dma.hbm_to_vmem [thread:$0]  %s3, 16, %s240, [#allocation8]
        $region24: #{netg_forward.4} parent=11 // pred_fallthru
          _
        // Predicated region
        $region25: #{netg_forward.4} parent=11 // pred_check
          %p243 = pneg %p128
        $region26: #{netg_forward.4} parent=11 // pred_check_branch
          %245 = sbr.rel (%p243) target = $region28
        $region27: #{netg_forward.4} parent=11 // pred_region
          %s247 = ssub.s32 16, 16
          %248 = vsyncadd [#allocation12], %s247
          %s250 = sshll.u32 [#allocation11], 4
          %s251 = int_to_ptr.vmem [resolvable:$true] %s250
          %253 = dma.hbm_to_vmem [thread:$0]  %s4, 16, %s251, [#allocation12]
        $region28: #{netg_forward.4} parent=11 // pred_fallthru
          _
        // Predicated region
        $region29: #{netg_forward.4} parent=11 // pred_check
          %p254 = pneg %p149
        $region30: #{netg_forward.4} parent=11 // pred_check_branch
          %256 = sbr.rel (%p254) target = $region32
        $region31: #{netg_forward.4} parent=11 // pred_region
          %s258 = ssub.s32 512, 512
          %259 = vsyncadd [#allocation12], %s258
          %s260 = sshll.u32 [#allocation13], 4
          %s261 = int_to_ptr.vmem [resolvable:$true] %s260
          %266 = dma.hbm_to_vmem [thread:$0]  %s5, 512, %s261, [#allocation12], 128, 128, 8
        $region32: #{netg_forward.4} parent=11 // pred_fallthru
          _
        // Predicated region
        $region33: #{netg_forward.4} parent=11 // pred_check
          %p267 = pneg %p170
        $region34: #{netg_forward.4} parent=11 // pred_check_branch
          %269 = sbr.rel (%p267) target = $region36
        $region35: #{netg_forward.4} parent=11 // pred_region
          %s271 = ssub.s32 128, 128
          %272 = vsyncadd [#allocation15], %s271
          %s274 = sshll.u32 [#allocation14], 4
          %s275 = int_to_ptr.vmem [resolvable:$true] %s274
          %277 = dma.hbm_to_vmem [thread:$0]  %s6, 128, %s275, [#allocation15]
        $region36: #{netg_forward.4} parent=11 // pred_fallthru
          _
      $region12: #{netg_forward.4} parent=5 // pred_fallthru
        _
      %p278 = scmp.lt.s32.totalorder %s18, 2
      // Predicated region
      $region37: #{netg_forward.4} parent=5 // pred_check
        %p279 = pneg %p278
      $region38: #{netg_forward.4} parent=5 // pred_check_branch
        %281 = sbr.rel (%p279) target = $region40
      $region39: #{netg_forward.4} parent=5 // pred_region
        // Predicated region
        $region41: #{netg_forward.4} parent=39 // pred_check
          %p282 = pneg %p80
        $region42: #{netg_forward.4} parent=39 // pred_check_branch
          %284 = sbr.rel (%p282) target = $region44
        $region43: #{netg_forward.4} parent=39 // pred_region
          %s285 = sand.u32 %s18, 1
          %s286 = scalar_lea.sflag [#allocation5], %s285
          %s287 = sand.u32 %s70, 1
          %s288 = smul.addr %s287, 128
          %s289 = scalar_lea.vmem [#allocation9], %s288
          %s290 = smul.u32 16, %s18
          %s292 = ssub.s32 2048, 2048
          %293 = vsyncadd %s286, %s292
          %s294 = smul.addr %s290, 128
          %s295 = scalar_lea.hbm %s2, %s294
          %s296 = sshll.u32 %s289, 4
          %s297 = int_to_ptr.vmem [resolvable:$true] %s296
          %302 = dma.hbm_to_vmem [thread:$0]  %s295, 2048, %s297, %s286, 128, 128, 8
        $region44: #{netg_forward.4} parent=39 // pred_fallthru
          _
      $region40: #{netg_forward.4} parent=5 // pred_fallthru
        _
      %p303 = scmp.le.s32.totalorder 1, %s18
      %p304 = scmp.lt.s32.totalorder %s18, 3
      %p305 = pnand %p303, %p304
      %p306 = pneg %p305
      // Predicated region
      $region45: #{netg_forward.4} parent=5 // pred_check
        _
      $region46: #{netg_forward.4} parent=5 // pred_check_branch
        %308 = sbr.rel (%p305) target = $region48
      $region47: #{netg_forward.4} parent=5 // pred_region
        %s309 = ssub.s32 %s18, 1
        // Predicated region
        $region49: #{netg_forward.4} parent=47 // pred_check
          %p310 = pneg %p39
        $region50: #{netg_forward.4} parent=47 // pred_check_branch
          %312 = sbr.rel (%p310) target = $region52
        $region51: #{netg_forward.4} parent=47 // pred_region
          %313 = dma.done [#allocation5], 2304
        $region52: #{netg_forward.4} parent=47 // pred_fallthru
          _
        // Predicated region
        $region53: #{netg_forward.4} parent=47 // pred_check
          %p314 = pneg %p60
        $region54: #{netg_forward.4} parent=47 // pred_check_branch
          %316 = sbr.rel (%p314) target = $region56
        $region55: #{netg_forward.4} parent=47 // pred_region
          %317 = dma.done [#allocation8], 1152
        $region56: #{netg_forward.4} parent=47 // pred_fallthru
          _
        %s318 = sand.u32 %s23, 1
        %s319 = scalar_lea.sflag [#allocation5], %s318
        %s320 = sand.u32 %s73, 1
        %s321 = smul.addr %s320, 128
        %s322 = scalar_lea.vmem [#allocation9], %s321
        // Predicated region
        $region57: #{netg_forward.4} parent=47 // pred_check
          %p323 = pneg %p86
        $region58: #{netg_forward.4} parent=47 // pred_check_branch
          %325 = sbr.rel (%p323) target = $region60
        $region59: #{netg_forward.4} parent=47 // pred_region
          %326 = dma.done %s319, 2048
        $region60: #{netg_forward.4} parent=47 // pred_fallthru
          _
        // Predicated region
        $region61: #{netg_forward.4} parent=47 // pred_check
          %p327 = pneg %p107
        $region62: #{netg_forward.4} parent=47 // pred_check_branch
          %329 = sbr.rel (%p327) target = $region64
        $region63: #{netg_forward.4} parent=47 // pred_region
          %330 = dma.done [#allocation8], 16
        $region64: #{netg_forward.4} parent=47 // pred_fallthru
          _
        // Predicated region
        $region65: #{netg_forward.4} parent=47 // pred_check
          %p331 = pneg %p128
        $region66: #{netg_forward.4} parent=47 // pred_check_branch
          %333 = sbr.rel (%p331) target = $region68
        $region67: #{netg_forward.4} parent=47 // pred_region
          %334 = dma.done [#allocation12], 16
        $region68: #{netg_forward.4} parent=47 // pred_fallthru
          _
        // Predicated region
        $region69: #{netg_forward.4} parent=47 // pred_check
          %p335 = pneg %p149
        $region70: #{netg_forward.4} parent=47 // pred_check_branch
          %337 = sbr.rel (%p335) target = $region72
        $region71: #{netg_forward.4} parent=47 // pred_region
          %338 = dma.done [#allocation12], 512
        $region72: #{netg_forward.4} parent=47 // pred_fallthru
          _
        // Predicated region
        $region73: #{netg_forward.4} parent=47 // pred_check
          %p339 = pneg %p170
        $region74: #{netg_forward.4} parent=47 // pred_check_branch
          %341 = sbr.rel (%p339) target = $region76
        $region75: #{netg_forward.4} parent=47 // pred_region
          %342 = dma.done [#allocation15], 128
        $region76: #{netg_forward.4} parent=47 // pred_fallthru
          _
        %p343 = pneg %p39
        %p344 = pneg %p36
        %p345 = pneg %p60
        %p346 = pneg %p57
        %s347 = sand.u32 %s23, 1
        %s348 = scalar_lea.sflag [#allocation5], %s347
        %s349 = sand.u32 %s73, 1
        %s350 = smul.addr %s349, 128
        %s351 = scalar_lea.vmem [#allocation9], %s350
        %p352 = pneg %p86
        %p353 = pneg %p83
        %p354 = pneg %p107
        %p355 = pneg %p104
        %p356 = pneg %p128
        %p357 = pneg %p125
        %p358 = pneg %p149
        %p359 = pneg %p146
        %p360 = pneg %p170
        %p361 = pneg %p167
        %p362 = pneg %p191
        %p363 = pneg %p188
        %s364 = smul.u32 16, %s23
        %p366 = scmp.eq.s32.totalorder %s23, 0
        // Predicated region
        $region77: #{netg_forward.4} parent=47 // pred_check
          %p367 = pneg %p366
        $region78: #{netg_forward.4} parent=47 // pred_check_branch
          %369 = sbr.rel (%p367) target = $region80
        $region79: #{netg_forward.4} parent=47 // pred_region
          %vm370 = vcmask 254976
          %371 = vst.msk [vmem:[#allocation3] sm:$0x3] %vm370, 0.0
        $region80: #{netg_forward.4} parent=47 // pred_fallthru
          _
        %s372 = smul.u32 %s23, 128
        %s373 = sshra.s32 %s372, 3
        %s374 = sand.u32 %s372, 7
        %s375 = smul.addr %s373, 4
        %s376 = scalar_lea.vmem [#allocation4], %s375
        %v377 = vld [vmem:[%s376] sm:$0xf]
        %v378 = vld [vmem:[%s376 + $0x4] sm:$0xf]
        %v379 = vld [vmem:[%s376 + $0x8] sm:$0xf]
        %v380 = vld [vmem:[%s376 + $0xc] sm:$0xf]
        %v381 = vld [vmem:[%s376 + $0x10] sm:$0xf]
        %v382 = vld [vmem:[%s376 + $0x14] sm:$0xf]
        %v383 = vld [vmem:[%s376 + $0x18] sm:$0xf]
        %v384 = vld [vmem:[%s376 + $0x1c] sm:$0xf]
        %v385 = vld [vmem:[%s376 + $0x20] sm:$0xf]
        %v386 = vld [vmem:[%s376 + $0x24] sm:$0xf]
        %v387 = vld [vmem:[%s376 + $0x28] sm:$0xf]
        %v388 = vld [vmem:[%s376 + $0x2c] sm:$0xf]
        %v389 = vld [vmem:[%s376 + $0x30] sm:$0xf]
        %v390 = vld [vmem:[%s376 + $0x34] sm:$0xf]
        %v391 = vld [vmem:[%s376 + $0x38] sm:$0xf]
        %v392 = vld [vmem:[%s376 + $0x3c] sm:$0xf]
        %v393 = vld [vmem:[%s376 + $0x40] sm:$0xf]
        %v394 = vld [vmem:[%s376 + $0x44] sm:$0xf]
        %v395 = vld [vmem:[%s376 + $0x48] sm:$0xf]
        %v396 = vld [vmem:[%s376 + $0x4c] sm:$0xf]
        %v397 = vld [vmem:[#allocation7] sm:$0xf]
        %v398 = vld [vmem:[#allocation7 + $0x4] sm:$0xf]
        %s399 = scalar_lea.vmem [#allocation7], 8
        %v400 = vld [vmem:[%s399] sm:$0xf]
        %v401 = vld [vmem:[%s399 + $0x4] sm:$0xf]
        %v419 = vunpack.c.l.b16 %v377
        %v420 = vunpack.c.l.b16 %v378
        %v421 = vunpack.c.l.b16 %v379
        %v422 = vunpack.c.l.b16 %v380
        %v423 = vunpack.c.l.b16 %v381
        %v424 = vunpack.c.l.b16 %v382
        %v425 = vunpack.c.l.b16 %v383
        %v426 = vunpack.c.l.b16 %v384
        %v427 = vunpack.c.l.b16 %v385
        %v428 = vunpack.c.l.b16 %v386
        %v429 = vunpack.c.l.b16 %v387
        %v430 = vunpack.c.l.b16 %v388
        %v431 = vunpack.c.l.b16 %v389
        %v432 = vunpack.c.l.b16 %v390
        %v433 = vunpack.c.l.b16 %v391
        %v434 = vunpack.c.l.b16 %v392
        %v435 = vunpack.c.l.b16 %v393
        %v436 = vpack.c.b16 %v420, %v419
        %v437 = vpack.c.b16 %v422, %v421
        %v438 = vpack.c.b16 %v424, %v423
        %v439 = vpack.c.b16 %v426, %v425
        %v440 = vpack.c.b16 %v428, %v427
        %v441 = vpack.c.b16 %v430, %v429
        %v442 = vpack.c.b16 %v432, %v431
        %v443 = vpack.c.b16 %v434, %v433
        %v444 = vpack.c.b16 %v435, %v435
        %vm445 = vsmask.f32 4352
        %v447 = vshrl.u32 %v436, 16
        %v449 = vrot.slane %v447, 3
        %v450 = vshll.u32 %v436, 16
        %v452 = vrot.slane %v450, 4
        %v453 = vor.u32 %v449, %v452
        %v455 = vshrl.u32 %v437, 16
        %v457 = vrot.slane %v455, 3
        %v458 = vshll.u32 %v437, 16
        %v460 = vrot.slane %v458, 4
        %v461 = vor.u32 %v457, %v460
        %v462 = vsel %vm445, %v453, %v461
        %v464 = vshrl.u32 %v438, 16
        %v466 = vrot.slane %v464, 3
        %v467 = vshll.u32 %v438, 16
        %v469 = vrot.slane %v467, 4
        %v470 = vor.u32 %v466, %v469
        %v471 = vsel %vm445, %v461, %v470
        %v473 = vshrl.u32 %v439, 16
        %v475 = vrot.slane %v473, 3
        %v476 = vshll.u32 %v439, 16
        %v478 = vrot.slane %v476, 4
        %v479 = vor.u32 %v475, %v478
        %v480 = vsel %vm445, %v470, %v479
        %v482 = vshrl.u32 %v440, 16
        %v484 = vrot.slane %v482, 3
        %v485 = vshll.u32 %v440, 16
        %v487 = vrot.slane %v485, 4
        %v488 = vor.u32 %v484, %v487
        %v489 = vsel %vm445, %v479, %v488
        %v491 = vshrl.u32 %v441, 16
        %v493 = vrot.slane %v491, 3
        %v494 = vshll.u32 %v441, 16
        %v496 = vrot.slane %v494, 4
        %v497 = vor.u32 %v493, %v496
        %v498 = vsel %vm445, %v488, %v497
        %v500 = vshrl.u32 %v442, 16
        %v502 = vrot.slane %v500, 3
        %v503 = vshll.u32 %v442, 16
        %v505 = vrot.slane %v503, 4
        %v506 = vor.u32 %v502, %v505
        %v507 = vsel %vm445, %v497, %v506
        %v509 = vshrl.u32 %v443, 16
        %v511 = vrot.slane %v509, 3
        %v512 = vshll.u32 %v443, 16
        %v514 = vrot.slane %v512, 4
        %v515 = vor.u32 %v511, %v514
        %v516 = vsel %vm445, %v506, %v515
        %v518 = vshrl.u32 %v444, 16
        %v520 = vrot.slane %v518, 3
        %v521 = vshll.u32 %v444, 16
        %v523 = vrot.slane %v521, 4
        %v524 = vor.u32 %v520, %v523
        %v525 = vsel %vm445, %v515, %v524
        %v528 = vunpack.c.l.b16 %v400
        %v529 = vunpack.c.l.b16 %v401
        %v530 = vpack.c.b16 %v529, %v528
        %vm532 = vcmask 130048
        %v534 = vsel %vm532, %v462, 0
        %v537 = vsel %vm532, %v471, 0
        %v540 = vsel %vm532, %v480, 0
        %v543 = vsel %vm532, %v489, 0
        %v546 = vsel %vm532, %v498, 0
        %v549 = vsel %vm532, %v507, 0
        %v552 = vsel %vm532, %v516, 0
        %v555 = vsel %vm532, %v525, 0
        %557 = vmatprep.subr.bf16.mxu0 0
        %558 = vmatpush1.bf16.msra.mxu0 %v530
        %559 = vmatprep.subr.bf16.mxu0 0
        %560 = vmatpush1.bf16.msra.mxu0 0
        %561 = vmatprep.subr.bf16.mxu0 0
        %562 = vmatpush1.bf16.msra.mxu0 0
        %563 = vmatprep.subr.bf16.mxu0 0
        %564 = vmatpush1.bf16.msra.mxu0 0
        %565 = vmatprep.subr.bf16.mxu0 0
        %566 = vmatpush1.bf16.msra.mxu0 0
        %567 = vmatprep.subr.bf16.mxu0 0
        %568 = vmatpush1.bf16.msra.mxu0 0
        %569 = vmatprep.subr.bf16.mxu0 0
        %570 = vmatpush1.bf16.msra.mxu0 0
        %571 = vmatprep.subr.bf16.mxu0 0
        %572 = vmatpush1.bf16.msra.mxu0 0
        %573 = vmatprep.subr.bf16.mxu0 0
        %574 = vmatpush1.bf16.msra.mxu0 0
        %575 = vmatprep.subr.bf16.mxu0 0
        %576 = vmatpush1.bf16.msra.mxu0 0
        %577 = vmatprep.subr.bf16.mxu0 0
        %578 = vmatpush1.bf16.msra.mxu0 0
        %579 = vmatprep.subr.bf16.mxu0 0
        %580 = vmatpush1.bf16.msra.mxu0 0
        %581 = vmatprep.subr.bf16.mxu0 0
        %582 = vmatpush1.bf16.msra.mxu0 0
        %583 = vmatprep.subr.bf16.mxu0 0
        %584 = vmatpush1.bf16.msra.mxu0 0
        %585 = vmatprep.subr.bf16.mxu0 0
        %586 = vmatpush1.bf16.msra.mxu0 0
        %587 = vmatprep.subr.bf16.mxu0 0
        %588 = vmatpush1.bf16.msra.mxu0 0
        %589 = vmatprep.mubr.bf16.mxu0 0
        %590 = vmatmul.mubr.bf16.gmra.mrb[0].mxu0 %v534
        %v591 = vpop.f32.mrb[0].mxu0
        %v592 = vadd.f32 0.0, %v591
        %v593 = vpop.f32.mrb[0].mxu0
        %v594 = vpop.f32.mrb[0].mxu0
        %v595 = vadd.f32 0.0, %v594
        %v596 = vpop.f32.mrb[0].mxu0
        %597 = vmatprep.mubr.bf16.mxu0 0
        %598 = vmatmul.mubr.bf16.gmra.mrb[0].mxu0 %v537
        %v599 = vpop.f32.mrb[0].mxu0
        %v600 = vadd.f32 0.0, %v599
        %v601 = vpop.f32.mrb[0].mxu0
        %v602 = vpop.f32.mrb[0].mxu0
        %v603 = vadd.f32 0.0, %v602
        %v604 = vpop.f32.mrb[0].mxu0
        %605 = vmatprep.mubr.bf16.mxu0 0
        %606 = vmatmul.mubr.bf16.gmra.mrb[0].mxu0 %v540
        %v607 = vpop.f32.mrb[0].mxu0
        %v608 = vadd.f32 0.0, %v607
        %v609 = vpop.f32.mrb[0].mxu0
        %v610 = vpop.f32.mrb[0].mxu0
        %v611 = vadd.f32 0.0, %v610
        %v612 = vpop.f32.mrb[0].mxu0
        %613 = vmatprep.mubr.bf16.mxu0 0
        %614 = vmatmul.mubr.bf16.gmra.mrb[0].mxu0 %v543
        %v615 = vpop.f32.mrb[0].mxu0
        %v616 = vadd.f32 0.0, %v615
        %v617 = vpop.f32.mrb[0].mxu0
        %v618 = vpop.f32.mrb[0].mxu0
        %v619 = vadd.f32 0.0, %v618
        %v620 = vpop.f32.mrb[0].mxu0
        %621 = vmatprep.mubr.bf16.mxu0 0
        %622 = vmatmul.mubr.bf16.gmra.mrb[0].mxu0 %v546
        %v623 = vpop.f32.mrb[0].mxu0
        %v624 = vadd.f32 0.0, %v623
        %v625 = vpop.f32.mrb[0].mxu0
        %v626 = vpop.f32.mrb[0].mxu0
        %v627 = vadd.f32 0.0, %v626
        %v628 = vpop.f32.mrb[0].mxu0
        %629 = vmatprep.mubr.bf16.mxu0 0
        %630 = vmatmul.mubr.bf16.gmra.mrb[0].mxu0 %v549
        %v631 = vpop.f32.mrb[0].mxu0
        %v632 = vadd.f32 0.0, %v631
        %v633 = vpop.f32.mrb[0].mxu0
        %v634 = vpop.f32.mrb[0].mxu0
        %v635 = vadd.f32 0.0, %v634
        %v636 = vpop.f32.mrb[0].mxu0
        %637 = vmatprep.mubr.bf16.mxu0 0
        %638 = vmatmul.mubr.bf16.gmra.mrb[0].mxu0 %v552
        %v639 = vpop.f32.mrb[0].mxu0
        %v640 = vadd.f32 0.0, %v639
        %v641 = vpop.f32.mrb[0].mxu0
        %v642 = vpop.f32.mrb[0].mxu0
        %v643 = vadd.f32 0.0, %v642
        %v644 = vpop.f32.mrb[0].mxu0
        %645 = vmatprep.mubr.bf16.mxu0 0
        %646 = vmatmul.mubr.bf16.gmra.mrb[0].mxu0 %v555
        %v647 = vpop.f32.mrb[0].mxu0
        %v648 = vadd.f32 0.0, %v647
        %v649 = vpop.f32.mrb[0].mxu0
        %v650 = vpop.f32.mrb[0].mxu0
        %v651 = vadd.f32 0.0, %v650
        %v652 = vpop.f32.mrb[0].mxu0
        %653 = vdwg.mxu0
        %vm654 = vcmask 1044480
        %v655 = vrot.slane %v436, 3
        %v656 = vrot.slane %v437, 3
        %v657 = vsel %vm654, %v655, %v656
        %v658 = vrot.slane %v438, 3
        %v659 = vsel %vm654, %v656, %v658
        %v660 = vrot.slane %v439, 3
        %v661 = vsel %vm654, %v658, %v660
        %v662 = vrot.slane %v440, 3
        %v663 = vsel %vm654, %v660, %v662
        %v664 = vrot.slane %v441, 3
        %v665 = vsel %vm654, %v662, %v664
        %v666 = vrot.slane %v442, 3
        %v667 = vsel %vm654, %v664, %v666
        %v668 = vrot.slane %v443, 3
        %v669 = vsel %vm654, %v666, %v668
        %v670 = vrot.slane %v444, 3
        %v671 = vsel %vm654, %v668, %v670
        %v674 = vunpack.c.l.b16 %v397
        %v675 = vunpack.c.l.b16 %v398
        %v676 = vpack.c.b16 %v675, %v674
        %v679 = vsel %vm532, %v657, 0
        %v682 = vsel %vm532, %v659, 0
        %v685 = vsel %vm532, %v661, 0
        %v688 = vsel %vm532, %v663, 0
        %v691 = vsel %vm532, %v665, 0
        %v694 = vsel %vm532, %v667, 0
        %v697 = vsel %vm532, %v669, 0
        %v700 = vsel %vm532, %v671, 0
        %702 = vmatprep.subr.bf16.mxu0 0
        %703 = vmatpush1.bf16.msra.mxu0 %v676
        %704 = vmatprep.subr.bf16.mxu0 0
        %705 = vmatpush1.bf16.msra.mxu0 0
        %706 = vmatprep.subr.bf16.mxu0 0
        %707 = vmatpush1.bf16.msra.mxu0 0
        %708 = vmatprep.subr.bf16.mxu0 0
        %709 = vmatpush1.bf16.msra.mxu0 0
        %710 = vmatprep.subr.bf16.mxu0 0
        %711 = vmatpush1.bf16.msra.mxu0 0
        %712 = vmatprep.subr.bf16.mxu0 0
        %713 = vmatpush1.bf16.msra.mxu0 0
        %714 = vmatprep.subr.bf16.mxu0 0
        %715 = vmatpush1.bf16.msra.mxu0 0
        %716 = vmatprep.subr.bf16.mxu0 0
        %717 = vmatpush1.bf16.msra.mxu0 0
        %718 = vmatprep.subr.bf16.mxu0 0
        %719 = vmatpush1.bf16.msra.mxu0 0
        %720 = vmatprep.subr.bf16.mxu0 0
        %721 = vmatpush1.bf16.msra.mxu0 0
        %722 = vmatprep.subr.bf16.mxu0 0
        %723 = vmatpush1.bf16.msra.mxu0 0
        %724 = vmatprep.subr.bf16.mxu0 0
        %725 = vmatpush1.bf16.msra.mxu0 0
        %726 = vmatprep.subr.bf16.mxu0 0
        %727 = vmatpush1.bf16.msra.mxu0 0
        %728 = vmatprep.subr.bf16.mxu0 0
        %729 = vmatpush1.bf16.msra.mxu0 0
        %730 = vmatprep.subr.bf16.mxu0 0
        %731 = vmatpush1.bf16.msra.mxu0 0
        %732 = vmatprep.subr.bf16.mxu0 0
        %733 = vmatpush1.bf16.msra.mxu0 0
        %734 = vmatprep.mubr.bf16.mxu0 0
        %735 = vmatmul.mubr.bf16.gmra.mrb[0].mxu0 %v679
        %v736 = vpop.f32.mrb[0].mxu0
        %v737 = vadd.f32 %v592, %v736
        %v738 = vpop.f32.mrb[0].mxu0
        %v739 = vpop.f32.mrb[0].mxu0
        %v740 = vadd.f32 %v595, %v739
        %v741 = vpop.f32.mrb[0].mxu0
        %742 = vmatprep.mubr.bf16.mxu0 0
        %743 = vmatmul.mubr.bf16.gmra.mrb[0].mxu0 %v682
        %v744 = vpop.f32.mrb[0].mxu0
        %v745 = vadd.f32 %v600, %v744
        %v746 = vpop.f32.mrb[0].mxu0
        %v747 = vpop.f32.mrb[0].mxu0
        %v748 = vadd.f32 %v603, %v747
        %v749 = vpop.f32.mrb[0].mxu0
        %750 = vmatprep.mubr.bf16.mxu0 0
        %751 = vmatmul.mubr.bf16.gmra.mrb[0].mxu0 %v685
        %v752 = vpop.f32.mrb[0].mxu0
        %v753 = vadd.f32 %v608, %v752
        %v754 = vpop.f32.mrb[0].mxu0
        %v755 = vpop.f32.mrb[0].mxu0
        %v756 = vadd.f32 %v611, %v755
        %v757 = vpop.f32.mrb[0].mxu0
        %758 = vmatprep.mubr.bf16.mxu0 0
        %759 = vmatmul.mubr.bf16.gmra.mrb[0].mxu0 %v688
        %v760 = vpop.f32.mrb[0].mxu0
        %v761 = vadd.f32 %v616, %v760
        %v762 = vpop.f32.mrb[0].mxu0
        %v763 = vpop.f32.mrb[0].mxu0
        %v764 = vadd.f32 %v619, %v763
        %v765 = vpop.f32.mrb[0].mxu0
        %766 = vmatprep.mubr.bf16.mxu0 0
        %767 = vmatmul.mubr.bf16.gmra.mrb[0].mxu0 %v691
        %v768 = vpop.f32.mrb[0].mxu0
        %v769 = vadd.f32 %v624, %v768
        %v770 = vpop.f32.mrb[0].mxu0
        %v771 = vpop.f32.mrb[0].mxu0
        %v772 = vadd.f32 %v627, %v771
        %v773 = vpop.f32.mrb[0].mxu0
        %774 = vmatprep.mubr.bf16.mxu0 0
        %775 = vmatmul.mubr.bf16.gmra.mrb[0].mxu0 %v694
        %v776 = vpop.f32.mrb[0].mxu0
        %v777 = vadd.f32 %v632, %v776
        %v778 = vpop.f32.mrb[0].mxu0
        %v779 = vpop.f32.mrb[0].mxu0
        %v780 = vadd.f32 %v635, %v779
        %v781 = vpop.f32.mrb[0].mxu0
        %782 = vmatprep.mubr.bf16.mxu0 0
        %783 = vmatmul.mubr.bf16.gmra.mrb[0].mxu0 %v697
        %v784 = vpop.f32.mrb[0].mxu0
        %v785 = vadd.f32 %v640, %v784
        %v786 = vpop.f32.mrb[0].mxu0
        %v787 = vpop.f32.mrb[0].mxu0
        %v788 = vadd.f32 %v643, %v787
        %v789 = vpop.f32.mrb[0].mxu0
        %790 = vmatprep.mubr.bf16.mxu0 0
        %791 = vmatmul.mubr.bf16.gmra.mrb[0].mxu0 %v700
        %v792 = vpop.f32.mrb[0].mxu0
        %v793 = vadd.f32 %v648, %v792
        %v794 = vpop.f32.mrb[0].mxu0
        %v795 = vpop.f32.mrb[0].mxu0
        %v796 = vadd.f32 %v651, %v795
        %v797 = vpop.f32.mrb[0].mxu0
        %798 = vdwg.mxu0
        %s799 = scalar_lea.vmem [#allocation7], 16
        %v800 = vld [vmem:[%s799] sm:$0xf]
        %v801 = vld [vmem:[%s799 + $0x4] sm:$0xf]
        %v802 = vpack.c.b16 %v421, %v420
        %v803 = vpack.c.b16 %v423, %v422
        %v804 = vpack.c.b16 %v425, %v424
        %v805 = vpack.c.b16 %v427, %v426
        %v806 = vpack.c.b16 %v429, %v428
        %v807 = vpack.c.b16 %v431, %v430
        %v808 = vpack.c.b16 %v433, %v432
        %v809 = vpack.c.b16 %v435, %v434
        %v812 = vunpack.c.l.b16 %v800
        %v813 = vunpack.c.l.b16 %v801
        %v814 = vpack.c.b16 %v813, %v812
        %v817 = vsel %vm532, %v802, 0
        %v820 = vsel %vm532, %v803, 0
        %v823 = vsel %vm532, %v804, 0
        %v826 = vsel %vm532, %v805, 0
        %v829 = vsel %vm532, %v806, 0
        %v832 = vsel %vm532, %v807, 0
        %v835 = vsel %vm532, %v808, 0
        %v838 = vsel %vm532, %v809, 0
        %840 = vmatprep.subr.bf16.mxu0 0
        %841 = vmatpush1.bf16.msra.mxu0 %v814
        %842 = vmatprep.subr.bf16.mxu0 0
        %843 = vmatpush1.bf16.msra.mxu0 0
        %844 = vmatprep.subr.bf16.mxu0 0
        %845 = vmatpush1.bf16.msra.mxu0 0
        %846 = vmatprep.subr.bf16.mxu0 0
        %847 = vmatpush1.bf16.msra.mxu0 0
        %848 = vmatprep.subr.bf16.mxu0 0
        %849 = vmatpush1.bf16.msra.mxu0 0
        %850 = vmatprep.subr.bf16.mxu0 0
        %851 = vmatpush1.bf16.msra.mxu0 0
        %852 = vmatprep.subr.bf16.mxu0 0
        %853 = vmatpush1.bf16.msra.mxu0 0
        %854 = vmatprep.subr.bf16.mxu0 0
        %855 = vmatpush1.bf16.msra.mxu0 0
        %856 = vmatprep.subr.bf16.mxu0 0
        %857 = vmatpush1.bf16.msra.mxu0 0
        %858 = vmatprep.subr.bf16.mxu0 0
        %859 = vmatpush1.bf16.msra.mxu0 0
        %860 = vmatprep.subr.bf16.mxu0 0
        %861 = vmatpush1.bf16.msra.mxu0 0
        %862 = vmatprep.subr.bf16.mxu0 0
        %863 = vmatpush1.bf16.msra.mxu0 0
        %864 = vmatprep.subr.bf16.mxu0 0
        %865 = vmatpush1.bf16.msra.mxu0 0
        %866 = vmatprep.subr.bf16.mxu0 0
        %867 = vmatpush1.bf16.msra.mxu0 0
        %868 = vmatprep.subr.bf16.mxu0 0
        %869 = vmatpush1.bf16.msra.mxu0 0
        %870 = vmatprep.subr.bf16.mxu0 0
        %871 = vmatpush1.bf16.msra.mxu0 0
        %872 = vmatprep.mubr.bf16.mxu0 0
        %873 = vmatmul.mubr.bf16.gmra.mrb[0].mxu0 %v817
        %v874 = vpop.f32.mrb[0].mxu0
        %v875 = vadd.f32 0.0, %v874
        %v876 = vpop.f32.mrb[0].mxu0
        %v877 = vpop.f32.mrb[0].mxu0
        %v878 = vadd.f32 0.0, %v877
        %v879 = vpop.f32.mrb[0].mxu0
        %880 = vmatprep.mubr.bf16.mxu0 0
        %881 = vmatmul.mubr.bf16.gmra.mrb[0].mxu0 %v820
        %v882 = vpop.f32.mrb[0].mxu0
        %v883 = vadd.f32 0.0, %v882
        %v884 = vpop.f32.mrb[0].mxu0
        %v885 = vpop.f32.mrb[0].mxu0
        %v886 = vadd.f32 0.0, %v885
        %v887 = vpop.f32.mrb[0].mxu0
        %888 = vmatprep.mubr.bf16.mxu0 0
        %889 = vmatmul.mubr.bf16.gmra.mrb[0].mxu0 %v823
        %v890 = vpop.f32.mrb[0].mxu0
        %v891 = vadd.f32 0.0, %v890
        %v892 = vpop.f32.mrb[0].mxu0
        %v893 = vpop.f32.mrb[0].mxu0
        %v894 = vadd.f32 0.0, %v893
        %v895 = vpop.f32.mrb[0].mxu0
        %896 = vmatprep.mubr.bf16.mxu0 0
        %897 = vmatmul.mubr.bf16.gmra.mrb[0].mxu0 %v826
        %v898 = vpop.f32.mrb[0].mxu0
        %v899 = vadd.f32 0.0, %v898
        %v900 = vpop.f32.mrb[0].mxu0
        %v901 = vpop.f32.mrb[0].mxu0
        %v902 = vadd.f32 0.0, %v901
        %v903 = vpop.f32.mrb[0].mxu0
        %904 = vmatprep.mubr.bf16.mxu0 0
        %905 = vmatmul.mubr.bf16.gmra.mrb[0].mxu0 %v829
        %v906 = vpop.f32.mrb[0].mxu0
        %v907 = vadd.f32 0.0, %v906
        %v908 = vpop.f32.mrb[0].mxu0
        %v909 = vpop.f32.mrb[0].mxu0
        %v910 = vadd.f32 0.0, %v909
        %v911 = vpop.f32.mrb[0].mxu0
        %912 = vmatprep.mubr.bf16.mxu0 0
        %913 = vmatmul.mubr.bf16.gmra.mrb[0].mxu0 %v832
        %v914 = vpop.f32.mrb[0].mxu0
        %v915 = vadd.f32 0.0, %v914
        %v916 = vpop.f32.mrb[0].mxu0
        %v917 = vpop.f32.mrb[0].mxu0
        %v918 = vadd.f32 0.0, %v917
        %v919 = vpop.f32.mrb[0].mxu0
        %920 = vmatprep.mubr.bf16.mxu0 0
        %921 = vmatmul.mubr.bf16.gmra.mrb[0].mxu0 %v835
        %v922 = vpop.f32.mrb[0].mxu0
        %v923 = vadd.f32 0.0, %v922
        %v924 = vpop.f32.mrb[0].mxu0
        %v925 = vpop.f32.mrb[0].mxu0
        %v926 = vadd.f32 0.0, %v925
        %v927 = vpop.f32.mrb[0].mxu0
        %928 = vmatprep.mubr.bf16.mxu0 0
        %929 = vmatmul.mubr.bf16.gmra.mrb[0].mxu0 %v838
        %v930 = vpop.f32.mrb[0].mxu0
        %v931 = vadd.f32 0.0, %v930
        %v932 = vpop.f32.mrb[0].mxu0
        %v933 = vpop.f32.mrb[0].mxu0
        %v934 = vadd.f32 0.0, %v933
        %v935 = vpop.f32.mrb[0].mxu0
        %936 = vdwg.mxu0
        %v937 = vadd.f32 %v737, %v875
        %v938 = vadd.f32 %v740, %v878
        %v939 = vadd.f32 %v745, %v883
        %v940 = vadd.f32 %v748, %v886
        %v941 = vadd.f32 %v753, %v891
        %v942 = vadd.f32 %v756, %v894
        %v943 = vadd.f32 %v761, %v899
        %v944 = vadd.f32 %v764, %v902
        %v945 = vadd.f32 %v769, %v907
        %v946 = vadd.f32 %v772, %v910
        %v947 = vadd.f32 %v777, %v915
        %v948 = vadd.f32 %v780, %v918
        %v949 = vadd.f32 %v785, %v923
        %v950 = vadd.f32 %v788, %v926
        %v951 = vadd.f32 %v793, %v931
        %v952 = vadd.f32 %v796, %v934
        %s953 = scalar_lea.vmem [#allocation7], 24
        %v954 = vld [vmem:[%s953] sm:$0xf]
        %v955 = vld [vmem:[%s953 + $0x4] sm:$0xf]
        %v957 = vunpack.c.l.b16 %v394
        %v958 = vpack.c.b16 %v957, %v957
        %v959 = vshrl.u32 %v802, 16
        %v961 = vrot.slane %v959, 3
        %v962 = vshll.u32 %v802, 16
        %v964 = vrot.slane %v962, 4
        %v965 = vor.u32 %v961, %v964
        %v966 = vshrl.u32 %v803, 16
        %v968 = vrot.slane %v966, 3
        %v969 = vshll.u32 %v803, 16
        %v971 = vrot.slane %v969, 4
        %v972 = vor.u32 %v968, %v971
        %v973 = vsel %vm445, %v965, %v972
        %v974 = vshrl.u32 %v804, 16
        %v976 = vrot.slane %v974, 3
        %v977 = vshll.u32 %v804, 16
        %v979 = vrot.slane %v977, 4
        %v980 = vor.u32 %v976, %v979
        %v981 = vsel %vm445, %v972, %v980
        %v982 = vshrl.u32 %v805, 16
        %v984 = vrot.slane %v982, 3
        %v985 = vshll.u32 %v805, 16
        %v987 = vrot.slane %v985, 4
        %v988 = vor.u32 %v984, %v987
        %v989 = vsel %vm445, %v980, %v988
        %v990 = vshrl.u32 %v806, 16
        %v992 = vrot.slane %v990, 3
        %v993 = vshll.u32 %v806, 16
        %v995 = vrot.slane %v993, 4
        %v996 = vor.u32 %v992, %v995
        %v997 = vsel %vm445, %v988, %v996
        %v998 = vshrl.u32 %v807, 16
        %v1000 = vrot.slane %v998, 3
        %v1001 = vshll.u32 %v807, 16
        %v1003 = vrot.slane %v1001, 4
        %v1004 = vor.u32 %v1000, %v1003
        %v1005 = vsel %vm445, %v996, %v1004
        %v1006 = vshrl.u32 %v808, 16
        %v1008 = vrot.slane %v1006, 3
        %v1009 = vshll.u32 %v808, 16
        %v1011 = vrot.slane %v1009, 4
        %v1012 = vor.u32 %v1008, %v1011
        %v1013 = vsel %vm445, %v1004, %v1012
        %v1014 = vshrl.u32 %v809, 16
        %v1016 = vrot.slane %v1014, 3
        %v1017 = vshll.u32 %v809, 16
        %v1019 = vrot.slane %v1017, 4
        %v1020 = vor.u32 %v1016, %v1019
        %v1021 = vsel %vm445, %v1012, %v1020
        %v1023 = vshrl.u32 %v958, 16
        %v1025 = vrot.slane %v1023, 3
        %v1026 = vshll.u32 %v958, 16
        %v1028 = vrot.slane %v1026, 4
        %v1029 = vor.u32 %v1025, %v1028
        %v1030 = vsel %vm445, %v1020, %v1029
        %v1033 = vunpack.c.l.b16 %v954
        %v1034 = vunpack.c.l.b16 %v955
        %v1035 = vpack.c.b16 %v1034, %v1033
        %v1038 = vsel %vm532, %v973, 0
        %v1041 = vsel %vm532, %v981, 0
        %v1044 = vsel %vm532, %v989, 0
        %v1047 = vsel %vm532, %v997, 0
        %v1050 = vsel %vm532, %v1005, 0
        %v1053 = vsel %vm532, %v1013, 0
        %v1056 = vsel %vm532, %v1021, 0
        %v1059 = vsel %vm532, %v1030, 0
        %1061 = vmatprep.subr.bf16.mxu0 0
        %1062 = vmatpush1.bf16.msra.mxu0 %v1035
        %1063 = vmatprep.subr.bf16.mxu0 0
        %1064 = vmatpush1.bf16.msra.mxu0 0
        %1065 = vmatprep.subr.bf16.mxu0 0
        %1066 = vmatpush1.bf16.msra.mxu0 0
        %1067 = vmatprep.subr.bf16.mxu0 0
        %1068 = vmatpush1.bf16.msra.mxu0 0
        %1069 = vmatprep.subr.bf16.mxu0 0
        %1070 = vmatpush1.bf16.msra.mxu0 0
        %1071 = vmatprep.subr.bf16.mxu0 0
        %1072 = vmatpush1.bf16.msra.mxu0 0
        %1073 = vmatprep.subr.bf16.mxu0 0
        %1074 = vmatpush1.bf16.msra.mxu0 0
        %1075 = vmatprep.subr.bf16.mxu0 0
        %1076 = vmatpush1.bf16.msra.mxu0 0
        %1077 = vmatprep.subr.bf16.mxu0 0
        %1078 = vmatpush1.bf16.msra.mxu0 0
        %1079 = vmatprep.subr.bf16.mxu0 0
        %1080 = vmatpush1.bf16.msra.mxu0 0
        %1081 = vmatprep.subr.bf16.mxu0 0
        %1082 = vmatpush1.bf16.msra.mxu0 0
        %1083 = vmatprep.subr.bf16.mxu0 0
        %1084 = vmatpush1.bf16.msra.mxu0 0
        %1085 = vmatprep.subr.bf16.mxu0 0
        %1086 = vmatpush1.bf16.msra.mxu0 0
        %1087 = vmatprep.subr.bf16.mxu0 0
        %1088 = vmatpush1.bf16.msra.mxu0 0
        %1089 = vmatprep.subr.bf16.mxu0 0
        %1090 = vmatpush1.bf16.msra.mxu0 0
        %1091 = vmatprep.subr.bf16.mxu0 0
        %1092 = vmatpush1.bf16.msra.mxu0 0
        %1093 = vmatprep.mubr.bf16.mxu0 0
        %1094 = vmatmul.mubr.bf16.gmra.mrb[0].mxu0 %v1038
        %v1095 = vpop.f32.mrb[0].mxu0
        %v1096 = vadd.f32 0.0, %v1095
        %v1097 = vpop.f32.mrb[0].mxu0
        %v1098 = vpop.f32.mrb[0].mxu0
        %v1099 = vadd.f32 0.0, %v1098
        %v1100 = vpop.f32.mrb[0].mxu0
        %1101 = vmatprep.mubr.bf16.mxu0 0
        %1102 = vmatmul.mubr.bf16.gmra.mrb[0].mxu0 %v1041
        %v1103 = vpop.f32.mrb[0].mxu0
        %v1104 = vadd.f32 0.0, %v1103
        %v1105 = vpop.f32.mrb[0].mxu0
        %v1106 = vpop.f32.mrb[0].mxu0
        %v1107 = vadd.f32 0.0, %v1106
        %v1108 = vpop.f32.mrb[0].mxu0
        %1109 = vmatprep.mubr.bf16.mxu0 0
        %1110 = vmatmul.mubr.bf16.gmra.mrb[0].mxu0 %v1044
        %v1111 = vpop.f32.mrb[0].mxu0
        %v1112 = vadd.f32 0.0, %v1111
        %v1113 = vpop.f32.mrb[0].mxu0
        %v1114 = vpop.f32.mrb[0].mxu0
        %v1115 = vadd.f32 0.0, %v1114
        %v1116 = vpop.f32.mrb[0].mxu0
        %1117 = vmatprep.mubr.bf16.mxu0 0
        %1118 = vmatmul.mubr.bf16.gmra.mrb[0].mxu0 %v1047
        %v1119 = vpop.f32.mrb[0].mxu0
        %v1120 = vadd.f32 0.0, %v1119
        %v1121 = vpop.f32.mrb[0].mxu0
        %v1122 = vpop.f32.mrb[0].mxu0
        %v1123 = vadd.f32 0.0, %v1122
        %v1124 = vpop.f32.mrb[0].mxu0
        %1125 = vmatprep.mubr.bf16.mxu0 0
        %1126 = vmatmul.mubr.bf16.gmra.mrb[0].mxu0 %v1050
        %v1127 = vpop.f32.mrb[0].mxu0
        %v1128 = vadd.f32 0.0, %v1127
        %v1129 = vpop.f32.mrb[0].mxu0
        %v1130 = vpop.f32.mrb[0].mxu0
        %v1131 = vadd.f32 0.0, %v1130
        %v1132 = vpop.f32.mrb[0].mxu0
        %1133 = vmatprep.mubr.bf16.mxu0 0
        %1134 = vmatmul.mubr.bf16.gmra.mrb[0].mxu0 %v1053
        %v1135 = vpop.f32.mrb[0].mxu0
        %v1136 = vadd.f32 0.0, %v1135
        %v1137 = vpop.f32.mrb[0].mxu0
        %v1138 = vpop.f32.mrb[0].mxu0
        %v1139 = vadd.f32 0.0, %v1138
        %v1140 = vpop.f32.mrb[0].mxu0
        %1141 = vmatprep.mubr.bf16.mxu0 0
        %1142 = vmatmul.mubr.bf16.gmra.mrb[0].mxu0 %v1056
        %v1143 = vpop.f32.mrb[0].mxu0
        %v1144 = vadd.f32 0.0, %v1143
        %v1145 = vpop.f32.mrb[0].mxu0
        %v1146 = vpop.f32.mrb[0].mxu0
        %v1147 = vadd.f32 0.0, %v1146
        %v1148 = vpop.f32.mrb[0].mxu0
        %1149 = vmatprep.mubr.bf16.mxu0 0
        %1150 = vmatmul.mubr.bf16.gmra.mrb[0].mxu0 %v1059
        %v1151 = vpop.f32.mrb[0].mxu0
        %v1152 = vadd.f32 0.0, %v1151
        %v1153 = vpop.f32.mrb[0].mxu0
        %v1154 = vpop.f32.mrb[0].mxu0
        %v1155 = vadd.f32 0.0, %v1154
        %v1156 = vpop.f32.mrb[0].mxu0
        %1157 = vdwg.mxu0
        %v1158 = vadd.f32 %v937, %v1096
        %v1159 = vadd.f32 %v938, %v1099
        %v1160 = vadd.f32 %v939, %v1104
        %v1161 = vadd.f32 %v940, %v1107
        %v1162 = vadd.f32 %v941, %v1112
        %v1163 = vadd.f32 %v942, %v1115
        %v1164 = vadd.f32 %v943, %v1120
        %v1165 = vadd.f32 %v944, %v1123
        %v1166 = vadd.f32 %v945, %v1128
        %v1167 = vadd.f32 %v946, %v1131
        %v1168 = vadd.f32 %v947, %v1136
        %v1169 = vadd.f32 %v948, %v1139
        %v1170 = vadd.f32 %v949, %v1144
        %v1171 = vadd.f32 %v950, %v1147
        %v1172 = vadd.f32 %v951, %v1152
        %v1173 = vadd.f32 %v952, %v1155
        %s1174 = scalar_lea.vmem [#allocation7], 32
        %v1175 = vld [vmem:[%s1174] sm:$0xf]
        %v1176 = vld [vmem:[%s1174 + $0x4] sm:$0xf]
        %v1177 = vpack.c.b16 %v957, %v435
        %v1180 = vunpack.c.l.b16 %v1175
        %v1181 = vunpack.c.l.b16 %v1176
        %v1182 = vpack.c.b16 %v1181, %v1180
        %v1184 = vsel %vm532, %v437, 0
        %v1186 = vsel %vm532, %v438, 0
        %v1188 = vsel %vm532, %v439, 0
        %v1190 = vsel %vm532, %v440, 0
        %v1192 = vsel %vm532, %v441, 0
        %v1194 = vsel %vm532, %v442, 0
        %v1196 = vsel %vm532, %v443, 0
        %v1199 = vsel %vm532, %v1177, 0
        %1201 = vmatprep.subr.bf16.mxu0 0
        %1202 = vmatpush1.bf16.msra.mxu0 %v1182
        %1203 = vmatprep.subr.bf16.mxu0 0
        %1204 = vmatpush1.bf16.msra.mxu0 0
        %1205 = vmatprep.subr.bf16.mxu0 0
        %1206 = vmatpush1.bf16.msra.mxu0 0
        %1207 = vmatprep.subr.bf16.mxu0 0
        %1208 = vmatpush1.bf16.msra.mxu0 0
        %1209 = vmatprep.subr.bf16.mxu0 0
        %1210 = vmatpush1.bf16.msra.mxu0 0
        %1211 = vmatprep.subr.bf16.mxu0 0
        %1212 = vmatpush1.bf16.msra.mxu0 0
        %1213 = vmatprep.subr.bf16.mxu0 0
        %1214 = vmatpush1.bf16.msra.mxu0 0
        %1215 = vmatprep.subr.bf16.mxu0 0
        %1216 = vmatpush1.bf16.msra.mxu0 0
        %1217 = vmatprep.subr.bf16.mxu0 0
        %1218 = vmatpush1.bf16.msra.mxu0 0
        %1219 = vmatprep.subr.bf16.mxu0 0
        %1220 = vmatpush1.bf16.msra.mxu0 0
        %1221 = vmatprep.subr.bf16.mxu0 0
        %1222 = vmatpush1.bf16.msra.mxu0 0
        %1223 = vmatprep.subr.bf16.mxu0 0
        %1224 = vmatpush1.bf16.msra.mxu0 0
        %1225 = vmatprep.subr.bf16.mxu0 0
        %1226 = vmatpush1.bf16.msra.mxu0 0
        %1227 = vmatprep.subr.bf16.mxu0 0
        %1228 = vmatpush1.bf16.msra.mxu0 0
        %1229 = vmatprep.subr.bf16.mxu0 0
        %1230 = vmatpush1.bf16.msra.mxu0 0
        %1231 = vmatprep.subr.bf16.mxu0 0
        %1232 = vmatpush1.bf16.msra.mxu0 0
        %1233 = vmatprep.mubr.bf16.mxu0 0
        %1234 = vmatmul.mubr.bf16.gmra.mrb[0].mxu0 %v1184
        %v1235 = vpop.f32.mrb[0].mxu0
        %v1236 = vadd.f32 0.0, %v1235
        %v1237 = vpop.f32.mrb[0].mxu0
        %v1238 = vpop.f32.mrb[0].mxu0
        %v1239 = vadd.f32 0.0, %v1238
        %v1240 = vpop.f32.mrb[0].mxu0
        %1241 = vmatprep.mubr.bf16.mxu0 0
        %1242 = vmatmul.mubr.bf16.gmra.mrb[0].mxu0 %v1186
        %v1243 = vpop.f32.mrb[0].mxu0
        %v1244 = vadd.f32 0.0, %v1243
        %v1245 = vpop.f32.mrb[0].mxu0
        %v1246 = vpop.f32.mrb[0].mxu0
        %v1247 = vadd.f32 0.0, %v1246
        %v1248 = vpop.f32.mrb[0].mxu0
        %1249 = vmatprep.mubr.bf16.mxu0 0
        %1250 = vmatmul.mubr.bf16.gmra.mrb[0].mxu0 %v1188
        %v1251 = vpop.f32.mrb[0].mxu0
        %v1252 = vadd.f32 0.0, %v1251
        %v1253 = vpop.f32.mrb[0].mxu0
        %v1254 = vpop.f32.mrb[0].mxu0
        %v1255 = vadd.f32 0.0, %v1254
        %v1256 = vpop.f32.mrb[0].mxu0
        %1257 = vmatprep.mubr.bf16.mxu0 0
        %1258 = vmatmul.mubr.bf16.gmra.mrb[0].mxu0 %v1190
        %v1259 = vpop.f32.mrb[0].mxu0
        %v1260 = vadd.f32 0.0, %v1259
        %v1261 = vpop.f32.mrb[0].mxu0
        %v1262 = vpop.f32.mrb[0].mxu0
        %v1263 = vadd.f32 0.0, %v1262
        %v1264 = vpop.f32.mrb[0].mxu0
        %1265 = vmatprep.mubr.bf16.mxu0 0
        %1266 = vmatmul.mubr.bf16.gmra.mrb[0].mxu0 %v1192
        %v1267 = vpop.f32.mrb[0].mxu0
        %v1268 = vadd.f32 0.0, %v1267
        %v1269 = vpop.f32.mrb[0].mxu0
        %v1270 = vpop.f32.mrb[0].mxu0
        %v1271 = vadd.f32 0.0, %v1270
        %v1272 = vpop.f32.mrb[0].mxu0
        %1273 = vmatprep.mubr.bf16.mxu0 0
        %1274 = vmatmul.mubr.bf16.gmra.mrb[0].mxu0 %v1194
        %v1275 = vpop.f32.mrb[0].mxu0
        %v1276 = vadd.f32 0.0, %v1275
        %v1277 = vpop.f32.mrb[0].mxu0
        %v1278 = vpop.f32.mrb[0].mxu0
        %v1279 = vadd.f32 0.0, %v1278
        %v1280 = vpop.f32.mrb[0].mxu0
        %1281 = vmatprep.mubr.bf16.mxu0 0
        %1282 = vmatmul.mubr.bf16.gmra.mrb[0].mxu0 %v1196
        %v1283 = vpop.f32.mrb[0].mxu0
        %v1284 = vadd.f32 0.0, %v1283
        %v1285 = vpop.f32.mrb[0].mxu0
        %v1286 = vpop.f32.mrb[0].mxu0
        %v1287 = vadd.f32 0.0, %v1286
        %v1288 = vpop.f32.mrb[0].mxu0
        %1289 = vmatprep.mubr.bf16.mxu0 0
        %1290 = vmatmul.mubr.bf16.gmra.mrb[0].mxu0 %v1199
        %v1291 = vpop.f32.mrb[0].mxu0
        %v1292 = vadd.f32 0.0, %v1291
        %v1293 = vpop.f32.mrb[0].mxu0
        %v1294 = vpop.f32.mrb[0].mxu0
        %v1295 = vadd.f32 0.0, %v1294
        %v1296 = vpop.f32.mrb[0].mxu0
        %1297 = vdwg.mxu0
        %v1298 = vadd.f32 %v1158, %v1236
        %v1299 = vadd.f32 %v1159, %v1239
        %v1300 = vadd.f32 %v1160, %v1244
        %v1301 = vadd.f32 %v1161, %v1247
        %v1302 = vadd.f32 %v1162, %v1252
        %v1303 = vadd.f32 %v1163, %v1255
        %v1304 = vadd.f32 %v1164, %v1260
        %v1305 = vadd.f32 %v1165, %v1263
        %v1306 = vadd.f32 %v1166, %v1268
        %v1307 = vadd.f32 %v1167, %v1271
        %v1308 = vadd.f32 %v1168, %v1276
        %v1309 = vadd.f32 %v1169, %v1279
        %v1310 = vadd.f32 %v1170, %v1284
        %v1311 = vadd.f32 %v1171, %v1287
        %v1312 = vadd.f32 %v1172, %v1292
        %v1313 = vadd.f32 %v1173, %v1295
        %s1314 = scalar_lea.vmem [#allocation7], 40
        %v1315 = vld [vmem:[%s1314] sm:$0xf]
        %v1316 = vld [vmem:[%s1314 + $0x4] sm:$0xf]
        %v1318 = vunpack.c.l.b16 %v395
        %v1319 = vpack.c.b16 %v1318, %v1318
        %vm1320 = vsmask.f32 7424
        %v1321 = vrot.slane %v458, 1
        %v1322 = vor.u32 %v455, %v1321
        %v1323 = vrot.slane %v467, 1
        %v1324 = vsel %vm1320, %v1322, %v1323
        %v1325 = vor.u32 %v464, %v1323
        %v1326 = vrot.slane %v476, 1
        %v1327 = vsel %vm1320, %v1325, %v1326
        %v1328 = vor.u32 %v473, %v1326
        %v1329 = vrot.slane %v485, 1
        %v1330 = vsel %vm1320, %v1328, %v1329
        %v1331 = vor.u32 %v482, %v1329
        %v1332 = vrot.slane %v494, 1
        %v1333 = vsel %vm1320, %v1331, %v1332
        %v1334 = vor.u32 %v491, %v1332
        %v1335 = vrot.slane %v503, 1
        %v1336 = vsel %vm1320, %v1334, %v1335
        %v1337 = vor.u32 %v500, %v1335
        %v1338 = vrot.slane %v512, 1
        %v1339 = vsel %vm1320, %v1337, %v1338
        %v1340 = vor.u32 %v509, %v1338
        %v1341 = vshll.u32 %v1177, 16
        %v1343 = vrot.slane %v1341, 1
        %v1344 = vsel %vm1320, %v1340, %v1343
        %v1345 = vshrl.u32 %v1177, 16
        %v1347 = vor.u32 %v1345, %v1343
        %v1349 = vshll.u32 %v1319, 16
        %v1351 = vrot.slane %v1349, 1
        %v1352 = vsel %vm1320, %v1347, %v1351
        %v1355 = vunpack.c.l.b16 %v1315
        %v1356 = vunpack.c.l.b16 %v1316
        %v1357 = vpack.c.b16 %v1356, %v1355
        %v1360 = vsel %vm532, %v1324, 0
        %v1363 = vsel %vm532, %v1327, 0
        %v1366 = vsel %vm532, %v1330, 0
        %v1369 = vsel %vm532, %v1333, 0
        %v1372 = vsel %vm532, %v1336, 0
        %v1375 = vsel %vm532, %v1339, 0
        %v1378 = vsel %vm532, %v1344, 0
        %v1381 = vsel %vm532, %v1352, 0
        %1383 = vmatprep.subr.bf16.mxu0 0
        %1384 = vmatpush1.bf16.msra.mxu0 %v1357
        %1385 = vmatprep.subr.bf16.mxu0 0
        %1386 = vmatpush1.bf16.msra.mxu0 0
        %1387 = vmatprep.subr.bf16.mxu0 0
        %1388 = vmatpush1.bf16.msra.mxu0 0
        %1389 = vmatprep.subr.bf16.mxu0 0
        %1390 = vmatpush1.bf16.msra.mxu0 0
        %1391 = vmatprep.subr.bf16.mxu0 0
        %1392 = vmatpush1.bf16.msra.mxu0 0
        %1393 = vmatprep.subr.bf16.mxu0 0
        %1394 = vmatpush1.bf16.msra.mxu0 0
        %1395 = vmatprep.subr.bf16.mxu0 0
        %1396 = vmatpush1.bf16.msra.mxu0 0
        %1397 = vmatprep.subr.bf16.mxu0 0
        %1398 = vmatpush1.bf16.msra.mxu0 0
        %1399 = vmatprep.subr.bf16.mxu0 0
        %1400 = vmatpush1.bf16.msra.mxu0 0
        %1401 = vmatprep.subr.bf16.mxu0 0
        %1402 = vmatpush1.bf16.msra.mxu0 0
        %1403 = vmatprep.subr.bf16.mxu0 0
        %1404 = vmatpush1.bf16.msra.mxu0 0
        %1405 = vmatprep.subr.bf16.mxu0 0
        %1406 = vmatpush1.bf16.msra.mxu0 0
        %1407 = vmatprep.subr.bf16.mxu0 0
        %1408 = vmatpush1.bf16.msra.mxu0 0
        %1409 = vmatprep.subr.bf16.mxu0 0
        %1410 = vmatpush1.bf16.msra.mxu0 0
        %1411 = vmatprep.subr.bf16.mxu0 0
        %1412 = vmatpush1.bf16.msra.mxu0 0
        %1413 = vmatprep.subr.bf16.mxu0 0
        %1414 = vmatpush1.bf16.msra.mxu0 0
        %1415 = vmatprep.mubr.bf16.mxu0 0
        %1416 = vmatmul.mubr.bf16.gmra.mrb[0].mxu0 %v1360
        %v1417 = vpop.f32.mrb[0].mxu0
        %v1418 = vadd.f32 0.0, %v1417
        %v1419 = vpop.f32.mrb[0].mxu0
        %v1420 = vpop.f32.mrb[0].mxu0
        %v1421 = vadd.f32 0.0, %v1420
        %v1422 = vpop.f32.mrb[0].mxu0
        %1423 = vmatprep.mubr.bf16.mxu0 0
        %1424 = vmatmul.mubr.bf16.gmra.mrb[0].mxu0 %v1363
        %v1425 = vpop.f32.mrb[0].mxu0
        %v1426 = vadd.f32 0.0, %v1425
        %v1427 = vpop.f32.mrb[0].mxu0
        %v1428 = vpop.f32.mrb[0].mxu0
        %v1429 = vadd.f32 0.0, %v1428
        %v1430 = vpop.f32.mrb[0].mxu0
        %1431 = vmatprep.mubr.bf16.mxu0 0
        %1432 = vmatmul.mubr.bf16.gmra.mrb[0].mxu0 %v1366
        %v1433 = vpop.f32.mrb[0].mxu0
        %v1434 = vadd.f32 0.0, %v1433
        %v1435 = vpop.f32.mrb[0].mxu0
        %v1436 = vpop.f32.mrb[0].mxu0
        %v1437 = vadd.f32 0.0, %v1436
        %v1438 = vpop.f32.mrb[0].mxu0
        %1439 = vmatprep.mubr.bf16.mxu0 0
        %1440 = vmatmul.mubr.bf16.gmra.mrb[0].mxu0 %v1369
        %v1441 = vpop.f32.mrb[0].mxu0
        %v1442 = vadd.f32 0.0, %v1441
        %v1443 = vpop.f32.mrb[0].mxu0
        %v1444 = vpop.f32.mrb[0].mxu0
        %v1445 = vadd.f32 0.0, %v1444
        %v1446 = vpop.f32.mrb[0].mxu0
        %1447 = vmatprep.mubr.bf16.mxu0 0
        %1448 = vmatmul.mubr.bf16.gmra.mrb[0].mxu0 %v1372
        %v1449 = vpop.f32.mrb[0].mxu0
        %v1450 = vadd.f32 0.0, %v1449
        %v1451 = vpop.f32.mrb[0].mxu0
        %v1452 = vpop.f32.mrb[0].mxu0
        %v1453 = vadd.f32 0.0, %v1452
        %v1454 = vpop.f32.mrb[0].mxu0
        %1455 = vmatprep.mubr.bf16.mxu0 0
        %1456 = vmatmul.mubr.bf16.gmra.mrb[0].mxu0 %v1375
        %v1457 = vpop.f32.mrb[0].mxu0
        %v1458 = vadd.f32 0.0, %v1457
        %v1459 = vpop.f32.mrb[0].mxu0
        %v1460 = vpop.f32.mrb[0].mxu0
        %v1461 = vadd.f32 0.0, %v1460
        %v1462 = vpop.f32.mrb[0].mxu0
        %1463 = vmatprep.mubr.bf16.mxu0 0
        %1464 = vmatmul.mubr.bf16.gmra.mrb[0].mxu0 %v1378
        %v1465 = vpop.f32.mrb[0].mxu0
        %v1466 = vadd.f32 0.0, %v1465
        %v1467 = vpop.f32.mrb[0].mxu0
        %v1468 = vpop.f32.mrb[0].mxu0
        %v1469 = vadd.f32 0.0, %v1468
        %v1470 = vpop.f32.mrb[0].mxu0
        %1471 = vmatprep.mubr.bf16.mxu0 0
        %1472 = vmatmul.mubr.bf16.gmra.mrb[0].mxu0 %v1381
        %v1473 = vpop.f32.mrb[0].mxu0
        %v1474 = vadd.f32 0.0, %v1473
        %v1475 = vpop.f32.mrb[0].mxu0
        %v1476 = vpop.f32.mrb[0].mxu0
        %v1477 = vadd.f32 0.0, %v1476
        %v1478 = vpop.f32.mrb[0].mxu0
        %1479 = vdwg.mxu0
        %v1480 = vadd.f32 %v1298, %v1418
        %v1481 = vadd.f32 %v1299, %v1421
        %v1482 = vadd.f32 %v1300, %v1426
        %v1483 = vadd.f32 %v1301, %v1429
        %v1484 = vadd.f32 %v1302, %v1434
        %v1485 = vadd.f32 %v1303, %v1437
        %v1486 = vadd.f32 %v1304, %v1442
        %v1487 = vadd.f32 %v1305, %v1445
        %v1488 = vadd.f32 %v1306, %v1450
        %v1489 = vadd.f32 %v1307, %v1453
        %v1490 = vadd.f32 %v1308, %v1458
        %v1491 = vadd.f32 %v1309, %v1461
        %v1492 = vadd.f32 %v1310, %v1466
        %v1493 = vadd.f32 %v1311, %v1469
        %v1494 = vadd.f32 %v1312, %v1474
        %v1495 = vadd.f32 %v1313, %v1477
        %s1496 = scalar_lea.vmem [#allocation7], 48
        %v1497 = vld [vmem:[%s1496] sm:$0xf]
        %v1498 = vld [vmem:[%s1496 + $0x4] sm:$0xf]
        %v1499 = vpack.c.b16 %v1318, %v957
        %v1502 = vunpack.c.l.b16 %v1497
        %v1503 = vunpack.c.l.b16 %v1498
        %v1504 = vpack.c.b16 %v1503, %v1502
        %v1507 = vsel %vm532, %v1499, 0
        %1509 = vmatprep.subr.bf16.mxu0 0
        %1510 = vmatpush1.bf16.msra.mxu0 %v1504
        %1511 = vmatprep.subr.bf16.mxu0 0
        %1512 = vmatpush1.bf16.msra.mxu0 0
        %1513 = vmatprep.subr.bf16.mxu0 0
        %1514 = vmatpush1.bf16.msra.mxu0 0
        %1515 = vmatprep.subr.bf16.mxu0 0
        %1516 = vmatpush1.bf16.msra.mxu0 0
        %1517 = vmatprep.subr.bf16.mxu0 0
        %1518 = vmatpush1.bf16.msra.mxu0 0
        %1519 = vmatprep.subr.bf16.mxu0 0
        %1520 = vmatpush1.bf16.msra.mxu0 0
        %1521 = vmatprep.subr.bf16.mxu0 0
        %1522 = vmatpush1.bf16.msra.mxu0 0
        %1523 = vmatprep.subr.bf16.mxu0 0
        %1524 = vmatpush1.bf16.msra.mxu0 0
        %1525 = vmatprep.subr.bf16.mxu0 0
        %1526 = vmatpush1.bf16.msra.mxu0 0
        %1527 = vmatprep.subr.bf16.mxu0 0
        %1528 = vmatpush1.bf16.msra.mxu0 0
        %1529 = vmatprep.subr.bf16.mxu0 0
        %1530 = vmatpush1.bf16.msra.mxu0 0
        %1531 = vmatprep.subr.bf16.mxu0 0
        %1532 = vmatpush1.bf16.msra.mxu0 0
        %1533 = vmatprep.subr.bf16.mxu0 0
        %1534 = vmatpush1.bf16.msra.mxu0 0
        %1535 = vmatprep.subr.bf16.mxu0 0
        %1536 = vmatpush1.bf16.msra.mxu0 0
        %1537 = vmatprep.subr.bf16.mxu0 0
        %1538 = vmatpush1.bf16.msra.mxu0 0
        %1539 = vmatprep.subr.bf16.mxu0 0
        %1540 = vmatpush1.bf16.msra.mxu0 0
        %1541 = vmatprep.mubr.bf16.mxu0 0
        %1542 = vmatmul.mubr.bf16.gmra.mrb[0].mxu0 %v820
        %v1543 = vpop.f32.mrb[0].mxu0
        %v1544 = vadd.f32 0.0, %v1543
        %v1545 = vpop.f32.mrb[0].mxu0
        %v1546 = vpop.f32.mrb[0].mxu0
        %v1547 = vadd.f32 0.0, %v1546
        %v1548 = vpop.f32.mrb[0].mxu0
        %1549 = vmatprep.mubr.bf16.mxu0 0
        %1550 = vmatmul.mubr.bf16.gmra.mrb[0].mxu0 %v823
        %v1551 = vpop.f32.mrb[0].mxu0
        %v1552 = vadd.f32 0.0, %v1551
        %v1553 = vpop.f32.mrb[0].mxu0
        %v1554 = vpop.f32.mrb[0].mxu0
        %v1555 = vadd.f32 0.0, %v1554
        %v1556 = vpop.f32.mrb[0].mxu0
        %1557 = vmatprep.mubr.bf16.mxu0 0
        %1558 = vmatmul.mubr.bf16.gmra.mrb[0].mxu0 %v826
        %v1559 = vpop.f32.mrb[0].mxu0
        %v1560 = vadd.f32 0.0, %v1559
        %v1561 = vpop.f32.mrb[0].mxu0
        %v1562 = vpop.f32.mrb[0].mxu0
        %v1563 = vadd.f32 0.0, %v1562
        %v1564 = vpop.f32.mrb[0].mxu0
        %1565 = vmatprep.mubr.bf16.mxu0 0
        %1566 = vmatmul.mubr.bf16.gmra.mrb[0].mxu0 %v829
        %v1567 = vpop.f32.mrb[0].mxu0
        %v1568 = vadd.f32 0.0, %v1567
        %v1569 = vpop.f32.mrb[0].mxu0
        %v1570 = vpop.f32.mrb[0].mxu0
        %v1571 = vadd.f32 0.0, %v1570
        %v1572 = vpop.f32.mrb[0].mxu0
        %1573 = vmatprep.mubr.bf16.mxu0 0
        %1574 = vmatmul.mubr.bf16.gmra.mrb[0].mxu0 %v832
        %v1575 = vpop.f32.mrb[0].mxu0
        %v1576 = vadd.f32 0.0, %v1575
        %v1577 = vpop.f32.mrb[0].mxu0
        %v1578 = vpop.f32.mrb[0].mxu0
        %v1579 = vadd.f32 0.0, %v1578
        %v1580 = vpop.f32.mrb[0].mxu0
        %1581 = vmatprep.mubr.bf16.mxu0 0
        %1582 = vmatmul.mubr.bf16.gmra.mrb[0].mxu0 %v835
        %v1583 = vpop.f32.mrb[0].mxu0
        %v1584 = vadd.f32 0.0, %v1583
        %v1585 = vpop.f32.mrb[0].mxu0
        %v1586 = vpop.f32.mrb[0].mxu0
        %v1587 = vadd.f32 0.0, %v1586
        %v1588 = vpop.f32.mrb[0].mxu0
        %1589 = vmatprep.mubr.bf16.mxu0 0
        %1590 = vmatmul.mubr.bf16.gmra.mrb[0].mxu0 %v838
        %v1591 = vpop.f32.mrb[0].mxu0
        %v1592 = vadd.f32 0.0, %v1591
        %v1593 = vpop.f32.mrb[0].mxu0
        %v1594 = vpop.f32.mrb[0].mxu0
        %v1595 = vadd.f32 0.0, %v1594
        %v1596 = vpop.f32.mrb[0].mxu0
        %1597 = vmatprep.mubr.bf16.mxu0 0
        %1598 = vmatmul.mubr.bf16.gmra.mrb[0].mxu0 %v1507
        %v1599 = vpop.f32.mrb[0].mxu0
        %v1600 = vadd.f32 0.0, %v1599
        %v1601 = vpop.f32.mrb[0].mxu0
        %v1602 = vpop.f32.mrb[0].mxu0
        %v1603 = vadd.f32 0.0, %v1602
        %v1604 = vpop.f32.mrb[0].mxu0
        %1605 = vdwg.mxu0
        %v1606 = vadd.f32 %v1480, %v1544
        %v1607 = vadd.f32 %v1481, %v1547
        %v1608 = vadd.f32 %v1482, %v1552
        %v1609 = vadd.f32 %v1483, %v1555
        %v1610 = vadd.f32 %v1484, %v1560
        %v1611 = vadd.f32 %v1485, %v1563
        %v1612 = vadd.f32 %v1486, %v1568
        %v1613 = vadd.f32 %v1487, %v1571
        %v1614 = vadd.f32 %v1488, %v1576
        %v1615 = vadd.f32 %v1489, %v1579
        %v1616 = vadd.f32 %v1490, %v1584
        %v1617 = vadd.f32 %v1491, %v1587
        %v1618 = vadd.f32 %v1492, %v1592
        %v1619 = vadd.f32 %v1493, %v1595
        %v1620 = vadd.f32 %v1494, %v1600
        %v1621 = vadd.f32 %v1495, %v1603
        %s1622 = scalar_lea.vmem [#allocation7], 56
        %v1623 = vld [vmem:[%s1622] sm:$0xf]
        %v1624 = vld [vmem:[%s1622 + $0x4] sm:$0xf]
        %v1626 = vunpack.c.l.b16 %v396
        %v1627 = vpack.c.b16 %v1626, %v1626
        %v1628 = vrot.slane %v969, 1
        %v1629 = vor.u32 %v966, %v1628
        %v1630 = vrot.slane %v977, 1
        %v1631 = vsel %vm1320, %v1629, %v1630
        %v1632 = vor.u32 %v974, %v1630
        %v1633 = vrot.slane %v985, 1
        %v1634 = vsel %vm1320, %v1632, %v1633
        %v1635 = vor.u32 %v982, %v1633
        %v1636 = vrot.slane %v993, 1
        %v1637 = vsel %vm1320, %v1635, %v1636
        %v1638 = vor.u32 %v990, %v1636
        %v1639 = vrot.slane %v1001, 1
        %v1640 = vsel %vm1320, %v1638, %v1639
        %v1641 = vor.u32 %v998, %v1639
        %v1642 = vrot.slane %v1009, 1
        %v1643 = vsel %vm1320, %v1641, %v1642
        %v1644 = vor.u32 %v1006, %v1642
        %v1645 = vrot.slane %v1017, 1
        %v1646 = vsel %vm1320, %v1644, %v1645
        %v1647 = vor.u32 %v1014, %v1645
        %v1648 = vshll.u32 %v1499, 16
        %v1650 = vrot.slane %v1648, 1
        %v1651 = vsel %vm1320, %v1647, %v1650
        %v1652 = vshrl.u32 %v1499, 16
        %v1654 = vor.u32 %v1652, %v1650
        %v1656 = vshll.u32 %v1627, 16
        %v1658 = vrot.slane %v1656, 1
        %v1659 = vsel %vm1320, %v1654, %v1658
        %v1662 = vunpack.c.l.b16 %v1623
        %v1663 = vunpack.c.l.b16 %v1624
        %v1664 = vpack.c.b16 %v1663, %v1662
        %v1667 = vsel %vm532, %v1631, 0
        %v1670 = vsel %vm532, %v1634, 0
        %v1673 = vsel %vm532, %v1637, 0
        %v1676 = vsel %vm532, %v1640, 0
        %v1679 = vsel %vm532, %v1643, 0
        %v1682 = vsel %vm532, %v1646, 0
        %v1685 = vsel %vm532, %v1651, 0
        %v1688 = vsel %vm532, %v1659, 0
        %1690 = vmatprep.subr.bf16.mxu0 0
        %1691 = vmatpush1.bf16.msra.mxu0 %v1664
        %1692 = vmatprep.subr.bf16.mxu0 0
        %1693 = vmatpush1.bf16.msra.mxu0 0
        %1694 = vmatprep.subr.bf16.mxu0 0
        %1695 = vmatpush1.bf16.msra.mxu0 0
        %1696 = vmatprep.subr.bf16.mxu0 0
        %1697 = vmatpush1.bf16.msra.mxu0 0
        %1698 = vmatprep.subr.bf16.mxu0 0
        %1699 = vmatpush1.bf16.msra.mxu0 0
        %1700 = vmatprep.subr.bf16.mxu0 0
        %1701 = vmatpush1.bf16.msra.mxu0 0
        %1702 = vmatprep.subr.bf16.mxu0 0
        %1703 = vmatpush1.bf16.msra.mxu0 0
        %1704 = vmatprep.subr.bf16.mxu0 0
        %1705 = vmatpush1.bf16.msra.mxu0 0
        %1706 = vmatprep.subr.bf16.mxu0 0
        %1707 = vmatpush1.bf16.msra.mxu0 0
        %1708 = vmatprep.subr.bf16.mxu0 0
        %1709 = vmatpush1.bf16.msra.mxu0 0
        %1710 = vmatprep.subr.bf16.mxu0 0
        %1711 = vmatpush1.bf16.msra.mxu0 0
        %1712 = vmatprep.subr.bf16.mxu0 0
        %1713 = vmatpush1.bf16.msra.mxu0 0
        %1714 = vmatprep.subr.bf16.mxu0 0
        %1715 = vmatpush1.bf16.msra.mxu0 0
        %1716 = vmatprep.subr.bf16.mxu0 0
        %1717 = vmatpush1.bf16.msra.mxu0 0
        %1718 = vmatprep.subr.bf16.mxu0 0
        %1719 = vmatpush1.bf16.msra.mxu0 0
        %1720 = vmatprep.subr.bf16.mxu0 0
        %1721 = vmatpush1.bf16.msra.mxu0 0
        %1722 = vmatprep.mubr.bf16.mxu0 0
        %1723 = vmatmul.mubr.bf16.gmra.mrb[0].mxu0 %v1667
        %v1724 = vpop.f32.mrb[0].mxu0
        %v1725 = vadd.f32 0.0, %v1724
        %v1726 = vpop.f32.mrb[0].mxu0
        %v1727 = vpop.f32.mrb[0].mxu0
        %v1728 = vadd.f32 0.0, %v1727
        %v1729 = vpop.f32.mrb[0].mxu0
        %1730 = vmatprep.mubr.bf16.mxu0 0
        %1731 = vmatmul.mubr.bf16.gmra.mrb[0].mxu0 %v1670
        %v1732 = vpop.f32.mrb[0].mxu0
        %v1733 = vadd.f32 0.0, %v1732
        %v1734 = vpop.f32.mrb[0].mxu0
        %v1735 = vpop.f32.mrb[0].mxu0
        %v1736 = vadd.f32 0.0, %v1735
        %v1737 = vpop.f32.mrb[0].mxu0
        %1738 = vmatprep.mubr.bf16.mxu0 0
        %1739 = vmatmul.mubr.bf16.gmra.mrb[0].mxu0 %v1673
        %v1740 = vpop.f32.mrb[0].mxu0
        %v1741 = vadd.f32 0.0, %v1740
        %v1742 = vpop.f32.mrb[0].mxu0
        %v1743 = vpop.f32.mrb[0].mxu0
        %v1744 = vadd.f32 0.0, %v1743
        %v1745 = vpop.f32.mrb[0].mxu0
        %1746 = vmatprep.mubr.bf16.mxu0 0
        %1747 = vmatmul.mubr.bf16.gmra.mrb[0].mxu0 %v1676
        %v1748 = vpop.f32.mrb[0].mxu0
        %v1749 = vadd.f32 0.0, %v1748
        %v1750 = vpop.f32.mrb[0].mxu0
        %v1751 = vpop.f32.mrb[0].mxu0
        %v1752 = vadd.f32 0.0, %v1751
        %v1753 = vpop.f32.mrb[0].mxu0
        %1754 = vmatprep.mubr.bf16.mxu0 0
        %1755 = vmatmul.mubr.bf16.gmra.mrb[0].mxu0 %v1679
        %v1756 = vpop.f32.mrb[0].mxu0
        %v1757 = vadd.f32 0.0, %v1756
        %v1758 = vpop.f32.mrb[0].mxu0
        %v1759 = vpop.f32.mrb[0].mxu0
        %v1760 = vadd.f32 0.0, %v1759
        %v1761 = vpop.f32.mrb[0].mxu0
        %1762 = vmatprep.mubr.bf16.mxu0 0
        %1763 = vmatmul.mubr.bf16.gmra.mrb[0].mxu0 %v1682
        %v1764 = vpop.f32.mrb[0].mxu0
        %v1765 = vadd.f32 0.0, %v1764
        %v1766 = vpop.f32.mrb[0].mxu0
        %v1767 = vpop.f32.mrb[0].mxu0
        %v1768 = vadd.f32 0.0, %v1767
        %v1769 = vpop.f32.mrb[0].mxu0
        %1770 = vmatprep.mubr.bf16.mxu0 0
        %1771 = vmatmul.mubr.bf16.gmra.mrb[0].mxu0 %v1685
        %v1772 = vpop.f32.mrb[0].mxu0
        %v1773 = vadd.f32 0.0, %v1772
        %v1774 = vpop.f32.mrb[0].mxu0
        %v1775 = vpop.f32.mrb[0].mxu0
        %v1776 = vadd.f32 0.0, %v1775
        %v1777 = vpop.f32.mrb[0].mxu0
        %1778 = vmatprep.mubr.bf16.mxu0 0
        %1779 = vmatmul.mubr.bf16.gmra.mrb[0].mxu0 %v1688
        %v1780 = vpop.f32.mrb[0].mxu0
        %v1781 = vadd.f32 0.0, %v1780
        %v1782 = vpop.f32.mrb[0].mxu0
        %v1783 = vpop.f32.mrb[0].mxu0
        %v1784 = vadd.f32 0.0, %v1783
        %v1785 = vpop.f32.mrb[0].mxu0
        %1786 = vdwg.mxu0
        %v1787 = vadd.f32 %v1606, %v1725
        %v1788 = vadd.f32 %v1607, %v1728
        %v1789 = vadd.f32 %v1608, %v1733
        %v1790 = vadd.f32 %v1609, %v1736
        %v1791 = vadd.f32 %v1610, %v1741
        %v1792 = vadd.f32 %v1611, %v1744
        %v1793 = vadd.f32 %v1612, %v1749
        %v1794 = vadd.f32 %v1613, %v1752
        %v1795 = vadd.f32 %v1614, %v1757
        %v1796 = vadd.f32 %v1615, %v1760
        %v1797 = vadd.f32 %v1616, %v1765
        %v1798 = vadd.f32 %v1617, %v1768
        %v1799 = vadd.f32 %v1618, %v1773
        %v1800 = vadd.f32 %v1619, %v1776
        %v1801 = vadd.f32 %v1620, %v1781
        %v1802 = vadd.f32 %v1621, %v1784
        %s1803 = scalar_lea.vmem [#allocation7], 64
        %v1804 = vld [vmem:[%s1803] sm:$0xf]
        %v1805 = vld [vmem:[%s1803 + $0x4] sm:$0xf]
        %vm1806 = vcmask 1046528
        %v1807 = vrot.slane %v803, 1
        %v1808 = vrot.slane %v804, 1
        %v1809 = vsel %vm1806, %v1807, %v1808
        %v1810 = vrot.slane %v805, 1
        %v1811 = vsel %vm1806, %v1808, %v1810
        %v1812 = vrot.slane %v806, 1
        %v1813 = vsel %vm1806, %v1810, %v1812
        %v1814 = vrot.slane %v807, 1
        %v1815 = vsel %vm1806, %v1812, %v1814
        %v1816 = vrot.slane %v808, 1
        %v1817 = vsel %vm1806, %v1814, %v1816
        %v1818 = vrot.slane %v809, 1
        %v1819 = vsel %vm1806, %v1816, %v1818
        %v1820 = vrot.slane %v1499, 1
        %v1821 = vsel %vm1806, %v1818, %v1820
        %v1822 = vrot.slane %v1627, 1
        %v1823 = vsel %vm1806, %v1820, %v1822
        %v1826 = vunpack.c.l.b16 %v1804
        %v1827 = vunpack.c.l.b16 %v1805
        %v1828 = vpack.c.b16 %v1827, %v1826
        %v1831 = vsel %vm532, %v1809, 0
        %v1834 = vsel %vm532, %v1811, 0
        %v1837 = vsel %vm532, %v1813, 0
        %v1840 = vsel %vm532, %v1815, 0
        %v1843 = vsel %vm532, %v1817, 0
        %v1846 = vsel %vm532, %v1819, 0
        %v1849 = vsel %vm532, %v1821, 0
        %v1852 = vsel %vm532, %v1823, 0
        %1854 = vmatprep.subr.bf16.mxu0 0
        %1855 = vmatpush1.bf16.msra.mxu0 %v1828
        %1856 = vmatprep.subr.bf16.mxu0 0
        %1857 = vmatpush1.bf16.msra.mxu0 0
        %1858 = vmatprep.subr.bf16.mxu0 0
        %1859 = vmatpush1.bf16.msra.mxu0 0
        %1860 = vmatprep.subr.bf16.mxu0 0
        %1861 = vmatpush1.bf16.msra.mxu0 0
        %1862 = vmatprep.subr.bf16.mxu0 0
        %1863 = vmatpush1.bf16.msra.mxu0 0
        %1864 = vmatprep.subr.bf16.mxu0 0
        %1865 = vmatpush1.bf16.msra.mxu0 0
        %1866 = vmatprep.subr.bf16.mxu0 0
        %1867 = vmatpush1.bf16.msra.mxu0 0
        %1868 = vmatprep.subr.bf16.mxu0 0
        %1869 = vmatpush1.bf16.msra.mxu0 0
        %1870 = vmatprep.subr.bf16.mxu0 0
        %1871 = vmatpush1.bf16.msra.mxu0 0
        %1872 = vmatprep.subr.bf16.mxu0 0
        %1873 = vmatpush1.bf16.msra.mxu0 0
        %1874 = vmatprep.subr.bf16.mxu0 0
        %1875 = vmatpush1.bf16.msra.mxu0 0
        %1876 = vmatprep.subr.bf16.mxu0 0
        %1877 = vmatpush1.bf16.msra.mxu0 0
        %1878 = vmatprep.subr.bf16.mxu0 0
        %1879 = vmatpush1.bf16.msra.mxu0 0
        %1880 = vmatprep.subr.bf16.mxu0 0
        %1881 = vmatpush1.bf16.msra.mxu0 0
        %1882 = vmatprep.subr.bf16.mxu0 0
        %1883 = vmatpush1.bf16.msra.mxu0 0
        %1884 = vmatprep.subr.bf16.mxu0 0
        %1885 = vmatpush1.bf16.msra.mxu0 0
        %1886 = vmatprep.mubr.bf16.mxu0 0
        %1887 = vmatmul.mubr.bf16.gmra.mrb[0].mxu0 %v1831
        %v1888 = vpop.f32.mrb[0].mxu0
        %v1889 = vadd.f32 0.0, %v1888
        %v1890 = vpop.f32.mrb[0].mxu0
        %v1891 = vpop.f32.mrb[0].mxu0
        %v1892 = vadd.f32 0.0, %v1891
        %v1893 = vpop.f32.mrb[0].mxu0
        %1894 = vmatprep.mubr.bf16.mxu0 0
        %1895 = vmatmul.mubr.bf16.gmra.mrb[0].mxu0 %v1834
        %v1896 = vpop.f32.mrb[0].mxu0
        %v1897 = vadd.f32 0.0, %v1896
        %v1898 = vpop.f32.mrb[0].mxu0
        %v1899 = vpop.f32.mrb[0].mxu0
        %v1900 = vadd.f32 0.0, %v1899
        %v1901 = vpop.f32.mrb[0].mxu0
        %1902 = vmatprep.mubr.bf16.mxu0 0
        %1903 = vmatmul.mubr.bf16.gmra.mrb[0].mxu0 %v1837
        %v1904 = vpop.f32.mrb[0].mxu0
        %v1905 = vadd.f32 0.0, %v1904
        %v1906 = vpop.f32.mrb[0].mxu0
        %v1907 = vpop.f32.mrb[0].mxu0
        %v1908 = vadd.f32 0.0, %v1907
        %v1909 = vpop.f32.mrb[0].mxu0
        %1910 = vmatprep.mubr.bf16.mxu0 0
        %1911 = vmatmul.mubr.bf16.gmra.mrb[0].mxu0 %v1840
        %v1912 = vpop.f32.mrb[0].mxu0
        %v1913 = vadd.f32 0.0, %v1912
        %v1914 = vpop.f32.mrb[0].mxu0
        %v1915 = vpop.f32.mrb[0].mxu0
        %v1916 = vadd.f32 0.0, %v1915
        %v1917 = vpop.f32.mrb[0].mxu0
        %1918 = vmatprep.mubr.bf16.mxu0 0
        %1919 = vmatmul.mubr.bf16.gmra.mrb[0].mxu0 %v1843
        %v1920 = vpop.f32.mrb[0].mxu0
        %v1921 = vadd.f32 0.0, %v1920
        %v1922 = vpop.f32.mrb[0].mxu0
        %v1923 = vpop.f32.mrb[0].mxu0
        %v1924 = vadd.f32 0.0, %v1923
        %v1925 = vpop.f32.mrb[0].mxu0
        %1926 = vmatprep.mubr.bf16.mxu0 0
        %1927 = vmatmul.mubr.bf16.gmra.mrb[0].mxu0 %v1846
        %v1928 = vpop.f32.mrb[0].mxu0
        %v1929 = vadd.f32 0.0, %v1928
        %v1930 = vpop.f32.mrb[0].mxu0
        %v1931 = vpop.f32.mrb[0].mxu0
        %v1932 = vadd.f32 0.0, %v1931
        %v1933 = vpop.f32.mrb[0].mxu0
        %1934 = vmatprep.mubr.bf16.mxu0 0
        %1935 = vmatmul.mubr.bf16.gmra.mrb[0].mxu0 %v1849
        %v1936 = vpop.f32.mrb[0].mxu0
        %v1937 = vadd.f32 0.0, %v1936
        %v1938 = vpop.f32.mrb[0].mxu0
        %v1939 = vpop.f32.mrb[0].mxu0
        %v1940 = vadd.f32 0.0, %v1939
        %v1941 = vpop.f32.mrb[0].mxu0
        %1942 = vmatprep.mubr.bf16.mxu0 0
        %1943 = vmatmul.mubr.bf16.gmra.mrb[0].mxu0 %v1852
        %v1944 = vpop.f32.mrb[0].mxu0
        %v1945 = vadd.f32 0.0, %v1944
        %v1946 = vpop.f32.mrb[0].mxu0
        %v1947 = vpop.f32.mrb[0].mxu0
        %v1948 = vadd.f32 0.0, %v1947
        %v1949 = vpop.f32.mrb[0].mxu0
        %1950 = vdwg.mxu0
        %v1951 = vadd.f32 %v1787, %v1889
        %v1952 = vadd.f32 %v1788, %v1892
        %v1953 = vadd.f32 %v1789, %v1897
        %v1954 = vadd.f32 %v1790, %v1900
        %v1955 = vadd.f32 %v1791, %v1905
        %v1956 = vadd.f32 %v1792, %v1908
        %v1957 = vadd.f32 %v1793, %v1913
        %v1958 = vadd.f32 %v1794, %v1916
        %v1959 = vadd.f32 %v1795, %v1921
        %v1960 = vadd.f32 %v1796, %v1924
        %v1961 = vadd.f32 %v1797, %v1929
        %v1962 = vadd.f32 %v1798, %v1932
        %v1963 = vadd.f32 %v1799, %v1937
        %v1964 = vadd.f32 %v1800, %v1940
        %v1965 = vadd.f32 %v1801, %v1945
        %v1966 = vadd.f32 %v1802, %v1948
        %v1967 = vld [vmem:[%s322] sm:$0xff]
        %v1968 = vld [vmem:[%s322 + $0x8] sm:$0xff]
        %v1969 = vld [vmem:[%s322 + $0x10] sm:$0xff]
        %v1970 = vld [vmem:[%s322 + $0x18] sm:$0xff]
        %v1971 = vld [vmem:[%s322 + $0x20] sm:$0xff]
        %v1972 = vld [vmem:[%s322 + $0x28] sm:$0xff]
        %v1973 = vld [vmem:[%s322 + $0x30] sm:$0xff]
        %v1974 = vld [vmem:[%s322 + $0x38] sm:$0xff]
        %v1975 = vld [vmem:[%s322 + $0x40] sm:$0xff]
        %v1976 = vld [vmem:[%s322 + $0x48] sm:$0xff]
        %v1977 = vld [vmem:[%s322 + $0x50] sm:$0xff]
        %v1978 = vld [vmem:[%s322 + $0x58] sm:$0xff]
        %v1979 = vld [vmem:[%s322 + $0x60] sm:$0xff]
        %v1980 = vld [vmem:[%s322 + $0x68] sm:$0xff]
        %v1981 = vld [vmem:[%s322 + $0x70] sm:$0xff]
        %v1982 = vld [vmem:[%s322 + $0x78] sm:$0xff]
        %1984 = vset.pattern.permute.xlu0 0
        %1985 = vperm.xlu0 %1984, %v1967
        %v1986 = vpop.permute.xlu0 %1985
        %1989 = vset.pattern.permute.xlu0 0
        %1990 = vperm.xlu0 %1989, %v1968
        %v1991 = vpop.permute.xlu0 %1990
        %1994 = vset.pattern.permute.xlu0 0
        %1995 = vperm.xlu0 %1994, %v1969
        %v1996 = vpop.permute.xlu0 %1995
        %1999 = vset.pattern.permute.xlu0 0
        %2000 = vperm.xlu0 %1999, %v1970
        %v2001 = vpop.permute.xlu0 %2000
        %2004 = vset.pattern.permute.xlu0 0
        %2005 = vperm.xlu0 %2004, %v1971
        %v2006 = vpop.permute.xlu0 %2005
        %2009 = vset.pattern.permute.xlu0 0
        %2010 = vperm.xlu0 %2009, %v1972
        %v2011 = vpop.permute.xlu0 %2010
        %2014 = vset.pattern.permute.xlu0 0
        %2015 = vperm.xlu0 %2014, %v1973
        %v2016 = vpop.permute.xlu0 %2015
        %2019 = vset.pattern.permute.xlu0 0
        %2020 = vperm.xlu0 %2019, %v1974
        %v2021 = vpop.permute.xlu0 %2020
        %2024 = vset.pattern.permute.xlu0 0
        %2025 = vperm.xlu0 %2024, %v1975
        %v2026 = vpop.permute.xlu0 %2025
        %2029 = vset.pattern.permute.xlu0 0
        %2030 = vperm.xlu0 %2029, %v1976
        %v2031 = vpop.permute.xlu0 %2030
        %2034 = vset.pattern.permute.xlu0 0
        %2035 = vperm.xlu0 %2034, %v1977
        %v2036 = vpop.permute.xlu0 %2035
        %2039 = vset.pattern.permute.xlu0 0
        %2040 = vperm.xlu0 %2039, %v1978
        %v2041 = vpop.permute.xlu0 %2040
        %2044 = vset.pattern.permute.xlu0 0
        %2045 = vperm.xlu0 %2044, %v1979
        %v2046 = vpop.permute.xlu0 %2045
        %2049 = vset.pattern.permute.xlu0 0
        %2050 = vperm.xlu0 %2049, %v1980
        %v2051 = vpop.permute.xlu0 %2050
        %2054 = vset.pattern.permute.xlu0 0
        %2055 = vperm.xlu0 %2054, %v1981
        %v2056 = vpop.permute.xlu0 %2055
        %2059 = vset.pattern.permute.xlu0 0
        %2060 = vperm.xlu0 %2059, %v1982
        %v2061 = vpop.permute.xlu0 %2060
        %v2063 = vmul.f32 %v1951, %v1986
        %v2064 = vmul.f32 %v1952, %v1991
        %v2065 = vmul.f32 %v1953, %v1996
        %v2066 = vmul.f32 %v1954, %v2001
        %v2067 = vmul.f32 %v1955, %v2006
        %v2068 = vmul.f32 %v1956, %v2011
        %v2069 = vmul.f32 %v1957, %v2016
        %v2070 = vmul.f32 %v1958, %v2021
        %v2071 = vmul.f32 %v1959, %v2026
        %v2072 = vmul.f32 %v1960, %v2031
        %v2073 = vmul.f32 %v1961, %v2036
        %v2074 = vmul.f32 %v1962, %v2041
        %v2075 = vmul.f32 %v1963, %v2046
        %v2076 = vmul.f32 %v1964, %v2051
        %v2077 = vmul.f32 %v1965, %v2056
        %v2078 = vmul.f32 %v1966, %v2061
        %s2079 = scalar_lea.vmem [#allocation2], %s372
        %vm2080 = vcmask 261120
        %2081 = vst.msk [vmem:[%s2079] sm:$0xff] %vm2080, %v2063
        %2082 = vst.msk [vmem:[%s2079 + $0x8] sm:$0xff] %vm2080, %v2064
        %2083 = vst.msk [vmem:[%s2079 + $0x10] sm:$0xff] %vm2080, %v2065
        %2084 = vst.msk [vmem:[%s2079 + $0x18] sm:$0xff] %vm2080, %v2066
        %2085 = vst.msk [vmem:[%s2079 + $0x20] sm:$0xff] %vm2080, %v2067
        %2086 = vst.msk [vmem:[%s2079 + $0x28] sm:$0xff] %vm2080, %v2068
        %2087 = vst.msk [vmem:[%s2079 + $0x30] sm:$0xff] %vm2080, %v2069
        %2088 = vst.msk [vmem:[%s2079 + $0x38] sm:$0xff] %vm2080, %v2070
        %2089 = vst.msk [vmem:[%s2079 + $0x40] sm:$0xff] %vm2080, %v2071
        %2090 = vst.msk [vmem:[%s2079 + $0x48] sm:$0xff] %vm2080, %v2072
        %2091 = vst.msk [vmem:[%s2079 + $0x50] sm:$0xff] %vm2080, %v2073
        %2092 = vst.msk [vmem:[%s2079 + $0x58] sm:$0xff] %vm2080, %v2074
        %2093 = vst.msk [vmem:[%s2079 + $0x60] sm:$0xff] %vm2080, %v2075
        %2094 = vst.msk [vmem:[%s2079 + $0x68] sm:$0xff] %vm2080, %v2076
        %2095 = vst.msk [vmem:[%s2079 + $0x70] sm:$0xff] %vm2080, %v2077
        %2096 = vst.msk [vmem:[%s2079 + $0x78] sm:$0xff] %vm2080, %v2078
        %v2097 = vld [vmem:[#allocation3] sm:$0x3]
        %v2098 = vsel %vm2080, %v2063, 0.0
        %v2099 = vsel %vm2080, %v2064, 0.0
        %v2100 = vadd.f32 %v2098, %v2099
        %v2101 = vsel %vm2080, %v2065, 0.0
        %v2102 = vadd.f32 %v2100, %v2101
        %v2103 = vsel %vm2080, %v2066, 0.0
        %v2104 = vadd.f32 %v2102, %v2103
        %v2105 = vsel %vm2080, %v2067, 0.0
        %v2106 = vadd.f32 %v2104, %v2105
        %v2107 = vsel %vm2080, %v2068, 0.0
        %v2108 = vadd.f32 %v2106, %v2107
        %v2109 = vsel %vm2080, %v2069, 0.0
        %v2110 = vadd.f32 %v2108, %v2109
        %v2111 = vsel %vm2080, %v2070, 0.0
        %v2112 = vadd.f32 %v2110, %v2111
        %v2113 = vsel %vm2080, %v2071, 0.0
        %v2114 = vadd.f32 %v2112, %v2113
        %v2115 = vsel %vm2080, %v2072, 0.0
        %v2116 = vadd.f32 %v2114, %v2115
        %v2117 = vsel %vm2080, %v2073, 0.0
        %v2118 = vadd.f32 %v2116, %v2117
        %v2119 = vsel %vm2080, %v2074, 0.0
        %v2120 = vadd.f32 %v2118, %v2119
        %v2121 = vsel %vm2080, %v2075, 0.0
        %v2122 = vadd.f32 %v2120, %v2121
        %v2123 = vsel %vm2080, %v2076, 0.0
        %v2124 = vadd.f32 %v2122, %v2123
        %v2125 = vsel %vm2080, %v2077, 0.0
        %v2126 = vadd.f32 %v2124, %v2125
        %v2127 = vsel %vm2080, %v2078, 0.0
        %v2128 = vadd.f32 %v2126, %v2127
        %v2129 = vrot.slane %v2128, 4
        %v2130 = vadd.f32 %v2128, %v2129
        %v2131 = vrot.slane %v2130, 2
        %v2132 = vadd.f32 %v2130, %v2131
        %v2133 = vrot.slane %v2132, 1
        %v2134 = vadd.f32 %v2132, %v2133
        %v2135 = vmul.f32 %v2063, %v2063
        %v2136 = vmul.f32 %v2064, %v2064
        %v2137 = vmul.f32 %v2065, %v2065
        %v2138 = vmul.f32 %v2066, %v2066
        %v2139 = vmul.f32 %v2067, %v2067
        %v2140 = vmul.f32 %v2068, %v2068
        %v2141 = vmul.f32 %v2069, %v2069
        %v2142 = vmul.f32 %v2070, %v2070
        %v2143 = vmul.f32 %v2071, %v2071
        %v2144 = vmul.f32 %v2072, %v2072
        %v2145 = vmul.f32 %v2073, %v2073
        %v2146 = vmul.f32 %v2074, %v2074
        %v2147 = vmul.f32 %v2075, %v2075
        %v2148 = vmul.f32 %v2076, %v2076
        %v2149 = vmul.f32 %v2077, %v2077
        %v2150 = vmul.f32 %v2078, %v2078
        %v2151 = vsel %vm2080, %v2135, 0.0
        %v2152 = vsel %vm2080, %v2136, 0.0
        %v2153 = vadd.f32 %v2151, %v2152
        %v2154 = vsel %vm2080, %v2137, 0.0
        %v2155 = vadd.f32 %v2153, %v2154
        %v2156 = vsel %vm2080, %v2138, 0.0
        %v2157 = vadd.f32 %v2155, %v2156
        %v2158 = vsel %vm2080, %v2139, 0.0
        %v2159 = vadd.f32 %v2157, %v2158
        %v2160 = vsel %vm2080, %v2140, 0.0
        %v2161 = vadd.f32 %v2159, %v2160
        %v2162 = vsel %vm2080, %v2141, 0.0
        %v2163 = vadd.f32 %v2161, %v2162
        %v2164 = vsel %vm2080, %v2142, 0.0
        %v2165 = vadd.f32 %v2163, %v2164
        %v2166 = vsel %vm2080, %v2143, 0.0
        %v2167 = vadd.f32 %v2165, %v2166
        %v2168 = vsel %vm2080, %v2144, 0.0
        %v2169 = vadd.f32 %v2167, %v2168
        %v2170 = vsel %vm2080, %v2145, 0.0
        %v2171 = vadd.f32 %v2169, %v2170
        %v2172 = vsel %vm2080, %v2146, 0.0
        %v2173 = vadd.f32 %v2171, %v2172
        %v2174 = vsel %vm2080, %v2147, 0.0
        %v2175 = vadd.f32 %v2173, %v2174
        %v2176 = vsel %vm2080, %v2148, 0.0
        %v2177 = vadd.f32 %v2175, %v2176
        %v2178 = vsel %vm2080, %v2149, 0.0
        %v2179 = vadd.f32 %v2177, %v2178
        %v2180 = vsel %vm2080, %v2150, 0.0
        %v2181 = vadd.f32 %v2179, %v2180
        %v2182 = vrot.slane %v2181, 4
        %v2183 = vadd.f32 %v2181, %v2182
        %v2184 = vrot.slane %v2183, 2
        %v2185 = vadd.f32 %v2183, %v2184
        %v2186 = vrot.slane %v2185, 1
        %v2187 = vadd.f32 %v2185, %v2186
        %vm2188 = vcmask 1040384
        %v2189 = vsel %vm2188, %v2134, %v2187
        %v2190 = vadd.f32 %v2097, %v2189
        %vm2191 = vcmask 254976
        %2192 = vst.msk [vmem:[#allocation3] sm:$0x3] %vm2191, %v2190
        %p2193 = scmp.eq.s32.totalorder %s23, 1
        // Predicated region
        $region81: #{netg_forward.4} parent=47 // pred_check
          %p2194 = pneg %p2193
        $region82: #{netg_forward.4} parent=47 // pred_check_branch
          %2196 = sbr.rel (%p2194) target = $region84
        $region83: #{netg_forward.4} parent=47 // pred_region
          %v2197 = vld [vmem:[#allocation3] sm:$0x1]
          %v2198 = vld [vmem:[#allocation13] sm:$0xff]
          %v2199 = vld [vmem:[#allocation13 + $0x8] sm:$0xff]
          %v2200 = vld [vmem:[#allocation13 + $0x10] sm:$0xff]
          %v2201 = vld [vmem:[#allocation13 + $0x18] sm:$0xff]
          %v2203 = vsel %vm2080, %v2197, 0
          %2205 = vmatprep.subr.mxu0 0.0
          %2206 = vmatpush1.msra.mxu0 %v2198
          %2207 = vmatprep.subr.mxu0 0.0
          %2208 = vmatpush1.msra.mxu0 %v2199
          %2209 = vmatprep.subr.mxu0 0.0
          %2210 = vmatpush1.msra.mxu0 %v2200
          %2211 = vmatprep.subr.mxu0 0.0
          %2212 = vmatpush1.msra.mxu0 %v2201
          %2213 = vmatprep.subr.mxu0 0.0
          %2214 = vmatpush1.msra.mxu0 0.0
          %2215 = vmatprep.subr.mxu0 0.0
          %2216 = vmatpush1.msra.mxu0 0.0
          %2217 = vmatprep.subr.mxu0 0.0
          %2218 = vmatpush1.msra.mxu0 0.0
          %2219 = vmatprep.subr.mxu0 0.0
          %2220 = vmatpush1.msra.mxu0 0.0
          %2221 = vmatprep.subr.mxu0 0.0
          %2222 = vmatpush1.msra.mxu0 0.0
          %2223 = vmatprep.subr.mxu0 0.0
          %2224 = vmatpush1.msra.mxu0 0.0
          %2225 = vmatprep.subr.mxu0 0.0
          %2226 = vmatpush1.msra.mxu0 0.0
          %2227 = vmatprep.subr.mxu0 0.0
          %2228 = vmatpush1.msra.mxu0 0.0
          %2229 = vmatprep.subr.mxu0 0.0
          %2230 = vmatpush1.msra.mxu0 0.0
          %2231 = vmatprep.subr.mxu0 0.0
          %2232 = vmatpush1.msra.mxu0 0.0
          %2233 = vmatprep.subr.mxu0 0.0
          %2234 = vmatpush1.msra.mxu0 0.0
          %2235 = vmatprep.subr.mxu0 0.0
          %2236 = vmatpush1.msra.mxu0 0.0
          %2237 = vmatprep.subr.mxu0 0.0
          %2238 = vmatpush1.msra.mxu0 0.0
          %2239 = vmatprep.subr.mxu0 0.0
          %2240 = vmatpush1.msra.mxu0 0.0
          %2241 = vmatprep.subr.mxu0 0.0
          %2242 = vmatpush1.msra.mxu0 0.0
          %2243 = vmatprep.subr.mxu0 0.0
          %2244 = vmatpush1.msra.mxu0 0.0
          %2245 = vmatprep.subr.mxu0 0.0
          %2246 = vmatpush1.msra.mxu0 0.0
          %2247 = vmatprep.subr.mxu0 0.0
          %2248 = vmatpush1.msra.mxu0 0.0
          %2249 = vmatprep.subr.mxu0 0.0
          %2250 = vmatpush1.msra.mxu0 0.0
          %2251 = vmatprep.subr.mxu0 0.0
          %2252 = vmatpush1.msra.mxu0 0.0
          %2253 = vmatprep.subr.mxu0 0.0
          %2254 = vmatpush1.msra.mxu0 0.0
          %2255 = vmatprep.subr.mxu0 0.0
          %2256 = vmatpush1.msra.mxu0 0.0
          %2257 = vmatprep.subr.mxu0 0.0
          %2258 = vmatpush1.msra.mxu0 0.0
          %2259 = vmatprep.subr.mxu0 0.0
          %2260 = vmatpush1.msra.mxu0 0.0
          %2261 = vmatprep.subr.mxu0 0.0
          %2262 = vmatpush1.msra.mxu0 0.0
          %2263 = vmatprep.subr.mxu0 0.0
          %2264 = vmatpush1.msra.mxu0 0.0
          %2265 = vmatprep.subr.mxu0 0.0
          %2266 = vmatpush1.msra.mxu0 0.0
          %2267 = vmatprep.subr.mxu0 0.0
          %2268 = vmatpush1.msra.mxu0 0.0
          %2269 = vmatprep.mubr.f32.mxu0 0.0
          %2270 = vmatmul.mubr.f32.gmra.mrb[0].mxu0 %v2203
          %v2271 = vpop.f32.mrb[0].mxu0
          %v2272 = vadd.f32 0.0, %v2271
          %v2273 = vpop.f32.mrb[0].mxu0
          %2274 = vdwg.mxu0
          %v2275 = vmul.f32 %v2272, 0.0025510204
          %v2276 = vld [vmem:[#allocation3 + $0x1] sm:$0x1]
          %v2278 = vsel %vm2080, %v2276, 0
          %2280 = vmatprep.subr.mxu0 0.0
          %2281 = vmatpush1.msra.mxu0 %v2198
          %2282 = vmatprep.subr.mxu0 0.0
          %2283 = vmatpush1.msra.mxu0 %v2199
          %2284 = vmatprep.subr.mxu0 0.0
          %2285 = vmatpush1.msra.mxu0 %v2200
          %2286 = vmatprep.subr.mxu0 0.0
          %2287 = vmatpush1.msra.mxu0 %v2201
          %2288 = vmatprep.subr.mxu0 0.0
          %2289 = vmatpush1.msra.mxu0 0.0
          %2290 = vmatprep.subr.mxu0 0.0
          %2291 = vmatpush1.msra.mxu0 0.0
          %2292 = vmatprep.subr.mxu0 0.0
          %2293 = vmatpush1.msra.mxu0 0.0
          %2294 = vmatprep.subr.mxu0 0.0
          %2295 = vmatpush1.msra.mxu0 0.0
          %2296 = vmatprep.subr.mxu0 0.0
          %2297 = vmatpush1.msra.mxu0 0.0
          %2298 = vmatprep.subr.mxu0 0.0
          %2299 = vmatpush1.msra.mxu0 0.0
          %2300 = vmatprep.subr.mxu0 0.0
          %2301 = vmatpush1.msra.mxu0 0.0
          %2302 = vmatprep.subr.mxu0 0.0
          %2303 = vmatpush1.msra.mxu0 0.0
          %2304 = vmatprep.subr.mxu0 0.0
          %2305 = vmatpush1.msra.mxu0 0.0
          %2306 = vmatprep.subr.mxu0 0.0
          %2307 = vmatpush1.msra.mxu0 0.0
          %2308 = vmatprep.subr.mxu0 0.0
          %2309 = vmatpush1.msra.mxu0 0.0
          %2310 = vmatprep.subr.mxu0 0.0
          %2311 = vmatpush1.msra.mxu0 0.0
          %2312 = vmatprep.subr.mxu0 0.0
          %2313 = vmatpush1.msra.mxu0 0.0
          %2314 = vmatprep.subr.mxu0 0.0
          %2315 = vmatpush1.msra.mxu0 0.0
          %2316 = vmatprep.subr.mxu0 0.0
          %2317 = vmatpush1.msra.mxu0 0.0
          %2318 = vmatprep.subr.mxu0 0.0
          %2319 = vmatpush1.msra.mxu0 0.0
          %2320 = vmatprep.subr.mxu0 0.0
          %2321 = vmatpush1.msra.mxu0 0.0
          %2322 = vmatprep.subr.mxu0 0.0
          %2323 = vmatpush1.msra.mxu0 0.0
          %2324 = vmatprep.subr.mxu0 0.0
          %2325 = vmatpush1.msra.mxu0 0.0
          %2326 = vmatprep.subr.mxu0 0.0
          %2327 = vmatpush1.msra.mxu0 0.0
          %2328 = vmatprep.subr.mxu0 0.0
          %2329 = vmatpush1.msra.mxu0 0.0
          %2330 = vmatprep.subr.mxu0 0.0
          %2331 = vmatpush1.msra.mxu0 0.0
          %2332 = vmatprep.subr.mxu0 0.0
          %2333 = vmatpush1.msra.mxu0 0.0
          %2334 = vmatprep.subr.mxu0 0.0
          %2335 = vmatpush1.msra.mxu0 0.0
          %2336 = vmatprep.subr.mxu0 0.0
          %2337 = vmatpush1.msra.mxu0 0.0
          %2338 = vmatprep.subr.mxu0 0.0
          %2339 = vmatpush1.msra.mxu0 0.0
          %2340 = vmatprep.subr.mxu0 0.0
          %2341 = vmatpush1.msra.mxu0 0.0
          %2342 = vmatprep.subr.mxu0 0.0
          %2343 = vmatpush1.msra.mxu0 0.0
          %2344 = vmatprep.mubr.f32.mxu0 0.0
          %2345 = vmatmul.mubr.f32.gmra.mrb[0].mxu0 %v2278
          %v2346 = vpop.f32.mrb[0].mxu0
          %v2347 = vadd.f32 0.0, %v2346
          %v2348 = vpop.f32.mrb[0].mxu0
          %2349 = vdwg.mxu0
          %v2350 = vmul.f32 %v2347, 0.0025510204
          %v2351 = vmul.f32 %v2275, %v2275
          %v2352 = vsub.f32 %v2350, %v2351
          %v2353 = vld [vmem:[#allocation10] sm:$0x1]
          %v2354 = vadd.f32 %v2352, 1e-05
          %v2355 = vrsqrt.pop %v2354
          %v2356 = vmul.f32 %v2353, %v2355
          %v2357 = vld [vmem:[#allocation11] sm:$0x1]
          %v2358 = vmul.f32 %v2275, %v2356
          %v2359 = vsub.f32 %v2357, %v2358
          %v2360 = vld [vmem:[#allocation14] sm:$0xff]
          %vm2361 = vcmask 64512
          %v2363 = vsel %vm2361, %v2356, 0
          %2365 = vmatprep.subr.mxu0 0.0
          %2366 = vmatpush1.msra.mxu0 %v2360
          %2367 = vmatprep.subr.mxu0 0.0
          %2368 = vmatpush1.msra.mxu0 0.0
          %2369 = vmatprep.subr.mxu0 0.0
          %2370 = vmatpush1.msra.mxu0 0.0
          %2371 = vmatprep.subr.mxu0 0.0
          %2372 = vmatpush1.msra.mxu0 0.0
          %2373 = vmatprep.subr.mxu0 0.0
          %2374 = vmatpush1.msra.mxu0 0.0
          %2375 = vmatprep.subr.mxu0 0.0
          %2376 = vmatpush1.msra.mxu0 0.0
          %2377 = vmatprep.subr.mxu0 0.0
          %2378 = vmatpush1.msra.mxu0 0.0
          %2379 = vmatprep.subr.mxu0 0.0
          %2380 = vmatpush1.msra.mxu0 0.0
          %2381 = vmatprep.subr.mxu0 0.0
          %2382 = vmatpush1.msra.mxu0 0.0
          %2383 = vmatprep.subr.mxu0 0.0
          %2384 = vmatpush1.msra.mxu0 0.0
          %2385 = vmatprep.subr.mxu0 0.0
          %2386 = vmatpush1.msra.mxu0 0.0
          %2387 = vmatprep.subr.mxu0 0.0
          %2388 = vmatpush1.msra.mxu0 0.0
          %2389 = vmatprep.subr.mxu0 0.0
          %2390 = vmatpush1.msra.mxu0 0.0
          %2391 = vmatprep.subr.mxu0 0.0
          %2392 = vmatpush1.msra.mxu0 0.0
          %2393 = vmatprep.subr.mxu0 0.0
          %2394 = vmatpush1.msra.mxu0 0.0
          %2395 = vmatprep.subr.mxu0 0.0
          %2396 = vmatpush1.msra.mxu0 0.0
          %2397 = vmatprep.subr.mxu0 0.0
          %2398 = vmatpush1.msra.mxu0 0.0
          %2399 = vmatprep.subr.mxu0 0.0
          %2400 = vmatpush1.msra.mxu0 0.0
          %2401 = vmatprep.subr.mxu0 0.0
          %2402 = vmatpush1.msra.mxu0 0.0
          %2403 = vmatprep.subr.mxu0 0.0
          %2404 = vmatpush1.msra.mxu0 0.0
          %2405 = vmatprep.subr.mxu0 0.0
          %2406 = vmatpush1.msra.mxu0 0.0
          %2407 = vmatprep.subr.mxu0 0.0
          %2408 = vmatpush1.msra.mxu0 0.0
          %2409 = vmatprep.subr.mxu0 0.0
          %2410 = vmatpush1.msra.mxu0 0.0
          %2411 = vmatprep.subr.mxu0 0.0
          %2412 = vmatpush1.msra.mxu0 0.0
          %2413 = vmatprep.subr.mxu0 0.0
          %2414 = vmatpush1.msra.mxu0 0.0
          %2415 = vmatprep.subr.mxu0 0.0
          %2416 = vmatpush1.msra.mxu0 0.0
          %2417 = vmatprep.subr.mxu0 0.0
          %2418 = vmatpush1.msra.mxu0 0.0
          %2419 = vmatprep.subr.mxu0 0.0
          %2420 = vmatpush1.msra.mxu0 0.0
          %2421 = vmatprep.subr.mxu0 0.0
          %2422 = vmatpush1.msra.mxu0 0.0
          %2423 = vmatprep.subr.mxu0 0.0
          %2424 = vmatpush1.msra.mxu0 0.0
          %2425 = vmatprep.subr.mxu0 0.0
          %2426 = vmatpush1.msra.mxu0 0.0
          %2427 = vmatprep.subr.mxu0 0.0
          %2428 = vmatpush1.msra.mxu0 0.0
          %2429 = vmatprep.mubr.f32.mxu0 0.0
          %2430 = vmatmul.mubr.f32.gmra.mrb[0].mxu0 %v2363
          %v2431 = vpop.f32.mrb[0].mxu0
          %v2432 = vadd.f32 0.0, %v2431
          %v2433 = vpop.f32.mrb[0].mxu0
          %2434 = vdwg.mxu0
          %v2436 = vsel %vm2361, %v2359, 0
          %2438 = vmatprep.subr.mxu0 0.0
          %2439 = vmatpush1.msra.mxu0 %v2360
          %2440 = vmatprep.subr.mxu0 0.0
          %2441 = vmatpush1.msra.mxu0 0.0
          %2442 = vmatprep.subr.mxu0 0.0
          %2443 = vmatpush1.msra.mxu0 0.0
          %2444 = vmatprep.subr.mxu0 0.0
          %2445 = vmatpush1.msra.mxu0 0.0
          %2446 = vmatprep.subr.mxu0 0.0
          %2447 = vmatpush1.msra.mxu0 0.0
          %2448 = vmatprep.subr.mxu0 0.0
          %2449 = vmatpush1.msra.mxu0 0.0
          %2450 = vmatprep.subr.mxu0 0.0
          %2451 = vmatpush1.msra.mxu0 0.0
          %2452 = vmatprep.subr.mxu0 0.0
          %2453 = vmatpush1.msra.mxu0 0.0
          %2454 = vmatprep.subr.mxu0 0.0
          %2455 = vmatpush1.msra.mxu0 0.0
          %2456 = vmatprep.subr.mxu0 0.0
          %2457 = vmatpush1.msra.mxu0 0.0
          %2458 = vmatprep.subr.mxu0 0.0
          %2459 = vmatpush1.msra.mxu0 0.0
          %2460 = vmatprep.subr.mxu0 0.0
          %2461 = vmatpush1.msra.mxu0 0.0
          %2462 = vmatprep.subr.mxu0 0.0
          %2463 = vmatpush1.msra.mxu0 0.0
          %2464 = vmatprep.subr.mxu0 0.0
          %2465 = vmatpush1.msra.mxu0 0.0
          %2466 = vmatprep.subr.mxu0 0.0
          %2467 = vmatpush1.msra.mxu0 0.0
          %2468 = vmatprep.subr.mxu0 0.0
          %2469 = vmatpush1.msra.mxu0 0.0
          %2470 = vmatprep.subr.mxu0 0.0
          %2471 = vmatpush1.msra.mxu0 0.0
          %2472 = vmatprep.subr.mxu0 0.0
          %2473 = vmatpush1.msra.mxu0 0.0
          %2474 = vmatprep.subr.mxu0 0.0
          %2475 = vmatpush1.msra.mxu0 0.0
          %2476 = vmatprep.subr.mxu0 0.0
          %2477 = vmatpush1.msra.mxu0 0.0
          %2478 = vmatprep.subr.mxu0 0.0
          %2479 = vmatpush1.msra.mxu0 0.0
          %2480 = vmatprep.subr.mxu0 0.0
          %2481 = vmatpush1.msra.mxu0 0.0
          %2482 = vmatprep.subr.mxu0 0.0
          %2483 = vmatpush1.msra.mxu0 0.0
          %2484 = vmatprep.subr.mxu0 0.0
          %2485 = vmatpush1.msra.mxu0 0.0
          %2486 = vmatprep.subr.mxu0 0.0
          %2487 = vmatpush1.msra.mxu0 0.0
          %2488 = vmatprep.subr.mxu0 0.0
          %2489 = vmatpush1.msra.mxu0 0.0
          %2490 = vmatprep.subr.mxu0 0.0
          %2491 = vmatpush1.msra.mxu0 0.0
          %2492 = vmatprep.subr.mxu0 0.0
          %2493 = vmatpush1.msra.mxu0 0.0
          %2494 = vmatprep.subr.mxu0 0.0
          %2495 = vmatpush1.msra.mxu0 0.0
          %2496 = vmatprep.subr.mxu0 0.0
          %2497 = vmatpush1.msra.mxu0 0.0
          %2498 = vmatprep.subr.mxu0 0.0
          %2499 = vmatpush1.msra.mxu0 0.0
          %2500 = vmatprep.subr.mxu0 0.0
          %2501 = vmatpush1.msra.mxu0 0.0
          %2502 = vmatprep.mubr.f32.mxu0 0.0
          %2503 = vmatmul.mubr.f32.gmra.mrb[0].mxu0 %v2436
          %v2504 = vpop.f32.mrb[0].mxu0
          %v2505 = vadd.f32 0.0, %v2504
          %v2506 = vpop.f32.mrb[0].mxu0
          %2507 = vdwg.mxu0
          %v2508 = vld [vmem:[#allocation2] sm:$0xff]
          %v2509 = vld [vmem:[#allocation2 + $0x8] sm:$0xff]
          %v2510 = vld [vmem:[#allocation2 + $0x10] sm:$0xff]
          %v2511 = vld [vmem:[#allocation2 + $0x18] sm:$0xff]
          %v2512 = vld [vmem:[#allocation2 + $0x20] sm:$0xff]
          %v2513 = vld [vmem:[#allocation2 + $0x28] sm:$0xff]
          %v2514 = vld [vmem:[#allocation2 + $0x30] sm:$0xff]
          %v2515 = vld [vmem:[#allocation2 + $0x38] sm:$0xff]
          %v2516 = vld [vmem:[#allocation2 + $0x40] sm:$0xff]
          %v2517 = vld [vmem:[#allocation2 + $0x48] sm:$0xff]
          %v2518 = vld [vmem:[#allocation2 + $0x50] sm:$0xff]
          %v2519 = vld [vmem:[#allocation2 + $0x58] sm:$0xff]
          %v2520 = vld [vmem:[#allocation2 + $0x60] sm:$0xff]
          %v2521 = vld [vmem:[#allocation2 + $0x68] sm:$0xff]
          %v2522 = vld [vmem:[#allocation2 + $0x70] sm:$0xff]
          %v2523 = vld [vmem:[#allocation2 + $0x78] sm:$0xff]
          %v2524 = vlaneseq
          %v2525 = vshrl.u32 %v2524, 7
          %v2526 = vsub.s32 0, %v2525
          %v2527 = vrot.slane %v2432, %v2526
          %v2528 = vmul.f32 %v2508, %v2527
          %v2529 = vmul.f32 %v2509, %v2527
          %v2530 = vmul.f32 %v2510, %v2527
          %v2531 = vmul.f32 %v2511, %v2527
          %v2532 = vmul.f32 %v2512, %v2527
          %v2533 = vmul.f32 %v2513, %v2527
          %v2534 = vmul.f32 %v2514, %v2527
          %v2535 = vmul.f32 %v2515, %v2527
          %v2536 = vmul.f32 %v2516, %v2527
          %v2537 = vmul.f32 %v2517, %v2527
          %v2538 = vmul.f32 %v2518, %v2527
          %v2539 = vmul.f32 %v2519, %v2527
          %v2540 = vmul.f32 %v2520, %v2527
          %v2541 = vmul.f32 %v2521, %v2527
          %v2542 = vmul.f32 %v2522, %v2527
          %v2543 = vmul.f32 %v2523, %v2527
          %v2544 = vlaneseq
          %v2545 = vshrl.u32 %v2544, 7
          %v2546 = vsub.s32 0, %v2545
          %v2547 = vrot.slane %v2505, %v2546
          %v2548 = vadd.f32 %v2528, %v2547
          %v2549 = vadd.f32 %v2529, %v2547
          %v2550 = vadd.f32 %v2530, %v2547
          %v2551 = vadd.f32 %v2531, %v2547
          %v2552 = vadd.f32 %v2532, %v2547
          %v2553 = vadd.f32 %v2533, %v2547
          %v2554 = vadd.f32 %v2534, %v2547
          %v2555 = vadd.f32 %v2535, %v2547
          %v2556 = vadd.f32 %v2536, %v2547
          %v2557 = vadd.f32 %v2537, %v2547
          %v2558 = vadd.f32 %v2538, %v2547
          %v2559 = vadd.f32 %v2539, %v2547
          %v2560 = vadd.f32 %v2540, %v2547
          %v2561 = vadd.f32 %v2541, %v2547
          %v2562 = vadd.f32 %v2542, %v2547
          %v2563 = vadd.f32 %v2543, %v2547
          %v2564 = vmax.f32 %v2548, 0.0
          %v2565 = vmax.f32 %v2549, 0.0
          %v2566 = vmax.f32 %v2550, 0.0
          %v2567 = vmax.f32 %v2551, 0.0
          %v2568 = vmax.f32 %v2552, 0.0
          %v2569 = vmax.f32 %v2553, 0.0
          %v2570 = vmax.f32 %v2554, 0.0
          %v2571 = vmax.f32 %v2555, 0.0
          %v2572 = vmax.f32 %v2556, 0.0
          %v2573 = vmax.f32 %v2557, 0.0
          %v2574 = vmax.f32 %v2558, 0.0
          %v2575 = vmax.f32 %v2559, 0.0
          %v2576 = vmax.f32 %v2560, 0.0
          %v2577 = vmax.f32 %v2561, 0.0
          %v2578 = vmax.f32 %v2562, 0.0
          %v2579 = vmax.f32 %v2563, 0.0
          %v2580 = vpack.c.bf16 %v2565, %v2564
          %v2581 = vpack.c.bf16 %v2567, %v2566
          %v2582 = vpack.c.bf16 %v2569, %v2568
          %v2583 = vpack.c.bf16 %v2571, %v2570
          %v2584 = vpack.c.bf16 %v2573, %v2572
          %v2585 = vpack.c.bf16 %v2575, %v2574
          %v2586 = vpack.c.bf16 %v2577, %v2576
          %v2587 = vpack.c.bf16 %v2579, %v2578
          %v2596 = vunpack.c.l.b16 %v2580
          %v2597 = vunpack.c.h.b16 %v2580
          %v2598 = vunpack.c.l.b16 %v2581
          %v2599 = vunpack.c.h.b16 %v2581
          %v2600 = vunpack.c.l.b16 %v2582
          %v2601 = vunpack.c.h.b16 %v2582
          %v2602 = vunpack.c.l.b16 %v2583
          %v2603 = vunpack.c.h.b16 %v2583
          %v2604 = vunpack.c.l.b16 %v2584
          %v2605 = vunpack.c.h.b16 %v2584
          %v2606 = vunpack.c.l.b16 %v2585
          %v2607 = vunpack.c.h.b16 %v2585
          %v2608 = vunpack.c.l.b16 %v2586
          %v2609 = vunpack.c.h.b16 %v2586
          %v2610 = vunpack.c.l.b16 %v2587
          %v2611 = vunpack.c.h.b16 %v2587
          %v2612 = vpack.c.b16 %v2596, %v2596
          %v2613 = vpack.c.b16 %v2597, %v2597
          %v2614 = vpack.c.b16 %v2598, %v2598
          %v2615 = vpack.c.b16 %v2599, %v2599
          %v2616 = vpack.c.b16 %v2600, %v2600
          %v2617 = vpack.c.b16 %v2601, %v2601
          %v2618 = vpack.c.b16 %v2602, %v2602
          %v2619 = vpack.c.b16 %v2603, %v2603
          %v2620 = vpack.c.b16 %v2604, %v2604
          %v2621 = vpack.c.b16 %v2605, %v2605
          %v2622 = vpack.c.b16 %v2606, %v2606
          %v2623 = vpack.c.b16 %v2607, %v2607
          %v2624 = vpack.c.b16 %v2608, %v2608
          %v2625 = vpack.c.b16 %v2609, %v2609
          %v2626 = vpack.c.b16 %v2610, %v2610
          %v2627 = vpack.c.b16 %v2611, %v2611
          %vm2644 = vcmask 257024
          %2645 = vst.msk [vmem:[#allocation16] sm:$0xf] %vm2644, %v2612
          %2646 = vst.msk [vmem:[#allocation16 + $0x4] sm:$0xf] %vm2644, %v2613
          %2647 = vst.msk [vmem:[#allocation16 + $0x8] sm:$0xf] %vm2644, %v2614
          %2648 = vst.msk [vmem:[#allocation16 + $0xc] sm:$0xf] %vm2644, %v2615
          %2649 = vst.msk [vmem:[#allocation16 + $0x10] sm:$0xf] %vm2644, %v2616
          %2650 = vst.msk [vmem:[#allocation16 + $0x14] sm:$0xf] %vm2644, %v2617
          %2651 = vst.msk [vmem:[#allocation16 + $0x18] sm:$0xf] %vm2644, %v2618
          %2652 = vst.msk [vmem:[#allocation16 + $0x1c] sm:$0xf] %vm2644, %v2619
          %2653 = vst.msk [vmem:[#allocation16 + $0x20] sm:$0xf] %vm2644, %v2620
          %2654 = vst.msk [vmem:[#allocation16 + $0x24] sm:$0xf] %vm2644, %v2621
          %2655 = vst.msk [vmem:[#allocation16 + $0x28] sm:$0xf] %vm2644, %v2622
          %2656 = vst.msk [vmem:[#allocation16 + $0x2c] sm:$0xf] %vm2644, %v2623
          %2657 = vst.msk [vmem:[#allocation16 + $0x30] sm:$0xf] %vm2644, %v2624
          %2658 = vst.msk [vmem:[#allocation16 + $0x34] sm:$0xf] %vm2644, %v2625
          %2659 = vst.msk [vmem:[#allocation16 + $0x38] sm:$0xf] %vm2644, %v2626
          %2660 = vst.msk [vmem:[#allocation16 + $0x3c] sm:$0xf] %vm2644, %v2627
          %s2661 = scalar_lea.vmem [#allocation2], 128
          %v2662 = vld [vmem:[%s2661] sm:$0xff]
          %v2663 = vld [vmem:[%s2661 + $0x8] sm:$0xff]
          %v2664 = vld [vmem:[%s2661 + $0x10] sm:$0xff]
          %v2665 = vld [vmem:[%s2661 + $0x18] sm:$0xff]
          %v2666 = vld [vmem:[%s2661 + $0x20] sm:$0xff]
          %v2667 = vld [vmem:[%s2661 + $0x28] sm:$0xff]
          %v2668 = vld [vmem:[%s2661 + $0x30] sm:$0xff]
          %v2669 = vld [vmem:[%s2661 + $0x38] sm:$0xff]
          %v2670 = vld [vmem:[%s2661 + $0x40] sm:$0xff]
          %v2671 = vld [vmem:[%s2661 + $0x48] sm:$0xff]
          %v2672 = vld [vmem:[%s2661 + $0x50] sm:$0xff]
          %v2673 = vld [vmem:[%s2661 + $0x58] sm:$0xff]
          %v2674 = vld [vmem:[%s2661 + $0x60] sm:$0xff]
          %v2675 = vld [vmem:[%s2661 + $0x68] sm:$0xff]
          %v2676 = vld [vmem:[%s2661 + $0x70] sm:$0xff]
          %v2677 = vld [vmem:[%s2661 + $0x78] sm:$0xff]
          %v2678 = vmul.f32 %v2662, %v2527
          %v2679 = vmul.f32 %v2663, %v2527
          %v2680 = vmul.f32 %v2664, %v2527
          %v2681 = vmul.f32 %v2665, %v2527
          %v2682 = vmul.f32 %v2666, %v2527
          %v2683 = vmul.f32 %v2667, %v2527
          %v2684 = vmul.f32 %v2668, %v2527
          %v2685 = vmul.f32 %v2669, %v2527
          %v2686 = vmul.f32 %v2670, %v2527
          %v2687 = vmul.f32 %v2671, %v2527
          %v2688 = vmul.f32 %v2672, %v2527
          %v2689 = vmul.f32 %v2673, %v2527
          %v2690 = vmul.f32 %v2674, %v2527
          %v2691 = vmul.f32 %v2675, %v2527
          %v2692 = vmul.f32 %v2676, %v2527
          %v2693 = vmul.f32 %v2677, %v2527
          %v2694 = vadd.f32 %v2678, %v2547
          %v2695 = vadd.f32 %v2679, %v2547
          %v2696 = vadd.f32 %v2680, %v2547
          %v2697 = vadd.f32 %v2681, %v2547
          %v2698 = vadd.f32 %v2682, %v2547
          %v2699 = vadd.f32 %v2683, %v2547
          %v2700 = vadd.f32 %v2684, %v2547
          %v2701 = vadd.f32 %v2685, %v2547
          %v2702 = vadd.f32 %v2686, %v2547
          %v2703 = vadd.f32 %v2687, %v2547
          %v2704 = vadd.f32 %v2688, %v2547
          %v2705 = vadd.f32 %v2689, %v2547
          %v2706 = vadd.f32 %v2690, %v2547
          %v2707 = vadd.f32 %v2691, %v2547
          %v2708 = vadd.f32 %v2692, %v2547
          %v2709 = vadd.f32 %v2693, %v2547
          %v2710 = vmax.f32 %v2694, 0.0
          %v2711 = vmax.f32 %v2695, 0.0
          %v2712 = vmax.f32 %v2696, 0.0
          %v2713 = vmax.f32 %v2697, 0.0
          %v2714 = vmax.f32 %v2698, 0.0
          %v2715 = vmax.f32 %v2699, 0.0
          %v2716 = vmax.f32 %v2700, 0.0
          %v2717 = vmax.f32 %v2701, 0.0
          %v2718 = vmax.f32 %v2702, 0.0
          %v2719 = vmax.f32 %v2703, 0.0
          %v2720 = vmax.f32 %v2704, 0.0
          %v2721 = vmax.f32 %v2705, 0.0
          %v2722 = vmax.f32 %v2706, 0.0
          %v2723 = vmax.f32 %v2707, 0.0
          %v2724 = vmax.f32 %v2708, 0.0
          %v2725 = vmax.f32 %v2709, 0.0
          %v2726 = vpack.c.bf16 %v2711, %v2710
          %v2727 = vpack.c.bf16 %v2713, %v2712
          %v2728 = vpack.c.bf16 %v2715, %v2714
          %v2729 = vpack.c.bf16 %v2717, %v2716
          %v2730 = vpack.c.bf16 %v2719, %v2718
          %v2731 = vpack.c.bf16 %v2721, %v2720
          %v2732 = vpack.c.bf16 %v2723, %v2722
          %v2733 = vpack.c.bf16 %v2725, %v2724
          %v2742 = vunpack.c.l.b16 %v2726
          %v2743 = vunpack.c.h.b16 %v2726
          %v2744 = vunpack.c.l.b16 %v2727
          %v2745 = vunpack.c.h.b16 %v2727
          %v2746 = vunpack.c.l.b16 %v2728
          %v2747 = vunpack.c.h.b16 %v2728
          %v2748 = vunpack.c.l.b16 %v2729
          %v2749 = vunpack.c.h.b16 %v2729
          %v2750 = vunpack.c.l.b16 %v2730
          %v2751 = vunpack.c.h.b16 %v2730
          %v2752 = vunpack.c.l.b16 %v2731
          %v2753 = vunpack.c.h.b16 %v2731
          %v2754 = vunpack.c.l.b16 %v2732
          %v2755 = vunpack.c.h.b16 %v2732
          %v2756 = vunpack.c.l.b16 %v2733
          %v2757 = vunpack.c.h.b16 %v2733
          %v2758 = vpack.c.b16 %v2742, %v2742
          %v2759 = vpack.c.b16 %v2743, %v2743
          %v2760 = vpack.c.b16 %v2744, %v2744
          %v2761 = vpack.c.b16 %v2745, %v2745
          %v2762 = vpack.c.b16 %v2746, %v2746
          %v2763 = vpack.c.b16 %v2747, %v2747
          %v2764 = vpack.c.b16 %v2748, %v2748
          %v2765 = vpack.c.b16 %v2749, %v2749
          %v2766 = vpack.c.b16 %v2750, %v2750
          %v2767 = vpack.c.b16 %v2751, %v2751
          %v2768 = vpack.c.b16 %v2752, %v2752
          %v2769 = vpack.c.b16 %v2753, %v2753
          %v2770 = vpack.c.b16 %v2754, %v2754
          %v2771 = vpack.c.b16 %v2755, %v2755
          %v2772 = vpack.c.b16 %v2756, %v2756
          %v2773 = vpack.c.b16 %v2757, %v2757
          %2790 = vst.msk [vmem:[#allocation16 + $0x40] sm:$0xf] %vm2644, %v2758
          %2791 = vst.msk [vmem:[#allocation16 + $0x44] sm:$0xf] %vm2644, %v2759
          %2792 = vst.msk [vmem:[#allocation16 + $0x48] sm:$0xf] %vm2644, %v2760
          %2793 = vst.msk [vmem:[#allocation16 + $0x4c] sm:$0xf] %vm2644, %v2761
          %2794 = vst.msk [vmem:[#allocation16 + $0x50] sm:$0xf] %vm2644, %v2762
          %2795 = vst.msk [vmem:[#allocation16 + $0x54] sm:$0xf] %vm2644, %v2763
          %2796 = vst.msk [vmem:[#allocation16 + $0x58] sm:$0xf] %vm2644, %v2764
          %2797 = vst.msk [vmem:[#allocation16 + $0x5c] sm:$0xf] %vm2644, %v2765
          %2798 = vst.msk [vmem:[#allocation16 + $0x60] sm:$0xf] %vm2644, %v2766
          %2799 = vst.msk [vmem:[#allocation16 + $0x64] sm:$0xf] %vm2644, %v2767
          %2800 = vst.msk [vmem:[#allocation16 + $0x68] sm:$0xf] %vm2644, %v2768
          %2801 = vst.msk [vmem:[#allocation16 + $0x6c] sm:$0xf] %vm2644, %v2769
          %2802 = vst.msk [vmem:[#allocation16 + $0x70] sm:$0xf] %vm2644, %v2770
          %2803 = vst.msk [vmem:[#allocation16 + $0x74] sm:$0xf] %vm2644, %v2771
          %2804 = vst.msk [vmem:[#allocation16 + $0x78] sm:$0xf] %vm2644, %v2772
          %2805 = vst.msk [vmem:[#allocation16 + $0x7c] sm:$0xf] %vm2644, %v2773
        $region84: #{netg_forward.4} parent=47 // pred_fallthru
          _
        // Predicated region
        $region85: #{netg_forward.4} parent=47 // pred_check
          %p2806 = pneg %p188
        $region86: #{netg_forward.4} parent=47 // pred_check_branch
          %2808 = sbr.rel (%p2806) target = $region88
        $region87: #{netg_forward.4} parent=47 // pred_region
          %s2810 = ssub.s32 2048, 2048
          %2811 = vsyncadd [#allocation6], %s2810
          %s2812 = sshll.u32 [#allocation16], 4
          %s2813 = int_to_ptr.vmem [resolvable:$true] %s2812
          %2818 = dma.vmem_to_hbm [thread:$0]  %s2813, 2048, %s7, [#allocation6], 64, 64, 4
        $region88: #{netg_forward.4} parent=47 // pred_fallthru
          _
        // Predicated region
        $region89: #{netg_forward.4} parent=47 // pred_check
          %p2819 = pneg %p188
        $region90: #{netg_forward.4} parent=47 // pred_check_branch
          %2821 = sbr.rel (%p2819) target = $region92
        $region91: #{netg_forward.4} parent=47 // pred_region
          %2822 = dma.done [#allocation6], 2048
        $region92: #{netg_forward.4} parent=47 // pred_fallthru
          _
      $region48: #{netg_forward.4} parent=5 // pred_fallthru
        _
      %p2823 = scmp.le.s32.totalorder 2, %s18
      // Predicated region
      $region93: #{netg_forward.4} parent=5 // pred_check
        %p2824 = pneg %p2823
      $region94: #{netg_forward.4} parent=5 // pred_check_branch
        %2826 = sbr.rel (%p2824) target = $region96
      $region95: #{netg_forward.4} parent=5 // pred_region
        %s2827 = ssub.s32 %s18, 2
      $region96: #{netg_forward.4} parent=5 // pred_fallthru
        _
    $region6: #{netg_forward.4} parent=1 // loop_footer
      %s22 = sadd.s32 1, %s18
    $region7: #{netg_forward.4} parent=1 // loop_footer_branch
      %17 = sbr.rel target = $region3
    $region8: #{netg_forward.4} parent=1 // loop_exit
      _
    %2828 = vsyncpa [#allocation5], 1
    %s2829 = scalar_lea.sflag [#allocation5], 1
    %2830 = vsyncpa %s2829, 1
    %2831 = vsyncpa [#allocation8], 1
    %2832 = vsyncpa [#allocation12], 1
    %2833 = vsyncpa [#allocation15], 1
    %2834 = vsyncpa [#allocation6], 1
    %s2835 = scalar_lea.sflag [#allocation6], 1
    %2836 = vsyncpa %s2835, 1

// kernel: netg_forward.5
$region0: #{netg_forward.5}
  #allocation0 [shape = 'u32[]', space=smem, size = 0x4, offset = 0x4, fixed_abs, tag = 'smem constant byte address 0x4 - core index']
  #allocation1 [shape = 'u32[144,128]{1,0:T(1,128)}', space=vmem, size = 0x12000, scoped, tag = 'internal scratch']
  %s0 = inlined_call_operand.hbm [shape: bf16[560,8], index: 0, kind: input, shape index: {}]
  %s1 = inlined_call_operand.hbm [shape: bf16[9,4,8], index: 1, kind: input, shape index: {}]
  %s2 = inlined_call_operand.hbm [shape: f32[4,512], index: 2, kind: output, shape index: {}]
  %s3 = sld [smem:[#allocation0]]
  $region49: #{netg_forward.5} parent=0
    _
  %s5 = ssub.s32 1, %s3
  %s6 = scalar_select 0, %s5, %s3
  $region1: #{netg_forward.5} parent=0
    #allocation2 [shape = 'u8[143360]{0}', space=vmem, size = 0x23000, scoped, tag = 'input window, operand 0, single buffered']
    #allocation3 [shape = 's32[2]{0}', space=sflag, size = 0x8, scoped, tag = 'scoped memory for netg_forward.5']
    #allocation4 [shape = 's32[2]{0}', space=sflag, size = 0x8, scoped, tag = 'scoped memory for netg_forward.5']
    #allocation5 [shape = 'u8[9216]{0}', space=vmem, size = 0x2400, scoped, tag = 'input window, operand 1, single buffered']
    #allocation6 [shape = 's32[1]{0}', space=sflag, size = 0x4, scoped, tag = 'scoped memory for netg_forward.5']
    #allocation7 [shape = 'u8[8192]{0}', space=vmem, size = 0x2000, scoped, tag = 'output window, operand 0']
    %7 = vsyncpa [#allocation3], 0
    %8 = vsyncpa [#allocation6], 0
    %9 = vsyncpa [#allocation4], 0
    %s10 = scalar_lea.sflag [#allocation4], 1
    %11 = vsyncpa %s10, 0
    loop: start=0, step=1, limit=4
    $region2: #{netg_forward.5} parent=1 // loop_pre_header
      _
    $region3: #{netg_forward.5} parent=1 // loop_header
      %s13 = sphi 0, %s17
      %p14 = scmp.ge.s32.totalorder %s13, 4
      %s21 = sphi 0, %s21
      %s23 = sphi 0, %s21
      %s24 = sphi 0, %s23
      %s38 = sphi 0, %s24
      %s42 = sphi 0, %s42
      %s44 = sphi 0, %s42
      %s45 = sphi 0, %s44
      %s59 = sphi 0, %s45
      %s65 = sphi 0, %s67
      %s68 = sphi 0, %s65
      %s69 = sphi 0, %s68
      %s85 = sphi 0, %s69
    $region4: #{netg_forward.5} parent=1 // loop_header_branch
      %16 = sbr.rel (%p14) target = $region8
    $region5: #{netg_forward.5} parent=1 // loop_body
      %s18 = ssub.s32 %s13, 1
      %s19 = ssub.s32 %s13, 2
      %s20 = sadd.s32 %s13, 1
      %s22 = sadd.s32 %s21, 1
      %p25 = scmp.eq.s32.totalorder %s13, 1
      %p26 = scmp.ne.s32.totalorder %s21, %s23
      %p27 = scmp.eq.s32.totalorder %s13, 0
      %p28 = por %p26, %p27
      %p29 = scmp.ne.s32.totalorder %s21, %s23
      %p30 = scmp.eq.s32.totalorder %s18, 1
      %p31 = por %p29, %p30
      %p32 = scmp.ne.s32.totalorder %s23, %s24
      %p33 = scmp.eq.s32.totalorder %s18, 0
      %p34 = por %p32, %p33
      %p35 = scmp.ne.s32.totalorder %s23, %s24
      %p36 = scmp.eq.s32.totalorder %s19, 1
      %p37 = por %p35, %p36
      %p39 = scmp.ne.s32.totalorder %s24, %s38
      %p40 = scmp.eq.s32.totalorder %s19, 0
      %p41 = por %p39, %p40
      %s43 = sadd.s32 %s42, 1
      %p46 = scmp.eq.s32.totalorder %s13, 1
      %p47 = scmp.ne.s32.totalorder %s42, %s44
      %p48 = scmp.eq.s32.totalorder %s13, 0
      %p49 = por %p47, %p48
      %p50 = scmp.ne.s32.totalorder %s42, %s44
      %p51 = scmp.eq.s32.totalorder %s18, 1
      %p52 = por %p50, %p51
      %p53 = scmp.ne.s32.totalorder %s44, %s45
      %p54 = scmp.eq.s32.totalorder %s18, 0
      %p55 = por %p53, %p54
      %p56 = scmp.ne.s32.totalorder %s44, %s45
      %p57 = scmp.eq.s32.totalorder %s19, 1
      %p58 = por %p56, %p57
      %p60 = scmp.ne.s32.totalorder %s45, %s59
      %p61 = scmp.eq.s32.totalorder %s19, 0
      %p62 = por %p60, %p61
      %s63 = ssub.s32 %s13, %s20
      %p64 = scmp.eq.s32.totalorder %s63, 0
      %s66 = sadd.s32 %s65, 1
      %s67 = scalar_select %p64, %s65, %s66
      %p70 = pneg %p64
      %p71 = scmp.eq.s32.totalorder %s13, 1
      %p72 = por %p70, %p71
      %p73 = scmp.ne.s32.totalorder %s65, %s68
      %p74 = scmp.eq.s32.totalorder %s13, 0
      %p75 = por %p73, %p74
      %p76 = scmp.ne.s32.totalorder %s65, %s68
      %p77 = scmp.eq.s32.totalorder %s18, 1
      %p78 = por %p76, %p77
      %p79 = scmp.ne.s32.totalorder %s68, %s69
      %p80 = scmp.eq.s32.totalorder %s18, 0
      %p81 = por %p79, %p80
      %p82 = scmp.ne.s32.totalorder %s68, %s69
      %p83 = scmp.eq.s32.totalorder %s19, 1
      %p84 = por %p82, %p83
      %p86 = scmp.ne.s32.totalorder %s69, %s85
      %p87 = scmp.eq.s32.totalorder %s19, 0
      %p88 = por %p86, %p87
      %p89 = scmp.le.s32.totalorder 1, %s13
      %p90 = scmp.lt.s32.totalorder %s13, 3
      %p91 = pnand %p89, %p90
      %p92 = pneg %p91
      // Predicated region
      $region9: #{netg_forward.5} parent=5 // pred_check
        _
      $region10: #{netg_forward.5} parent=5 // pred_check_branch
        %94 = sbr.rel (%p91) target = $region12
      $region11: #{netg_forward.5} parent=5 // pred_region
        %s95 = ssub.s32 %s13, 1
        // Predicated region
        $region13: #{netg_forward.5} parent=11 // pred_check
          %p96 = pneg %p34
        $region14: #{netg_forward.5} parent=11 // pred_check_branch
          %98 = sbr.rel (%p96) target = $region16
        $region15: #{netg_forward.5} parent=11 // pred_region
          %s100 = ssub.s32 4480, 4480
          %101 = vsyncadd [#allocation3], %s100
          %s102 = sshll.u32 [#allocation2], 4
          %s103 = int_to_ptr.vmem [resolvable:$true] %s102
          %108 = dma.hbm_to_vmem [thread:$0]  %s0, 4480, %s103, [#allocation3], 64, 64, 4
        $region16: #{netg_forward.5} parent=11 // pred_fallthru
          _
        // Predicated region
        $region17: #{netg_forward.5} parent=11 // pred_check
          %p109 = pneg %p55
        $region18: #{netg_forward.5} parent=11 // pred_check_branch
          %111 = sbr.rel (%p109) target = $region20
        $region19: #{netg_forward.5} parent=11 // pred_region
          %s113 = ssub.s32 288, 288
          %114 = vsyncadd [#allocation6], %s113
          %s115 = sshll.u32 [#allocation5], 4
          %s116 = int_to_ptr.vmem [resolvable:$true] %s115
          %121 = dma.hbm_to_vmem [thread:$0]  %s1, 288, %s116, [#allocation6], 32, 32, 2
        $region20: #{netg_forward.5} parent=11 // pred_fallthru
          _
      $region12: #{netg_forward.5} parent=5 // pred_fallthru
        _
      %p122 = scmp.lt.s32.totalorder %s13, 2
      // Predicated region
      $region21: #{netg_forward.5} parent=5 // pred_check
        %p123 = pneg %p122
      $region22: #{netg_forward.5} parent=5 // pred_check_branch
        %125 = sbr.rel (%p123) target = $region24
      $region23: #{netg_forward.5} parent=5 // pred_region
        _
      $region24: #{netg_forward.5} parent=5 // pred_fallthru
        _
      %p126 = scmp.le.s32.totalorder 1, %s13
      %p127 = scmp.lt.s32.totalorder %s13, 3
      %p128 = pnand %p126, %p127
      %p129 = pneg %p128
      // Predicated region
      $region25: #{netg_forward.5} parent=5 // pred_check
        _
      $region26: #{netg_forward.5} parent=5 // pred_check_branch
        %131 = sbr.rel (%p128) target = $region28
      $region27: #{netg_forward.5} parent=5 // pred_region
        %s132 = ssub.s32 %s13, 1
        // Predicated region
        $region29: #{netg_forward.5} parent=27 // pred_check
          %p133 = pneg %p34
        $region30: #{netg_forward.5} parent=27 // pred_check_branch
          %135 = sbr.rel (%p133) target = $region32
        $region31: #{netg_forward.5} parent=27 // pred_region
          %136 = dma.done [#allocation3], 4480
        $region32: #{netg_forward.5} parent=27 // pred_fallthru
          _
        // Predicated region
        $region33: #{netg_forward.5} parent=27 // pred_check
          %p137 = pneg %p55
        $region34: #{netg_forward.5} parent=27 // pred_check_branch
          %139 = sbr.rel (%p137) target = $region36
        $region35: #{netg_forward.5} parent=27 // pred_region
          %140 = dma.done [#allocation6], 288
        $region36: #{netg_forward.5} parent=27 // pred_fallthru
          _
        %p141 = pneg %p34
        %p142 = pneg %p31
        %p143 = pneg %p55
        %p144 = pneg %p52
        %p145 = pneg %p81
        %p146 = pneg %p78
        %s147 = sand.u32 %s68, 1
        %s148 = scalar_lea.sflag [#allocation4], %s147
        %s149 = sand.u32 %s68, 1
        %s150 = smul.addr %s149, 8
        %s151 = scalar_lea.vmem [#allocation7], %s150
        %s152 = smul.u32 2, %s18
        %s154 = smul.u32 %s18, 256
        %s155 = sshra.s32 %s154, 3
        %s156 = sand.u32 %s154, 7
        %s157 = smul.addr %s155, 4
        %s158 = scalar_lea.vmem [#allocation2], %s157
        %v159 = vld [vmem:[%s158] sm:$0xf]
        %v160 = vld [vmem:[%s158 + $0x4] sm:$0xf]
        %v161 = vld [vmem:[%s158 + $0x8] sm:$0xf]
        %v162 = vld [vmem:[%s158 + $0xc] sm:$0xf]
        %v163 = vld [vmem:[%s158 + $0x10] sm:$0xf]
        %v164 = vld [vmem:[%s158 + $0x14] sm:$0xf]
        %v165 = vld [vmem:[%s158 + $0x18] sm:$0xf]
        %v166 = vld [vmem:[%s158 + $0x1c] sm:$0xf]
        %v167 = vld [vmem:[%s158 + $0x20] sm:$0xf]
        %v168 = vld [vmem:[%s158 + $0x24] sm:$0xf]
        %v169 = vld [vmem:[%s158 + $0x28] sm:$0xf]
        %v170 = vld [vmem:[%s158 + $0x2c] sm:$0xf]
        %v171 = vld [vmem:[%s158 + $0x30] sm:$0xf]
        %v172 = vld [vmem:[%s158 + $0x34] sm:$0xf]
        %v173 = vld [vmem:[%s158 + $0x38] sm:$0xf]
        %v174 = vld [vmem:[%s158 + $0x3c] sm:$0xf]
        %v175 = vld [vmem:[%s158 + $0x40] sm:$0xf]
        %v176 = vld [vmem:[%s158 + $0x44] sm:$0xf]
        %v177 = vld [vmem:[%s158 + $0x48] sm:$0xf]
        %v178 = vld [vmem:[%s158 + $0x4c] sm:$0xf]
        %v179 = vld [vmem:[%s158 + $0x50] sm:$0xf]
        %v180 = vld [vmem:[%s158 + $0x54] sm:$0xf]
        %v181 = vld [vmem:[%s158 + $0x58] sm:$0xf]
        %v182 = vld [vmem:[%s158 + $0x5c] sm:$0xf]
        %v183 = vld [vmem:[%s158 + $0x60] sm:$0xf]
        %v184 = vld [vmem:[%s158 + $0x64] sm:$0xf]
        %v185 = vld [vmem:[%s158 + $0x68] sm:$0xf]
        %v186 = vld [vmem:[%s158 + $0x6c] sm:$0xf]
        %v187 = vld [vmem:[%s158 + $0x70] sm:$0xf]
        %v188 = vld [vmem:[%s158 + $0x74] sm:$0xf]
        %v189 = vld [vmem:[%s158 + $0x78] sm:$0xf]
        %v190 = vld [vmem:[%s158 + $0x7c] sm:$0xf]
        %v191 = vld [vmem:[%s158 + $0x80] sm:$0xf]
        %v192 = vld [vmem:[%s158 + $0x84] sm:$0xf]
        %v193 = vld [vmem:[%s158 + $0x88] sm:$0xf]
        %v194 = vld [vmem:[%s158 + $0x8c] sm:$0xf]
        %v195 = vld [vmem:[%s158 + $0x90] sm:$0xf]
        %v196 = vld [vmem:[%s158 + $0x94] sm:$0xf]
        %v197 = vld [vmem:[#allocation5] sm:$0x3]
        %s198 = scalar_lea.vmem [#allocation5], 2
        %v199 = vld [vmem:[%s198] sm:$0x3]
        %v232 = vunpack.c.l.b16 %v160
        %v233 = vunpack.c.l.b16 %v161
        %v234 = vunpack.c.l.b16 %v162
        %v235 = vunpack.c.l.b16 %v163
        %v236 = vunpack.c.l.b16 %v164
        %v237 = vunpack.c.l.b16 %v165
        %v238 = vunpack.c.l.b16 %v166
        %v239 = vunpack.c.l.b16 %v167
        %v240 = vunpack.c.l.b16 %v168
        %v241 = vunpack.c.l.b16 %v169
        %v242 = vunpack.c.l.b16 %v170
        %v243 = vunpack.c.l.b16 %v171
        %v244 = vunpack.c.l.b16 %v172
        %v245 = vunpack.c.l.b16 %v173
        %v246 = vunpack.c.l.b16 %v174
        %v247 = vunpack.c.l.b16 %v175
        %v248 = vunpack.c.l.b16 %v176
        %v249 = vunpack.c.l.b16 %v177
        %v250 = vunpack.c.l.b16 %v178
        %v251 = vunpack.c.l.b16 %v179
        %v252 = vunpack.c.l.b16 %v180
        %v253 = vunpack.c.l.b16 %v181
        %v254 = vunpack.c.l.b16 %v182
        %v255 = vunpack.c.l.b16 %v183
        %v256 = vunpack.c.l.b16 %v184
        %v257 = vunpack.c.l.b16 %v185
        %v258 = vunpack.c.l.b16 %v186
        %v259 = vunpack.c.l.b16 %v187
        %v260 = vunpack.c.l.b16 %v188
        %v261 = vunpack.c.l.b16 %v189
        %v262 = vunpack.c.l.b16 %v190
        %v263 = vunpack.c.l.b16 %v191
        %v264 = vpack.c.b16 %v233, %v232
        %v265 = vpack.c.b16 %v235, %v234
        %v266 = vpack.c.b16 %v237, %v236
        %v267 = vpack.c.b16 %v239, %v238
        %v268 = vpack.c.b16 %v241, %v240
        %v269 = vpack.c.b16 %v243, %v242
        %v270 = vpack.c.b16 %v245, %v244
        %v271 = vpack.c.b16 %v247, %v246
        %v272 = vpack.c.b16 %v249, %v248
        %v273 = vpack.c.b16 %v251, %v250
        %v274 = vpack.c.b16 %v253, %v252
        %v275 = vpack.c.b16 %v255, %v254
        %v276 = vpack.c.b16 %v257, %v256
        %v277 = vpack.c.b16 %v259, %v258
        %v278 = vpack.c.b16 %v261, %v260
        %v279 = vpack.c.b16 %v263, %v262
        %vm280 = vcmask 64512
        %v282 = vsel %vm280, %v199, 0
        %v285 = vsel %vm280, %v264, 0
        %v288 = vsel %vm280, %v265, 0
        %v291 = vsel %vm280, %v266, 0
        %v294 = vsel %vm280, %v267, 0
        %v297 = vsel %vm280, %v268, 0
        %v300 = vsel %vm280, %v269, 0
        %v303 = vsel %vm280, %v270, 0
        %v306 = vsel %vm280, %v271, 0
        %v309 = vsel %vm280, %v272, 0
        %v312 = vsel %vm280, %v273, 0
        %v315 = vsel %vm280, %v274, 0
        %v318 = vsel %vm280, %v275, 0
        %v321 = vsel %vm280, %v276, 0
        %v324 = vsel %vm280, %v277, 0
        %v327 = vsel %vm280, %v278, 0
        %v330 = vsel %vm280, %v279, 0
        %332 = vmatprep.subr.bf16.mxu0 0
        %333 = vmatpush1.bf16.xpose.msra.mxu0 %v285
        %334 = vmatprep.subr.bf16.mxu0 0
        %335 = vmatpush1.bf16.xpose.msra.mxu0 %v288
        %336 = vmatprep.subr.bf16.mxu0 0
        %337 = vmatpush1.bf16.xpose.msra.mxu0 %v291
        %338 = vmatprep.subr.bf16.mxu0 0
        %339 = vmatpush1.bf16.xpose.msra.mxu0 %v294
        %340 = vmatprep.subr.bf16.mxu0 0
        %341 = vmatpush1.bf16.xpose.msra.mxu0 %v297
        %342 = vmatprep.subr.bf16.mxu0 0
        %343 = vmatpush1.bf16.xpose.msra.mxu0 %v300
        %344 = vmatprep.subr.bf16.mxu0 0
        %345 = vmatpush1.bf16.xpose.msra.mxu0 %v303
        %346 = vmatprep.subr.bf16.mxu0 0
        %347 = vmatpush1.bf16.xpose.msra.mxu0 %v306
        %348 = vmatprep.subr.bf16.mxu0 0
        %349 = vmatpush1.bf16.xpose.msra.mxu0 %v309
        %350 = vmatprep.subr.bf16.mxu0 0
        %351 = vmatpush1.bf16.xpose.msra.mxu0 %v312
        %352 = vmatprep.subr.bf16.mxu0 0
        %353 = vmatpush1.bf16.xpose.msra.mxu0 %v315
        %354 = vmatprep.subr.bf16.mxu0 0
        %355 = vmatpush1.bf16.xpose.msra.mxu0 %v318
        %356 = vmatprep.subr.bf16.mxu0 0
        %357 = vmatpush1.bf16.xpose.msra.mxu0 %v321
        %358 = vmatprep.subr.bf16.mxu0 0
        %359 = vmatpush1.bf16.xpose.msra.mxu0 %v324
        %360 = vmatprep.subr.bf16.mxu0 0
        %361 = vmatpush1.bf16.xpose.msra.mxu0 %v327
        %362 = vmatprep.subr.bf16.mxu0 0
        %363 = vmatpush1.bf16.xpose.msra.mxu0 %v330
        %364 = vmatprep.mubr.bf16.mxu0 0
        %365 = vmatmul.mubr.bf16.gmra.mrb[0].mxu0 %v282
        %v366 = vpop.f32.mrb[0].mxu0
        %v367 = vadd.f32 0.0, %v366
        %v368 = vpop.f32.mrb[0].mxu0
        %v369 = vadd.f32 0.0, %v368
        %v370 = vpop.f32.mrb[0].mxu0
        %v371 = vpop.f32.mrb[0].mxu0
        %372 = vdwg.mxu0
        %v374 = vunpack.c.l.b16 %v159
        %v375 = vpack.c.b16 %v232, %v374
        %v376 = vpack.c.b16 %v234, %v233
        %v377 = vpack.c.b16 %v236, %v235
        %v378 = vpack.c.b16 %v238, %v237
        %v379 = vpack.c.b16 %v240, %v239
        %v380 = vpack.c.b16 %v242, %v241
        %v381 = vpack.c.b16 %v244, %v243
        %v382 = vpack.c.b16 %v246, %v245
        %v383 = vpack.c.b16 %v248, %v247
        %v384 = vpack.c.b16 %v250, %v249
        %v385 = vpack.c.b16 %v252, %v251
        %v386 = vpack.c.b16 %v254, %v253
        %v387 = vpack.c.b16 %v256, %v255
        %v388 = vpack.c.b16 %v258, %v257
        %v389 = vpack.c.b16 %v260, %v259
        %v390 = vpack.c.b16 %v262, %v261
        %v391 = vpack.c.b16 %v263, %v263
        %vm392 = vsmask.f32 4352
        %v394 = vshrl.u32 %v375, 16
        %v396 = vrot.slane %v394, 3
        %v397 = vshll.u32 %v375, 16
        %v399 = vrot.slane %v397, 4
        %v400 = vor.u32 %v396, %v399
        %v402 = vshrl.u32 %v376, 16
        %v404 = vrot.slane %v402, 3
        %v405 = vshll.u32 %v376, 16
        %v407 = vrot.slane %v405, 4
        %v408 = vor.u32 %v404, %v407
        %v409 = vsel %vm392, %v400, %v408
        %v411 = vshrl.u32 %v377, 16
        %v413 = vrot.slane %v411, 3
        %v414 = vshll.u32 %v377, 16
        %v416 = vrot.slane %v414, 4
        %v417 = vor.u32 %v413, %v416
        %v418 = vsel %vm392, %v408, %v417
        %v420 = vshrl.u32 %v378, 16
        %v422 = vrot.slane %v420, 3
        %v423 = vshll.u32 %v378, 16
        %v425 = vrot.slane %v423, 4
        %v426 = vor.u32 %v422, %v425
        %v427 = vsel %vm392, %v417, %v426
        %v429 = vshrl.u32 %v379, 16
        %v431 = vrot.slane %v429, 3
        %v432 = vshll.u32 %v379, 16
        %v434 = vrot.slane %v432, 4
        %v435 = vor.u32 %v431, %v434
        %v436 = vsel %vm392, %v426, %v435
        %v438 = vshrl.u32 %v380, 16
        %v440 = vrot.slane %v438, 3
        %v441 = vshll.u32 %v380, 16
        %v443 = vrot.slane %v441, 4
        %v444 = vor.u32 %v440, %v443
        %v445 = vsel %vm392, %v435, %v444
        %v447 = vshrl.u32 %v381, 16
        %v449 = vrot.slane %v447, 3
        %v450 = vshll.u32 %v381, 16
        %v452 = vrot.slane %v450, 4
        %v453 = vor.u32 %v449, %v452
        %v454 = vsel %vm392, %v444, %v453
        %v456 = vshrl.u32 %v382, 16
        %v458 = vrot.slane %v456, 3
        %v459 = vshll.u32 %v382, 16
        %v461 = vrot.slane %v459, 4
        %v462 = vor.u32 %v458, %v461
        %v463 = vsel %vm392, %v453, %v462
        %v465 = vshrl.u32 %v383, 16
        %v467 = vrot.slane %v465, 3
        %v468 = vshll.u32 %v383, 16
        %v470 = vrot.slane %v468, 4
        %v471 = vor.u32 %v467, %v470
        %v472 = vsel %vm392, %v462, %v471
        %v474 = vshrl.u32 %v384, 16
        %v476 = vrot.slane %v474, 3
        %v477 = vshll.u32 %v384, 16
        %v479 = vrot.slane %v477, 4
        %v480 = vor.u32 %v476, %v479
        %v481 = vsel %vm392, %v471, %v480
        %v483 = vshrl.u32 %v385, 16
        %v485 = vrot.slane %v483, 3
        %v486 = vshll.u32 %v385, 16
        %v488 = vrot.slane %v486, 4
        %v489 = vor.u32 %v485, %v488
        %v490 = vsel %vm392, %v480, %v489
        %v492 = vshrl.u32 %v386, 16
        %v494 = vrot.slane %v492, 3
        %v495 = vshll.u32 %v386, 16
        %v497 = vrot.slane %v495, 4
        %v498 = vor.u32 %v494, %v497
        %v499 = vsel %vm392, %v489, %v498
        %v501 = vshrl.u32 %v387, 16
        %v503 = vrot.slane %v501, 3
        %v504 = vshll.u32 %v387, 16
        %v506 = vrot.slane %v504, 4
        %v507 = vor.u32 %v503, %v506
        %v508 = vsel %vm392, %v498, %v507
        %v510 = vshrl.u32 %v388, 16
        %v512 = vrot.slane %v510, 3
        %v513 = vshll.u32 %v388, 16
        %v515 = vrot.slane %v513, 4
        %v516 = vor.u32 %v512, %v515
        %v517 = vsel %vm392, %v507, %v516
        %v519 = vshrl.u32 %v389, 16
        %v521 = vrot.slane %v519, 3
        %v522 = vshll.u32 %v389, 16
        %v524 = vrot.slane %v522, 4
        %v525 = vor.u32 %v521, %v524
        %v526 = vsel %vm392, %v516, %v525
        %v528 = vshrl.u32 %v390, 16
        %v530 = vrot.slane %v528, 3
        %v531 = vshll.u32 %v390, 16
        %v533 = vrot.slane %v531, 4
        %v534 = vor.u32 %v530, %v533
        %v535 = vsel %vm392, %v525, %v534
        %v537 = vshrl.u32 %v391, 16
        %v539 = vrot.slane %v537, 3
        %v540 = vshll.u32 %v391, 16
        %v542 = vrot.slane %v540, 4
        %v543 = vor.u32 %v539, %v542
        %v544 = vsel %vm392, %v534, %v543
        %v546 = vsel %vm280, %v197, 0
        %v549 = vsel %vm280, %v409, 0
        %v552 = vsel %vm280, %v418, 0
        %v555 = vsel %vm280, %v427, 0
        %v558 = vsel %vm280, %v436, 0
        %v561 = vsel %vm280, %v445, 0
        %v564 = vsel %vm280, %v454, 0
        %v567 = vsel %vm280, %v463, 0
        %v570 = vsel %vm280, %v472, 0
        %v573 = vsel %vm280, %v481, 0
        %v576 = vsel %vm280, %v490, 0
        %v579 = vsel %vm280, %v499, 0
        %v582 = vsel %vm280, %v508, 0
        %v585 = vsel %vm280, %v517, 0
        %v588 = vsel %vm280, %v526, 0
        %v591 = vsel %vm280, %v535, 0
        %v594 = vsel %vm280, %v544, 0
        %596 = vmatprep.subr.bf16.mxu0 0
        %597 = vmatpush1.bf16.xpose.msra.mxu0 %v549
        %598 = vmatprep.subr.bf16.mxu0 0
        %599 = vmatpush1.bf16.xpose.msra.mxu0 %v552
        %600 = vmatprep.subr.bf16.mxu0 0
        %601 = vmatpush1.bf16.xpose.msra.mxu0 %v555
        %602 = vmatprep.subr.bf16.mxu0 0
        %603 = vmatpush1.bf16.xpose.msra.mxu0 %v558
        %604 = vmatprep.subr.bf16.mxu0 0
        %605 = vmatpush1.bf16.xpose.msra.mxu0 %v561
        %606 = vmatprep.subr.bf16.mxu0 0
        %607 = vmatpush1.bf16.xpose.msra.mxu0 %v564
        %608 = vmatprep.subr.bf16.mxu0 0
        %609 = vmatpush1.bf16.xpose.msra.mxu0 %v567
        %610 = vmatprep.subr.bf16.mxu0 0
        %611 = vmatpush1.bf16.xpose.msra.mxu0 %v570
        %612 = vmatprep.subr.bf16.mxu0 0
        %613 = vmatpush1.bf16.xpose.msra.mxu0 %v573
        %614 = vmatprep.subr.bf16.mxu0 0
        %615 = vmatpush1.bf16.xpose.msra.mxu0 %v576
        %616 = vmatprep.subr.bf16.mxu0 0
        %617 = vmatpush1.bf16.xpose.msra.mxu0 %v579
        %618 = vmatprep.subr.bf16.mxu0 0
        %619 = vmatpush1.bf16.xpose.msra.mxu0 %v582
        %620 = vmatprep.subr.bf16.mxu0 0
        %621 = vmatpush1.bf16.xpose.msra.mxu0 %v585
        %622 = vmatprep.subr.bf16.mxu0 0
        %623 = vmatpush1.bf16.xpose.msra.mxu0 %v588
        %624 = vmatprep.subr.bf16.mxu0 0
        %625 = vmatpush1.bf16.xpose.msra.mxu0 %v591
        %626 = vmatprep.subr.bf16.mxu0 0
        %627 = vmatpush1.bf16.xpose.msra.mxu0 %v594
        %628 = vmatprep.mubr.bf16.mxu0 0
        %629 = vmatmul.mubr.bf16.gmra.mrb[0].mxu0 %v546
        %v630 = vpop.f32.mrb[0].mxu0
        %v631 = vadd.f32 %v367, %v630
        %v632 = vpop.f32.mrb[0].mxu0
        %v633 = vadd.f32 %v369, %v632
        %v634 = vpop.f32.mrb[0].mxu0
        %v635 = vpop.f32.mrb[0].mxu0
        %636 = vdwg.mxu0
        %s637 = scalar_lea.vmem [#allocation5], 4
        %v638 = vld [vmem:[%s637] sm:$0x3]
        %v640 = vunpack.c.l.b16 %v192
        %v641 = vpack.c.b16 %v640, %v640
        %vm642 = vsmask.f32 7424
        %v643 = vshrl.u32 %v264, 16
        %v645 = vshll.u32 %v264, 16
        %v647 = vrot.slane %v645, 1
        %v648 = vor.u32 %v643, %v647
        %v649 = vshll.u32 %v265, 16
        %v651 = vrot.slane %v649, 1
        %v652 = vsel %vm642, %v648, %v651
        %v653 = vshrl.u32 %v265, 16
        %v655 = vor.u32 %v653, %v651
        %v656 = vshll.u32 %v266, 16
        %v658 = vrot.slane %v656, 1
        %v659 = vsel %vm642, %v655, %v658
        %v660 = vshrl.u32 %v266, 16
        %v662 = vor.u32 %v660, %v658
        %v663 = vshll.u32 %v267, 16
        %v665 = vrot.slane %v663, 1
        %v666 = vsel %vm642, %v662, %v665
        %v667 = vshrl.u32 %v267, 16
        %v669 = vor.u32 %v667, %v665
        %v670 = vshll.u32 %v268, 16
        %v672 = vrot.slane %v670, 1
        %v673 = vsel %vm642, %v669, %v672
        %v674 = vshrl.u32 %v268, 16
        %v676 = vor.u32 %v674, %v672
        %v677 = vshll.u32 %v269, 16
        %v679 = vrot.slane %v677, 1
        %v680 = vsel %vm642, %v676, %v679
        %v681 = vshrl.u32 %v269, 16
        %v683 = vor.u32 %v681, %v679
        %v684 = vshll.u32 %v270, 16
        %v686 = vrot.slane %v684, 1
        %v687 = vsel %vm642, %v683, %v686
        %v688 = vshrl.u32 %v270, 16
        %v690 = vor.u32 %v688, %v686
        %v691 = vshll.u32 %v271, 16
        %v693 = vrot.slane %v691, 1
        %v694 = vsel %vm642, %v690, %v693
        %v695 = vshrl.u32 %v271, 16
        %v697 = vor.u32 %v695, %v693
        %v698 = vshll.u32 %v272, 16
        %v700 = vrot.slane %v698, 1
        %v701 = vsel %vm642, %v697, %v700
        %v702 = vshrl.u32 %v272, 16
        %v704 = vor.u32 %v702, %v700
        %v705 = vshll.u32 %v273, 16
        %v707 = vrot.slane %v705, 1
        %v708 = vsel %vm642, %v704, %v707
        %v709 = vshrl.u32 %v273, 16
        %v711 = vor.u32 %v709, %v707
        %v712 = vshll.u32 %v274, 16
        %v714 = vrot.slane %v712, 1
        %v715 = vsel %vm642, %v711, %v714
        %v716 = vshrl.u32 %v274, 16
        %v718 = vor.u32 %v716, %v714
        %v719 = vshll.u32 %v275, 16
        %v721 = vrot.slane %v719, 1
        %v722 = vsel %vm642, %v718, %v721
        %v723 = vshrl.u32 %v275, 16
        %v725 = vor.u32 %v723, %v721
        %v726 = vshll.u32 %v276, 16
        %v728 = vrot.slane %v726, 1
        %v729 = vsel %vm642, %v725, %v728
        %v730 = vshrl.u32 %v276, 16
        %v732 = vor.u32 %v730, %v728
        %v733 = vshll.u32 %v277, 16
        %v735 = vrot.slane %v733, 1
        %v736 = vsel %vm642, %v732, %v735
        %v737 = vshrl.u32 %v277, 16
        %v739 = vor.u32 %v737, %v735
        %v740 = vshll.u32 %v278, 16
        %v742 = vrot.slane %v740, 1
        %v743 = vsel %vm642, %v739, %v742
        %v744 = vshrl.u32 %v278, 16
        %v746 = vor.u32 %v744, %v742
        %v747 = vshll.u32 %v279, 16
        %v749 = vrot.slane %v747, 1
        %v750 = vsel %vm642, %v746, %v749
        %v751 = vshrl.u32 %v279, 16
        %v753 = vor.u32 %v751, %v749
        %v755 = vshll.u32 %v641, 16
        %v757 = vrot.slane %v755, 1
        %v758 = vsel %vm642, %v753, %v757
        %v760 = vsel %vm280, %v638, 0
        %v763 = vsel %vm280, %v652, 0
        %v766 = vsel %vm280, %v659, 0
        %v769 = vsel %vm280, %v666, 0
        %v772 = vsel %vm280, %v673, 0
        %v775 = vsel %vm280, %v680, 0
        %v778 = vsel %vm280, %v687, 0
        %v781 = vsel %vm280, %v694, 0
        %v784 = vsel %vm280, %v701, 0
        %v787 = vsel %vm280, %v708, 0
        %v790 = vsel %vm280, %v715, 0
        %v793 = vsel %vm280, %v722, 0
        %v796 = vsel %vm280, %v729, 0
        %v799 = vsel %vm280, %v736, 0
        %v802 = vsel %vm280, %v743, 0
        %v805 = vsel %vm280, %v750, 0
        %v808 = vsel %vm280, %v758, 0
        %810 = vmatprep.subr.bf16.mxu0 0
        %811 = vmatpush1.bf16.xpose.msra.mxu0 %v763
        %812 = vmatprep.subr.bf16.mxu0 0
        %813 = vmatpush1.bf16.xpose.msra.mxu0 %v766
        %814 = vmatprep.subr.bf16.mxu0 0
        %815 = vmatpush1.bf16.xpose.msra.mxu0 %v769
        %816 = vmatprep.subr.bf16.mxu0 0
        %817 = vmatpush1.bf16.xpose.msra.mxu0 %v772
        %818 = vmatprep.subr.bf16.mxu0 0
        %819 = vmatpush1.bf16.xpose.msra.mxu0 %v775
        %820 = vmatprep.subr.bf16.mxu0 0
        %821 = vmatpush1.bf16.xpose.msra.mxu0 %v778
        %822 = vmatprep.subr.bf16.mxu0 0
        %823 = vmatpush1.bf16.xpose.msra.mxu0 %v781
        %824 = vmatprep.subr.bf16.mxu0 0
        %825 = vmatpush1.bf16.xpose.msra.mxu0 %v784
        %826 = vmatprep.subr.bf16.mxu0 0
        %827 = vmatpush1.bf16.xpose.msra.mxu0 %v787
        %828 = vmatprep.subr.bf16.mxu0 0
        %829 = vmatpush1.bf16.xpose.msra.mxu0 %v790
        %830 = vmatprep.subr.bf16.mxu0 0
        %831 = vmatpush1.bf16.xpose.msra.mxu0 %v793
        %832 = vmatprep.subr.bf16.mxu0 0
        %833 = vmatpush1.bf16.xpose.msra.mxu0 %v796
        %834 = vmatprep.subr.bf16.mxu0 0
        %835 = vmatpush1.bf16.xpose.msra.mxu0 %v799
        %836 = vmatprep.subr.bf16.mxu0 0
        %837 = vmatpush1.bf16.xpose.msra.mxu0 %v802
        %838 = vmatprep.subr.bf16.mxu0 0
        %839 = vmatpush1.bf16.xpose.msra.mxu0 %v805
        %840 = vmatprep.subr.bf16.mxu0 0
        %841 = vmatpush1.bf16.xpose.msra.mxu0 %v808
        %842 = vmatprep.mubr.bf16.mxu0 0
        %843 = vmatmul.mubr.bf16.gmra.mrb[0].mxu0 %v760
        %v844 = vpop.f32.mrb[0].mxu0
        %v845 = vadd.f32 0.0, %v844
        %v846 = vpop.f32.mrb[0].mxu0
        %v847 = vadd.f32 0.0, %v846
        %v848 = vpop.f32.mrb[0].mxu0
        %v849 = vpop.f32.mrb[0].mxu0
        %850 = vdwg.mxu0
        %v851 = vadd.f32 %v631, %v845
        %v852 = vadd.f32 %v633, %v847
        %s853 = scalar_lea.vmem [#allocation5], 6
        %v854 = vld [vmem:[%s853] sm:$0x3]
        %v856 = vunpack.c.l.b16 %v193
        %v857 = vpack.c.b16 %v640, %v263
        %v858 = vpack.c.b16 %v856, %v856
        %v860 = vshrl.u32 %v857, 16
        %v862 = vrot.slane %v860, 3
        %v863 = vshll.u32 %v857, 16
        %v865 = vrot.slane %v863, 4
        %v866 = vor.u32 %v862, %v865
        %v867 = vsel %vm392, %v534, %v866
        %v869 = vshrl.u32 %v858, 16
        %v871 = vrot.slane %v869, 3
        %v872 = vshll.u32 %v858, 16
        %v874 = vrot.slane %v872, 4
        %v875 = vor.u32 %v871, %v874
        %v876 = vsel %vm392, %v866, %v875
        %v878 = vsel %vm280, %v854, 0
        %v881 = vsel %vm280, %v867, 0
        %v884 = vsel %vm280, %v876, 0
        %886 = vmatprep.subr.bf16.mxu0 0
        %887 = vmatpush1.bf16.xpose.msra.mxu0 %v552
        %888 = vmatprep.subr.bf16.mxu0 0
        %889 = vmatpush1.bf16.xpose.msra.mxu0 %v555
        %890 = vmatprep.subr.bf16.mxu0 0
        %891 = vmatpush1.bf16.xpose.msra.mxu0 %v558
        %892 = vmatprep.subr.bf16.mxu0 0
        %893 = vmatpush1.bf16.xpose.msra.mxu0 %v561
        %894 = vmatprep.subr.bf16.mxu0 0
        %895 = vmatpush1.bf16.xpose.msra.mxu0 %v564
        %896 = vmatprep.subr.bf16.mxu0 0
        %897 = vmatpush1.bf16.xpose.msra.mxu0 %v567
        %898 = vmatprep.subr.bf16.mxu0 0
        %899 = vmatpush1.bf16.xpose.msra.mxu0 %v570
        %900 = vmatprep.subr.bf16.mxu0 0
        %901 = vmatpush1.bf16.xpose.msra.mxu0 %v573
        %902 = vmatprep.subr.bf16.mxu0 0
        %903 = vmatpush1.bf16.xpose.msra.mxu0 %v576
        %904 = vmatprep.subr.bf16.mxu0 0
        %905 = vmatpush1.bf16.xpose.msra.mxu0 %v579
        %906 = vmatprep.subr.bf16.mxu0 0
        %907 = vmatpush1.bf16.xpose.msra.mxu0 %v582
        %908 = vmatprep.subr.bf16.mxu0 0
        %909 = vmatpush1.bf16.xpose.msra.mxu0 %v585
        %910 = vmatprep.subr.bf16.mxu0 0
        %911 = vmatpush1.bf16.xpose.msra.mxu0 %v588
        %912 = vmatprep.subr.bf16.mxu0 0
        %913 = vmatpush1.bf16.xpose.msra.mxu0 %v591
        %914 = vmatprep.subr.bf16.mxu0 0
        %915 = vmatpush1.bf16.xpose.msra.mxu0 %v881
        %916 = vmatprep.subr.bf16.mxu0 0
        %917 = vmatpush1.bf16.xpose.msra.mxu0 %v884
        %918 = vmatprep.mubr.bf16.mxu0 0
        %919 = vmatmul.mubr.bf16.gmra.mrb[0].mxu0 %v878
        %v920 = vpop.f32.mrb[0].mxu0
        %v921 = vadd.f32 0.0, %v920
        %v922 = vpop.f32.mrb[0].mxu0
        %v923 = vadd.f32 0.0, %v922
        %v924 = vpop.f32.mrb[0].mxu0
        %v925 = vpop.f32.mrb[0].mxu0
        %926 = vdwg.mxu0
        %v927 = vadd.f32 %v851, %v921
        %v928 = vadd.f32 %v852, %v923
        %s929 = scalar_lea.vmem [#allocation5], 8
        %v930 = vld [vmem:[%s929] sm:$0x3]
        %v931 = vpack.c.b16 %v856, %v640
        %v933 = vsel %vm280, %v930, 0
        %v936 = vsel %vm280, %v931, 0
        %938 = vmatprep.subr.bf16.mxu0 0
        %939 = vmatpush1.bf16.xpose.msra.mxu0 %v288
        %940 = vmatprep.subr.bf16.mxu0 0
        %941 = vmatpush1.bf16.xpose.msra.mxu0 %v291
        %942 = vmatprep.subr.bf16.mxu0 0
        %943 = vmatpush1.bf16.xpose.msra.mxu0 %v294
        %944 = vmatprep.subr.bf16.mxu0 0
        %945 = vmatpush1.bf16.xpose.msra.mxu0 %v297
        %946 = vmatprep.subr.bf16.mxu0 0
        %947 = vmatpush1.bf16.xpose.msra.mxu0 %v300
        %948 = vmatprep.subr.bf16.mxu0 0
        %949 = vmatpush1.bf16.xpose.msra.mxu0 %v303
        %950 = vmatprep.subr.bf16.mxu0 0
        %951 = vmatpush1.bf16.xpose.msra.mxu0 %v306
        %952 = vmatprep.subr.bf16.mxu0 0
        %953 = vmatpush1.bf16.xpose.msra.mxu0 %v309
        %954 = vmatprep.subr.bf16.mxu0 0
        %955 = vmatpush1.bf16.xpose.msra.mxu0 %v312
        %956 = vmatprep.subr.bf16.mxu0 0
        %957 = vmatpush1.bf16.xpose.msra.mxu0 %v315
        %958 = vmatprep.subr.bf16.mxu0 0
        %959 = vmatpush1.bf16.xpose.msra.mxu0 %v318
        %960 = vmatprep.subr.bf16.mxu0 0
        %961 = vmatpush1.bf16.xpose.msra.mxu0 %v321
        %962 = vmatprep.subr.bf16.mxu0 0
        %963 = vmatpush1.bf16.xpose.msra.mxu0 %v324
        %964 = vmatprep.subr.bf16.mxu0 0
        %965 = vmatpush1.bf16.xpose.msra.mxu0 %v327
        %966 = vmatprep.subr.bf16.mxu0 0
        %967 = vmatpush1.bf16.xpose.msra.mxu0 %v330
        %968 = vmatprep.subr.bf16.mxu0 0
        %969 = vmatpush1.bf16.xpose.msra.mxu0 %v936
        %970 = vmatprep.mubr.bf16.mxu0 0
        %971 = vmatmul.mubr.bf16.gmra.mrb[0].mxu0 %v933
        %v972 = vpop.f32.mrb[0].mxu0
        %v973 = vadd.f32 0.0, %v972
        %v974 = vpop.f32.mrb[0].mxu0
        %v975 = vadd.f32 0.0, %v974
        %v976 = vpop.f32.mrb[0].mxu0
        %v977 = vpop.f32.mrb[0].mxu0
        %978 = vdwg.mxu0
        %v979 = vadd.f32 %v927, %v973
        %v980 = vadd.f32 %v928, %v975
        %s981 = scalar_lea.vmem [#allocation5], 10
        %v982 = vld [vmem:[%s981] sm:$0x3]
        %v984 = vunpack.c.l.b16 %v194
        %v985 = vpack.c.b16 %v984, %v984
        %v986 = vshll.u32 %v931, 16
        %v988 = vrot.slane %v986, 1
        %v989 = vsel %vm642, %v753, %v988
        %v990 = vshrl.u32 %v931, 16
        %v992 = vor.u32 %v990, %v988
        %v994 = vshll.u32 %v985, 16
        %v996 = vrot.slane %v994, 1
        %v997 = vsel %vm642, %v992, %v996
        %v999 = vsel %vm280, %v982, 0
        %v1002 = vsel %vm280, %v989, 0
        %v1005 = vsel %vm280, %v997, 0
        %1007 = vmatprep.subr.bf16.mxu0 0
        %1008 = vmatpush1.bf16.xpose.msra.mxu0 %v766
        %1009 = vmatprep.subr.bf16.mxu0 0
        %1010 = vmatpush1.bf16.xpose.msra.mxu0 %v769
        %1011 = vmatprep.subr.bf16.mxu0 0
        %1012 = vmatpush1.bf16.xpose.msra.mxu0 %v772
        %1013 = vmatprep.subr.bf16.mxu0 0
        %1014 = vmatpush1.bf16.xpose.msra.mxu0 %v775
        %1015 = vmatprep.subr.bf16.mxu0 0
        %1016 = vmatpush1.bf16.xpose.msra.mxu0 %v778
        %1017 = vmatprep.subr.bf16.mxu0 0
        %1018 = vmatpush1.bf16.xpose.msra.mxu0 %v781
        %1019 = vmatprep.subr.bf16.mxu0 0
        %1020 = vmatpush1.bf16.xpose.msra.mxu0 %v784
        %1021 = vmatprep.subr.bf16.mxu0 0
        %1022 = vmatpush1.bf16.xpose.msra.mxu0 %v787
        %1023 = vmatprep.subr.bf16.mxu0 0
        %1024 = vmatpush1.bf16.xpose.msra.mxu0 %v790
        %1025 = vmatprep.subr.bf16.mxu0 0
        %1026 = vmatpush1.bf16.xpose.msra.mxu0 %v793
        %1027 = vmatprep.subr.bf16.mxu0 0
        %1028 = vmatpush1.bf16.xpose.msra.mxu0 %v796
        %1029 = vmatprep.subr.bf16.mxu0 0
        %1030 = vmatpush1.bf16.xpose.msra.mxu0 %v799
        %1031 = vmatprep.subr.bf16.mxu0 0
        %1032 = vmatpush1.bf16.xpose.msra.mxu0 %v802
        %1033 = vmatprep.subr.bf16.mxu0 0
        %1034 = vmatpush1.bf16.xpose.msra.mxu0 %v805
        %1035 = vmatprep.subr.bf16.mxu0 0
        %1036 = vmatpush1.bf16.xpose.msra.mxu0 %v1002
        %1037 = vmatprep.subr.bf16.mxu0 0
        %1038 = vmatpush1.bf16.xpose.msra.mxu0 %v1005
        %1039 = vmatprep.mubr.bf16.mxu0 0
        %1040 = vmatmul.mubr.bf16.gmra.mrb[0].mxu0 %v999
        %v1041 = vpop.f32.mrb[0].mxu0
        %v1042 = vadd.f32 0.0, %v1041
        %v1043 = vpop.f32.mrb[0].mxu0
        %v1044 = vadd.f32 0.0, %v1043
        %v1045 = vpop.f32.mrb[0].mxu0
        %v1046 = vpop.f32.mrb[0].mxu0
        %1047 = vdwg.mxu0
        %v1048 = vadd.f32 %v979, %v1042
        %v1049 = vadd.f32 %v980, %v1044
        %s1050 = scalar_lea.vmem [#allocation5], 12
        %v1051 = vld [vmem:[%s1050] sm:$0x3]
        %v1053 = vunpack.c.l.b16 %v195
        %v1054 = vpack.c.b16 %v984, %v856
        %v1055 = vpack.c.b16 %v1053, %v1053
        %v1057 = vshrl.u32 %v1054, 16
        %v1059 = vrot.slane %v1057, 3
        %v1060 = vshll.u32 %v1054, 16
        %v1062 = vrot.slane %v1060, 4
        %v1063 = vor.u32 %v1059, %v1062
        %v1064 = vsel %vm392, %v866, %v1063
        %v1066 = vshrl.u32 %v1055, 16
        %v1068 = vrot.slane %v1066, 3
        %v1069 = vshll.u32 %v1055, 16
        %v1071 = vrot.slane %v1069, 4
        %v1072 = vor.u32 %v1068, %v1071
        %v1073 = vsel %vm392, %v1063, %v1072
        %v1075 = vsel %vm280, %v1051, 0
        %v1078 = vsel %vm280, %v1064, 0
        %v1081 = vsel %vm280, %v1073, 0
        %1083 = vmatprep.subr.bf16.mxu0 0
        %1084 = vmatpush1.bf16.xpose.msra.mxu0 %v555
        %1085 = vmatprep.subr.bf16.mxu0 0
        %1086 = vmatpush1.bf16.xpose.msra.mxu0 %v558
        %1087 = vmatprep.subr.bf16.mxu0 0
        %1088 = vmatpush1.bf16.xpose.msra.mxu0 %v561
        %1089 = vmatprep.subr.bf16.mxu0 0
        %1090 = vmatpush1.bf16.xpose.msra.mxu0 %v564
        %1091 = vmatprep.subr.bf16.mxu0 0
        %1092 = vmatpush1.bf16.xpose.msra.mxu0 %v567
        %1093 = vmatprep.subr.bf16.mxu0 0
        %1094 = vmatpush1.bf16.xpose.msra.mxu0 %v570
        %1095 = vmatprep.subr.bf16.mxu0 0
        %1096 = vmatpush1.bf16.xpose.msra.mxu0 %v573
        %1097 = vmatprep.subr.bf16.mxu0 0
        %1098 = vmatpush1.bf16.xpose.msra.mxu0 %v576
        %1099 = vmatprep.subr.bf16.mxu0 0
        %1100 = vmatpush1.bf16.xpose.msra.mxu0 %v579
        %1101 = vmatprep.subr.bf16.mxu0 0
        %1102 = vmatpush1.bf16.xpose.msra.mxu0 %v582
        %1103 = vmatprep.subr.bf16.mxu0 0
        %1104 = vmatpush1.bf16.xpose.msra.mxu0 %v585
        %1105 = vmatprep.subr.bf16.mxu0 0
        %1106 = vmatpush1.bf16.xpose.msra.mxu0 %v588
        %1107 = vmatprep.subr.bf16.mxu0 0
        %1108 = vmatpush1.bf16.xpose.msra.mxu0 %v591
        %1109 = vmatprep.subr.bf16.mxu0 0
        %1110 = vmatpush1.bf16.xpose.msra.mxu0 %v881
        %1111 = vmatprep.subr.bf16.mxu0 0
        %1112 = vmatpush1.bf16.xpose.msra.mxu0 %v1078
        %1113 = vmatprep.subr.bf16.mxu0 0
        %1114 = vmatpush1.bf16.xpose.msra.mxu0 %v1081
        %1115 = vmatprep.mubr.bf16.mxu0 0
        %1116 = vmatmul.mubr.bf16.gmra.mrb[0].mxu0 %v1075
        %v1117 = vpop.f32.mrb[0].mxu0
        %v1118 = vadd.f32 0.0, %v1117
        %v1119 = vpop.f32.mrb[0].mxu0
        %v1120 = vadd.f32 0.0, %v1119
        %v1121 = vpop.f32.mrb[0].mxu0
        %v1122 = vpop.f32.mrb[0].mxu0
        %1123 = vdwg.mxu0
        %v1124 = vadd.f32 %v1048, %v1118
        %v1125 = vadd.f32 %v1049, %v1120
        %s1126 = scalar_lea.vmem [#allocation5], 14
        %v1127 = vld [vmem:[%s1126] sm:$0x3]
        %v1128 = vpack.c.b16 %v1053, %v984
        %v1130 = vsel %vm280, %v1127, 0
        %v1133 = vsel %vm280, %v1128, 0
        %1135 = vmatprep.subr.bf16.mxu0 0
        %1136 = vmatpush1.bf16.xpose.msra.mxu0 %v291
        %1137 = vmatprep.subr.bf16.mxu0 0
        %1138 = vmatpush1.bf16.xpose.msra.mxu0 %v294
        %1139 = vmatprep.subr.bf16.mxu0 0
        %1140 = vmatpush1.bf16.xpose.msra.mxu0 %v297
        %1141 = vmatprep.subr.bf16.mxu0 0
        %1142 = vmatpush1.bf16.xpose.msra.mxu0 %v300
        %1143 = vmatprep.subr.bf16.mxu0 0
        %1144 = vmatpush1.bf16.xpose.msra.mxu0 %v303
        %1145 = vmatprep.subr.bf16.mxu0 0
        %1146 = vmatpush1.bf16.xpose.msra.mxu0 %v306
        %1147 = vmatprep.subr.bf16.mxu0 0
        %1148 = vmatpush1.bf16.xpose.msra.mxu0 %v309
        %1149 = vmatprep.subr.bf16.mxu0 0
        %1150 = vmatpush1.bf16.xpose.msra.mxu0 %v312
        %1151 = vmatprep.subr.bf16.mxu0 0
        %1152 = vmatpush1.bf16.xpose.msra.mxu0 %v315
        %1153 = vmatprep.subr.bf16.mxu0 0
        %1154 = vmatpush1.bf16.xpose.msra.mxu0 %v318
        %1155 = vmatprep.subr.bf16.mxu0 0
        %1156 = vmatpush1.bf16.xpose.msra.mxu0 %v321
        %1157 = vmatprep.subr.bf16.mxu0 0
        %1158 = vmatpush1.bf16.xpose.msra.mxu0 %v324
        %1159 = vmatprep.subr.bf16.mxu0 0
        %1160 = vmatpush1.bf16.xpose.msra.mxu0 %v327
        %1161 = vmatprep.subr.bf16.mxu0 0
        %1162 = vmatpush1.bf16.xpose.msra.mxu0 %v330
        %1163 = vmatprep.subr.bf16.mxu0 0
        %1164 = vmatpush1.bf16.xpose.msra.mxu0 %v936
        %1165 = vmatprep.subr.bf16.mxu0 0
        %1166 = vmatpush1.bf16.xpose.msra.mxu0 %v1133
        %1167 = vmatprep.mubr.bf16.mxu0 0
        %1168 = vmatmul.mubr.bf16.gmra.mrb[0].mxu0 %v1130
        %v1169 = vpop.f32.mrb[0].mxu0
        %v1170 = vadd.f32 0.0, %v1169
        %v1171 = vpop.f32.mrb[0].mxu0
        %v1172 = vadd.f32 0.0, %v1171
        %v1173 = vpop.f32.mrb[0].mxu0
        %v1174 = vpop.f32.mrb[0].mxu0
        %1175 = vdwg.mxu0
        %v1176 = vadd.f32 %v1124, %v1170
        %v1177 = vadd.f32 %v1125, %v1172
        %s1178 = scalar_lea.vmem [#allocation5], 16
        %v1179 = vld [vmem:[%s1178] sm:$0x3]
        %v1181 = vunpack.c.l.b16 %v196
        %v1182 = vpack.c.b16 %v1181, %v1181
        %v1183 = vshll.u32 %v1128, 16
        %v1185 = vrot.slane %v1183, 1
        %v1186 = vsel %vm642, %v992, %v1185
        %v1187 = vshrl.u32 %v1128, 16
        %v1189 = vor.u32 %v1187, %v1185
        %v1191 = vshll.u32 %v1182, 16
        %v1193 = vrot.slane %v1191, 1
        %v1194 = vsel %vm642, %v1189, %v1193
        %v1196 = vsel %vm280, %v1179, 0
        %v1199 = vsel %vm280, %v1186, 0
        %v1202 = vsel %vm280, %v1194, 0
        %1204 = vmatprep.subr.bf16.mxu0 0
        %1205 = vmatpush1.bf16.xpose.msra.mxu0 %v769
        %1206 = vmatprep.subr.bf16.mxu0 0
        %1207 = vmatpush1.bf16.xpose.msra.mxu0 %v772
        %1208 = vmatprep.subr.bf16.mxu0 0
        %1209 = vmatpush1.bf16.xpose.msra.mxu0 %v775
        %1210 = vmatprep.subr.bf16.mxu0 0
        %1211 = vmatpush1.bf16.xpose.msra.mxu0 %v778
        %1212 = vmatprep.subr.bf16.mxu0 0
        %1213 = vmatpush1.bf16.xpose.msra.mxu0 %v781
        %1214 = vmatprep.subr.bf16.mxu0 0
        %1215 = vmatpush1.bf16.xpose.msra.mxu0 %v784
        %1216 = vmatprep.subr.bf16.mxu0 0
        %1217 = vmatpush1.bf16.xpose.msra.mxu0 %v787
        %1218 = vmatprep.subr.bf16.mxu0 0
        %1219 = vmatpush1.bf16.xpose.msra.mxu0 %v790
        %1220 = vmatprep.subr.bf16.mxu0 0
        %1221 = vmatpush1.bf16.xpose.msra.mxu0 %v793
        %1222 = vmatprep.subr.bf16.mxu0 0
        %1223 = vmatpush1.bf16.xpose.msra.mxu0 %v796
        %1224 = vmatprep.subr.bf16.mxu0 0
        %1225 = vmatpush1.bf16.xpose.msra.mxu0 %v799
        %1226 = vmatprep.subr.bf16.mxu0 0
        %1227 = vmatpush1.bf16.xpose.msra.mxu0 %v802
        %1228 = vmatprep.subr.bf16.mxu0 0
        %1229 = vmatpush1.bf16.xpose.msra.mxu0 %v805
        %1230 = vmatprep.subr.bf16.mxu0 0
        %1231 = vmatpush1.bf16.xpose.msra.mxu0 %v1002
        %1232 = vmatprep.subr.bf16.mxu0 0
        %1233 = vmatpush1.bf16.xpose.msra.mxu0 %v1199
        %1234 = vmatprep.subr.bf16.mxu0 0
        %1235 = vmatpush1.bf16.xpose.msra.mxu0 %v1202
        %1236 = vmatprep.mubr.bf16.mxu0 0
        %1237 = vmatmul.mubr.bf16.gmra.mrb[0].mxu0 %v1196
        %v1238 = vpop.f32.mrb[0].mxu0
        %v1239 = vadd.f32 0.0, %v1238
        %v1240 = vpop.f32.mrb[0].mxu0
        %v1241 = vadd.f32 0.0, %v1240
        %v1242 = vpop.f32.mrb[0].mxu0
        %v1243 = vpop.f32.mrb[0].mxu0
        %1244 = vdwg.mxu0
        %v1245 = vadd.f32 %v1176, %v1239
        %v1246 = vadd.f32 %v1177, %v1241
        %v1247 = vtanh.pop %v1245
        %v1248 = vtanh.pop %v1246
        %v1251 = vcombine.low %v1247, %v1248
        %1253 = vst [vmem:[%s151] sm:$0xff] %v1251
        %s1254 = sand.u32 %s68, 1
        %s1255 = scalar_lea.sflag [#allocation4], %s1254
        %s1256 = sand.u32 %s68, 1
        %s1257 = smul.addr %s1256, 8
        %s1258 = scalar_lea.vmem [#allocation7], %s1257
        // Predicated region
        $region37: #{netg_forward.5} parent=27 // pred_check
          %p1259 = pneg %p78
        $region38: #{netg_forward.5} parent=27 // pred_check_branch
          %1261 = sbr.rel (%p1259) target = $region40
        $region39: #{netg_forward.5} parent=27 // pred_region
          %s1262 = smul.u32 2, %s18
          %s1264 = ssub.s32 128, 128
          %1265 = vsyncadd %s1255, %s1264
          %s1266 = smul.addr %s1262, 64
          %s1267 = scalar_lea.hbm %s2, %s1266
          %s1269 = sshll.u32 %s1258, 4
          %s1270 = int_to_ptr.vmem [resolvable:$true] %s1269
          %1272 = dma.vmem_to_hbm [thread:$0]  %s1270, 128, %s1267, %s1255
        $region40: #{netg_forward.5} parent=27 // pred_fallthru
          _
      $region28: #{netg_forward.5} parent=5 // pred_fallthru
        _
      %p1273 = scmp.le.s32.totalorder 2, %s13
      // Predicated region
      $region41: #{netg_forward.5} parent=5 // pred_check
        %p1274 = pneg %p1273
      $region42: #{netg_forward.5} parent=5 // pred_check_branch
        %1276 = sbr.rel (%p1274) target = $region44
      $region43: #{netg_forward.5} parent=5 // pred_region
        %s1277 = ssub.s32 %s13, 2
        // Predicated region
        $region45: #{netg_forward.5} parent=43 // pred_check
          %p1278 = pneg %p84
        $region46: #{netg_forward.5} parent=43 // pred_check_branch
          %1280 = sbr.rel (%p1278) target = $region48
        $region47: #{netg_forward.5} parent=43 // pred_region
          %s1281 = sand.u32 %s69, 1
          %s1282 = scalar_lea.sflag [#allocation4], %s1281
          %s1283 = sand.u32 %s69, 1
          %s1284 = smul.addr %s1283, 8
          %s1285 = scalar_lea.vmem [#allocation7], %s1284
          %1286 = dma.done %s1282, 128
        $region48: #{netg_forward.5} parent=43 // pred_fallthru
          _
      $region44: #{netg_forward.5} parent=5 // pred_fallthru
        _
    $region6: #{netg_forward.5} parent=1 // loop_footer
      %s17 = sadd.s32 1, %s13
    $region7: #{netg_forward.5} parent=1 // loop_footer_branch
      %12 = sbr.rel target = $region3
    $region8: #{netg_forward.5} parent=1 // loop_exit
      _
    %1287 = vsyncpa [#allocation3], 1
    %s1288 = scalar_lea.sflag [#allocation3], 1
    %1289 = vsyncpa %s1288, 1
    %1290 = vsyncpa [#allocation6], 1
    %1291 = vsyncpa [#allocation4], 1
    %s1292 = scalar_lea.sflag [#allocation4], 1
    %1293 = vsyncpa %s1292, 1

</llo_original>
